<compile_context>
chip_gen: v7x
topology: tpu7x:2x2x1
jax: 0.10.0
libtpu: 0.0.40
codegen_flags: <defaults>
</compile_context>

<pallas_src>
import numpy as np
import jax
import jax.numpy as jnp
from jax.experimental import pallas as pl
from jax.experimental.pallas import tpu as pltpu


# ---------------------------------------------------------------------------
# Static shapes implied by the module (Linear(1600, 64) forces 1x28x28 input)
# ---------------------------------------------------------------------------
KSZ = 3
H_IN = W_IN = 28
C1_OUT = 32
C2_OUT = 64
HP1 = WP1 = 13          # block-1 pooled output spatial size
HP2 = WP2 = 5           # block-2 pooled output spatial size
R1 = 16                 # per-image row stride, block-1 slabs & output (>=14, mult of 8)
R2 = 8                  # per-image row stride, block-2 slabs & output (>=7,  mult of 8)
FC_HID = 128            # fc1 hidden (64) zero-padded to one full lane width
N_CLASSES = 10


def _round_up(n, m):
    return ((n + m - 1) // m) * m


def _cdiv(a, b):
    return -(-a // b)


def _batch_tiling(b):
    """(images per grid step, padded batch).  >=2 grid steps whenever B>=2 so
    both v7x TensorCores get work; <=16 images/step bounds per-step VMEM."""
    if b < 2:
        return 1, b
    n_steps = max(2, _cdiv(b, 16))
    bt = _cdiv(b, n_steps)
    return bt, bt * n_steps


def _fc_tiling(b):
    n_steps = _cdiv(b, 256)
    bt = _round_up(_cdiv(b, n_steps), 8)
    return bt, bt * n_steps


# ---------------------------------------------------------------------------
# Pallas kernels
# ---------------------------------------------------------------------------
def _conv_relu_pool_kernel(e_ref, o_ref,
                           w0k0_ref, w0k1_ref, w0k2_ref,
                           w1k0_ref, w1k1_ref, w1k2_ref,
                           b_ref, out_ref):
    """Fused 3x3 conv + bias + ReLU + 2x2 max-pool for a tile of images.

    e_ref / o_ref : (bt*R, W*C) bf16 even-/odd-row slabs.  Image b occupies
                    rows [b*R, b*R + valid_rows), zero-padded to R rows.
    w{dx}k{ki}    : (W*C, Wp*Cout) bf16 block-diagonal "column selector"
                    weights for pool corner column dx and kernel row ki.
    b_ref         : (1, Wp*Cout) f32 bias (tiled per pooled column).
    out_ref       : (bt*R, Wp*Cout) bf16.  Pooled row i of image b lands at
                    row b*R + i; trailing rows per image are don't-care pad.
    """
    rows = e_ref.shape[0]
    L = rows - 1                           # rows usable by the offset-1 views
    e = e_ref[...]
    o = o_ref[...]
    e0, e1 = e[:L, :], e[1:rows, :]        # even input rows at offsets 0 / 1
    o0, o1 = o[:L, :], o[1:rows, :]        # odd  input rows at offsets 0 / 1

    w00, w01, w02 = w0k0_ref[...], w0k1_ref[...], w0k2_ref[...]   # dx = 0
    w10, w11, w12 = w1k0_ref[...], w1k1_ref[...], w1k2_ref[...]   # dx = 1

    def conv_rows(p0, p1, p2, wk0, wk1, wk2):
        # One pool-corner row offset: input rows (r, r+1, r+2) contracted
        # against the per-kernel-row block-diagonal weights (f32 accumulate).
        y = jnp.dot(p0, wk0, preferred_element_type=jnp.float32)
        y = y + jnp.dot(p1, wk1, preferred_element_type=jnp.float32)
        y = y + jnp.dot(p2, wk2, preferred_element_type=jnp.float32)
        return y

    # Running max over the 4 pool-window corners (dy, dx).
    y = conv_rows(e0, o0, e1, w00, w01, w02)                      # dy=0, dx=0
    y = jnp.maximum(y, conv_rows(e0, o0, e1, w10, w11, w12))      # dy=0, dx=1
    y = jnp.maximum(y, conv_rows(o0, e1, o1, w00, w01, w02))      # dy=1, dx=0
    y = jnp.maximum(y, conv_rows(o0, e1, o1, w10, w11, w12))      # dy=1, dx=1
    # Shared bias once after the max, then ReLU  (== pool(relu(conv + b))).
    y = jnp.maximum(y + b_ref[...], 0.0)
    out_ref[:L, :] = y.astype(out_ref.dtype)


def _fc_head_kernel(x_ref, w1_ref, b1_ref, w2_ref, b2_ref, o_ref):
    """fc_layer1 -> fc_layer2 -> softmax(dim=1).  No ReLU between the two
    Linear layers (matches the PyTorch module).  Exact softmax division."""
    h = jnp.dot(x_ref[...], w1_ref[...], preferred_element_type=jnp.float32)
    h = h + b1_ref[...]
    logits = jnp.dot(h.astype(w2_ref.dtype), w2_ref[...],
                     preferred_element_type=jnp.float32) + b2_ref[...]
    m = jnp.max(logits, axis=-1, keepdims=True)
    e = jnp.exp(logits - m)
    s = jnp.sum(e, axis=-1, keepdims=True)
    o_ref[...] = (e / s).astype(o_ref.dtype)


# ---------------------------------------------------------------------------
# pallas_call wrappers
# ---------------------------------------------------------------------------
def conv_relu_pool(even2d, odd2d, w_chunks, bias_row, *, rows_per_img, bt):
    rows, wc = even2d.shape
    n_img = rows // rows_per_img
    assert n_img % bt == 0
    blk = bt * rows_per_img
    grid = (n_img // bt,)
    n_out = bias_row.shape[1]

    slab_spec = pl.BlockSpec((blk, wc), lambda i: (i, 0))
    def resident(shape):
        return pl.BlockSpec(shape, lambda i: (0, 0))

    flops = 12 * 2 * (blk - 1) * wc * n_out * grid[0]
    bytes_accessed = (2 * (2 * rows * wc + rows * n_out)          # bf16 slabs + out
                      + 2 * 6 * wc * n_out + 4 * n_out)           # bf16 weights + bias

    return pl.pallas_call(
        _conv_relu_pool_kernel,
        out_shape=jax.ShapeDtypeStruct((rows, n_out), jnp.bfloat16),
        grid=grid,
        in_specs=[slab_spec, slab_spec]
                 + [resident(w.shape) for w in w_chunks]
                 + [resident(bias_row.shape)],
        out_specs=pl.BlockSpec((blk, n_out), lambda i: (i, 0)),
        compiler_params=pltpu.CompilerParams(
            dimension_semantics=("parallel",)),
        cost_estimate=pl.CostEstimate(
            flops=flops, transcendentals=0, bytes_accessed=bytes_accessed),
    )(even2d, odd2d, *w_chunks, bias_row)


def fc_head(x, w1, b1, w2, b2):
    b, d = x.shape
    hid = w1.shape[1]
    n_cls = w2.shape[1]
    bt, b_pad = _fc_tiling(b)
    if b_pad != b:
        x = jnp.pad(x, ((0, b_pad - b), (0, 0)))
    grid = (b_pad // bt,)
    flops = 2 * b_pad * (d * hid + hid * n_cls)
    bytes_accessed = (2 * (b_pad * d + d * hid + hid * n_cls)
                      + 4 * (hid + n_cls + b_pad * n_cls))
    probs = pl.pallas_call(
        _fc_head_kernel,
        out_shape=jax.ShapeDtypeStruct((b_pad, n_cls), jnp.float32),
        grid=grid,
        in_specs=[
            pl.BlockSpec((bt, d), lambda i: (i, 0)),
            pl.BlockSpec((d, hid), lambda i: (0, 0)),     # resident weights
            pl.BlockSpec((1, hid), lambda i: (0, 0)),
            pl.BlockSpec((hid, n_cls), lambda i: (0, 0)),
            pl.BlockSpec((1, n_cls), lambda i: (0, 0)),
        ],
        out_specs=pl.BlockSpec((bt, n_cls), lambda i: (i, 0)),
        compiler_params=pltpu.CompilerParams(
            dimension_semantics=("parallel",)),
        cost_estimate=pl.CostEstimate(
            flops=flops, transcendentals=b_pad * n_cls,
            bytes_accessed=bytes_accessed),
    )(x, w1, b1, w2, b2)
    return probs[:b]


# ---------------------------------------------------------------------------
# Glue (cheap data rearrangement only; no im2col materialization)
# ---------------------------------------------------------------------------
def _row_parity_slabs(x_bhwc, rows_per_img):
    """Split an NHWC activation into even-/odd-row slabs as 2D
    (B*rows_per_img, W*C) bf16 arrays (zero padded to rows_per_img rows/img)."""
    b, _, w, c = x_bhwc.shape

    def slab(start):
        s = x_bhwc[:, start::2, :, :]
        s = s.reshape(b, s.shape[1], w * c)
        s = jnp.pad(s, ((0, 0), (0, rows_per_img - s.shape[1]), (0, 0)))
        return s.reshape(b * rows_per_img, w * c).astype(jnp.bfloat16)

    return slab(0), slab(1)


def conv_features(x_nchw, pp):
    """Both fused conv blocks; returns (B, 1600) bf16 NHWC-flat features."""
    b = x_nchw.shape[0]
    bt, b_pad = _batch_tiling(b)
    x = jnp.transpose(x_nchw, (0, 2, 3, 1))                       # NHWC, Cin=1
    if b_pad != b:
        x = jnp.pad(x, ((0, b_pad - b), (0, 0), (0, 0), (0, 0)))

    # block 1: Conv2d(1, 32, 3) + ReLU + MaxPool2d(2)
    e1, o1 = _row_parity_slabs(x, R1)
    y1 = conv_relu_pool(e1, o1, pp["c1w"], pp["c1b"],
                        rows_per_img=R1, bt=bt)                   # (b_pad*16, 13*32)

    # block 2: Conv2d(32, 64, 3) + ReLU + MaxPool2d(2)
    a1 = y1.reshape(b_pad, R1, WP1 * C1_OUT)[:, :HP1, :]
    a1 = a1.reshape(b_pad, HP1, WP1, C1_OUT)                      # NHWC activation
    e2, o2 = _row_parity_slabs(a1, R2)
    y2 = conv_relu_pool(e2, o2, pp["c2w"], pp["c2b"],
                        rows_per_img=R2, bt=bt)                   # (b_pad*8, 5*64)

    feat = y2.reshape(b_pad, R2, WP2 * C2_OUT)[:, :HP2, :]
    return feat.reshape(b_pad, HP2 * WP2 * C2_OUT)[:b]            # (B, 1600)


def basic_cnn_forward(x_nchw, pp):
    feat = conv_features(x_nchw, pp)
    return fc_head(feat, pp["fc1_w"], pp["fc1_b"], pp["fc2_w"], pp["fc2_b"])


# ---------------------------------------------------------------------------
# One-time host-side weight preparation
# ---------------------------------------------------------------------------
def _make_conv_block_weights(conv_w, conv_b, w_in, wp):
    """Block-diagonal 'column selector' weights for the fused conv+pool kernel.

    Returns ([dx0_ki0, dx0_ki1, dx0_ki2, dx1_ki0, dx1_ki1, dx1_ki2], bias_row).
    chunk[dx][ki] has shape (w_in*Cin, wp*Cout) with
      chunk[col*Cin + c, j*Cout + o] = conv_w[o, c, ki, kj]  where kj = col-2j-dx
    (zero if kj not in [0, 3)).  bias_row is (1, wp*Cout) f32 (bias per pooled
    column).
    """
    co, ci, k, _ = conv_w.shape
    w_np = np.asarray(conv_w, np.float32)
    chunks = []
    for dx in (0, 1):
        for ki in range(k):
            wk = np.zeros((w_in * ci, wp * co), np.float32)
            for j in range(wp):
                for kj in range(k):
                    col = 2 * j + dx + kj
                    wk[col * ci:(col + 1) * ci, j * co:(j + 1) * co] = \
                        w_np[:, :, ki, kj].T
            chunks.append(jnp.asarray(wk, jnp.bfloat16))
    bias_row = jnp.asarray(np.tile(np.asarray(conv_b, np.float32), wp)[None, :])
    return chunks, bias_row


def _nhwc_to_torch_flat_perm():
    # our feature order is (i, j, c); torch's x.view(B, -1) on NCHW is (c, i, j)
    f = np.arange(HP2 * WP2 * C2_OUT)
    return (f % C2_OUT) * (HP2 * WP2) + (f // C2_OUT)


def prepare_params(params):
    c1_chunks, c1b = _make_conv_block_weights(params["conv1_w"],
                                              params["conv1_b"], W_IN, WP1)
    c2_chunks, c2b = _make_conv_block_weights(params["conv2_w"],
                                              params["conv2_b"], WP1, WP2)

    perm = jnp.asarray(_nhwc_to_torch_flat_perm())
    fc1_w = params["fc1_w"][perm]                                  # (1600, 64)
    fc1_w = jnp.pad(fc1_w, ((0, 0), (0, FC_HID - fc1_w.shape[1])))
    fc1_b = jnp.pad(params["fc1_b"].reshape(1, -1),
                    ((0, 0), (0, FC_HID - params["fc1_b"].shape[0])))
    fc2_w = jnp.pad(params["fc2_w"],
                    ((0, FC_HID - params["fc2_w"].shape[0]), (0, 0)))

    return {
        "c1w": tuple(c1_chunks), "c1b": c1b,
        "c2w": tuple(c2_chunks), "c2b": c2b,
        "fc1_w": fc1_w.astype(jnp.bfloat16),
        "fc1_b": fc1_b.astype(jnp.float32),
        "fc2_w": fc2_w.astype(jnp.bfloat16),
        "fc2_b": params["fc2_b"].reshape(1, -1).astype(jnp.float32),
    }


# ---------------------------------------------------------------------------
# Deterministic synthetic parameters (shapes from basic_CNN.__init__)
# ---------------------------------------------------------------------------
def init_params(key):
    ks = jax.random.split(key, 8)

    def u(k, shape, fan_in):
        bound = 1.0 / jnp.sqrt(jnp.float32(fan_in))
        return jax.random.uniform(k, shape, jnp.float32, -bound, bound)

    return {
        "conv1_w": u(ks[0], (32, 1, 3, 3), 1 * 9),
        "conv1_b": u(ks[1], (32,), 1 * 9),
        "conv2_w": u(ks[2], (64, 32, 3, 3), 32 * 9),
        "conv2_b": u(ks[3], (64,), 32 * 9),
        # stored as (in, out); torch Linear weight is (out, in) applied as x @ W.T
        "fc1_w": u(ks[4], (1600, 64), 1600),
        "fc1_b": u(ks[5], (64,), 1600),
        "fc2_w": u(ks[6], (64, 10), 64),
        "fc2_b": u(ks[7], (10,), 64),
    }


# ---------------------------------------------------------------------------
# Pure-JAX f32 reference of the original module (for validation only)
# ---------------------------------------------------------------------------
def reference_forward(x_nchw, params):
    def block(x, w, b):
        y = jax.lax.conv_general_dilated(
            x, w, window_strides=(1, 1), padding="VALID",
            dimension_numbers=("NCHW", "OIHW", "NCHW"))
        y = jax.nn.relu(y + b[None, :, None, None])
        return jax.lax.reduce_window(
            y, -jnp.inf, jax.lax.max, (1, 1, 2, 2), (1, 1, 2, 2), "VALID")

    y = block(x_nchw.astype(jnp.float32), params["conv1_w"], params["conv1_b"])
    y = block(y, params["conv2_w"], params["conv2_b"])
    feat = y.reshape(x_nchw.shape[0], -1)                         # torch NCHW-flat
    h = feat @ params["fc1_w"] + params["fc1_b"]
    logits = h @ params["fc2_w"] + params["fc2_b"]
    return jax.nn.softmax(logits, axis=-1), feat


if __name__ == "__main__":
    key = jax.random.PRNGKey(0)
    pkey, xkey = jax.random.split(key)
    params = init_params(pkey)
    prepped = prepare_params(params)   # one-time host weight prep

    # MNIST-style input: Linear(1600, 64) forces 1x28x28 inputs.
    B = 2
    x = jax.random.normal(xkey, (B, 1, 28, 28), jnp.float32)      # NCHW

    fwd = jax.jit(basic_cnn_forward)
    probs = jax.block_until_ready(fwd(x, prepped))

    assert probs.shape == (B, 10), probs.shape
    row_sums = jnp.sum(probs, axis=1)
    assert bool(jnp.all(jnp.abs(row_sums - 1.0) < 1e-3)), row_sums
    assert bool(jnp.all(probs >= 0.0))

    # Validate the bf16 Pallas path against the f32 XLA reference.
    ref_probs, ref_feat = reference_forward(x, params)
    my_feat = jax.jit(conv_features)(x, prepped).astype(jnp.float32)
    perm = _nhwc_to_torch_flat_perm()
    feat_err = float(jnp.max(jnp.abs(my_feat - ref_feat[:, perm])))
    prob_err = float(jnp.max(jnp.abs(probs - ref_probs)))
    assert feat_err < 0.1, feat_err
    assert prob_err < 3e-2, prob_err

    print("KERNEL_OK")
</pallas_src>

<mosaic_0001>
module attributes {stable_mosaic.version = 11 : i64} {
  func.func @_conv_relu_pool_kernel(%arg0: i32, %arg1: memref<16x28xbf16, #tpu.memory_space<vmem>>, %arg2: memref<16x28xbf16, #tpu.memory_space<vmem>>, %arg3: memref<28x416xbf16, #tpu.memory_space<vmem>>, %arg4: memref<28x416xbf16, #tpu.memory_space<vmem>>, %arg5: memref<28x416xbf16, #tpu.memory_space<vmem>>, %arg6: memref<28x416xbf16, #tpu.memory_space<vmem>>, %arg7: memref<28x416xbf16, #tpu.memory_space<vmem>>, %arg8: memref<28x416xbf16, #tpu.memory_space<vmem>>, %arg9: memref<1x416xf32, #tpu.memory_space<vmem>>, %arg10: memref<16x416xbf16, #tpu.memory_space<vmem>>) attributes {dimension_semantics = [#tpu.dimension_semantics<parallel>], iteration_bounds = array<i64: 2>, scalar_prefetch = 0 : i64, scratch_operands = 0 : i64, tpu.core_type = #tpu.core_type<tc>, window_params = [{transform_indices = @transform_0, window_bounds = array<i64: 16, 28>}, {transform_indices = @transform_1, window_bounds = array<i64: 16, 28>}, {pipeline_mode = #tpu.pipeline_mode<synchronous>, transform_indices = @transform_2, window_bounds = array<i64: 28, 416>}, {pipeline_mode = #tpu.pipeline_mode<synchronous>, transform_indices = @transform_3, window_bounds = array<i64: 28, 416>}, {pipeline_mode = #tpu.pipeline_mode<synchronous>, transform_indices = @transform_4, window_bounds = array<i64: 28, 416>}, {pipeline_mode = #tpu.pipeline_mode<synchronous>, transform_indices = @transform_5, window_bounds = array<i64: 28, 416>}, {pipeline_mode = #tpu.pipeline_mode<synchronous>, transform_indices = @transform_6, window_bounds = array<i64: 28, 416>}, {pipeline_mode = #tpu.pipeline_mode<synchronous>, transform_indices = @transform_7, window_bounds = array<i64: 28, 416>}, {pipeline_mode = #tpu.pipeline_mode<synchronous>, transform_indices = @transform_8, window_bounds = array<i64: 1, 416>}, {transform_indices = @transform_9, window_bounds = array<i64: 16, 416>}]} {
    %c0 = arith.constant 0 : index
    %c0_0 = arith.constant 0 : index
    %0 = vector.load %arg1[%c0, %c0_0] : memref<16x28xbf16, #tpu.memory_space<vmem>>, vector<16x28xbf16>
    %c0_1 = arith.constant 0 : index
    %c0_2 = arith.constant 0 : index
    %1 = vector.load %arg2[%c0_1, %c0_2] : memref<16x28xbf16, #tpu.memory_space<vmem>>, vector<16x28xbf16>
    %2 = vector.extract_strided_slice %0 {offsets = [0, 0], sizes = [15, 28], strides = [1, 1]} : vector<16x28xbf16> to vector<15x28xbf16>
    %3 = vector.extract_strided_slice %0 {offsets = [1, 0], sizes = [15, 28], strides = [1, 1]} : vector<16x28xbf16> to vector<15x28xbf16>
    %4 = vector.extract_strided_slice %1 {offsets = [0, 0], sizes = [15, 28], strides = [1, 1]} : vector<16x28xbf16> to vector<15x28xbf16>
    %5 = vector.extract_strided_slice %1 {offsets = [1, 0], sizes = [15, 28], strides = [1, 1]} : vector<16x28xbf16> to vector<15x28xbf16>
    %c0_3 = arith.constant 0 : index
    %c0_4 = arith.constant 0 : index
    %6 = vector.load %arg3[%c0_3, %c0_4] : memref<28x416xbf16, #tpu.memory_space<vmem>>, vector<28x416xbf16>
    %c0_5 = arith.constant 0 : index
    %c0_6 = arith.constant 0 : index
    %7 = vector.load %arg4[%c0_5, %c0_6] : memref<28x416xbf16, #tpu.memory_space<vmem>>, vector<28x416xbf16>
    %c0_7 = arith.constant 0 : index
    %c0_8 = arith.constant 0 : index
    %8 = vector.load %arg5[%c0_7, %c0_8] : memref<28x416xbf16, #tpu.memory_space<vmem>>, vector<28x416xbf16>
    %c0_9 = arith.constant 0 : index
    %c0_10 = arith.constant 0 : index
    %9 = vector.load %arg6[%c0_9, %c0_10] : memref<28x416xbf16, #tpu.memory_space<vmem>>, vector<28x416xbf16>
    %c0_11 = arith.constant 0 : index
    %c0_12 = arith.constant 0 : index
    %10 = vector.load %arg7[%c0_11, %c0_12] : memref<28x416xbf16, #tpu.memory_space<vmem>>, vector<28x416xbf16>
    %c0_13 = arith.constant 0 : index
    %c0_14 = arith.constant 0 : index
    %11 = vector.load %arg8[%c0_13, %c0_14] : memref<28x416xbf16, #tpu.memory_space<vmem>>, vector<28x416xbf16>
    %cst = arith.constant dense<0.000000e+00> : vector<15x416xf32>
    %12 = tpu.matmul %2, %6, %cst {dimension_numbers = #tpu.dot_dimension_numbers<[1], [0], [0], [1], [0, 0, 1, 1], [], []>} : vector<15x28xbf16>, vector<28x416xbf16>, vector<15x416xf32> -> vector<15x416xf32>
    %cst_15 = arith.constant dense<0.000000e+00> : vector<15x416xf32>
    %13 = tpu.matmul %4, %7, %cst_15 {dimension_numbers = #tpu.dot_dimension_numbers<[1], [0], [0], [1], [0, 0, 1, 1], [], []>} : vector<15x28xbf16>, vector<28x416xbf16>, vector<15x416xf32> -> vector<15x416xf32>
    %14 = arith.addf %12, %13 : vector<15x416xf32>
    %cst_16 = arith.constant dense<0.000000e+00> : vector<15x416xf32>
    %15 = tpu.matmul %3, %8, %cst_16 {dimension_numbers = #tpu.dot_dimension_numbers<[1], [0], [0], [1], [0, 0, 1, 1], [], []>} : vector<15x28xbf16>, vector<28x416xbf16>, vector<15x416xf32> -> vector<15x416xf32>
    %16 = arith.addf %14, %15 : vector<15x416xf32>
    %cst_17 = arith.constant dense<0.000000e+00> : vector<15x416xf32>
    %17 = tpu.matmul %2, %9, %cst_17 {dimension_numbers = #tpu.dot_dimension_numbers<[1], [0], [0], [1], [0, 0, 1, 1], [], []>} : vector<15x28xbf16>, vector<28x416xbf16>, vector<15x416xf32> -> vector<15x416xf32>
    %cst_18 = arith.constant dense<0.000000e+00> : vector<15x416xf32>
    %18 = tpu.matmul %4, %10, %cst_18 {dimension_numbers = #tpu.dot_dimension_numbers<[1], [0], [0], [1], [0, 0, 1, 1], [], []>} : vector<15x28xbf16>, vector<28x416xbf16>, vector<15x416xf32> -> vector<15x416xf32>
    %19 = arith.addf %17, %18 : vector<15x416xf32>
    %cst_19 = arith.constant dense<0.000000e+00> : vector<15x416xf32>
    %20 = tpu.matmul %3, %11, %cst_19 {dimension_numbers = #tpu.dot_dimension_numbers<[1], [0], [0], [1], [0, 0, 1, 1], [], []>} : vector<15x28xbf16>, vector<28x416xbf16>, vector<15x416xf32> -> vector<15x416xf32>
    %21 = arith.addf %19, %20 : vector<15x416xf32>
    %22 = arith.maximumf %16, %21 : vector<15x416xf32>
    %cst_20 = arith.constant dense<0.000000e+00> : vector<15x416xf32>
    %23 = tpu.matmul %4, %6, %cst_20 {dimension_numbers = #tpu.dot_dimension_numbers<[1], [0], [0], [1], [0, 0, 1, 1], [], []>} : vector<15x28xbf16>, vector<28x416xbf16>, vector<15x416xf32> -> vector<15x416xf32>
    %cst_21 = arith.constant dense<0.000000e+00> : vector<15x416xf32>
    %24 = tpu.matmul %3, %7, %cst_21 {dimension_numbers = #tpu.dot_dimension_numbers<[1], [0], [0], [1], [0, 0, 1, 1], [], []>} : vector<15x28xbf16>, vector<28x416xbf16>, vector<15x416xf32> -> vector<15x416xf32>
    %25 = arith.addf %23, %24 : vector<15x416xf32>
    %cst_22 = arith.constant dense<0.000000e+00> : vector<15x416xf32>
    %26 = tpu.matmul %5, %8, %cst_22 {dimension_numbers = #tpu.dot_dimension_numbers<[1], [0], [0], [1], [0, 0, 1, 1], [], []>} : vector<15x28xbf16>, vector<28x416xbf16>, vector<15x416xf32> -> vector<15x416xf32>
    %27 = arith.addf %25, %26 : vector<15x416xf32>
    %28 = arith.maximumf %22, %27 : vector<15x416xf32>
    %cst_23 = arith.constant dense<0.000000e+00> : vector<15x416xf32>
    %29 = tpu.matmul %4, %9, %cst_23 {dimension_numbers = #tpu.dot_dimension_numbers<[1], [0], [0], [1], [0, 0, 1, 1], [], []>} : vector<15x28xbf16>, vector<28x416xbf16>, vector<15x416xf32> -> vector<15x416xf32>
    %cst_24 = arith.constant dense<0.000000e+00> : vector<15x416xf32>
    %30 = tpu.matmul %3, %10, %cst_24 {dimension_numbers = #tpu.dot_dimension_numbers<[1], [0], [0], [1], [0, 0, 1, 1], [], []>} : vector<15x28xbf16>, vector<28x416xbf16>, vector<15x416xf32> -> vector<15x416xf32>
    %31 = arith.addf %29, %30 : vector<15x416xf32>
    %cst_25 = arith.constant dense<0.000000e+00> : vector<15x416xf32>
    %32 = tpu.matmul %5, %11, %cst_25 {dimension_numbers = #tpu.dot_dimension_numbers<[1], [0], [0], [1], [0, 0, 1, 1], [], []>} : vector<15x28xbf16>, vector<28x416xbf16>, vector<15x416xf32> -> vector<15x416xf32>
    %33 = arith.addf %31, %32 : vector<15x416xf32>
    %34 = arith.maximumf %28, %33 : vector<15x416xf32>
    %c0_26 = arith.constant 0 : index
    %c0_27 = arith.constant 0 : index
    %35 = vector.load %arg9[%c0_26, %c0_27] : memref<1x416xf32, #tpu.memory_space<vmem>>, vector<1x416xf32>
    %36 = vector.broadcast %35 : vector<1x416xf32> to vector<15x416xf32>
    %37 = arith.addf %34, %36 : vector<15x416xf32>
    %cst_28 = arith.constant 0.000000e+00 : f32
    %38 = vector.broadcast %cst_28 : f32 to vector<15x416xf32>
    %39 = arith.maximumf %37, %38 : vector<15x416xf32>
    %40 = arith.truncf %39 : vector<15x416xf32> to vector<15x416xbf16>
    %c0_29 = arith.constant 0 : index
    %c0_30 = arith.constant 0 : index
    %41 = vector.load %arg10[%c0_29, %c0_30] : memref<16x416xbf16, #tpu.memory_space<vmem>>, vector<15x416xbf16>
    tpu.vector_store %arg10[%c0_29, %c0_30], %40 {strides = array<i32>} : memref<16x416xbf16, #tpu.memory_space<vmem>>, vector<15x416xbf16>,
    return
  }
  func.func @transform_0(%arg0: i32) -> (i32, i32) {
    %c0_i32 = arith.constant 0 : i32
    %c0_i32_0 = arith.constant 0 : i32
    return %arg0, %c0_i32 : i32, i32
  }
  func.func @transform_1(%arg0: i32) -> (i32, i32) {
    %c0_i32 = arith.constant 0 : i32
    %c0_i32_0 = arith.constant 0 : i32
    return %arg0, %c0_i32 : i32, i32
  }
  func.func @transform_2(%arg0: i32) -> (i32, i32) {
    %c0_i32 = arith.constant 0 : i32
    %c0_i32_0 = arith.constant 0 : i32
    %c0_i32_1 = arith.constant 0 : i32
    return %c0_i32, %c0_i32_0 : i32, i32
  }
  func.func @transform_3(%arg0: i32) -> (i32, i32) {
    %c0_i32 = arith.constant 0 : i32
    %c0_i32_0 = arith.constant 0 : i32
    %c0_i32_1 = arith.constant 0 : i32
    return %c0_i32, %c0_i32_0 : i32, i32
  }
  func.func @transform_4(%arg0: i32) -> (i32, i32) {
    %c0_i32 = arith.constant 0 : i32
    %c0_i32_0 = arith.constant 0 : i32
    %c0_i32_1 = arith.constant 0 : i32
    return %c0_i32, %c0_i32_0 : i32, i32
  }
  func.func @transform_5(%arg0: i32) -> (i32, i32) {
    %c0_i32 = arith.constant 0 : i32
    %c0_i32_0 = arith.constant 0 : i32
    %c0_i32_1 = arith.constant 0 : i32
    return %c0_i32, %c0_i32_0 : i32, i32
  }
  func.func @transform_6(%arg0: i32) -> (i32, i32) {
    %c0_i32 = arith.constant 0 : i32
    %c0_i32_0 = arith.constant 0 : i32
    %c0_i32_1 = arith.constant 0 : i32
    return %c0_i32, %c0_i32_0 : i32, i32
  }
  func.func @transform_7(%arg0: i32) -> (i32, i32) {
    %c0_i32 = arith.constant 0 : i32
    %c0_i32_0 = arith.constant 0 : i32
    %c0_i32_1 = arith.constant 0 : i32
    return %c0_i32, %c0_i32_0 : i32, i32
  }
  func.func @transform_8(%arg0: i32) -> (i32, i32) {
    %c0_i32 = arith.constant 0 : i32
    %c0_i32_0 = arith.constant 0 : i32
    %c0_i32_1 = arith.constant 0 : i32
    return %c0_i32, %c0_i32_0 : i32, i32
  }
  func.func @transform_9(%arg0: i32) -> (i32, i32) {
    %c0_i32 = arith.constant 0 : i32
    %c0_i32_0 = arith.constant 0 : i32
    return %arg0, %c0_i32 : i32, i32
  }
}

module attributes {stable_mosaic.version = 11 : i64} {
  func.func @_conv_relu_pool_kernel(%arg0: i32, %arg1: memref<8x416xbf16, #tpu.memory_space<vmem>>, %arg2: memref<8x416xbf16, #tpu.memory_space<vmem>>, %arg3: memref<416x320xbf16, #tpu.memory_space<vmem>>, %arg4: memref<416x320xbf16, #tpu.memory_space<vmem>>, %arg5: memref<416x320xbf16, #tpu.memory_space<vmem>>, %arg6: memref<416x320xbf16, #tpu.memory_space<vmem>>, %arg7: memref<416x320xbf16, #tpu.memory_space<vmem>>, %arg8: memref<416x320xbf16, #tpu.memory_space<vmem>>, %arg9: memref<1x320xf32, #tpu.memory_space<vmem>>, %arg10: memref<8x320xbf16, #tpu.memory_space<vmem>>) attributes {dimension_semantics = [#tpu.dimension_semantics<parallel>], iteration_bounds = array<i64: 2>, scalar_prefetch = 0 : i64, scratch_operands = 0 : i64, tpu.core_type = #tpu.core_type<tc>, window_params = [{transform_indices = @transform_0, window_bounds = array<i64: 8, 416>}, {transform_indices = @transform_1, window_bounds = array<i64: 8, 416>}, {pipeline_mode = #tpu.pipeline_mode<synchronous>, transform_indices = @transform_2, window_bounds = array<i64: 416, 320>}, {pipeline_mode = #tpu.pipeline_mode<synchronous>, transform_indices = @transform_3, window_bounds = array<i64: 416, 320>}, {pipeline_mode = #tpu.pipeline_mode<synchronous>, transform_indices = @transform_4, window_bounds = array<i64: 416, 320>}, {pipeline_mode = #tpu.pipeline_mode<synchronous>, transform_indices = @transform_5, window_bounds = array<i64: 416, 320>}, {pipeline_mode = #tpu.pipeline_mode<synchronous>, transform_indices = @transform_6, window_bounds = array<i64: 416, 320>}, {pipeline_mode = #tpu.pipeline_mode<synchronous>, transform_indices = @transform_7, window_bounds = array<i64: 416, 320>}, {pipeline_mode = #tpu.pipeline_mode<synchronous>, transform_indices = @transform_8, window_bounds = array<i64: 1, 320>}, {transform_indices = @transform_9, window_bounds = array<i64: 8, 320>}]} {
    %c0 = arith.constant 0 : index
    %c0_0 = arith.constant 0 : index
    %0 = vector.load %arg1[%c0, %c0_0] : memref<8x416xbf16, #tpu.memory_space<vmem>>, vector<8x416xbf16>
    %c0_1 = arith.constant 0 : index
    %c0_2 = arith.constant 0 : index
    %1 = vector.load %arg2[%c0_1, %c0_2] : memref<8x416xbf16, #tpu.memory_space<vmem>>, vector<8x416xbf16>
    %2 = vector.extract_strided_slice %0 {offsets = [0, 0], sizes = [7, 416], strides = [1, 1]} : vector<8x416xbf16> to vector<7x416xbf16>
    %3 = vector.extract_strided_slice %0 {offsets = [1, 0], sizes = [7, 416], strides = [1, 1]} : vector<8x416xbf16> to vector<7x416xbf16>
    %4 = vector.extract_strided_slice %1 {offsets = [0, 0], sizes = [7, 416], strides = [1, 1]} : vector<8x416xbf16> to vector<7x416xbf16>
    %5 = vector.extract_strided_slice %1 {offsets = [1, 0], sizes = [7, 416], strides = [1, 1]} : vector<8x416xbf16> to vector<7x416xbf16>
    %c0_3 = arith.constant 0 : index
    %c0_4 = arith.constant 0 : index
    %6 = vector.load %arg3[%c0_3, %c0_4] : memref<416x320xbf16, #tpu.memory_space<vmem>>, vector<416x320xbf16>
    %c0_5 = arith.constant 0 : index
    %c0_6 = arith.constant 0 : index
    %7 = vector.load %arg4[%c0_5, %c0_6] : memref<416x320xbf16, #tpu.memory_space<vmem>>, vector<416x320xbf16>
    %c0_7 = arith.constant 0 : index
    %c0_8 = arith.constant 0 : index
    %8 = vector.load %arg5[%c0_7, %c0_8] : memref<416x320xbf16, #tpu.memory_space<vmem>>, vector<416x320xbf16>
    %c0_9 = arith.constant 0 : index
    %c0_10 = arith.constant 0 : index
    %9 = vector.load %arg6[%c0_9, %c0_10] : memref<416x320xbf16, #tpu.memory_space<vmem>>, vector<416x320xbf16>
    %c0_11 = arith.constant 0 : index
    %c0_12 = arith.constant 0 : index
    %10 = vector.load %arg7[%c0_11, %c0_12] : memref<416x320xbf16, #tpu.memory_space<vmem>>, vector<416x320xbf16>
    %c0_13 = arith.constant 0 : index
    %c0_14 = arith.constant 0 : index
    %11 = vector.load %arg8[%c0_13, %c0_14] : memref<416x320xbf16, #tpu.memory_space<vmem>>, vector<416x320xbf16>
    %cst = arith.constant dense<0.000000e+00> : vector<7x320xf32>
    %12 = tpu.matmul %2, %6, %cst {dimension_numbers = #tpu.dot_dimension_numbers<[1], [0], [0], [1], [0, 0, 1, 1], [], []>} : vector<7x416xbf16>, vector<416x320xbf16>, vector<7x320xf32> -> vector<7x320xf32>
    %cst_15 = arith.constant dense<0.000000e+00> : vector<7x320xf32>
    %13 = tpu.matmul %4, %7, %cst_15 {dimension_numbers = #tpu.dot_dimension_numbers<[1], [0], [0], [1], [0, 0, 1, 1], [], []>} : vector<7x416xbf16>, vector<416x320xbf16>, vector<7x320xf32> -> vector<7x320xf32>
    %14 = arith.addf %12, %13 : vector<7x320xf32>
    %cst_16 = arith.constant dense<0.000000e+00> : vector<7x320xf32>
    %15 = tpu.matmul %3, %8, %cst_16 {dimension_numbers = #tpu.dot_dimension_numbers<[1], [0], [0], [1], [0, 0, 1, 1], [], []>} : vector<7x416xbf16>, vector<416x320xbf16>, vector<7x320xf32> -> vector<7x320xf32>
    %16 = arith.addf %14, %15 : vector<7x320xf32>
    %cst_17 = arith.constant dense<0.000000e+00> : vector<7x320xf32>
    %17 = tpu.matmul %2, %9, %cst_17 {dimension_numbers = #tpu.dot_dimension_numbers<[1], [0], [0], [1], [0, 0, 1, 1], [], []>} : vector<7x416xbf16>, vector<416x320xbf16>, vector<7x320xf32> -> vector<7x320xf32>
    %cst_18 = arith.constant dense<0.000000e+00> : vector<7x320xf32>
    %18 = tpu.matmul %4, %10, %cst_18 {dimension_numbers = #tpu.dot_dimension_numbers<[1], [0], [0], [1], [0, 0, 1, 1], [], []>} : vector<7x416xbf16>, vector<416x320xbf16>, vector<7x320xf32> -> vector<7x320xf32>
    %19 = arith.addf %17, %18 : vector<7x320xf32>
    %cst_19 = arith.constant dense<0.000000e+00> : vector<7x320xf32>
    %20 = tpu.matmul %3, %11, %cst_19 {dimension_numbers = #tpu.dot_dimension_numbers<[1], [0], [0], [1], [0, 0, 1, 1], [], []>} : vector<7x416xbf16>, vector<416x320xbf16>, vector<7x320xf32> -> vector<7x320xf32>
    %21 = arith.addf %19, %20 : vector<7x320xf32>
    %22 = arith.maximumf %16, %21 : vector<7x320xf32>
    %cst_20 = arith.constant dense<0.000000e+00> : vector<7x320xf32>
    %23 = tpu.matmul %4, %6, %cst_20 {dimension_numbers = #tpu.dot_dimension_numbers<[1], [0], [0], [1], [0, 0, 1, 1], [], []>} : vector<7x416xbf16>, vector<416x320xbf16>, vector<7x320xf32> -> vector<7x320xf32>
    %cst_21 = arith.constant dense<0.000000e+00> : vector<7x320xf32>
    %24 = tpu.matmul %3, %7, %cst_21 {dimension_numbers = #tpu.dot_dimension_numbers<[1], [0], [0], [1], [0, 0, 1, 1], [], []>} : vector<7x416xbf16>, vector<416x320xbf16>, vector<7x320xf32> -> vector<7x320xf32>
    %25 = arith.addf %23, %24 : vector<7x320xf32>
    %cst_22 = arith.constant dense<0.000000e+00> : vector<7x320xf32>
    %26 = tpu.matmul %5, %8, %cst_22 {dimension_numbers = #tpu.dot_dimension_numbers<[1], [0], [0], [1], [0, 0, 1, 1], [], []>} : vector<7x416xbf16>, vector<416x320xbf16>, vector<7x320xf32> -> vector<7x320xf32>
    %27 = arith.addf %25, %26 : vector<7x320xf32>
    %28 = arith.maximumf %22, %27 : vector<7x320xf32>
    %cst_23 = arith.constant dense<0.000000e+00> : vector<7x320xf32>
    %29 = tpu.matmul %4, %9, %cst_23 {dimension_numbers = #tpu.dot_dimension_numbers<[1], [0], [0], [1], [0, 0, 1, 1], [], []>} : vector<7x416xbf16>, vector<416x320xbf16>, vector<7x320xf32> -> vector<7x320xf32>
    %cst_24 = arith.constant dense<0.000000e+00> : vector<7x320xf32>
    %30 = tpu.matmul %3, %10, %cst_24 {dimension_numbers = #tpu.dot_dimension_numbers<[1], [0], [0], [1], [0, 0, 1, 1], [], []>} : vector<7x416xbf16>, vector<416x320xbf16>, vector<7x320xf32> -> vector<7x320xf32>
    %31 = arith.addf %29, %30 : vector<7x320xf32>
    %cst_25 = arith.constant dense<0.000000e+00> : vector<7x320xf32>
    %32 = tpu.matmul %5, %11, %cst_25 {dimension_numbers = #tpu.dot_dimension_numbers<[1], [0], [0], [1], [0, 0, 1, 1], [], []>} : vector<7x416xbf16>, vector<416x320xbf16>, vector<7x320xf32> -> vector<7x320xf32>
    %33 = arith.addf %31, %32 : vector<7x320xf32>
    %34 = arith.maximumf %28, %33 : vector<7x320xf32>
    %c0_26 = arith.constant 0 : index
    %c0_27 = arith.constant 0 : index
    %35 = vector.load %arg9[%c0_26, %c0_27] : memref<1x320xf32, #tpu.memory_space<vmem>>, vector<1x320xf32>
    %36 = vector.broadcast %35 : vector<1x320xf32> to vector<7x320xf32>
    %37 = arith.addf %34, %36 : vector<7x320xf32>
    %cst_28 = arith.constant 0.000000e+00 : f32
    %38 = vector.broadcast %cst_28 : f32 to vector<7x320xf32>
    %39 = arith.maximumf %37, %38 : vector<7x320xf32>
    %40 = arith.truncf %39 : vector<7x320xf32> to vector<7x320xbf16>
    %c0_29 = arith.constant 0 : index
    %c0_30 = arith.constant 0 : index
    %41 = vector.load %arg10[%c0_29, %c0_30] : memref<8x320xbf16, #tpu.memory_space<vmem>>, vector<7x320xbf16>
    tpu.vector_store %arg10[%c0_29, %c0_30], %40 {strides = array<i32>} : memref<8x320xbf16, #tpu.memory_space<vmem>>, vector<7x320xbf16>,
    return
  }
  func.func @transform_0(%arg0: i32) -> (i32, i32) {
    %c0_i32 = arith.constant 0 : i32
    %c0_i32_0 = arith.constant 0 : i32
    return %arg0, %c0_i32 : i32, i32
  }
  func.func @transform_1(%arg0: i32) -> (i32, i32) {
    %c0_i32 = arith.constant 0 : i32
    %c0_i32_0 = arith.constant 0 : i32
    return %arg0, %c0_i32 : i32, i32
  }
  func.func @transform_2(%arg0: i32) -> (i32, i32) {
    %c0_i32 = arith.constant 0 : i32
    %c0_i32_0 = arith.constant 0 : i32
    %c0_i32_1 = arith.constant 0 : i32
    return %c0_i32, %c0_i32_0 : i32, i32
  }
  func.func @transform_3(%arg0: i32) -> (i32, i32) {
    %c0_i32 = arith.constant 0 : i32
    %c0_i32_0 = arith.constant 0 : i32
    %c0_i32_1 = arith.constant 0 : i32
    return %c0_i32, %c0_i32_0 : i32, i32
  }
  func.func @transform_4(%arg0: i32) -> (i32, i32) {
    %c0_i32 = arith.constant 0 : i32
    %c0_i32_0 = arith.constant 0 : i32
    %c0_i32_1 = arith.constant 0 : i32
    return %c0_i32, %c0_i32_0 : i32, i32
  }
  func.func @transform_5(%arg0: i32) -> (i32, i32) {
    %c0_i32 = arith.constant 0 : i32
    %c0_i32_0 = arith.constant 0 : i32
    %c0_i32_1 = arith.constant 0 : i32
    return %c0_i32, %c0_i32_0 : i32, i32
  }
  func.func @transform_6(%arg0: i32) -> (i32, i32) {
    %c0_i32 = arith.constant 0 : i32
    %c0_i32_0 = arith.constant 0 : i32
    %c0_i32_1 = arith.constant 0 : i32
    return %c0_i32, %c0_i32_0 : i32, i32
  }
  func.func @transform_7(%arg0: i32) -> (i32, i32) {
    %c0_i32 = arith.constant 0 : i32
    %c0_i32_0 = arith.constant 0 : i32
    %c0_i32_1 = arith.constant 0 : i32
    return %c0_i32, %c0_i32_0 : i32, i32
  }
  func.func @transform_8(%arg0: i32) -> (i32, i32) {
    %c0_i32 = arith.constant 0 : i32
    %c0_i32_0 = arith.constant 0 : i32
    %c0_i32_1 = arith.constant 0 : i32
    return %c0_i32, %c0_i32_0 : i32, i32
  }
  func.func @transform_9(%arg0: i32) -> (i32, i32) {
    %c0_i32 = arith.constant 0 : i32
    %c0_i32_0 = arith.constant 0 : i32
    return %arg0, %c0_i32 : i32, i32
  }
}

module attributes {stable_mosaic.version = 11 : i64} {
  func.func @_fc_head_kernel(%arg0: i32, %arg1: memref<8x1600xbf16, #tpu.memory_space<vmem>>, %arg2: memref<1600x128xbf16, #tpu.memory_space<vmem>>, %arg3: memref<1x128xf32, #tpu.memory_space<vmem>>, %arg4: memref<128x10xbf16, #tpu.memory_space<vmem>>, %arg5: memref<1x10xf32, #tpu.memory_space<vmem>>, %arg6: memref<8x10xf32, #tpu.memory_space<vmem>>) attributes {dimension_semantics = [#tpu.dimension_semantics<parallel>], iteration_bounds = array<i64: 1>, scalar_prefetch = 0 : i64, scratch_operands = 0 : i64, tpu.core_type = #tpu.core_type<tc>, window_params = [{transform_indices = @transform_0, window_bounds = array<i64: 8, 1600>}, {pipeline_mode = #tpu.pipeline_mode<synchronous>, transform_indices = @transform_1, window_bounds = array<i64: 1600, 128>}, {pipeline_mode = #tpu.pipeline_mode<synchronous>, transform_indices = @transform_2, window_bounds = array<i64: 1, 128>}, {pipeline_mode = #tpu.pipeline_mode<synchronous>, transform_indices = @transform_3, window_bounds = array<i64: 128, 10>}, {pipeline_mode = #tpu.pipeline_mode<synchronous>, transform_indices = @transform_4, window_bounds = array<i64: 1, 10>}, {transform_indices = @transform_5, window_bounds = array<i64: 8, 10>}]} {
    %c0 = arith.constant 0 : index
    %c0_0 = arith.constant 0 : index
    %0 = vector.load %arg1[%c0, %c0_0] : memref<8x1600xbf16, #tpu.memory_space<vmem>>, vector<8x1600xbf16>
    %c0_1 = arith.constant 0 : index
    %c0_2 = arith.constant 0 : index
    %1 = vector.load %arg2[%c0_1, %c0_2] : memref<1600x128xbf16, #tpu.memory_space<vmem>>, vector<1600x128xbf16>
    %cst = arith.constant dense<0.000000e+00> : vector<8x128xf32>
    %2 = tpu.matmul %0, %1, %cst {dimension_numbers = #tpu.dot_dimension_numbers<[1], [0], [0], [1], [0, 0, 1, 1], [], []>} : vector<8x1600xbf16>, vector<1600x128xbf16>, vector<8x128xf32> -> vector<8x128xf32>
    %c0_3 = arith.constant 0 : index
    %c0_4 = arith.constant 0 : index
    %3 = vector.load %arg3[%c0_3, %c0_4] : memref<1x128xf32, #tpu.memory_space<vmem>>, vector<1x128xf32>
    %4 = vector.broadcast %3 : vector<1x128xf32> to vector<8x128xf32>
    %5 = arith.addf %2, %4 : vector<8x128xf32>
    %6 = arith.truncf %5 : vector<8x128xf32> to vector<8x128xbf16>
    %c0_5 = arith.constant 0 : index
    %c0_6 = arith.constant 0 : index
    %7 = vector.load %arg4[%c0_5, %c0_6] : memref<128x10xbf16, #tpu.memory_space<vmem>>, vector<128x10xbf16>
    %cst_7 = arith.constant dense<0.000000e+00> : vector<8x10xf32>
    %8 = tpu.matmul %6, %7, %cst_7 {dimension_numbers = #tpu.dot_dimension_numbers<[1], [0], [0], [1], [0, 0, 1, 1], [], []>} : vector<8x128xbf16>, vector<128x10xbf16>, vector<8x10xf32> -> vector<8x10xf32>
    %c0_8 = arith.constant 0 : index
    %c0_9 = arith.constant 0 : index
    %9 = vector.load %arg5[%c0_8, %c0_9] : memref<1x10xf32, #tpu.memory_space<vmem>>, vector<1x10xf32>
    %10 = vector.broadcast %9 : vector<1x10xf32> to vector<8x10xf32>
    %11 = arith.addf %8, %10 : vector<8x10xf32>
    %cst_10 = arith.constant dense<0xFF800000> : vector<8xf32>
    %12 = vector.multi_reduction <maximumf>, %11, %cst_10 [1] : vector<8x10xf32> to vector<8xf32>
    %13 = vector.shape_cast %12 : vector<8xf32> to vector<8x1xf32>
    %14 = vector.broadcast %13 : vector<8x1xf32> to vector<8x10xf32>
    %15 = arith.subf %11, %14 : vector<8x10xf32>
    %16 = math.exp %15 : vector<8x10xf32>
    %cst_11 = arith.constant dense<0.000000e+00> : vector<8xf32>
    %17 = vector.multi_reduction <add>, %16, %cst_11 [1] : vector<8x10xf32> to vector<8xf32>
    %18 = vector.shape_cast %17 : vector<8xf32> to vector<8x1xf32>
    %19 = vector.broadcast %18 : vector<8x1xf32> to vector<8x10xf32>
    %20 = arith.divf %16, %19 : vector<8x10xf32>
    %c0_12 = arith.constant 0 : index
    %c0_13 = arith.constant 0 : index
    %21 = vector.load %arg6[%c0_12, %c0_13] : memref<8x10xf32, #tpu.memory_space<vmem>>, vector<8x10xf32>
    tpu.vector_store %arg6[%c0_12, %c0_13], %20 {strides = array<i32>} : memref<8x10xf32, #tpu.memory_space<vmem>>, vector<8x10xf32>,
    return
  }
  func.func @transform_0(%arg0: i32) -> (i32, i32) {
    %c0_i32 = arith.constant 0 : i32
    %c0_i32_0 = arith.constant 0 : i32
    return %arg0, %c0_i32 : i32, i32
  }
  func.func @transform_1(%arg0: i32) -> (i32, i32) {
    %c0_i32 = arith.constant 0 : i32
    %c0_i32_0 = arith.constant 0 : i32
    %c0_i32_1 = arith.constant 0 : i32
    return %c0_i32, %c0_i32_0 : i32, i32
  }
  func.func @transform_2(%arg0: i32) -> (i32, i32) {
    %c0_i32 = arith.constant 0 : i32
    %c0_i32_0 = arith.constant 0 : i32
    %c0_i32_1 = arith.constant 0 : i32
    return %c0_i32, %c0_i32_0 : i32, i32
  }
  func.func @transform_3(%arg0: i32) -> (i32, i32) {
    %c0_i32 = arith.constant 0 : i32
    %c0_i32_0 = arith.constant 0 : i32
    %c0_i32_1 = arith.constant 0 : i32
    return %c0_i32, %c0_i32_0 : i32, i32
  }
  func.func @transform_4(%arg0: i32) -> (i32, i32) {
    %c0_i32 = arith.constant 0 : i32
    %c0_i32_0 = arith.constant 0 : i32
    %c0_i32_1 = arith.constant 0 : i32
    return %c0_i32, %c0_i32_0 : i32, i32
  }
  func.func @transform_5(%arg0: i32) -> (i32, i32) {
    %c0_i32 = arith.constant 0 : i32
    %c0_i32_0 = arith.constant 0 : i32
    return %arg0, %c0_i32 : i32, i32
  }
}

</mosaic_0001>

<llo_original>
// kernel: basic_cnn_forward.5
$region0: #{basic_cnn_forward.5}
  #allocation0 [shape = 'u32[]', space=smem, size = 0x4, offset = 0x4, fixed_abs, tag = 'smem constant byte address 0x4 - core index']
  #allocation1 [shape = 'u32[144,128]{1,0:T(1,128)}', space=vmem, size = 0x12000, scoped, tag = 'internal scratch']
  %s0 = inlined_call_operand.vmem [shape: bf16[8,1600], index: 0, kind: input, shape index: {}]
  %s1 = inlined_call_operand.vmem [shape: bf16[1600,128], index: 1, kind: input, shape index: {}]
  %s2 = inlined_call_operand.vmem [shape: f32[1,128], index: 2, kind: input, shape index: {}]
  %s3 = inlined_call_operand.vmem [shape: bf16[128,10], index: 3, kind: input, shape index: {}]
  %s4 = inlined_call_operand.vmem [shape: f32[1,10], index: 4, kind: input, shape index: {}]
  %s5 = inlined_call_operand.vmem [shape: f32[8,10], index: 5, kind: output, shape index: {}]
  %s6 = sld [smem:[#allocation0]]
  $region30: #{basic_cnn_forward.5} parent=0
    _
  %s8 = ssub.s32 1, %s6
  %s9 = scalar_select 0, %s8, %s6
  // Predicated region
  $region2: #{basic_cnn_forward.5} parent=0 // pred_check
    _
  $region3: #{basic_cnn_forward.5} parent=0 // pred_check_branch
    %11 = sbr.rel (0) target = $region5
  $region4: #{basic_cnn_forward.5} parent=0 // pred_region
    _
  $region5: #{basic_cnn_forward.5} parent=0 // pred_fallthru
    _
  // Predicated region
  $region6: #{basic_cnn_forward.5} parent=0 // pred_check
    _
  $region7: #{basic_cnn_forward.5} parent=0 // pred_check_branch
    %13 = sbr.rel (0) target = $region9
  $region8: #{basic_cnn_forward.5} parent=0 // pred_region
    _
  $region9: #{basic_cnn_forward.5} parent=0 // pred_fallthru
    _
  // Predicated region
  $region10: #{basic_cnn_forward.5} parent=0 // pred_check
    _
  $region11: #{basic_cnn_forward.5} parent=0 // pred_check_branch
    %15 = sbr.rel (0) target = $region13
  $region12: #{basic_cnn_forward.5} parent=0 // pred_region
    _
  $region13: #{basic_cnn_forward.5} parent=0 // pred_fallthru
    _
  // Predicated region
  $region14: #{basic_cnn_forward.5} parent=0 // pred_check
    _
  $region15: #{basic_cnn_forward.5} parent=0 // pred_check_branch
    %17 = sbr.rel (0) target = $region17
  $region16: #{basic_cnn_forward.5} parent=0 // pred_region
    _
  $region17: #{basic_cnn_forward.5} parent=0 // pred_fallthru
    _
  // Predicated region
  $region18: #{basic_cnn_forward.5} parent=0 // pred_check
    _
  $region19: #{basic_cnn_forward.5} parent=0 // pred_check_branch
    %19 = sbr.rel (0) target = $region21
  $region20: #{basic_cnn_forward.5} parent=0 // pred_region
    _
  $region21: #{basic_cnn_forward.5} parent=0 // pred_fallthru
    _
  %v21 = vld [vmem:[%s0] sm:$0xff]
  %v22 = vld [vmem:[%s0 + $0x8] sm:$0xff]
  %v23 = vld [vmem:[%s0 + $0x10] sm:$0xff]
  %v24 = vld [vmem:[%s0 + $0x18] sm:$0xff]
  %v25 = vld [vmem:[%s0 + $0x20] sm:$0xff]
  %v26 = vld [vmem:[%s0 + $0x28] sm:$0xff]
  %v27 = vld [vmem:[%s0 + $0x30] sm:$0xf]
  %v28 = vld [vmem:[%s1] sm:$0xf]
  %v29 = vld [vmem:[%s1 + $0x4] sm:$0xf]
  %v30 = vld [vmem:[%s1 + $0x8] sm:$0xf]
  %v31 = vld [vmem:[%s1 + $0xc] sm:$0xf]
  %v32 = vld [vmem:[%s1 + $0x10] sm:$0xf]
  %v33 = vld [vmem:[%s1 + $0x14] sm:$0xf]
  %v34 = vld [vmem:[%s1 + $0x18] sm:$0xf]
  %v35 = vld [vmem:[%s1 + $0x1c] sm:$0xf]
  %v36 = vld [vmem:[%s1 + $0x20] sm:$0xf]
  %v37 = vld [vmem:[%s1 + $0x24] sm:$0xf]
  %v38 = vld [vmem:[%s1 + $0x28] sm:$0xf]
  %v39 = vld [vmem:[%s1 + $0x2c] sm:$0xf]
  %v40 = vld [vmem:[%s1 + $0x30] sm:$0xf]
  %v41 = vld [vmem:[%s1 + $0x34] sm:$0xf]
  %v42 = vld [vmem:[%s1 + $0x38] sm:$0xf]
  %v43 = vld [vmem:[%s1 + $0x3c] sm:$0xf]
  %v44 = vld [vmem:[%s1 + $0x40] sm:$0xf]
  %v45 = vld [vmem:[%s1 + $0x44] sm:$0xf]
  %v46 = vld [vmem:[%s1 + $0x48] sm:$0xf]
  %v47 = vld [vmem:[%s1 + $0x4c] sm:$0xf]
  %v48 = vld [vmem:[%s1 + $0x50] sm:$0xf]
  %v49 = vld [vmem:[%s1 + $0x54] sm:$0xf]
  %v50 = vld [vmem:[%s1 + $0x58] sm:$0xf]
  %v51 = vld [vmem:[%s1 + $0x5c] sm:$0xf]
  %v52 = vld [vmem:[%s1 + $0x60] sm:$0xf]
  %v53 = vld [vmem:[%s1 + $0x64] sm:$0xf]
  %v54 = vld [vmem:[%s1 + $0x68] sm:$0xf]
  %v55 = vld [vmem:[%s1 + $0x6c] sm:$0xf]
  %v56 = vld [vmem:[%s1 + $0x70] sm:$0xf]
  %v57 = vld [vmem:[%s1 + $0x74] sm:$0xf]
  %v58 = vld [vmem:[%s1 + $0x78] sm:$0xf]
  %v59 = vld [vmem:[%s1 + $0x7c] sm:$0xf]
  %v60 = vld [vmem:[%s1 + $0x80] sm:$0xf]
  %v61 = vld [vmem:[%s1 + $0x84] sm:$0xf]
  %v62 = vld [vmem:[%s1 + $0x88] sm:$0xf]
  %v63 = vld [vmem:[%s1 + $0x8c] sm:$0xf]
  %v64 = vld [vmem:[%s1 + $0x90] sm:$0xf]
  %v65 = vld [vmem:[%s1 + $0x94] sm:$0xf]
  %v66 = vld [vmem:[%s1 + $0x98] sm:$0xf]
  %v67 = vld [vmem:[%s1 + $0x9c] sm:$0xf]
  %v68 = vld [vmem:[%s1 + $0xa0] sm:$0xf]
  %v69 = vld [vmem:[%s1 + $0xa4] sm:$0xf]
  %v70 = vld [vmem:[%s1 + $0xa8] sm:$0xf]
  %v71 = vld [vmem:[%s1 + $0xac] sm:$0xf]
  %v72 = vld [vmem:[%s1 + $0xb0] sm:$0xf]
  %v73 = vld [vmem:[%s1 + $0xb4] sm:$0xf]
  %v74 = vld [vmem:[%s1 + $0xb8] sm:$0xf]
  %v75 = vld [vmem:[%s1 + $0xbc] sm:$0xf]
  %v76 = vld [vmem:[%s1 + $0xc0] sm:$0xf]
  %v77 = vld [vmem:[%s1 + $0xc4] sm:$0xf]
  %v78 = vld [vmem:[%s1 + $0xc8] sm:$0xf]
  %v79 = vld [vmem:[%s1 + $0xcc] sm:$0xf]
  %v80 = vld [vmem:[%s1 + $0xd0] sm:$0xf]
  %v81 = vld [vmem:[%s1 + $0xd4] sm:$0xf]
  %v82 = vld [vmem:[%s1 + $0xd8] sm:$0xf]
  %v83 = vld [vmem:[%s1 + $0xdc] sm:$0xf]
  %v84 = vld [vmem:[%s1 + $0xe0] sm:$0xf]
  %v85 = vld [vmem:[%s1 + $0xe4] sm:$0xf]
  %v86 = vld [vmem:[%s1 + $0xe8] sm:$0xf]
  %v87 = vld [vmem:[%s1 + $0xec] sm:$0xf]
  %v88 = vld [vmem:[%s1 + $0xf0] sm:$0xf]
  %v89 = vld [vmem:[%s1 + $0xf4] sm:$0xf]
  %v90 = vld [vmem:[%s1 + $0xf8] sm:$0xf]
  %v91 = vld [vmem:[%s1 + $0xfc] sm:$0xf]
  %v92 = vld [vmem:[%s1 + $0x100] sm:$0xf]
  %v93 = vld [vmem:[%s1 + $0x104] sm:$0xf]
  %v94 = vld [vmem:[%s1 + $0x108] sm:$0xf]
  %v95 = vld [vmem:[%s1 + $0x10c] sm:$0xf]
  %v96 = vld [vmem:[%s1 + $0x110] sm:$0xf]
  %v97 = vld [vmem:[%s1 + $0x114] sm:$0xf]
  %v98 = vld [vmem:[%s1 + $0x118] sm:$0xf]
  %v99 = vld [vmem:[%s1 + $0x11c] sm:$0xf]
  %v100 = vld [vmem:[%s1 + $0x120] sm:$0xf]
  %v101 = vld [vmem:[%s1 + $0x124] sm:$0xf]
  %v102 = vld [vmem:[%s1 + $0x128] sm:$0xf]
  %v103 = vld [vmem:[%s1 + $0x12c] sm:$0xf]
  %v104 = vld [vmem:[%s1 + $0x130] sm:$0xf]
  %v105 = vld [vmem:[%s1 + $0x134] sm:$0xf]
  %v106 = vld [vmem:[%s1 + $0x138] sm:$0xf]
  %v107 = vld [vmem:[%s1 + $0x13c] sm:$0xf]
  %v108 = vld [vmem:[%s1 + $0x140] sm:$0xf]
  %v109 = vld [vmem:[%s1 + $0x144] sm:$0xf]
  %v110 = vld [vmem:[%s1 + $0x148] sm:$0xf]
  %v111 = vld [vmem:[%s1 + $0x14c] sm:$0xf]
  %v112 = vld [vmem:[%s1 + $0x150] sm:$0xf]
  %v113 = vld [vmem:[%s1 + $0x154] sm:$0xf]
  %v114 = vld [vmem:[%s1 + $0x158] sm:$0xf]
  %v115 = vld [vmem:[%s1 + $0x15c] sm:$0xf]
  %v116 = vld [vmem:[%s1 + $0x160] sm:$0xf]
  %v117 = vld [vmem:[%s1 + $0x164] sm:$0xf]
  %v118 = vld [vmem:[%s1 + $0x168] sm:$0xf]
  %v119 = vld [vmem:[%s1 + $0x16c] sm:$0xf]
  %v120 = vld [vmem:[%s1 + $0x170] sm:$0xf]
  %v121 = vld [vmem:[%s1 + $0x174] sm:$0xf]
  %v122 = vld [vmem:[%s1 + $0x178] sm:$0xf]
  %v123 = vld [vmem:[%s1 + $0x17c] sm:$0xf]
  %v124 = vld [vmem:[%s1 + $0x180] sm:$0xf]
  %v125 = vld [vmem:[%s1 + $0x184] sm:$0xf]
  %v126 = vld [vmem:[%s1 + $0x188] sm:$0xf]
  %v127 = vld [vmem:[%s1 + $0x18c] sm:$0xf]
  %v128 = vld [vmem:[%s1 + $0x190] sm:$0xf]
  %v129 = vld [vmem:[%s1 + $0x194] sm:$0xf]
  %v130 = vld [vmem:[%s1 + $0x198] sm:$0xf]
  %v131 = vld [vmem:[%s1 + $0x19c] sm:$0xf]
  %v132 = vld [vmem:[%s1 + $0x1a0] sm:$0xf]
  %v133 = vld [vmem:[%s1 + $0x1a4] sm:$0xf]
  %v134 = vld [vmem:[%s1 + $0x1a8] sm:$0xf]
  %v135 = vld [vmem:[%s1 + $0x1ac] sm:$0xf]
  %v136 = vld [vmem:[%s1 + $0x1b0] sm:$0xf]
  %v137 = vld [vmem:[%s1 + $0x1b4] sm:$0xf]
  %v138 = vld [vmem:[%s1 + $0x1b8] sm:$0xf]
  %v139 = vld [vmem:[%s1 + $0x1bc] sm:$0xf]
  %v140 = vld [vmem:[%s1 + $0x1c0] sm:$0xf]
  %v141 = vld [vmem:[%s1 + $0x1c4] sm:$0xf]
  %v142 = vld [vmem:[%s1 + $0x1c8] sm:$0xf]
  %v143 = vld [vmem:[%s1 + $0x1cc] sm:$0xf]
  %v144 = vld [vmem:[%s1 + $0x1d0] sm:$0xf]
  %v145 = vld [vmem:[%s1 + $0x1d4] sm:$0xf]
  %v146 = vld [vmem:[%s1 + $0x1d8] sm:$0xf]
  %v147 = vld [vmem:[%s1 + $0x1dc] sm:$0xf]
  %v148 = vld [vmem:[%s1 + $0x1e0] sm:$0xf]
  %v149 = vld [vmem:[%s1 + $0x1e4] sm:$0xf]
  %v150 = vld [vmem:[%s1 + $0x1e8] sm:$0xf]
  %v151 = vld [vmem:[%s1 + $0x1ec] sm:$0xf]
  %v152 = vld [vmem:[%s1 + $0x1f0] sm:$0xf]
  %v153 = vld [vmem:[%s1 + $0x1f4] sm:$0xf]
  %v154 = vld [vmem:[%s1 + $0x1f8] sm:$0xf]
  %v155 = vld [vmem:[%s1 + $0x1fc] sm:$0xf]
  %v156 = vld [vmem:[%s1 + $0x200] sm:$0xf]
  %v157 = vld [vmem:[%s1 + $0x204] sm:$0xf]
  %v158 = vld [vmem:[%s1 + $0x208] sm:$0xf]
  %v159 = vld [vmem:[%s1 + $0x20c] sm:$0xf]
  %v160 = vld [vmem:[%s1 + $0x210] sm:$0xf]
  %v161 = vld [vmem:[%s1 + $0x214] sm:$0xf]
  %v162 = vld [vmem:[%s1 + $0x218] sm:$0xf]
  %v163 = vld [vmem:[%s1 + $0x21c] sm:$0xf]
  %v164 = vld [vmem:[%s1 + $0x220] sm:$0xf]
  %v165 = vld [vmem:[%s1 + $0x224] sm:$0xf]
  %v166 = vld [vmem:[%s1 + $0x228] sm:$0xf]
  %v167 = vld [vmem:[%s1 + $0x22c] sm:$0xf]
  %v168 = vld [vmem:[%s1 + $0x230] sm:$0xf]
  %v169 = vld [vmem:[%s1 + $0x234] sm:$0xf]
  %v170 = vld [vmem:[%s1 + $0x238] sm:$0xf]
  %v171 = vld [vmem:[%s1 + $0x23c] sm:$0xf]
  %v172 = vld [vmem:[%s1 + $0x240] sm:$0xf]
  %v173 = vld [vmem:[%s1 + $0x244] sm:$0xf]
  %v174 = vld [vmem:[%s1 + $0x248] sm:$0xf]
  %v175 = vld [vmem:[%s1 + $0x24c] sm:$0xf]
  %v176 = vld [vmem:[%s1 + $0x250] sm:$0xf]
  %v177 = vld [vmem:[%s1 + $0x254] sm:$0xf]
  %v178 = vld [vmem:[%s1 + $0x258] sm:$0xf]
  %v179 = vld [vmem:[%s1 + $0x25c] sm:$0xf]
  %v180 = vld [vmem:[%s1 + $0x260] sm:$0xf]
  %v181 = vld [vmem:[%s1 + $0x264] sm:$0xf]
  %v182 = vld [vmem:[%s1 + $0x268] sm:$0xf]
  %v183 = vld [vmem:[%s1 + $0x26c] sm:$0xf]
  %v184 = vld [vmem:[%s1 + $0x270] sm:$0xf]
  %v185 = vld [vmem:[%s1 + $0x274] sm:$0xf]
  %v186 = vld [vmem:[%s1 + $0x278] sm:$0xf]
  %v187 = vld [vmem:[%s1 + $0x27c] sm:$0xf]
  %v188 = vld [vmem:[%s1 + $0x280] sm:$0xf]
  %v189 = vld [vmem:[%s1 + $0x284] sm:$0xf]
  %v190 = vld [vmem:[%s1 + $0x288] sm:$0xf]
  %v191 = vld [vmem:[%s1 + $0x28c] sm:$0xf]
  %v192 = vld [vmem:[%s1 + $0x290] sm:$0xf]
  %v193 = vld [vmem:[%s1 + $0x294] sm:$0xf]
  %v194 = vld [vmem:[%s1 + $0x298] sm:$0xf]
  %v195 = vld [vmem:[%s1 + $0x29c] sm:$0xf]
  %v196 = vld [vmem:[%s1 + $0x2a0] sm:$0xf]
  %v197 = vld [vmem:[%s1 + $0x2a4] sm:$0xf]
  %v198 = vld [vmem:[%s1 + $0x2a8] sm:$0xf]
  %v199 = vld [vmem:[%s1 + $0x2ac] sm:$0xf]
  %v200 = vld [vmem:[%s1 + $0x2b0] sm:$0xf]
  %v201 = vld [vmem:[%s1 + $0x2b4] sm:$0xf]
  %v202 = vld [vmem:[%s1 + $0x2b8] sm:$0xf]
  %v203 = vld [vmem:[%s1 + $0x2bc] sm:$0xf]
  %v204 = vld [vmem:[%s1 + $0x2c0] sm:$0xf]
  %v205 = vld [vmem:[%s1 + $0x2c4] sm:$0xf]
  %v206 = vld [vmem:[%s1 + $0x2c8] sm:$0xf]
  %v207 = vld [vmem:[%s1 + $0x2cc] sm:$0xf]
  %v208 = vld [vmem:[%s1 + $0x2d0] sm:$0xf]
  %v209 = vld [vmem:[%s1 + $0x2d4] sm:$0xf]
  %v210 = vld [vmem:[%s1 + $0x2d8] sm:$0xf]
  %v211 = vld [vmem:[%s1 + $0x2dc] sm:$0xf]
  %v212 = vld [vmem:[%s1 + $0x2e0] sm:$0xf]
  %v213 = vld [vmem:[%s1 + $0x2e4] sm:$0xf]
  %v214 = vld [vmem:[%s1 + $0x2e8] sm:$0xf]
  %v215 = vld [vmem:[%s1 + $0x2ec] sm:$0xf]
  %v216 = vld [vmem:[%s1 + $0x2f0] sm:$0xf]
  %v217 = vld [vmem:[%s1 + $0x2f4] sm:$0xf]
  %v218 = vld [vmem:[%s1 + $0x2f8] sm:$0xf]
  %v219 = vld [vmem:[%s1 + $0x2fc] sm:$0xf]
  %v220 = vld [vmem:[%s1 + $0x300] sm:$0xf]
  %v221 = vld [vmem:[%s1 + $0x304] sm:$0xf]
  %v222 = vld [vmem:[%s1 + $0x308] sm:$0xf]
  %v223 = vld [vmem:[%s1 + $0x30c] sm:$0xf]
  %v224 = vld [vmem:[%s1 + $0x310] sm:$0xf]
  %v225 = vld [vmem:[%s1 + $0x314] sm:$0xf]
  %v226 = vld [vmem:[%s1 + $0x318] sm:$0xf]
  %v227 = vld [vmem:[%s1 + $0x31c] sm:$0xf]
  %v228 = vld [vmem:[%s2] sm:$0x1]
  %v230 = vlaneseq
  %v231 = vshrl.u32 %v230, 7
  %v232 = vsub.s32 0, %v231
  %v233 = vrot.slane %v228, %v232
  %v242 = vunpack.c.l.b16 %v21
  %v243 = vunpack.c.h.b16 %v21
  %v244 = vunpack.c.l.b16 %v22
  %v245 = vunpack.c.h.b16 %v22
  %v246 = vunpack.c.l.b16 %v23
  %v247 = vunpack.c.h.b16 %v23
  %v248 = vunpack.c.l.b16 %v24
  %v249 = vunpack.c.h.b16 %v24
  %v250 = vunpack.c.l.b16 %v25
  %v251 = vunpack.c.h.b16 %v25
  %v252 = vunpack.c.l.b16 %v26
  %v253 = vunpack.c.h.b16 %v26
  %v254 = vunpack.c.l.b16 %v27
  %v255 = vpack.c.b16 %v242, %v242
  %v256 = vpack.c.b16 %v243, %v243
  %v257 = vpack.c.b16 %v244, %v244
  %v258 = vpack.c.b16 %v245, %v245
  %v259 = vpack.c.b16 %v246, %v246
  %v260 = vpack.c.b16 %v247, %v247
  %v261 = vpack.c.b16 %v248, %v248
  %v262 = vpack.c.b16 %v249, %v249
  %v263 = vpack.c.b16 %v250, %v250
  %v264 = vpack.c.b16 %v251, %v251
  %v265 = vpack.c.b16 %v252, %v252
  %v266 = vpack.c.b16 %v253, %v253
  %v267 = vpack.c.b16 %v254, %v254
  %v480 = vunpack.c.l.b16 %v28
  %v481 = vunpack.c.l.b16 %v29
  %v482 = vunpack.c.l.b16 %v30
  %v483 = vunpack.c.l.b16 %v31
  %v484 = vunpack.c.l.b16 %v32
  %v485 = vunpack.c.l.b16 %v33
  %v486 = vunpack.c.l.b16 %v34
  %v487 = vunpack.c.l.b16 %v35
  %v488 = vunpack.c.l.b16 %v36
  %v489 = vunpack.c.l.b16 %v37
  %v490 = vunpack.c.l.b16 %v38
  %v491 = vunpack.c.l.b16 %v39
  %v492 = vunpack.c.l.b16 %v40
  %v493 = vunpack.c.l.b16 %v41
  %v494 = vunpack.c.l.b16 %v42
  %v495 = vunpack.c.l.b16 %v43
  %v496 = vunpack.c.l.b16 %v44
  %v497 = vunpack.c.l.b16 %v45
  %v498 = vunpack.c.l.b16 %v46
  %v499 = vunpack.c.l.b16 %v47
  %v500 = vunpack.c.l.b16 %v48
  %v501 = vunpack.c.l.b16 %v49
  %v502 = vunpack.c.l.b16 %v50
  %v503 = vunpack.c.l.b16 %v51
  %v504 = vunpack.c.l.b16 %v52
  %v505 = vunpack.c.l.b16 %v53
  %v506 = vunpack.c.l.b16 %v54
  %v507 = vunpack.c.l.b16 %v55
  %v508 = vunpack.c.l.b16 %v56
  %v509 = vunpack.c.l.b16 %v57
  %v510 = vunpack.c.l.b16 %v58
  %v511 = vunpack.c.l.b16 %v59
  %v512 = vunpack.c.l.b16 %v60
  %v513 = vunpack.c.l.b16 %v61
  %v514 = vunpack.c.l.b16 %v62
  %v515 = vunpack.c.l.b16 %v63
  %v516 = vunpack.c.l.b16 %v64
  %v517 = vunpack.c.l.b16 %v65
  %v518 = vunpack.c.l.b16 %v66
  %v519 = vunpack.c.l.b16 %v67
  %v520 = vunpack.c.l.b16 %v68
  %v521 = vunpack.c.l.b16 %v69
  %v522 = vunpack.c.l.b16 %v70
  %v523 = vunpack.c.l.b16 %v71
  %v524 = vunpack.c.l.b16 %v72
  %v525 = vunpack.c.l.b16 %v73
  %v526 = vunpack.c.l.b16 %v74
  %v527 = vunpack.c.l.b16 %v75
  %v528 = vunpack.c.l.b16 %v76
  %v529 = vunpack.c.l.b16 %v77
  %v530 = vunpack.c.l.b16 %v78
  %v531 = vunpack.c.l.b16 %v79
  %v532 = vunpack.c.l.b16 %v80
  %v533 = vunpack.c.l.b16 %v81
  %v534 = vunpack.c.l.b16 %v82
  %v535 = vunpack.c.l.b16 %v83
  %v536 = vunpack.c.l.b16 %v84
  %v537 = vunpack.c.l.b16 %v85
  %v538 = vunpack.c.l.b16 %v86
  %v539 = vunpack.c.l.b16 %v87
  %v540 = vunpack.c.l.b16 %v88
  %v541 = vunpack.c.l.b16 %v89
  %v542 = vunpack.c.l.b16 %v90
  %v543 = vunpack.c.l.b16 %v91
  %v544 = vunpack.c.l.b16 %v92
  %v545 = vunpack.c.l.b16 %v93
  %v546 = vunpack.c.l.b16 %v94
  %v547 = vunpack.c.l.b16 %v95
  %v548 = vunpack.c.l.b16 %v96
  %v549 = vunpack.c.l.b16 %v97
  %v550 = vunpack.c.l.b16 %v98
  %v551 = vunpack.c.l.b16 %v99
  %v552 = vunpack.c.l.b16 %v100
  %v553 = vunpack.c.l.b16 %v101
  %v554 = vunpack.c.l.b16 %v102
  %v555 = vunpack.c.l.b16 %v103
  %v556 = vunpack.c.l.b16 %v104
  %v557 = vunpack.c.l.b16 %v105
  %v558 = vunpack.c.l.b16 %v106
  %v559 = vunpack.c.l.b16 %v107
  %v560 = vunpack.c.l.b16 %v108
  %v561 = vunpack.c.l.b16 %v109
  %v562 = vunpack.c.l.b16 %v110
  %v563 = vunpack.c.l.b16 %v111
  %v564 = vunpack.c.l.b16 %v112
  %v565 = vunpack.c.l.b16 %v113
  %v566 = vunpack.c.l.b16 %v114
  %v567 = vunpack.c.l.b16 %v115
  %v568 = vunpack.c.l.b16 %v116
  %v569 = vunpack.c.l.b16 %v117
  %v570 = vunpack.c.l.b16 %v118
  %v571 = vunpack.c.l.b16 %v119
  %v572 = vunpack.c.l.b16 %v120
  %v573 = vunpack.c.l.b16 %v121
  %v574 = vunpack.c.l.b16 %v122
  %v575 = vunpack.c.l.b16 %v123
  %v576 = vunpack.c.l.b16 %v124
  %v577 = vunpack.c.l.b16 %v125
  %v578 = vunpack.c.l.b16 %v126
  %v579 = vunpack.c.l.b16 %v127
  %v580 = vunpack.c.l.b16 %v128
  %v581 = vunpack.c.l.b16 %v129
  %v582 = vunpack.c.l.b16 %v130
  %v583 = vunpack.c.l.b16 %v131
  %v584 = vunpack.c.l.b16 %v132
  %v585 = vunpack.c.l.b16 %v133
  %v586 = vunpack.c.l.b16 %v134
  %v587 = vunpack.c.l.b16 %v135
  %v588 = vunpack.c.l.b16 %v136
  %v589 = vunpack.c.l.b16 %v137
  %v590 = vunpack.c.l.b16 %v138
  %v591 = vunpack.c.l.b16 %v139
  %v592 = vunpack.c.l.b16 %v140
  %v593 = vunpack.c.l.b16 %v141
  %v594 = vunpack.c.l.b16 %v142
  %v595 = vunpack.c.l.b16 %v143
  %v596 = vunpack.c.l.b16 %v144
  %v597 = vunpack.c.l.b16 %v145
  %v598 = vunpack.c.l.b16 %v146
  %v599 = vunpack.c.l.b16 %v147
  %v600 = vunpack.c.l.b16 %v148
  %v601 = vunpack.c.l.b16 %v149
  %v602 = vunpack.c.l.b16 %v150
  %v603 = vunpack.c.l.b16 %v151
  %v604 = vunpack.c.l.b16 %v152
  %v605 = vunpack.c.l.b16 %v153
  %v606 = vunpack.c.l.b16 %v154
  %v607 = vunpack.c.l.b16 %v155
  %v608 = vunpack.c.l.b16 %v156
  %v609 = vunpack.c.l.b16 %v157
  %v610 = vunpack.c.l.b16 %v158
  %v611 = vunpack.c.l.b16 %v159
  %v612 = vunpack.c.l.b16 %v160
  %v613 = vunpack.c.l.b16 %v161
  %v614 = vunpack.c.l.b16 %v162
  %v615 = vunpack.c.l.b16 %v163
  %v616 = vunpack.c.l.b16 %v164
  %v617 = vunpack.c.l.b16 %v165
  %v618 = vunpack.c.l.b16 %v166
  %v619 = vunpack.c.l.b16 %v167
  %v620 = vunpack.c.l.b16 %v168
  %v621 = vunpack.c.l.b16 %v169
  %v622 = vunpack.c.l.b16 %v170
  %v623 = vunpack.c.l.b16 %v171
  %v624 = vunpack.c.l.b16 %v172
  %v625 = vunpack.c.l.b16 %v173
  %v626 = vunpack.c.l.b16 %v174
  %v627 = vunpack.c.l.b16 %v175
  %v628 = vunpack.c.l.b16 %v176
  %v629 = vunpack.c.l.b16 %v177
  %v630 = vunpack.c.l.b16 %v178
  %v631 = vunpack.c.l.b16 %v179
  %v632 = vunpack.c.l.b16 %v180
  %v633 = vunpack.c.l.b16 %v181
  %v634 = vunpack.c.l.b16 %v182
  %v635 = vunpack.c.l.b16 %v183
  %v636 = vunpack.c.l.b16 %v184
  %v637 = vunpack.c.l.b16 %v185
  %v638 = vunpack.c.l.b16 %v186
  %v639 = vunpack.c.l.b16 %v187
  %v640 = vunpack.c.l.b16 %v188
  %v641 = vunpack.c.l.b16 %v189
  %v642 = vunpack.c.l.b16 %v190
  %v643 = vunpack.c.l.b16 %v191
  %v644 = vunpack.c.l.b16 %v192
  %v645 = vunpack.c.l.b16 %v193
  %v646 = vunpack.c.l.b16 %v194
  %v647 = vunpack.c.l.b16 %v195
  %v648 = vunpack.c.l.b16 %v196
  %v649 = vunpack.c.l.b16 %v197
  %v650 = vunpack.c.l.b16 %v198
  %v651 = vunpack.c.l.b16 %v199
  %v652 = vunpack.c.l.b16 %v200
  %v653 = vunpack.c.l.b16 %v201
  %v654 = vunpack.c.l.b16 %v202
  %v655 = vunpack.c.l.b16 %v203
  %v656 = vunpack.c.l.b16 %v204
  %v657 = vunpack.c.l.b16 %v205
  %v658 = vunpack.c.l.b16 %v206
  %v659 = vunpack.c.l.b16 %v207
  %v660 = vunpack.c.l.b16 %v208
  %v661 = vunpack.c.l.b16 %v209
  %v662 = vunpack.c.l.b16 %v210
  %v663 = vunpack.c.l.b16 %v211
  %v664 = vunpack.c.l.b16 %v212
  %v665 = vunpack.c.l.b16 %v213
  %v666 = vunpack.c.l.b16 %v214
  %v667 = vunpack.c.l.b16 %v215
  %v668 = vunpack.c.l.b16 %v216
  %v669 = vunpack.c.l.b16 %v217
  %v670 = vunpack.c.l.b16 %v218
  %v671 = vunpack.c.l.b16 %v219
  %v672 = vunpack.c.l.b16 %v220
  %v673 = vunpack.c.l.b16 %v221
  %v674 = vunpack.c.l.b16 %v222
  %v675 = vunpack.c.l.b16 %v223
  %v676 = vunpack.c.l.b16 %v224
  %v677 = vunpack.c.l.b16 %v225
  %v678 = vunpack.c.l.b16 %v226
  %v679 = vunpack.c.l.b16 %v227
  %v680 = vpack.c.b16 %v481, %v480
  %v681 = vpack.c.b16 %v483, %v482
  %v682 = vpack.c.b16 %v485, %v484
  %v683 = vpack.c.b16 %v487, %v486
  %v684 = vpack.c.b16 %v489, %v488
  %v685 = vpack.c.b16 %v491, %v490
  %v686 = vpack.c.b16 %v493, %v492
  %v687 = vpack.c.b16 %v495, %v494
  %v688 = vpack.c.b16 %v497, %v496
  %v689 = vpack.c.b16 %v499, %v498
  %v690 = vpack.c.b16 %v501, %v500
  %v691 = vpack.c.b16 %v503, %v502
  %v692 = vpack.c.b16 %v505, %v504
  %v693 = vpack.c.b16 %v507, %v506
  %v694 = vpack.c.b16 %v509, %v508
  %v695 = vpack.c.b16 %v511, %v510
  %v696 = vpack.c.b16 %v513, %v512
  %v697 = vpack.c.b16 %v515, %v514
  %v698 = vpack.c.b16 %v517, %v516
  %v699 = vpack.c.b16 %v519, %v518
  %v700 = vpack.c.b16 %v521, %v520
  %v701 = vpack.c.b16 %v523, %v522
  %v702 = vpack.c.b16 %v525, %v524
  %v703 = vpack.c.b16 %v527, %v526
  %v704 = vpack.c.b16 %v529, %v528
  %v705 = vpack.c.b16 %v531, %v530
  %v706 = vpack.c.b16 %v533, %v532
  %v707 = vpack.c.b16 %v535, %v534
  %v708 = vpack.c.b16 %v537, %v536
  %v709 = vpack.c.b16 %v539, %v538
  %v710 = vpack.c.b16 %v541, %v540
  %v711 = vpack.c.b16 %v543, %v542
  %v712 = vpack.c.b16 %v545, %v544
  %v713 = vpack.c.b16 %v547, %v546
  %v714 = vpack.c.b16 %v549, %v548
  %v715 = vpack.c.b16 %v551, %v550
  %v716 = vpack.c.b16 %v553, %v552
  %v717 = vpack.c.b16 %v555, %v554
  %v718 = vpack.c.b16 %v557, %v556
  %v719 = vpack.c.b16 %v559, %v558
  %v720 = vpack.c.b16 %v561, %v560
  %v721 = vpack.c.b16 %v563, %v562
  %v722 = vpack.c.b16 %v565, %v564
  %v723 = vpack.c.b16 %v567, %v566
  %v724 = vpack.c.b16 %v569, %v568
  %v725 = vpack.c.b16 %v571, %v570
  %v726 = vpack.c.b16 %v573, %v572
  %v727 = vpack.c.b16 %v575, %v574
  %v728 = vpack.c.b16 %v577, %v576
  %v729 = vpack.c.b16 %v579, %v578
  %v730 = vpack.c.b16 %v581, %v580
  %v731 = vpack.c.b16 %v583, %v582
  %v732 = vpack.c.b16 %v585, %v584
  %v733 = vpack.c.b16 %v587, %v586
  %v734 = vpack.c.b16 %v589, %v588
  %v735 = vpack.c.b16 %v591, %v590
  %v736 = vpack.c.b16 %v593, %v592
  %v737 = vpack.c.b16 %v595, %v594
  %v738 = vpack.c.b16 %v597, %v596
  %v739 = vpack.c.b16 %v599, %v598
  %v740 = vpack.c.b16 %v601, %v600
  %v741 = vpack.c.b16 %v603, %v602
  %v742 = vpack.c.b16 %v605, %v604
  %v743 = vpack.c.b16 %v607, %v606
  %v744 = vpack.c.b16 %v609, %v608
  %v745 = vpack.c.b16 %v611, %v610
  %v746 = vpack.c.b16 %v613, %v612
  %v747 = vpack.c.b16 %v615, %v614
  %v748 = vpack.c.b16 %v617, %v616
  %v749 = vpack.c.b16 %v619, %v618
  %v750 = vpack.c.b16 %v621, %v620
  %v751 = vpack.c.b16 %v623, %v622
  %v752 = vpack.c.b16 %v625, %v624
  %v753 = vpack.c.b16 %v627, %v626
  %v754 = vpack.c.b16 %v629, %v628
  %v755 = vpack.c.b16 %v631, %v630
  %v756 = vpack.c.b16 %v633, %v632
  %v757 = vpack.c.b16 %v635, %v634
  %v758 = vpack.c.b16 %v637, %v636
  %v759 = vpack.c.b16 %v639, %v638
  %v760 = vpack.c.b16 %v641, %v640
  %v761 = vpack.c.b16 %v643, %v642
  %v762 = vpack.c.b16 %v645, %v644
  %v763 = vpack.c.b16 %v647, %v646
  %v764 = vpack.c.b16 %v649, %v648
  %v765 = vpack.c.b16 %v651, %v650
  %v766 = vpack.c.b16 %v653, %v652
  %v767 = vpack.c.b16 %v655, %v654
  %v768 = vpack.c.b16 %v657, %v656
  %v769 = vpack.c.b16 %v659, %v658
  %v770 = vpack.c.b16 %v661, %v660
  %v771 = vpack.c.b16 %v663, %v662
  %v772 = vpack.c.b16 %v665, %v664
  %v773 = vpack.c.b16 %v667, %v666
  %v774 = vpack.c.b16 %v669, %v668
  %v775 = vpack.c.b16 %v671, %v670
  %v776 = vpack.c.b16 %v673, %v672
  %v777 = vpack.c.b16 %v675, %v674
  %v778 = vpack.c.b16 %v677, %v676
  %v779 = vpack.c.b16 %v679, %v678
  %vm880 = vcmask 523264
  %v882 = vsel %vm880, %v267, 0
  %884 = vmatprep.subr.bf16.mxu0 0
  %885 = vmatpush1.bf16.msra.mxu0 %v680
  %886 = vmatprep.subr.bf16.mxu0 0
  %887 = vmatpush1.bf16.msra.mxu0 %v681
  %888 = vmatprep.subr.bf16.mxu0 0
  %889 = vmatpush1.bf16.msra.mxu0 %v682
  %890 = vmatprep.subr.bf16.mxu0 0
  %891 = vmatpush1.bf16.msra.mxu0 %v683
  %892 = vmatprep.subr.bf16.mxu0 0
  %893 = vmatpush1.bf16.msra.mxu0 %v684
  %894 = vmatprep.subr.bf16.mxu0 0
  %895 = vmatpush1.bf16.msra.mxu0 %v685
  %896 = vmatprep.subr.bf16.mxu0 0
  %897 = vmatpush1.bf16.msra.mxu0 %v686
  %898 = vmatprep.subr.bf16.mxu0 0
  %899 = vmatpush1.bf16.msra.mxu0 %v687
  %900 = vmatprep.subr.bf16.mxu0 0
  %901 = vmatpush1.bf16.msra.mxu0 %v688
  %902 = vmatprep.subr.bf16.mxu0 0
  %903 = vmatpush1.bf16.msra.mxu0 %v689
  %904 = vmatprep.subr.bf16.mxu0 0
  %905 = vmatpush1.bf16.msra.mxu0 %v690
  %906 = vmatprep.subr.bf16.mxu0 0
  %907 = vmatpush1.bf16.msra.mxu0 %v691
  %908 = vmatprep.subr.bf16.mxu0 0
  %909 = vmatpush1.bf16.msra.mxu0 %v692
  %910 = vmatprep.subr.bf16.mxu0 0
  %911 = vmatpush1.bf16.msra.mxu0 %v693
  %912 = vmatprep.subr.bf16.mxu0 0
  %913 = vmatpush1.bf16.msra.mxu0 %v694
  %914 = vmatprep.subr.bf16.mxu0 0
  %915 = vmatpush1.bf16.msra.mxu0 %v695
  %916 = vmatprep.mubr.bf16.mxu0 %v256
  %917 = vmatmul.mubr.bf16.gmra.mrb[0].mxu0 %v255
  %v918 = vpop.f32.mrb[0].mxu0
  %v919 = vadd.f32 %v233, %v918
  %v920 = vpop.f32.mrb[0].mxu0
  %v921 = vpop.f32.mrb[0].mxu0
  %v922 = vpop.f32.mrb[0].mxu0
  %923 = vdwg.mxu0
  %924 = vmatprep.subr.bf16.mxu0 0
  %925 = vmatpush1.bf16.msra.mxu0 %v696
  %926 = vmatprep.subr.bf16.mxu0 0
  %927 = vmatpush1.bf16.msra.mxu0 %v697
  %928 = vmatprep.subr.bf16.mxu0 0
  %929 = vmatpush1.bf16.msra.mxu0 %v698
  %930 = vmatprep.subr.bf16.mxu0 0
  %931 = vmatpush1.bf16.msra.mxu0 %v699
  %932 = vmatprep.subr.bf16.mxu0 0
  %933 = vmatpush1.bf16.msra.mxu0 %v700
  %934 = vmatprep.subr.bf16.mxu0 0
  %935 = vmatpush1.bf16.msra.mxu0 %v701
  %936 = vmatprep.subr.bf16.mxu0 0
  %937 = vmatpush1.bf16.msra.mxu0 %v702
  %938 = vmatprep.subr.bf16.mxu0 0
  %939 = vmatpush1.bf16.msra.mxu0 %v703
  %940 = vmatprep.subr.bf16.mxu0 0
  %941 = vmatpush1.bf16.msra.mxu0 %v704
  %942 = vmatprep.subr.bf16.mxu0 0
  %943 = vmatpush1.bf16.msra.mxu0 %v705
  %944 = vmatprep.subr.bf16.mxu0 0
  %945 = vmatpush1.bf16.msra.mxu0 %v706
  %946 = vmatprep.subr.bf16.mxu0 0
  %947 = vmatpush1.bf16.msra.mxu0 %v707
  %948 = vmatprep.subr.bf16.mxu0 0
  %949 = vmatpush1.bf16.msra.mxu0 %v708
  %950 = vmatprep.subr.bf16.mxu0 0
  %951 = vmatpush1.bf16.msra.mxu0 %v709
  %952 = vmatprep.subr.bf16.mxu0 0
  %953 = vmatpush1.bf16.msra.mxu0 %v710
  %954 = vmatprep.subr.bf16.mxu0 0
  %955 = vmatpush1.bf16.msra.mxu0 %v711
  %956 = vmatprep.mubr.bf16.mxu0 %v258
  %957 = vmatmul.mubr.bf16.gmra.mrb[0].mxu0 %v257
  %v958 = vpop.f32.mrb[0].mxu0
  %v959 = vadd.f32 %v919, %v958
  %v960 = vpop.f32.mrb[0].mxu0
  %v961 = vpop.f32.mrb[0].mxu0
  %v962 = vpop.f32.mrb[0].mxu0
  %963 = vdwg.mxu0
  %964 = vmatprep.subr.bf16.mxu0 0
  %965 = vmatpush1.bf16.msra.mxu0 %v712
  %966 = vmatprep.subr.bf16.mxu0 0
  %967 = vmatpush1.bf16.msra.mxu0 %v713
  %968 = vmatprep.subr.bf16.mxu0 0
  %969 = vmatpush1.bf16.msra.mxu0 %v714
  %970 = vmatprep.subr.bf16.mxu0 0
  %971 = vmatpush1.bf16.msra.mxu0 %v715
  %972 = vmatprep.subr.bf16.mxu0 0
  %973 = vmatpush1.bf16.msra.mxu0 %v716
  %974 = vmatprep.subr.bf16.mxu0 0
  %975 = vmatpush1.bf16.msra.mxu0 %v717
  %976 = vmatprep.subr.bf16.mxu0 0
  %977 = vmatpush1.bf16.msra.mxu0 %v718
  %978 = vmatprep.subr.bf16.mxu0 0
  %979 = vmatpush1.bf16.msra.mxu0 %v719
  %980 = vmatprep.subr.bf16.mxu0 0
  %981 = vmatpush1.bf16.msra.mxu0 %v720
  %982 = vmatprep.subr.bf16.mxu0 0
  %983 = vmatpush1.bf16.msra.mxu0 %v721
  %984 = vmatprep.subr.bf16.mxu0 0
  %985 = vmatpush1.bf16.msra.mxu0 %v722
  %986 = vmatprep.subr.bf16.mxu0 0
  %987 = vmatpush1.bf16.msra.mxu0 %v723
  %988 = vmatprep.subr.bf16.mxu0 0
  %989 = vmatpush1.bf16.msra.mxu0 %v724
  %990 = vmatprep.subr.bf16.mxu0 0
  %991 = vmatpush1.bf16.msra.mxu0 %v725
  %992 = vmatprep.subr.bf16.mxu0 0
  %993 = vmatpush1.bf16.msra.mxu0 %v726
  %994 = vmatprep.subr.bf16.mxu0 0
  %995 = vmatpush1.bf16.msra.mxu0 %v727
  %996 = vmatprep.mubr.bf16.mxu0 %v260
  %997 = vmatmul.mubr.bf16.gmra.mrb[0].mxu0 %v259
  %v998 = vpop.f32.mrb[0].mxu0
  %v999 = vadd.f32 %v959, %v998
  %v1000 = vpop.f32.mrb[0].mxu0
  %v1001 = vpop.f32.mrb[0].mxu0
  %v1002 = vpop.f32.mrb[0].mxu0
  %1003 = vdwg.mxu0
  %1004 = vmatprep.subr.bf16.mxu0 0
  %1005 = vmatpush1.bf16.msra.mxu0 %v728
  %1006 = vmatprep.subr.bf16.mxu0 0
  %1007 = vmatpush1.bf16.msra.mxu0 %v729
  %1008 = vmatprep.subr.bf16.mxu0 0
  %1009 = vmatpush1.bf16.msra.mxu0 %v730
  %1010 = vmatprep.subr.bf16.mxu0 0
  %1011 = vmatpush1.bf16.msra.mxu0 %v731
  %1012 = vmatprep.subr.bf16.mxu0 0
  %1013 = vmatpush1.bf16.msra.mxu0 %v732
  %1014 = vmatprep.subr.bf16.mxu0 0
  %1015 = vmatpush1.bf16.msra.mxu0 %v733
  %1016 = vmatprep.subr.bf16.mxu0 0
  %1017 = vmatpush1.bf16.msra.mxu0 %v734
  %1018 = vmatprep.subr.bf16.mxu0 0
  %1019 = vmatpush1.bf16.msra.mxu0 %v735
  %1020 = vmatprep.subr.bf16.mxu0 0
  %1021 = vmatpush1.bf16.msra.mxu0 %v736
  %1022 = vmatprep.subr.bf16.mxu0 0
  %1023 = vmatpush1.bf16.msra.mxu0 %v737
  %1024 = vmatprep.subr.bf16.mxu0 0
  %1025 = vmatpush1.bf16.msra.mxu0 %v738
  %1026 = vmatprep.subr.bf16.mxu0 0
  %1027 = vmatpush1.bf16.msra.mxu0 %v739
  %1028 = vmatprep.subr.bf16.mxu0 0
  %1029 = vmatpush1.bf16.msra.mxu0 %v740
  %1030 = vmatprep.subr.bf16.mxu0 0
  %1031 = vmatpush1.bf16.msra.mxu0 %v741
  %1032 = vmatprep.subr.bf16.mxu0 0
  %1033 = vmatpush1.bf16.msra.mxu0 %v742
  %1034 = vmatprep.subr.bf16.mxu0 0
  %1035 = vmatpush1.bf16.msra.mxu0 %v743
  %1036 = vmatprep.mubr.bf16.mxu0 %v262
  %1037 = vmatmul.mubr.bf16.gmra.mrb[0].mxu0 %v261
  %v1038 = vpop.f32.mrb[0].mxu0
  %v1039 = vadd.f32 %v999, %v1038
  %v1040 = vpop.f32.mrb[0].mxu0
  %v1041 = vpop.f32.mrb[0].mxu0
  %v1042 = vpop.f32.mrb[0].mxu0
  %1043 = vdwg.mxu0
  %1044 = vmatprep.subr.bf16.mxu0 0
  %1045 = vmatpush1.bf16.msra.mxu0 %v744
  %1046 = vmatprep.subr.bf16.mxu0 0
  %1047 = vmatpush1.bf16.msra.mxu0 %v745
  %1048 = vmatprep.subr.bf16.mxu0 0
  %1049 = vmatpush1.bf16.msra.mxu0 %v746
  %1050 = vmatprep.subr.bf16.mxu0 0
  %1051 = vmatpush1.bf16.msra.mxu0 %v747
  %1052 = vmatprep.subr.bf16.mxu0 0
  %1053 = vmatpush1.bf16.msra.mxu0 %v748
  %1054 = vmatprep.subr.bf16.mxu0 0
  %1055 = vmatpush1.bf16.msra.mxu0 %v749
  %1056 = vmatprep.subr.bf16.mxu0 0
  %1057 = vmatpush1.bf16.msra.mxu0 %v750
  %1058 = vmatprep.subr.bf16.mxu0 0
  %1059 = vmatpush1.bf16.msra.mxu0 %v751
  %1060 = vmatprep.subr.bf16.mxu0 0
  %1061 = vmatpush1.bf16.msra.mxu0 %v752
  %1062 = vmatprep.subr.bf16.mxu0 0
  %1063 = vmatpush1.bf16.msra.mxu0 %v753
  %1064 = vmatprep.subr.bf16.mxu0 0
  %1065 = vmatpush1.bf16.msra.mxu0 %v754
  %1066 = vmatprep.subr.bf16.mxu0 0
  %1067 = vmatpush1.bf16.msra.mxu0 %v755
  %1068 = vmatprep.subr.bf16.mxu0 0
  %1069 = vmatpush1.bf16.msra.mxu0 %v756
  %1070 = vmatprep.subr.bf16.mxu0 0
  %1071 = vmatpush1.bf16.msra.mxu0 %v757
  %1072 = vmatprep.subr.bf16.mxu0 0
  %1073 = vmatpush1.bf16.msra.mxu0 %v758
  %1074 = vmatprep.subr.bf16.mxu0 0
  %1075 = vmatpush1.bf16.msra.mxu0 %v759
  %1076 = vmatprep.mubr.bf16.mxu0 %v264
  %1077 = vmatmul.mubr.bf16.gmra.mrb[0].mxu0 %v263
  %v1078 = vpop.f32.mrb[0].mxu0
  %v1079 = vadd.f32 %v1039, %v1078
  %v1080 = vpop.f32.mrb[0].mxu0
  %v1081 = vpop.f32.mrb[0].mxu0
  %v1082 = vpop.f32.mrb[0].mxu0
  %1083 = vdwg.mxu0
  %1084 = vmatprep.subr.bf16.mxu0 0
  %1085 = vmatpush1.bf16.msra.mxu0 %v760
  %1086 = vmatprep.subr.bf16.mxu0 0
  %1087 = vmatpush1.bf16.msra.mxu0 %v761
  %1088 = vmatprep.subr.bf16.mxu0 0
  %1089 = vmatpush1.bf16.msra.mxu0 %v762
  %1090 = vmatprep.subr.bf16.mxu0 0
  %1091 = vmatpush1.bf16.msra.mxu0 %v763
  %1092 = vmatprep.subr.bf16.mxu0 0
  %1093 = vmatpush1.bf16.msra.mxu0 %v764
  %1094 = vmatprep.subr.bf16.mxu0 0
  %1095 = vmatpush1.bf16.msra.mxu0 %v765
  %1096 = vmatprep.subr.bf16.mxu0 0
  %1097 = vmatpush1.bf16.msra.mxu0 %v766
  %1098 = vmatprep.subr.bf16.mxu0 0
  %1099 = vmatpush1.bf16.msra.mxu0 %v767
  %1100 = vmatprep.subr.bf16.mxu0 0
  %1101 = vmatpush1.bf16.msra.mxu0 %v768
  %1102 = vmatprep.subr.bf16.mxu0 0
  %1103 = vmatpush1.bf16.msra.mxu0 %v769
  %1104 = vmatprep.subr.bf16.mxu0 0
  %1105 = vmatpush1.bf16.msra.mxu0 %v770
  %1106 = vmatprep.subr.bf16.mxu0 0
  %1107 = vmatpush1.bf16.msra.mxu0 %v771
  %1108 = vmatprep.subr.bf16.mxu0 0
  %1109 = vmatpush1.bf16.msra.mxu0 %v772
  %1110 = vmatprep.subr.bf16.mxu0 0
  %1111 = vmatpush1.bf16.msra.mxu0 %v773
  %1112 = vmatprep.subr.bf16.mxu0 0
  %1113 = vmatpush1.bf16.msra.mxu0 %v774
  %1114 = vmatprep.subr.bf16.mxu0 0
  %1115 = vmatpush1.bf16.msra.mxu0 %v775
  %1116 = vmatprep.mubr.bf16.mxu0 %v266
  %1117 = vmatmul.mubr.bf16.gmra.mrb[0].mxu0 %v265
  %v1118 = vpop.f32.mrb[0].mxu0
  %v1119 = vadd.f32 %v1079, %v1118
  %v1120 = vpop.f32.mrb[0].mxu0
  %v1121 = vpop.f32.mrb[0].mxu0
  %v1122 = vpop.f32.mrb[0].mxu0
  %1123 = vdwg.mxu0
  %1124 = vmatprep.subr.bf16.mxu0 0
  %1125 = vmatpush1.bf16.msra.mxu0 %v776
  %1126 = vmatprep.subr.bf16.mxu0 0
  %1127 = vmatpush1.bf16.msra.mxu0 %v777
  %1128 = vmatprep.subr.bf16.mxu0 0
  %1129 = vmatpush1.bf16.msra.mxu0 %v778
  %1130 = vmatprep.subr.bf16.mxu0 0
  %1131 = vmatpush1.bf16.msra.mxu0 %v779
  %1132 = vmatprep.subr.bf16.mxu0 0
  %1133 = vmatpush1.bf16.msra.mxu0 0
  %1134 = vmatprep.subr.bf16.mxu0 0
  %1135 = vmatpush1.bf16.msra.mxu0 0
  %1136 = vmatprep.subr.bf16.mxu0 0
  %1137 = vmatpush1.bf16.msra.mxu0 0
  %1138 = vmatprep.subr.bf16.mxu0 0
  %1139 = vmatpush1.bf16.msra.mxu0 0
  %1140 = vmatprep.subr.bf16.mxu0 0
  %1141 = vmatpush1.bf16.msra.mxu0 0
  %1142 = vmatprep.subr.bf16.mxu0 0
  %1143 = vmatpush1.bf16.msra.mxu0 0
  %1144 = vmatprep.subr.bf16.mxu0 0
  %1145 = vmatpush1.bf16.msra.mxu0 0
  %1146 = vmatprep.subr.bf16.mxu0 0
  %1147 = vmatpush1.bf16.msra.mxu0 0
  %1148 = vmatprep.subr.bf16.mxu0 0
  %1149 = vmatpush1.bf16.msra.mxu0 0
  %1150 = vmatprep.subr.bf16.mxu0 0
  %1151 = vmatpush1.bf16.msra.mxu0 0
  %1152 = vmatprep.subr.bf16.mxu0 0
  %1153 = vmatpush1.bf16.msra.mxu0 0
  %1154 = vmatprep.subr.bf16.mxu0 0
  %1155 = vmatpush1.bf16.msra.mxu0 0
  %1156 = vmatprep.mubr.bf16.mxu0 0
  %1157 = vmatmul.mubr.bf16.gmra.mrb[0].mxu0 %v882
  %v1158 = vpop.f32.mrb[0].mxu0
  %v1159 = vadd.f32 %v1119, %v1158
  %v1160 = vpop.f32.mrb[0].mxu0
  %v1161 = vpop.f32.mrb[0].mxu0
  %v1162 = vpop.f32.mrb[0].mxu0
  %1163 = vdwg.mxu0
  %v1164 = vpack.c.bf16 %v1159, %v1159
  %v1165 = vld [vmem:[%s3] sm:$0xf]
  %v1166 = vld [vmem:[%s3 + $0x4] sm:$0xf]
  %v1167 = vld [vmem:[%s3 + $0x8] sm:$0xf]
  %v1168 = vld [vmem:[%s3 + $0xc] sm:$0xf]
  %v1169 = vld [vmem:[%s3 + $0x10] sm:$0xf]
  %v1170 = vld [vmem:[%s3 + $0x14] sm:$0xf]
  %v1171 = vld [vmem:[%s3 + $0x18] sm:$0xf]
  %v1172 = vld [vmem:[%s3 + $0x1c] sm:$0xf]
  %v1173 = vld [vmem:[%s3 + $0x20] sm:$0xf]
  %v1174 = vld [vmem:[%s3 + $0x24] sm:$0xf]
  %v1175 = vld [vmem:[%s3 + $0x28] sm:$0xf]
  %v1176 = vld [vmem:[%s3 + $0x2c] sm:$0xf]
  %v1177 = vld [vmem:[%s3 + $0x30] sm:$0xf]
  %v1178 = vld [vmem:[%s3 + $0x34] sm:$0xf]
  %v1179 = vld [vmem:[%s3 + $0x38] sm:$0xf]
  %v1180 = vld [vmem:[%s3 + $0x3c] sm:$0xf]
  %v1181 = vld [vmem:[%s4] sm:$0x1]
  %v1183 = vlaneseq
  %v1184 = vshrl.u32 %v1183, 7
  %v1185 = vsub.s32 0, %v1184
  %v1186 = vrot.slane %v1181, %v1185
  %v1204 = vunpack.c.l.b16 %v1165
  %v1205 = vunpack.c.l.b16 %v1166
  %v1206 = vunpack.c.l.b16 %v1167
  %v1207 = vunpack.c.l.b16 %v1168
  %v1208 = vunpack.c.l.b16 %v1169
  %v1209 = vunpack.c.l.b16 %v1170
  %v1210 = vunpack.c.l.b16 %v1171
  %v1211 = vunpack.c.l.b16 %v1172
  %v1212 = vunpack.c.l.b16 %v1173
  %v1213 = vunpack.c.l.b16 %v1174
  %v1214 = vunpack.c.l.b16 %v1175
  %v1215 = vunpack.c.l.b16 %v1176
  %v1216 = vunpack.c.l.b16 %v1177
  %v1217 = vunpack.c.l.b16 %v1178
  %v1218 = vunpack.c.l.b16 %v1179
  %v1219 = vunpack.c.l.b16 %v1180
  %v1220 = vpack.c.b16 %v1205, %v1204
  %v1221 = vpack.c.b16 %v1207, %v1206
  %v1222 = vpack.c.b16 %v1209, %v1208
  %v1223 = vpack.c.b16 %v1211, %v1210
  %v1224 = vpack.c.b16 %v1213, %v1212
  %v1225 = vpack.c.b16 %v1215, %v1214
  %v1226 = vpack.c.b16 %v1217, %v1216
  %v1227 = vpack.c.b16 %v1219, %v1218
  %1236 = vmatprep.subr.bf16.mxu0 0
  %1237 = vmatpush1.bf16.msra.mxu0 %v1220
  %1238 = vmatprep.subr.bf16.mxu0 0
  %1239 = vmatpush1.bf16.msra.mxu0 %v1221
  %1240 = vmatprep.subr.bf16.mxu0 0
  %1241 = vmatpush1.bf16.msra.mxu0 %v1222
  %1242 = vmatprep.subr.bf16.mxu0 0
  %1243 = vmatpush1.bf16.msra.mxu0 %v1223
  %1244 = vmatprep.subr.bf16.mxu0 0
  %1245 = vmatpush1.bf16.msra.mxu0 %v1224
  %1246 = vmatprep.subr.bf16.mxu0 0
  %1247 = vmatpush1.bf16.msra.mxu0 %v1225
  %1248 = vmatprep.subr.bf16.mxu0 0
  %1249 = vmatpush1.bf16.msra.mxu0 %v1226
  %1250 = vmatprep.subr.bf16.mxu0 0
  %1251 = vmatpush1.bf16.msra.mxu0 %v1227
  %1252 = vmatprep.subr.bf16.mxu0 0
  %1253 = vmatpush1.bf16.msra.mxu0 0
  %1254 = vmatprep.subr.bf16.mxu0 0
  %1255 = vmatpush1.bf16.msra.mxu0 0
  %1256 = vmatprep.subr.bf16.mxu0 0
  %1257 = vmatpush1.bf16.msra.mxu0 0
  %1258 = vmatprep.subr.bf16.mxu0 0
  %1259 = vmatpush1.bf16.msra.mxu0 0
  %1260 = vmatprep.subr.bf16.mxu0 0
  %1261 = vmatpush1.bf16.msra.mxu0 0
  %1262 = vmatprep.subr.bf16.mxu0 0
  %1263 = vmatpush1.bf16.msra.mxu0 0
  %1264 = vmatprep.subr.bf16.mxu0 0
  %1265 = vmatpush1.bf16.msra.mxu0 0
  %1266 = vmatprep.subr.bf16.mxu0 0
  %1267 = vmatpush1.bf16.msra.mxu0 0
  %1268 = vmatprep.mubr.bf16.mxu0 0
  %1269 = vmatmul.mubr.bf16.gmra.mrb[0].mxu0 %v1164
  %v1270 = vpop.f32.mrb[0].mxu0
  %v1271 = vadd.f32 %v1186, %v1270
  %v1272 = vpop.f32.mrb[0].mxu0
  %v1273 = vpop.f32.mrb[0].mxu0
  %v1274 = vpop.f32.mrb[0].mxu0
  %1275 = vdwg.mxu0
  %vm1276 = vcmask 80896
  %v1277 = vsel %vm1276, %v1271, -inf
  %1278 = vmax.xlane.f32.xlu0 %v1277
  %v1279 = vpop.xlane.xlu0 %1278
  %v1280 = vsub.f32 %v1271, %v1279
  %v1281 = vmul.f32 %v1280, 1.442695
  %v1282 = vpow.pop %v1281
  %v1283 = vsel %vm1276, %v1282, 0.0
  %1284 = vadd.xlane.f32.xlu0 %v1283
  %v1285 = vpop.xlane.xlu0 %1284
  %v1286 = vrcp.pop %v1285
  %v1287 = vmul.f32 %v1282, %v1286
  %1288 = vst.msk [vmem:[%s5] sm:$0xff] %vm1276, %v1287
  // Predicated region
  $region22: #{basic_cnn_forward.5} parent=0 // pred_check
    _
  $region23: #{basic_cnn_forward.5} parent=0 // pred_check_branch
    %1290 = sbr.rel (0) target = $region25
  $region24: #{basic_cnn_forward.5} parent=0 // pred_region
    _
  $region25: #{basic_cnn_forward.5} parent=0 // pred_fallthru
    _
  // Predicated region
  $region26: #{basic_cnn_forward.5} parent=0 // pred_check
    _
  $region27: #{basic_cnn_forward.5} parent=0 // pred_check_branch
    %1292 = sbr.rel (0) target = $region29
  $region28: #{basic_cnn_forward.5} parent=0 // pred_region
    _
  $region29: #{basic_cnn_forward.5} parent=0 // pred_fallthru
    _

// kernel: basic_cnn_forward.3
$region0: #{basic_cnn_forward.3}
  #allocation0 [shape = 'u32[]', space=smem, size = 0x4, offset = 0x4, fixed_abs, tag = 'smem constant byte address 0x4 - core index']
  #allocation1 [shape = 'u32[144,128]{1,0:T(1,128)}', space=vmem, size = 0x12000, scoped, tag = 'internal scratch']
  %s0 = inlined_call_operand.vmem [shape: bf16[32,28], index: 0, kind: input, shape index: {}]
  %s1 = inlined_call_operand.vmem [shape: bf16[32,28], index: 1, kind: input, shape index: {}]
  %s2 = inlined_call_operand.vmem [shape: bf16[28,416], index: 2, kind: input, shape index: {}]
  %s3 = inlined_call_operand.vmem [shape: bf16[28,416], index: 3, kind: input, shape index: {}]
  %s4 = inlined_call_operand.vmem [shape: bf16[28,416], index: 4, kind: input, shape index: {}]
  %s5 = inlined_call_operand.vmem [shape: bf16[28,416], index: 5, kind: input, shape index: {}]
  %s6 = inlined_call_operand.vmem [shape: bf16[28,416], index: 6, kind: input, shape index: {}]
  %s7 = inlined_call_operand.hbm [shape: bf16[28,416], index: 7, kind: input, shape index: {}]
  %s8 = inlined_call_operand.vmem [shape: f32[1,416], index: 8, kind: input, shape index: {}]
  %s9 = inlined_call_operand.vmem [shape: bf16[32,416], index: 9, kind: output, shape index: {}]
  %s10 = sld [smem:[#allocation0]]
  $region73: #{basic_cnn_forward.3} parent=0
    _
  %s12 = ssub.s32 1, %s10
  %s13 = scalar_select 0, %s12, %s10
  $region1: #{basic_cnn_forward.3} parent=0
    #allocation2 [shape = 'u8[32768]{0}', space=vmem, size = 0x8000, scoped, tag = 'input window, operand 7, single buffered']
    #allocation3 [shape = 's32[2]{0}', space=sflag, size = 0x8, scoped, tag = 'scoped memory for basic_cnn_forward.3']
    %14 = vsyncpa [#allocation3], 0
    loop: start=0, step=1, limit=4
    $region2: #{basic_cnn_forward.3} parent=1 // loop_pre_header
      _
    $region3: #{basic_cnn_forward.3} parent=1 // loop_header
      %s16 = sphi 0, %s20
      %p17 = scmp.ge.s32.totalorder %s16, 4
      %s26 = sphi 0, %s28
      %s29 = sphi 0, %s26
      %s30 = sphi 0, %s29
      %s46 = sphi 0, %s30
      %s52 = sphi 0, %s54
      %s55 = sphi 0, %s52
      %s56 = sphi 0, %s55
      %s72 = sphi 0, %s56
      %s76 = sphi 0, %s76
      %s78 = sphi 0, %s76
      %s79 = sphi 0, %s78
      %s93 = sphi 0, %s79
      %s97 = sphi 0, %s97
      %s99 = sphi 0, %s97
      %s100 = sphi 0, %s99
      %s114 = sphi 0, %s100
      %s118 = sphi 0, %s118
      %s120 = sphi 0, %s118
      %s121 = sphi 0, %s120
      %s135 = sphi 0, %s121
      %s139 = sphi 0, %s139
      %s141 = sphi 0, %s139
      %s142 = sphi 0, %s141
      %s156 = sphi 0, %s142
      %s160 = sphi 0, %s160
      %s162 = sphi 0, %s160
      %s163 = sphi 0, %s162
      %s177 = sphi 0, %s163
      %s181 = sphi 0, %s181
      %s183 = sphi 0, %s181
      %s184 = sphi 0, %s183
      %s198 = sphi 0, %s184
      %s202 = sphi 0, %s202
      %s204 = sphi 0, %s202
      %s205 = sphi 0, %s204
      %s219 = sphi 0, %s205
      %s225 = sphi 0, %s227
      %s228 = sphi 0, %s225
      %s229 = sphi 0, %s228
      %s245 = sphi 0, %s229
    $region4: #{basic_cnn_forward.3} parent=1 // loop_header_branch
      %19 = sbr.rel (%p17) target = $region8
    $region5: #{basic_cnn_forward.3} parent=1 // loop_body
      %s21 = ssub.s32 %s16, 1
      %s22 = ssub.s32 %s16, 2
      %s23 = sadd.s32 %s16, 1
      %s24 = ssub.s32 %s16, %s23
      %p25 = scmp.eq.s32.totalorder %s24, 0
      %s27 = sadd.s32 %s26, 1
      %s28 = scalar_select %p25, %s26, %s27
      %p31 = pneg %p25
      %p32 = scmp.eq.s32.totalorder %s16, 1
      %p33 = por %p31, %p32
      %p34 = scmp.ne.s32.totalorder %s26, %s29
      %p35 = scmp.eq.s32.totalorder %s16, 0
      %p36 = por %p34, %p35
      %p37 = scmp.ne.s32.totalorder %s26, %s29
      %p38 = scmp.eq.s32.totalorder %s21, 1
      %p39 = por %p37, %p38
      %p40 = scmp.ne.s32.totalorder %s29, %s30
      %p41 = scmp.eq.s32.totalorder %s21, 0
      %p42 = por %p40, %p41
      %p43 = scmp.ne.s32.totalorder %s29, %s30
      %p44 = scmp.eq.s32.totalorder %s22, 1
      %p45 = por %p43, %p44
      %p47 = scmp.ne.s32.totalorder %s30, %s46
      %p48 = scmp.eq.s32.totalorder %s22, 0
      %p49 = por %p47, %p48
      %s50 = ssub.s32 %s16, %s23
      %p51 = scmp.eq.s32.totalorder %s50, 0
      %s53 = sadd.s32 %s52, 1
      %s54 = scalar_select %p51, %s52, %s53
      %p57 = pneg %p51
      %p58 = scmp.eq.s32.totalorder %s16, 1
      %p59 = por %p57, %p58
      %p60 = scmp.ne.s32.totalorder %s52, %s55
      %p61 = scmp.eq.s32.totalorder %s16, 0
      %p62 = por %p60, %p61
      %p63 = scmp.ne.s32.totalorder %s52, %s55
      %p64 = scmp.eq.s32.totalorder %s21, 1
      %p65 = por %p63, %p64
      %p66 = scmp.ne.s32.totalorder %s55, %s56
      %p67 = scmp.eq.s32.totalorder %s21, 0
      %p68 = por %p66, %p67
      %p69 = scmp.ne.s32.totalorder %s55, %s56
      %p70 = scmp.eq.s32.totalorder %s22, 1
      %p71 = por %p69, %p70
      %p73 = scmp.ne.s32.totalorder %s56, %s72
      %p74 = scmp.eq.s32.totalorder %s22, 0
      %p75 = por %p73, %p74
      %s77 = sadd.s32 %s76, 1
      %p80 = scmp.eq.s32.totalorder %s16, 1
      %p81 = scmp.ne.s32.totalorder %s76, %s78
      %p82 = scmp.eq.s32.totalorder %s16, 0
      %p83 = por %p81, %p82
      %p84 = scmp.ne.s32.totalorder %s76, %s78
      %p85 = scmp.eq.s32.totalorder %s21, 1
      %p86 = por %p84, %p85
      %p87 = scmp.ne.s32.totalorder %s78, %s79
      %p88 = scmp.eq.s32.totalorder %s21, 0
      %p89 = por %p87, %p88
      %p90 = scmp.ne.s32.totalorder %s78, %s79
      %p91 = scmp.eq.s32.totalorder %s22, 1
      %p92 = por %p90, %p91
      %p94 = scmp.ne.s32.totalorder %s79, %s93
      %p95 = scmp.eq.s32.totalorder %s22, 0
      %p96 = por %p94, %p95
      %s98 = sadd.s32 %s97, 1
      %p101 = scmp.eq.s32.totalorder %s16, 1
      %p102 = scmp.ne.s32.totalorder %s97, %s99
      %p103 = scmp.eq.s32.totalorder %s16, 0
      %p104 = por %p102, %p103
      %p105 = scmp.ne.s32.totalorder %s97, %s99
      %p106 = scmp.eq.s32.totalorder %s21, 1
      %p107 = por %p105, %p106
      %p108 = scmp.ne.s32.totalorder %s99, %s100
      %p109 = scmp.eq.s32.totalorder %s21, 0
      %p110 = por %p108, %p109
      %p111 = scmp.ne.s32.totalorder %s99, %s100
      %p112 = scmp.eq.s32.totalorder %s22, 1
      %p113 = por %p111, %p112
      %p115 = scmp.ne.s32.totalorder %s100, %s114
      %p116 = scmp.eq.s32.totalorder %s22, 0
      %p117 = por %p115, %p116
      %s119 = sadd.s32 %s118, 1
      %p122 = scmp.eq.s32.totalorder %s16, 1
      %p123 = scmp.ne.s32.totalorder %s118, %s120
      %p124 = scmp.eq.s32.totalorder %s16, 0
      %p125 = por %p123, %p124
      %p126 = scmp.ne.s32.totalorder %s118, %s120
      %p127 = scmp.eq.s32.totalorder %s21, 1
      %p128 = por %p126, %p127
      %p129 = scmp.ne.s32.totalorder %s120, %s121
      %p130 = scmp.eq.s32.totalorder %s21, 0
      %p131 = por %p129, %p130
      %p132 = scmp.ne.s32.totalorder %s120, %s121
      %p133 = scmp.eq.s32.totalorder %s22, 1
      %p134 = por %p132, %p133
      %p136 = scmp.ne.s32.totalorder %s121, %s135
      %p137 = scmp.eq.s32.totalorder %s22, 0
      %p138 = por %p136, %p137
      %s140 = sadd.s32 %s139, 1
      %p143 = scmp.eq.s32.totalorder %s16, 1
      %p144 = scmp.ne.s32.totalorder %s139, %s141
      %p145 = scmp.eq.s32.totalorder %s16, 0
      %p146 = por %p144, %p145
      %p147 = scmp.ne.s32.totalorder %s139, %s141
      %p148 = scmp.eq.s32.totalorder %s21, 1
      %p149 = por %p147, %p148
      %p150 = scmp.ne.s32.totalorder %s141, %s142
      %p151 = scmp.eq.s32.totalorder %s21, 0
      %p152 = por %p150, %p151
      %p153 = scmp.ne.s32.totalorder %s141, %s142
      %p154 = scmp.eq.s32.totalorder %s22, 1
      %p155 = por %p153, %p154
      %p157 = scmp.ne.s32.totalorder %s142, %s156
      %p158 = scmp.eq.s32.totalorder %s22, 0
      %p159 = por %p157, %p158
      %s161 = sadd.s32 %s160, 1
      %p164 = scmp.eq.s32.totalorder %s16, 1
      %p165 = scmp.ne.s32.totalorder %s160, %s162
      %p166 = scmp.eq.s32.totalorder %s16, 0
      %p167 = por %p165, %p166
      %p168 = scmp.ne.s32.totalorder %s160, %s162
      %p169 = scmp.eq.s32.totalorder %s21, 1
      %p170 = por %p168, %p169
      %p171 = scmp.ne.s32.totalorder %s162, %s163
      %p172 = scmp.eq.s32.totalorder %s21, 0
      %p173 = por %p171, %p172
      %p174 = scmp.ne.s32.totalorder %s162, %s163
      %p175 = scmp.eq.s32.totalorder %s22, 1
      %p176 = por %p174, %p175
      %p178 = scmp.ne.s32.totalorder %s163, %s177
      %p179 = scmp.eq.s32.totalorder %s22, 0
      %p180 = por %p178, %p179
      %s182 = sadd.s32 %s181, 1
      %p185 = scmp.eq.s32.totalorder %s16, 1
      %p186 = scmp.ne.s32.totalorder %s181, %s183
      %p187 = scmp.eq.s32.totalorder %s16, 0
      %p188 = por %p186, %p187
      %p189 = scmp.ne.s32.totalorder %s181, %s183
      %p190 = scmp.eq.s32.totalorder %s21, 1
      %p191 = por %p189, %p190
      %p192 = scmp.ne.s32.totalorder %s183, %s184
      %p193 = scmp.eq.s32.totalorder %s21, 0
      %p194 = por %p192, %p193
      %p195 = scmp.ne.s32.totalorder %s183, %s184
      %p196 = scmp.eq.s32.totalorder %s22, 1
      %p197 = por %p195, %p196
      %p199 = scmp.ne.s32.totalorder %s184, %s198
      %p200 = scmp.eq.s32.totalorder %s22, 0
      %p201 = por %p199, %p200
      %s203 = sadd.s32 %s202, 1
      %p206 = scmp.eq.s32.totalorder %s16, 1
      %p207 = scmp.ne.s32.totalorder %s202, %s204
      %p208 = scmp.eq.s32.totalorder %s16, 0
      %p209 = por %p207, %p208
      %p210 = scmp.ne.s32.totalorder %s202, %s204
      %p211 = scmp.eq.s32.totalorder %s21, 1
      %p212 = por %p210, %p211
      %p213 = scmp.ne.s32.totalorder %s204, %s205
      %p214 = scmp.eq.s32.totalorder %s21, 0
      %p215 = por %p213, %p214
      %p216 = scmp.ne.s32.totalorder %s204, %s205
      %p217 = scmp.eq.s32.totalorder %s22, 1
      %p218 = por %p216, %p217
      %p220 = scmp.ne.s32.totalorder %s205, %s219
      %p221 = scmp.eq.s32.totalorder %s22, 0
      %p222 = por %p220, %p221
      %s223 = ssub.s32 %s16, %s23
      %p224 = scmp.eq.s32.totalorder %s223, 0
      %s226 = sadd.s32 %s225, 1
      %s227 = scalar_select %p224, %s225, %s226
      %p230 = pneg %p224
      %p231 = scmp.eq.s32.totalorder %s16, 1
      %p232 = por %p230, %p231
      %p233 = scmp.ne.s32.totalorder %s225, %s228
      %p234 = scmp.eq.s32.totalorder %s16, 0
      %p235 = por %p233, %p234
      %p236 = scmp.ne.s32.totalorder %s225, %s228
      %p237 = scmp.eq.s32.totalorder %s21, 1
      %p238 = por %p236, %p237
      %p239 = scmp.ne.s32.totalorder %s228, %s229
      %p240 = scmp.eq.s32.totalorder %s21, 0
      %p241 = por %p239, %p240
      %p242 = scmp.ne.s32.totalorder %s228, %s229
      %p243 = scmp.eq.s32.totalorder %s22, 1
      %p244 = por %p242, %p243
      %p246 = scmp.ne.s32.totalorder %s229, %s245
      %p247 = scmp.eq.s32.totalorder %s22, 0
      %p248 = por %p246, %p247
      %p249 = scmp.le.s32.totalorder 1, %s16
      %p250 = scmp.lt.s32.totalorder %s16, 3
      %p251 = pnand %p249, %p250
      %p252 = pneg %p251
      // Predicated region
      $region9: #{basic_cnn_forward.3} parent=5 // pred_check
        _
      $region10: #{basic_cnn_forward.3} parent=5 // pred_check_branch
        %254 = sbr.rel (%p251) target = $region12
      $region11: #{basic_cnn_forward.3} parent=5 // pred_region
        %s255 = ssub.s32 %s16, 1
        // Predicated region
        $region13: #{basic_cnn_forward.3} parent=11 // pred_check
          %p256 = pneg %p89
        $region14: #{basic_cnn_forward.3} parent=11 // pred_check_branch
          %258 = sbr.rel (%p256) target = $region16
        $region15: #{basic_cnn_forward.3} parent=11 // pred_region
          _
        $region16: #{basic_cnn_forward.3} parent=11 // pred_fallthru
          _
        // Predicated region
        $region17: #{basic_cnn_forward.3} parent=11 // pred_check
          %p259 = pneg %p110
        $region18: #{basic_cnn_forward.3} parent=11 // pred_check_branch
          %261 = sbr.rel (%p259) target = $region20
        $region19: #{basic_cnn_forward.3} parent=11 // pred_region
          _
        $region20: #{basic_cnn_forward.3} parent=11 // pred_fallthru
          _
        // Predicated region
        $region21: #{basic_cnn_forward.3} parent=11 // pred_check
          %p262 = pneg %p131
        $region22: #{basic_cnn_forward.3} parent=11 // pred_check_branch
          %264 = sbr.rel (%p262) target = $region24
        $region23: #{basic_cnn_forward.3} parent=11 // pred_region
          _
        $region24: #{basic_cnn_forward.3} parent=11 // pred_fallthru
          _
        // Predicated region
        $region25: #{basic_cnn_forward.3} parent=11 // pred_check
          %p265 = pneg %p152
        $region26: #{basic_cnn_forward.3} parent=11 // pred_check_branch
          %267 = sbr.rel (%p265) target = $region28
        $region27: #{basic_cnn_forward.3} parent=11 // pred_region
          _
        $region28: #{basic_cnn_forward.3} parent=11 // pred_fallthru
          _
        // Predicated region
        $region29: #{basic_cnn_forward.3} parent=11 // pred_check
          %p268 = pneg %p173
        $region30: #{basic_cnn_forward.3} parent=11 // pred_check_branch
          %270 = sbr.rel (%p268) target = $region32
        $region31: #{basic_cnn_forward.3} parent=11 // pred_region
          _
        $region32: #{basic_cnn_forward.3} parent=11 // pred_fallthru
          _
        // Predicated region
        $region33: #{basic_cnn_forward.3} parent=11 // pred_check
          %p271 = pneg %p194
        $region34: #{basic_cnn_forward.3} parent=11 // pred_check_branch
          %273 = sbr.rel (%p271) target = $region36
        $region35: #{basic_cnn_forward.3} parent=11 // pred_region
          %s275 = ssub.s32 1024, 1024
          %276 = vsyncadd [#allocation3], %s275
          %s277 = sshll.u32 [#allocation2], 4
          %s278 = int_to_ptr.vmem [resolvable:$true] %s277
          %283 = dma.hbm_to_vmem [thread:$0]  %s7, 1024, %s278, [#allocation3], 256, 256, 16
        $region36: #{basic_cnn_forward.3} parent=11 // pred_fallthru
          _
        // Predicated region
        $region37: #{basic_cnn_forward.3} parent=11 // pred_check
          %p284 = pneg %p215
        $region38: #{basic_cnn_forward.3} parent=11 // pred_check_branch
          %286 = sbr.rel (%p284) target = $region40
        $region39: #{basic_cnn_forward.3} parent=11 // pred_region
          _
        $region40: #{basic_cnn_forward.3} parent=11 // pred_fallthru
          _
      $region12: #{basic_cnn_forward.3} parent=5 // pred_fallthru
        _
      %p287 = scmp.lt.s32.totalorder %s16, 2
      // Predicated region
      $region41: #{basic_cnn_forward.3} parent=5 // pred_check
        %p288 = pneg %p287
      $region42: #{basic_cnn_forward.3} parent=5 // pred_check_branch
        %290 = sbr.rel (%p288) target = $region44
      $region43: #{basic_cnn_forward.3} parent=5 // pred_region
        // Predicated region
        $region45: #{basic_cnn_forward.3} parent=43 // pred_check
          %p291 = pneg %p36
        $region46: #{basic_cnn_forward.3} parent=43 // pred_check_branch
          %293 = sbr.rel (%p291) target = $region48
        $region47: #{basic_cnn_forward.3} parent=43 // pred_region
          %s294 = smul.u32 2, %s16
          %p295 = scmp.lt.s32.totalorder %s294, 3
          %s296 = scalar_select %p295, %s294, 3
          %s297 = smul.addr %s296, 4
          %s298 = scalar_lea.vmem %s0, %s297
          %s299 = smul.u32 2, %s16
        $region48: #{basic_cnn_forward.3} parent=43 // pred_fallthru
          _
        // Predicated region
        $region49: #{basic_cnn_forward.3} parent=43 // pred_check
          %p300 = pneg %p62
        $region50: #{basic_cnn_forward.3} parent=43 // pred_check_branch
          %302 = sbr.rel (%p300) target = $region52
        $region51: #{basic_cnn_forward.3} parent=43 // pred_region
          %s303 = smul.u32 2, %s16
          %p304 = scmp.lt.s32.totalorder %s303, 3
          %s305 = scalar_select %p304, %s303, 3
          %s306 = smul.addr %s305, 4
          %s307 = scalar_lea.vmem %s1, %s306
          %s308 = smul.u32 2, %s16
        $region52: #{basic_cnn_forward.3} parent=43 // pred_fallthru
          _
      $region44: #{basic_cnn_forward.3} parent=5 // pred_fallthru
        _
      %p309 = scmp.le.s32.totalorder 1, %s16
      %p310 = scmp.lt.s32.totalorder %s16, 3
      %p311 = pnand %p309, %p310
      %p312 = pneg %p311
      // Predicated region
      $region53: #{basic_cnn_forward.3} parent=5 // pred_check
        _
      $region54: #{basic_cnn_forward.3} parent=5 // pred_check_branch
        %314 = sbr.rel (%p311) target = $region56
      $region55: #{basic_cnn_forward.3} parent=5 // pred_region
        %s315 = ssub.s32 %s16, 1
        // Predicated region
        $region57: #{basic_cnn_forward.3} parent=55 // pred_check
          %p316 = pneg %p194
        $region58: #{basic_cnn_forward.3} parent=55 // pred_check_branch
          %318 = sbr.rel (%p316) target = $region60
        $region59: #{basic_cnn_forward.3} parent=55 // pred_region
          %319 = dma.done [#allocation3], 1024
        $region60: #{basic_cnn_forward.3} parent=55 // pred_fallthru
          _
        %s320 = smul.u32 2, %s21
        %p321 = scmp.lt.s32.totalorder %s320, 3
        %s322 = scalar_select %p321, %s320, 3
        %s323 = smul.addr %s322, 4
        %s324 = scalar_lea.vmem %s0, %s323
        %p325 = pneg %p42
        %p326 = pneg %p39
        %s327 = smul.u32 2, %s21
        %p328 = scmp.lt.s32.totalorder %s327, 3
        %s329 = scalar_select %p328, %s327, 3
        %s330 = smul.addr %s329, 4
        %s331 = scalar_lea.vmem %s1, %s330
        %p332 = pneg %p68
        %p333 = pneg %p65
        %p334 = pneg %p89
        %p335 = pneg %p86
        %p336 = pneg %p110
        %p337 = pneg %p107
        %p338 = pneg %p131
        %p339 = pneg %p128
        %p340 = pneg %p152
        %p341 = pneg %p149
        %p342 = pneg %p173
        %p343 = pneg %p170
        %p344 = pneg %p194
        %p345 = pneg %p191
        %p346 = pneg %p215
        %p347 = pneg %p212
        %p348 = pneg %p241
        %p349 = pneg %p238
        %s350 = smul.u32 2, %s21
        %p351 = scmp.lt.s32.totalorder %s350, 3
        %s352 = scalar_select %p351, %s350, 3
        %s353 = smul.addr %s352, 4
        %s354 = smul.addr %s353, 4
        %s355 = scalar_lea.vmem %s9, %s354
        %s356 = smul.u32 2, %s21
        %p357 = scmp.lt.s32.totalorder %s356, 3
        %s358 = scalar_select %p357, %s356, 3
        %s359 = smul.addr %s358, 4
        %s360 = scalar_lea.vmem %s0, %s359
        %s361 = smul.u32 2, %s21
        %s362 = smul.u32 2, %s21
        %p363 = scmp.lt.s32.totalorder %s362, 3
        %s364 = scalar_select %p363, %s362, 3
        %s365 = smul.addr %s364, 4
        %s366 = scalar_lea.vmem %s1, %s365
        %s367 = smul.u32 2, %s21
        %s368 = smul.u32 2, %s21
        %p369 = scmp.lt.s32.totalorder %s368, 3
        %s370 = scalar_select %p369, %s368, 3
        %s371 = smul.addr %s370, 4
        %s372 = smul.addr %s371, 4
        %s373 = scalar_lea.vmem %s9, %s372
        %s374 = smul.u32 2, %s21
        %v376 = vld [vmem:[%s360] sm:$0xf]
        %v377 = vld [vmem:[%s360 + $0x4] sm:$0xf]
        %v378 = vld [vmem:[%s366] sm:$0xf]
        %v379 = vld [vmem:[%s366 + $0x4] sm:$0xf]
        %v380 = vld [vmem:[%s2] sm:$0xff]
        %v381 = vld [vmem:[%s2 + $0x8] sm:$0xff]
        %v382 = vld [vmem:[%s2 + $0x10] sm:$0xff]
        %v383 = vld [vmem:[%s2 + $0x18] sm:$0xff]
        %v384 = vld [vmem:[%s2 + $0x20] sm:$0xff]
        %v385 = vld [vmem:[%s2 + $0x28] sm:$0xff]
        %v386 = vld [vmem:[%s2 + $0x30] sm:$0x33]
        %v387 = vld [vmem:[%s2 + $0x38] sm:$0x33]
        %v388 = vld [vmem:[%s3] sm:$0xff]
        %v389 = vld [vmem:[%s3 + $0x8] sm:$0xff]
        %v390 = vld [vmem:[%s3 + $0x10] sm:$0xff]
        %v391 = vld [vmem:[%s3 + $0x18] sm:$0xff]
        %v392 = vld [vmem:[%s3 + $0x20] sm:$0xff]
        %v393 = vld [vmem:[%s3 + $0x28] sm:$0xff]
        %v394 = vld [vmem:[%s3 + $0x30] sm:$0x33]
        %v395 = vld [vmem:[%s3 + $0x38] sm:$0x33]
        %v396 = vld [vmem:[%s4] sm:$0xff]
        %v397 = vld [vmem:[%s4 + $0x8] sm:$0xff]
        %v398 = vld [vmem:[%s4 + $0x10] sm:$0xff]
        %v399 = vld [vmem:[%s4 + $0x18] sm:$0xff]
        %v400 = vld [vmem:[%s4 + $0x20] sm:$0xff]
        %v401 = vld [vmem:[%s4 + $0x28] sm:$0xff]
        %v402 = vld [vmem:[%s4 + $0x30] sm:$0x33]
        %v403 = vld [vmem:[%s4 + $0x38] sm:$0x33]
        %v404 = vld [vmem:[%s5] sm:$0xff]
        %v405 = vld [vmem:[%s5 + $0x8] sm:$0xff]
        %v406 = vld [vmem:[%s5 + $0x10] sm:$0xff]
        %v407 = vld [vmem:[%s5 + $0x18] sm:$0xff]
        %v408 = vld [vmem:[%s5 + $0x20] sm:$0xff]
        %v409 = vld [vmem:[%s5 + $0x28] sm:$0xff]
        %v410 = vld [vmem:[%s5 + $0x30] sm:$0x33]
        %v411 = vld [vmem:[%s5 + $0x38] sm:$0x33]
        %v412 = vld [vmem:[%s6] sm:$0xff]
        %v413 = vld [vmem:[%s6 + $0x8] sm:$0xff]
        %v414 = vld [vmem:[%s6 + $0x10] sm:$0xff]
        %v415 = vld [vmem:[%s6 + $0x18] sm:$0xff]
        %v416 = vld [vmem:[%s6 + $0x20] sm:$0xff]
        %v417 = vld [vmem:[%s6 + $0x28] sm:$0xff]
        %v418 = vld [vmem:[%s6 + $0x30] sm:$0x33]
        %v419 = vld [vmem:[%s6 + $0x38] sm:$0x33]
        %v420 = vld [vmem:[#allocation2] sm:$0xff]
        %v421 = vld [vmem:[#allocation2 + $0x8] sm:$0xff]
        %v422 = vld [vmem:[#allocation2 + $0x10] sm:$0xff]
        %v423 = vld [vmem:[#allocation2 + $0x18] sm:$0xff]
        %v424 = vld [vmem:[#allocation2 + $0x20] sm:$0xff]
        %v425 = vld [vmem:[#allocation2 + $0x28] sm:$0xff]
        %v426 = vld [vmem:[#allocation2 + $0x30] sm:$0x33]
        %v427 = vld [vmem:[#allocation2 + $0x38] sm:$0x33]
        %v430 = vunpack.c.l.b16 %v378
        %v431 = vunpack.c.l.b16 %v379
        %v432 = vpack.c.b16 %v431, %v430
        %v441 = vunpack.c.l.b16 %v388
        %v442 = vunpack.c.h.b16 %v388
        %v443 = vunpack.c.l.b16 %v389
        %v444 = vunpack.c.h.b16 %v389
        %v445 = vunpack.c.l.b16 %v390
        %v446 = vunpack.c.h.b16 %v390
        %v447 = vunpack.c.l.b16 %v391
        %v448 = vunpack.c.h.b16 %v391
        %v449 = vunpack.c.l.b16 %v392
        %v450 = vunpack.c.h.b16 %v392
        %v451 = vunpack.c.l.b16 %v393
        %v452 = vunpack.c.h.b16 %v393
        %v453 = vunpack.c.l.b16 %v394
        %v454 = vunpack.c.h.b16 %v394
        %v455 = vunpack.c.l.b16 %v395
        %v456 = vunpack.c.h.b16 %v395
        %v457 = vpack.c.b16 %v445, %v441
        %v458 = vpack.c.b16 %v446, %v442
        %v459 = vpack.c.b16 %v447, %v443
        %v460 = vpack.c.b16 %v448, %v444
        %v461 = vpack.c.b16 %v453, %v449
        %v462 = vpack.c.b16 %v454, %v450
        %v463 = vpack.c.b16 %v455, %v451
        %v464 = vpack.c.b16 %v456, %v452
        %vm469 = vcmask 228352
        %v471 = vsel %vm469, %v432, 0
        %vm473 = vcmask 1045504
        %v475 = vsel %vm473, %v461, 0
        %v478 = vsel %vm473, %v462, 0
        %v481 = vsel %vm473, %v463, 0
        %v484 = vsel %vm473, %v464, 0
        %486 = vmatprep.subr.bf16.mxu0 %v458
        %487 = vmatpush1.bf16.msra.mxu0 %v457
        %488 = vmatprep.subr.bf16.mxu0 %v478
        %489 = vmatpush1.bf16.msra.mxu0 %v475
        %490 = vmatprep.subr.bf16.mxu0 0
        %491 = vmatpush1.bf16.msra.mxu0 0
        %492 = vmatprep.subr.bf16.mxu0 0
        %493 = vmatpush1.bf16.msra.mxu0 0
        %494 = vmatprep.subr.bf16.mxu0 0
        %495 = vmatpush1.bf16.msra.mxu0 0
        %496 = vmatprep.subr.bf16.mxu0 0
        %497 = vmatpush1.bf16.msra.mxu0 0
        %498 = vmatprep.subr.bf16.mxu0 0
        %499 = vmatpush1.bf16.msra.mxu0 0
        %500 = vmatprep.subr.bf16.mxu0 0
        %501 = vmatpush1.bf16.msra.mxu0 0
        %502 = vmatprep.subr.bf16.mxu0 0
        %503 = vmatpush1.bf16.msra.mxu0 0
        %504 = vmatprep.subr.bf16.mxu0 0
        %505 = vmatpush1.bf16.msra.mxu0 0
        %506 = vmatprep.subr.bf16.mxu0 0
        %507 = vmatpush1.bf16.msra.mxu0 0
        %508 = vmatprep.subr.bf16.mxu0 0
        %509 = vmatpush1.bf16.msra.mxu0 0
        %510 = vmatprep.subr.bf16.mxu0 0
        %511 = vmatpush1.bf16.msra.mxu0 0
        %512 = vmatprep.subr.bf16.mxu0 0
        %513 = vmatpush1.bf16.msra.mxu0 0
        %514 = vmatprep.subr.bf16.mxu0 0
        %515 = vmatpush1.bf16.msra.mxu0 0
        %516 = vmatprep.subr.bf16.mxu0 0
        %517 = vmatpush1.bf16.msra.mxu0 0
        %518 = vmatprep.mubr.bf16.mxu0 0
        %519 = vmatmul.mubr.bf16.gmra.mrb[0].mxu0 %v471
        %v520 = vpop.f32.mrb[0].mxu0
        %v521 = vadd.f32 0.0, %v520
        %v522 = vpop.f32.mrb[0].mxu0
        %v523 = vadd.f32 0.0, %v522
        %v524 = vpop.f32.mrb[0].mxu0
        %v525 = vadd.f32 0.0, %v524
        %v526 = vpop.f32.mrb[0].mxu0
        %v527 = vadd.f32 0.0, %v526
        %528 = vdwg.mxu0
        %529 = vmatprep.subr.bf16.mxu0 %v460
        %530 = vmatpush1.bf16.msra.mxu0 %v459
        %531 = vmatprep.subr.bf16.mxu0 %v484
        %532 = vmatpush1.bf16.msra.mxu0 %v481
        %533 = vmatprep.subr.bf16.mxu0 0
        %534 = vmatpush1.bf16.msra.mxu0 0
        %535 = vmatprep.subr.bf16.mxu0 0
        %536 = vmatpush1.bf16.msra.mxu0 0
        %537 = vmatprep.subr.bf16.mxu0 0
        %538 = vmatpush1.bf16.msra.mxu0 0
        %539 = vmatprep.subr.bf16.mxu0 0
        %540 = vmatpush1.bf16.msra.mxu0 0
        %541 = vmatprep.subr.bf16.mxu0 0
        %542 = vmatpush1.bf16.msra.mxu0 0
        %543 = vmatprep.subr.bf16.mxu0 0
        %544 = vmatpush1.bf16.msra.mxu0 0
        %545 = vmatprep.subr.bf16.mxu0 0
        %546 = vmatpush1.bf16.msra.mxu0 0
        %547 = vmatprep.subr.bf16.mxu0 0
        %548 = vmatpush1.bf16.msra.mxu0 0
        %549 = vmatprep.subr.bf16.mxu0 0
        %550 = vmatpush1.bf16.msra.mxu0 0
        %551 = vmatprep.subr.bf16.mxu0 0
        %552 = vmatpush1.bf16.msra.mxu0 0
        %553 = vmatprep.subr.bf16.mxu0 0
        %554 = vmatpush1.bf16.msra.mxu0 0
        %555 = vmatprep.subr.bf16.mxu0 0
        %556 = vmatpush1.bf16.msra.mxu0 0
        %557 = vmatprep.subr.bf16.mxu0 0
        %558 = vmatpush1.bf16.msra.mxu0 0
        %559 = vmatprep.subr.bf16.mxu0 0
        %560 = vmatpush1.bf16.msra.mxu0 0
        %561 = vmatprep.mubr.bf16.mxu0 0
        %562 = vmatmul.mubr.bf16.gmra.mrb[0].mxu0 %v471
        %v563 = vpop.f32.mrb[0].mxu0
        %v564 = vadd.f32 0.0, %v563
        %v565 = vpop.f32.mrb[0].mxu0
        %v566 = vadd.f32 0.0, %v565
        %v567 = vpop.f32.mrb[0].mxu0
        %v568 = vadd.f32 0.0, %v567
        %v569 = vpop.f32.mrb[0].mxu0
        %v570 = vadd.f32 0.0, %v569
        %571 = vdwg.mxu0
        %v574 = vunpack.c.l.b16 %v376
        %v575 = vunpack.c.l.b16 %v377
        %v576 = vpack.c.b16 %v575, %v574
        %v585 = vunpack.c.l.b16 %v380
        %v586 = vunpack.c.h.b16 %v380
        %v587 = vunpack.c.l.b16 %v381
        %v588 = vunpack.c.h.b16 %v381
        %v589 = vunpack.c.l.b16 %v382
        %v590 = vunpack.c.h.b16 %v382
        %v591 = vunpack.c.l.b16 %v383
        %v592 = vunpack.c.h.b16 %v383
        %v593 = vunpack.c.l.b16 %v384
        %v594 = vunpack.c.h.b16 %v384
        %v595 = vunpack.c.l.b16 %v385
        %v596 = vunpack.c.h.b16 %v385
        %v597 = vunpack.c.l.b16 %v386
        %v598 = vunpack.c.h.b16 %v386
        %v599 = vunpack.c.l.b16 %v387
        %v600 = vunpack.c.h.b16 %v387
        %v601 = vpack.c.b16 %v589, %v585
        %v602 = vpack.c.b16 %v590, %v586
        %v603 = vpack.c.b16 %v591, %v587
        %v604 = vpack.c.b16 %v592, %v588
        %v605 = vpack.c.b16 %v597, %v593
        %v606 = vpack.c.b16 %v598, %v594
        %v607 = vpack.c.b16 %v599, %v595
        %v608 = vpack.c.b16 %v600, %v596
        %v614 = vsel %vm469, %v576, 0
        %v617 = vsel %vm473, %v605, 0
        %v620 = vsel %vm473, %v606, 0
        %v623 = vsel %vm473, %v607, 0
        %v626 = vsel %vm473, %v608, 0
        %628 = vmatprep.subr.bf16.mxu0 %v602
        %629 = vmatpush1.bf16.msra.mxu0 %v601
        %630 = vmatprep.subr.bf16.mxu0 %v620
        %631 = vmatpush1.bf16.msra.mxu0 %v617
        %632 = vmatprep.subr.bf16.mxu0 0
        %633 = vmatpush1.bf16.msra.mxu0 0
        %634 = vmatprep.subr.bf16.mxu0 0
        %635 = vmatpush1.bf16.msra.mxu0 0
        %636 = vmatprep.subr.bf16.mxu0 0
        %637 = vmatpush1.bf16.msra.mxu0 0
        %638 = vmatprep.subr.bf16.mxu0 0
        %639 = vmatpush1.bf16.msra.mxu0 0
        %640 = vmatprep.subr.bf16.mxu0 0
        %641 = vmatpush1.bf16.msra.mxu0 0
        %642 = vmatprep.subr.bf16.mxu0 0
        %643 = vmatpush1.bf16.msra.mxu0 0
        %644 = vmatprep.subr.bf16.mxu0 0
        %645 = vmatpush1.bf16.msra.mxu0 0
        %646 = vmatprep.subr.bf16.mxu0 0
        %647 = vmatpush1.bf16.msra.mxu0 0
        %648 = vmatprep.subr.bf16.mxu0 0
        %649 = vmatpush1.bf16.msra.mxu0 0
        %650 = vmatprep.subr.bf16.mxu0 0
        %651 = vmatpush1.bf16.msra.mxu0 0
        %652 = vmatprep.subr.bf16.mxu0 0
        %653 = vmatpush1.bf16.msra.mxu0 0
        %654 = vmatprep.subr.bf16.mxu0 0
        %655 = vmatpush1.bf16.msra.mxu0 0
        %656 = vmatprep.subr.bf16.mxu0 0
        %657 = vmatpush1.bf16.msra.mxu0 0
        %658 = vmatprep.subr.bf16.mxu0 0
        %659 = vmatpush1.bf16.msra.mxu0 0
        %660 = vmatprep.mubr.bf16.mxu0 0
        %661 = vmatmul.mubr.bf16.gmra.mrb[0].mxu0 %v614
        %v662 = vpop.f32.mrb[0].mxu0
        %v663 = vadd.f32 %v521, %v662
        %v664 = vpop.f32.mrb[0].mxu0
        %v665 = vadd.f32 %v523, %v664
        %v666 = vpop.f32.mrb[0].mxu0
        %v667 = vadd.f32 %v525, %v666
        %v668 = vpop.f32.mrb[0].mxu0
        %v669 = vadd.f32 %v527, %v668
        %670 = vdwg.mxu0
        %671 = vmatprep.subr.bf16.mxu0 %v604
        %672 = vmatpush1.bf16.msra.mxu0 %v603
        %673 = vmatprep.subr.bf16.mxu0 %v626
        %674 = vmatpush1.bf16.msra.mxu0 %v623
        %675 = vmatprep.subr.bf16.mxu0 0
        %676 = vmatpush1.bf16.msra.mxu0 0
        %677 = vmatprep.subr.bf16.mxu0 0
        %678 = vmatpush1.bf16.msra.mxu0 0
        %679 = vmatprep.subr.bf16.mxu0 0
        %680 = vmatpush1.bf16.msra.mxu0 0
        %681 = vmatprep.subr.bf16.mxu0 0
        %682 = vmatpush1.bf16.msra.mxu0 0
        %683 = vmatprep.subr.bf16.mxu0 0
        %684 = vmatpush1.bf16.msra.mxu0 0
        %685 = vmatprep.subr.bf16.mxu0 0
        %686 = vmatpush1.bf16.msra.mxu0 0
        %687 = vmatprep.subr.bf16.mxu0 0
        %688 = vmatpush1.bf16.msra.mxu0 0
        %689 = vmatprep.subr.bf16.mxu0 0
        %690 = vmatpush1.bf16.msra.mxu0 0
        %691 = vmatprep.subr.bf16.mxu0 0
        %692 = vmatpush1.bf16.msra.mxu0 0
        %693 = vmatprep.subr.bf16.mxu0 0
        %694 = vmatpush1.bf16.msra.mxu0 0
        %695 = vmatprep.subr.bf16.mxu0 0
        %696 = vmatpush1.bf16.msra.mxu0 0
        %697 = vmatprep.subr.bf16.mxu0 0
        %698 = vmatpush1.bf16.msra.mxu0 0
        %699 = vmatprep.subr.bf16.mxu0 0
        %700 = vmatpush1.bf16.msra.mxu0 0
        %701 = vmatprep.subr.bf16.mxu0 0
        %702 = vmatpush1.bf16.msra.mxu0 0
        %703 = vmatprep.mubr.bf16.mxu0 0
        %704 = vmatmul.mubr.bf16.gmra.mrb[0].mxu0 %v614
        %v705 = vpop.f32.mrb[0].mxu0
        %v706 = vadd.f32 %v564, %v705
        %v707 = vpop.f32.mrb[0].mxu0
        %v708 = vadd.f32 %v566, %v707
        %v709 = vpop.f32.mrb[0].mxu0
        %v710 = vadd.f32 %v568, %v709
        %v711 = vpop.f32.mrb[0].mxu0
        %v712 = vadd.f32 %v570, %v711
        %713 = vdwg.mxu0
        %v714 = vshrl.u32 %v576, 16
        %v716 = vshll.u32 %v576, 16
        %v718 = vrot.slane %v716, 1
        %v719 = vor.u32 %v714, %v718
        %v728 = vunpack.c.l.b16 %v396
        %v729 = vunpack.c.h.b16 %v396
        %v730 = vunpack.c.l.b16 %v397
        %v731 = vunpack.c.h.b16 %v397
        %v732 = vunpack.c.l.b16 %v398
        %v733 = vunpack.c.h.b16 %v398
        %v734 = vunpack.c.l.b16 %v399
        %v735 = vunpack.c.h.b16 %v399
        %v736 = vunpack.c.l.b16 %v400
        %v737 = vunpack.c.h.b16 %v400
        %v738 = vunpack.c.l.b16 %v401
        %v739 = vunpack.c.h.b16 %v401
        %v740 = vunpack.c.l.b16 %v402
        %v741 = vunpack.c.h.b16 %v402
        %v742 = vunpack.c.l.b16 %v403
        %v743 = vunpack.c.h.b16 %v403
        %v744 = vpack.c.b16 %v732, %v728
        %v745 = vpack.c.b16 %v733, %v729
        %v746 = vpack.c.b16 %v734, %v730
        %v747 = vpack.c.b16 %v735, %v731
        %v748 = vpack.c.b16 %v740, %v736
        %v749 = vpack.c.b16 %v741, %v737
        %v750 = vpack.c.b16 %v742, %v738
        %v751 = vpack.c.b16 %v743, %v739
        %v757 = vsel %vm469, %v719, 0
        %v760 = vsel %vm473, %v748, 0
        %v763 = vsel %vm473, %v749, 0
        %v766 = vsel %vm473, %v750, 0
        %v769 = vsel %vm473, %v751, 0
        %771 = vmatprep.subr.bf16.mxu0 %v745
        %772 = vmatpush1.bf16.msra.mxu0 %v744
        %773 = vmatprep.subr.bf16.mxu0 %v763
        %774 = vmatpush1.bf16.msra.mxu0 %v760
        %775 = vmatprep.subr.bf16.mxu0 0
        %776 = vmatpush1.bf16.msra.mxu0 0
        %777 = vmatprep.subr.bf16.mxu0 0
        %778 = vmatpush1.bf16.msra.mxu0 0
        %779 = vmatprep.subr.bf16.mxu0 0
        %780 = vmatpush1.bf16.msra.mxu0 0
        %781 = vmatprep.subr.bf16.mxu0 0
        %782 = vmatpush1.bf16.msra.mxu0 0
        %783 = vmatprep.subr.bf16.mxu0 0
        %784 = vmatpush1.bf16.msra.mxu0 0
        %785 = vmatprep.subr.bf16.mxu0 0
        %786 = vmatpush1.bf16.msra.mxu0 0
        %787 = vmatprep.subr.bf16.mxu0 0
        %788 = vmatpush1.bf16.msra.mxu0 0
        %789 = vmatprep.subr.bf16.mxu0 0
        %790 = vmatpush1.bf16.msra.mxu0 0
        %791 = vmatprep.subr.bf16.mxu0 0
        %792 = vmatpush1.bf16.msra.mxu0 0
        %793 = vmatprep.subr.bf16.mxu0 0
        %794 = vmatpush1.bf16.msra.mxu0 0
        %795 = vmatprep.subr.bf16.mxu0 0
        %796 = vmatpush1.bf16.msra.mxu0 0
        %797 = vmatprep.subr.bf16.mxu0 0
        %798 = vmatpush1.bf16.msra.mxu0 0
        %799 = vmatprep.subr.bf16.mxu0 0
        %800 = vmatpush1.bf16.msra.mxu0 0
        %801 = vmatprep.subr.bf16.mxu0 0
        %802 = vmatpush1.bf16.msra.mxu0 0
        %803 = vmatprep.mubr.bf16.mxu0 0
        %804 = vmatmul.mubr.bf16.gmra.mrb[0].mxu0 %v757
        %v805 = vpop.f32.mrb[0].mxu0
        %v806 = vadd.f32 0.0, %v805
        %v807 = vpop.f32.mrb[0].mxu0
        %v808 = vadd.f32 0.0, %v807
        %v809 = vpop.f32.mrb[0].mxu0
        %v810 = vadd.f32 0.0, %v809
        %v811 = vpop.f32.mrb[0].mxu0
        %v812 = vadd.f32 0.0, %v811
        %813 = vdwg.mxu0
        %814 = vmatprep.subr.bf16.mxu0 %v747
        %815 = vmatpush1.bf16.msra.mxu0 %v746
        %816 = vmatprep.subr.bf16.mxu0 %v769
        %817 = vmatpush1.bf16.msra.mxu0 %v766
        %818 = vmatprep.subr.bf16.mxu0 0
        %819 = vmatpush1.bf16.msra.mxu0 0
        %820 = vmatprep.subr.bf16.mxu0 0
        %821 = vmatpush1.bf16.msra.mxu0 0
        %822 = vmatprep.subr.bf16.mxu0 0
        %823 = vmatpush1.bf16.msra.mxu0 0
        %824 = vmatprep.subr.bf16.mxu0 0
        %825 = vmatpush1.bf16.msra.mxu0 0
        %826 = vmatprep.subr.bf16.mxu0 0
        %827 = vmatpush1.bf16.msra.mxu0 0
        %828 = vmatprep.subr.bf16.mxu0 0
        %829 = vmatpush1.bf16.msra.mxu0 0
        %830 = vmatprep.subr.bf16.mxu0 0
        %831 = vmatpush1.bf16.msra.mxu0 0
        %832 = vmatprep.subr.bf16.mxu0 0
        %833 = vmatpush1.bf16.msra.mxu0 0
        %834 = vmatprep.subr.bf16.mxu0 0
        %835 = vmatpush1.bf16.msra.mxu0 0
        %836 = vmatprep.subr.bf16.mxu0 0
        %837 = vmatpush1.bf16.msra.mxu0 0
        %838 = vmatprep.subr.bf16.mxu0 0
        %839 = vmatpush1.bf16.msra.mxu0 0
        %840 = vmatprep.subr.bf16.mxu0 0
        %841 = vmatpush1.bf16.msra.mxu0 0
        %842 = vmatprep.subr.bf16.mxu0 0
        %843 = vmatpush1.bf16.msra.mxu0 0
        %844 = vmatprep.subr.bf16.mxu0 0
        %845 = vmatpush1.bf16.msra.mxu0 0
        %846 = vmatprep.mubr.bf16.mxu0 0
        %847 = vmatmul.mubr.bf16.gmra.mrb[0].mxu0 %v757
        %v848 = vpop.f32.mrb[0].mxu0
        %v849 = vadd.f32 0.0, %v848
        %v850 = vpop.f32.mrb[0].mxu0
        %v851 = vadd.f32 0.0, %v850
        %v852 = vpop.f32.mrb[0].mxu0
        %v853 = vadd.f32 0.0, %v852
        %v854 = vpop.f32.mrb[0].mxu0
        %v855 = vadd.f32 0.0, %v854
        %856 = vdwg.mxu0
        %v857 = vadd.f32 %v663, %v806
        %v858 = vadd.f32 %v665, %v808
        %v859 = vadd.f32 %v706, %v849
        %v860 = vadd.f32 %v708, %v851
        %v861 = vadd.f32 %v667, %v810
        %v862 = vadd.f32 %v669, %v812
        %v863 = vadd.f32 %v710, %v853
        %v864 = vadd.f32 %v712, %v855
        %v873 = vunpack.c.l.b16 %v412
        %v874 = vunpack.c.h.b16 %v412
        %v875 = vunpack.c.l.b16 %v413
        %v876 = vunpack.c.h.b16 %v413
        %v877 = vunpack.c.l.b16 %v414
        %v878 = vunpack.c.h.b16 %v414
        %v879 = vunpack.c.l.b16 %v415
        %v880 = vunpack.c.h.b16 %v415
        %v881 = vunpack.c.l.b16 %v416
        %v882 = vunpack.c.h.b16 %v416
        %v883 = vunpack.c.l.b16 %v417
        %v884 = vunpack.c.h.b16 %v417
        %v885 = vunpack.c.l.b16 %v418
        %v886 = vunpack.c.h.b16 %v418
        %v887 = vunpack.c.l.b16 %v419
        %v888 = vunpack.c.h.b16 %v419
        %v889 = vpack.c.b16 %v877, %v873
        %v890 = vpack.c.b16 %v878, %v874
        %v891 = vpack.c.b16 %v879, %v875
        %v892 = vpack.c.b16 %v880, %v876
        %v893 = vpack.c.b16 %v885, %v881
        %v894 = vpack.c.b16 %v886, %v882
        %v895 = vpack.c.b16 %v887, %v883
        %v896 = vpack.c.b16 %v888, %v884
        %v902 = vsel %vm473, %v893, 0
        %v905 = vsel %vm473, %v894, 0
        %v908 = vsel %vm473, %v895, 0
        %v911 = vsel %vm473, %v896, 0
        %913 = vmatprep.subr.bf16.mxu0 %v890
        %914 = vmatpush1.bf16.msra.mxu0 %v889
        %915 = vmatprep.subr.bf16.mxu0 %v905
        %916 = vmatpush1.bf16.msra.mxu0 %v902
        %917 = vmatprep.subr.bf16.mxu0 0
        %918 = vmatpush1.bf16.msra.mxu0 0
        %919 = vmatprep.subr.bf16.mxu0 0
        %920 = vmatpush1.bf16.msra.mxu0 0
        %921 = vmatprep.subr.bf16.mxu0 0
        %922 = vmatpush1.bf16.msra.mxu0 0
        %923 = vmatprep.subr.bf16.mxu0 0
        %924 = vmatpush1.bf16.msra.mxu0 0
        %925 = vmatprep.subr.bf16.mxu0 0
        %926 = vmatpush1.bf16.msra.mxu0 0
        %927 = vmatprep.subr.bf16.mxu0 0
        %928 = vmatpush1.bf16.msra.mxu0 0
        %929 = vmatprep.subr.bf16.mxu0 0
        %930 = vmatpush1.bf16.msra.mxu0 0
        %931 = vmatprep.subr.bf16.mxu0 0
        %932 = vmatpush1.bf16.msra.mxu0 0
        %933 = vmatprep.subr.bf16.mxu0 0
        %934 = vmatpush1.bf16.msra.mxu0 0
        %935 = vmatprep.subr.bf16.mxu0 0
        %936 = vmatpush1.bf16.msra.mxu0 0
        %937 = vmatprep.subr.bf16.mxu0 0
        %938 = vmatpush1.bf16.msra.mxu0 0
        %939 = vmatprep.subr.bf16.mxu0 0
        %940 = vmatpush1.bf16.msra.mxu0 0
        %941 = vmatprep.subr.bf16.mxu0 0
        %942 = vmatpush1.bf16.msra.mxu0 0
        %943 = vmatprep.subr.bf16.mxu0 0
        %944 = vmatpush1.bf16.msra.mxu0 0
        %945 = vmatprep.mubr.bf16.mxu0 0
        %946 = vmatmul.mubr.bf16.gmra.mrb[0].mxu0 %v471
        %v947 = vpop.f32.mrb[0].mxu0
        %v948 = vadd.f32 0.0, %v947
        %v949 = vpop.f32.mrb[0].mxu0
        %v950 = vadd.f32 0.0, %v949
        %v951 = vpop.f32.mrb[0].mxu0
        %v952 = vadd.f32 0.0, %v951
        %v953 = vpop.f32.mrb[0].mxu0
        %v954 = vadd.f32 0.0, %v953
        %955 = vdwg.mxu0
        %956 = vmatprep.subr.bf16.mxu0 %v892
        %957 = vmatpush1.bf16.msra.mxu0 %v891
        %958 = vmatprep.subr.bf16.mxu0 %v911
        %959 = vmatpush1.bf16.msra.mxu0 %v908
        %960 = vmatprep.subr.bf16.mxu0 0
        %961 = vmatpush1.bf16.msra.mxu0 0
        %962 = vmatprep.subr.bf16.mxu0 0
        %963 = vmatpush1.bf16.msra.mxu0 0
        %964 = vmatprep.subr.bf16.mxu0 0
        %965 = vmatpush1.bf16.msra.mxu0 0
        %966 = vmatprep.subr.bf16.mxu0 0
        %967 = vmatpush1.bf16.msra.mxu0 0
        %968 = vmatprep.subr.bf16.mxu0 0
        %969 = vmatpush1.bf16.msra.mxu0 0
        %970 = vmatprep.subr.bf16.mxu0 0
        %971 = vmatpush1.bf16.msra.mxu0 0
        %972 = vmatprep.subr.bf16.mxu0 0
        %973 = vmatpush1.bf16.msra.mxu0 0
        %974 = vmatprep.subr.bf16.mxu0 0
        %975 = vmatpush1.bf16.msra.mxu0 0
        %976 = vmatprep.subr.bf16.mxu0 0
        %977 = vmatpush1.bf16.msra.mxu0 0
        %978 = vmatprep.subr.bf16.mxu0 0
        %979 = vmatpush1.bf16.msra.mxu0 0
        %980 = vmatprep.subr.bf16.mxu0 0
        %981 = vmatpush1.bf16.msra.mxu0 0
        %982 = vmatprep.subr.bf16.mxu0 0
        %983 = vmatpush1.bf16.msra.mxu0 0
        %984 = vmatprep.subr.bf16.mxu0 0
        %985 = vmatpush1.bf16.msra.mxu0 0
        %986 = vmatprep.subr.bf16.mxu0 0
        %987 = vmatpush1.bf16.msra.mxu0 0
        %988 = vmatprep.mubr.bf16.mxu0 0
        %989 = vmatmul.mubr.bf16.gmra.mrb[0].mxu0 %v471
        %v990 = vpop.f32.mrb[0].mxu0
        %v991 = vadd.f32 0.0, %v990
        %v992 = vpop.f32.mrb[0].mxu0
        %v993 = vadd.f32 0.0, %v992
        %v994 = vpop.f32.mrb[0].mxu0
        %v995 = vadd.f32 0.0, %v994
        %v996 = vpop.f32.mrb[0].mxu0
        %v997 = vadd.f32 0.0, %v996
        %998 = vdwg.mxu0
        %v1007 = vunpack.c.l.b16 %v404
        %v1008 = vunpack.c.h.b16 %v404
        %v1009 = vunpack.c.l.b16 %v405
        %v1010 = vunpack.c.h.b16 %v405
        %v1011 = vunpack.c.l.b16 %v406
        %v1012 = vunpack.c.h.b16 %v406
        %v1013 = vunpack.c.l.b16 %v407
        %v1014 = vunpack.c.h.b16 %v407
        %v1015 = vunpack.c.l.b16 %v408
        %v1016 = vunpack.c.h.b16 %v408
        %v1017 = vunpack.c.l.b16 %v409
        %v1018 = vunpack.c.h.b16 %v409
        %v1019 = vunpack.c.l.b16 %v410
        %v1020 = vunpack.c.h.b16 %v410
        %v1021 = vunpack.c.l.b16 %v411
        %v1022 = vunpack.c.h.b16 %v411
        %v1023 = vpack.c.b16 %v1011, %v1007
        %v1024 = vpack.c.b16 %v1012, %v1008
        %v1025 = vpack.c.b16 %v1013, %v1009
        %v1026 = vpack.c.b16 %v1014, %v1010
        %v1027 = vpack.c.b16 %v1019, %v1015
        %v1028 = vpack.c.b16 %v1020, %v1016
        %v1029 = vpack.c.b16 %v1021, %v1017
        %v1030 = vpack.c.b16 %v1022, %v1018
        %v1036 = vsel %vm473, %v1027, 0
        %v1039 = vsel %vm473, %v1028, 0
        %v1042 = vsel %vm473, %v1029, 0
        %v1045 = vsel %vm473, %v1030, 0
        %1047 = vmatprep.subr.bf16.mxu0 %v1024
        %1048 = vmatpush1.bf16.msra.mxu0 %v1023
        %1049 = vmatprep.subr.bf16.mxu0 %v1039
        %1050 = vmatpush1.bf16.msra.mxu0 %v1036
        %1051 = vmatprep.subr.bf16.mxu0 0
        %1052 = vmatpush1.bf16.msra.mxu0 0
        %1053 = vmatprep.subr.bf16.mxu0 0
        %1054 = vmatpush1.bf16.msra.mxu0 0
        %1055 = vmatprep.subr.bf16.mxu0 0
        %1056 = vmatpush1.bf16.msra.mxu0 0
        %1057 = vmatprep.subr.bf16.mxu0 0
        %1058 = vmatpush1.bf16.msra.mxu0 0
        %1059 = vmatprep.subr.bf16.mxu0 0
        %1060 = vmatpush1.bf16.msra.mxu0 0
        %1061 = vmatprep.subr.bf16.mxu0 0
        %1062 = vmatpush1.bf16.msra.mxu0 0
        %1063 = vmatprep.subr.bf16.mxu0 0
        %1064 = vmatpush1.bf16.msra.mxu0 0
        %1065 = vmatprep.subr.bf16.mxu0 0
        %1066 = vmatpush1.bf16.msra.mxu0 0
        %1067 = vmatprep.subr.bf16.mxu0 0
        %1068 = vmatpush1.bf16.msra.mxu0 0
        %1069 = vmatprep.subr.bf16.mxu0 0
        %1070 = vmatpush1.bf16.msra.mxu0 0
        %1071 = vmatprep.subr.bf16.mxu0 0
        %1072 = vmatpush1.bf16.msra.mxu0 0
        %1073 = vmatprep.subr.bf16.mxu0 0
        %1074 = vmatpush1.bf16.msra.mxu0 0
        %1075 = vmatprep.subr.bf16.mxu0 0
        %1076 = vmatpush1.bf16.msra.mxu0 0
        %1077 = vmatprep.subr.bf16.mxu0 0
        %1078 = vmatpush1.bf16.msra.mxu0 0
        %1079 = vmatprep.mubr.bf16.mxu0 0
        %1080 = vmatmul.mubr.bf16.gmra.mrb[0].mxu0 %v614
        %v1081 = vpop.f32.mrb[0].mxu0
        %v1082 = vadd.f32 %v948, %v1081
        %v1083 = vpop.f32.mrb[0].mxu0
        %v1084 = vadd.f32 %v950, %v1083
        %v1085 = vpop.f32.mrb[0].mxu0
        %v1086 = vadd.f32 %v952, %v1085
        %v1087 = vpop.f32.mrb[0].mxu0
        %v1088 = vadd.f32 %v954, %v1087
        %1089 = vdwg.mxu0
        %1090 = vmatprep.subr.bf16.mxu0 %v1026
        %1091 = vmatpush1.bf16.msra.mxu0 %v1025
        %1092 = vmatprep.subr.bf16.mxu0 %v1045
        %1093 = vmatpush1.bf16.msra.mxu0 %v1042
        %1094 = vmatprep.subr.bf16.mxu0 0
        %1095 = vmatpush1.bf16.msra.mxu0 0
        %1096 = vmatprep.subr.bf16.mxu0 0
        %1097 = vmatpush1.bf16.msra.mxu0 0
        %1098 = vmatprep.subr.bf16.mxu0 0
        %1099 = vmatpush1.bf16.msra.mxu0 0
        %1100 = vmatprep.subr.bf16.mxu0 0
        %1101 = vmatpush1.bf16.msra.mxu0 0
        %1102 = vmatprep.subr.bf16.mxu0 0
        %1103 = vmatpush1.bf16.msra.mxu0 0
        %1104 = vmatprep.subr.bf16.mxu0 0
        %1105 = vmatpush1.bf16.msra.mxu0 0
        %1106 = vmatprep.subr.bf16.mxu0 0
        %1107 = vmatpush1.bf16.msra.mxu0 0
        %1108 = vmatprep.subr.bf16.mxu0 0
        %1109 = vmatpush1.bf16.msra.mxu0 0
        %1110 = vmatprep.subr.bf16.mxu0 0
        %1111 = vmatpush1.bf16.msra.mxu0 0
        %1112 = vmatprep.subr.bf16.mxu0 0
        %1113 = vmatpush1.bf16.msra.mxu0 0
        %1114 = vmatprep.subr.bf16.mxu0 0
        %1115 = vmatpush1.bf16.msra.mxu0 0
        %1116 = vmatprep.subr.bf16.mxu0 0
        %1117 = vmatpush1.bf16.msra.mxu0 0
        %1118 = vmatprep.subr.bf16.mxu0 0
        %1119 = vmatpush1.bf16.msra.mxu0 0
        %1120 = vmatprep.subr.bf16.mxu0 0
        %1121 = vmatpush1.bf16.msra.mxu0 0
        %1122 = vmatprep.mubr.bf16.mxu0 0
        %1123 = vmatmul.mubr.bf16.gmra.mrb[0].mxu0 %v614
        %v1124 = vpop.f32.mrb[0].mxu0
        %v1125 = vadd.f32 %v991, %v1124
        %v1126 = vpop.f32.mrb[0].mxu0
        %v1127 = vadd.f32 %v993, %v1126
        %v1128 = vpop.f32.mrb[0].mxu0
        %v1129 = vadd.f32 %v995, %v1128
        %v1130 = vpop.f32.mrb[0].mxu0
        %v1131 = vadd.f32 %v997, %v1130
        %1132 = vdwg.mxu0
        %v1141 = vunpack.c.l.b16 %v420
        %v1142 = vunpack.c.h.b16 %v420
        %v1143 = vunpack.c.l.b16 %v421
        %v1144 = vunpack.c.h.b16 %v421
        %v1145 = vunpack.c.l.b16 %v422
        %v1146 = vunpack.c.h.b16 %v422
        %v1147 = vunpack.c.l.b16 %v423
        %v1148 = vunpack.c.h.b16 %v423
        %v1149 = vunpack.c.l.b16 %v424
        %v1150 = vunpack.c.h.b16 %v424
        %v1151 = vunpack.c.l.b16 %v425
        %v1152 = vunpack.c.h.b16 %v425
        %v1153 = vunpack.c.l.b16 %v426
        %v1154 = vunpack.c.h.b16 %v426
        %v1155 = vunpack.c.l.b16 %v427
        %v1156 = vunpack.c.h.b16 %v427
        %v1157 = vpack.c.b16 %v1145, %v1141
        %v1158 = vpack.c.b16 %v1146, %v1142
        %v1159 = vpack.c.b16 %v1147, %v1143
        %v1160 = vpack.c.b16 %v1148, %v1144
        %v1161 = vpack.c.b16 %v1153, %v1149
        %v1162 = vpack.c.b16 %v1154, %v1150
        %v1163 = vpack.c.b16 %v1155, %v1151
        %v1164 = vpack.c.b16 %v1156, %v1152
        %v1170 = vsel %vm473, %v1161, 0
        %v1173 = vsel %vm473, %v1162, 0
        %v1176 = vsel %vm473, %v1163, 0
        %v1179 = vsel %vm473, %v1164, 0
        %1181 = vmatprep.subr.bf16.mxu0 %v1158
        %1182 = vmatpush1.bf16.msra.mxu0 %v1157
        %1183 = vmatprep.subr.bf16.mxu0 %v1173
        %1184 = vmatpush1.bf16.msra.mxu0 %v1170
        %1185 = vmatprep.subr.bf16.mxu0 0
        %1186 = vmatpush1.bf16.msra.mxu0 0
        %1187 = vmatprep.subr.bf16.mxu0 0
        %1188 = vmatpush1.bf16.msra.mxu0 0
        %1189 = vmatprep.subr.bf16.mxu0 0
        %1190 = vmatpush1.bf16.msra.mxu0 0
        %1191 = vmatprep.subr.bf16.mxu0 0
        %1192 = vmatpush1.bf16.msra.mxu0 0
        %1193 = vmatprep.subr.bf16.mxu0 0
        %1194 = vmatpush1.bf16.msra.mxu0 0
        %1195 = vmatprep.subr.bf16.mxu0 0
        %1196 = vmatpush1.bf16.msra.mxu0 0
        %1197 = vmatprep.subr.bf16.mxu0 0
        %1198 = vmatpush1.bf16.msra.mxu0 0
        %1199 = vmatprep.subr.bf16.mxu0 0
        %1200 = vmatpush1.bf16.msra.mxu0 0
        %1201 = vmatprep.subr.bf16.mxu0 0
        %1202 = vmatpush1.bf16.msra.mxu0 0
        %1203 = vmatprep.subr.bf16.mxu0 0
        %1204 = vmatpush1.bf16.msra.mxu0 0
        %1205 = vmatprep.subr.bf16.mxu0 0
        %1206 = vmatpush1.bf16.msra.mxu0 0
        %1207 = vmatprep.subr.bf16.mxu0 0
        %1208 = vmatpush1.bf16.msra.mxu0 0
        %1209 = vmatprep.subr.bf16.mxu0 0
        %1210 = vmatpush1.bf16.msra.mxu0 0
        %1211 = vmatprep.subr.bf16.mxu0 0
        %1212 = vmatpush1.bf16.msra.mxu0 0
        %1213 = vmatprep.mubr.bf16.mxu0 0
        %1214 = vmatmul.mubr.bf16.gmra.mrb[0].mxu0 %v757
        %v1215 = vpop.f32.mrb[0].mxu0
        %v1216 = vadd.f32 0.0, %v1215
        %v1217 = vpop.f32.mrb[0].mxu0
        %v1218 = vadd.f32 0.0, %v1217
        %v1219 = vpop.f32.mrb[0].mxu0
        %v1220 = vadd.f32 0.0, %v1219
        %v1221 = vpop.f32.mrb[0].mxu0
        %v1222 = vadd.f32 0.0, %v1221
        %1223 = vdwg.mxu0
        %1224 = vmatprep.subr.bf16.mxu0 %v1160
        %1225 = vmatpush1.bf16.msra.mxu0 %v1159
        %1226 = vmatprep.subr.bf16.mxu0 %v1179
        %1227 = vmatpush1.bf16.msra.mxu0 %v1176
        %1228 = vmatprep.subr.bf16.mxu0 0
        %1229 = vmatpush1.bf16.msra.mxu0 0
        %1230 = vmatprep.subr.bf16.mxu0 0
        %1231 = vmatpush1.bf16.msra.mxu0 0
        %1232 = vmatprep.subr.bf16.mxu0 0
        %1233 = vmatpush1.bf16.msra.mxu0 0
        %1234 = vmatprep.subr.bf16.mxu0 0
        %1235 = vmatpush1.bf16.msra.mxu0 0
        %1236 = vmatprep.subr.bf16.mxu0 0
        %1237 = vmatpush1.bf16.msra.mxu0 0
        %1238 = vmatprep.subr.bf16.mxu0 0
        %1239 = vmatpush1.bf16.msra.mxu0 0
        %1240 = vmatprep.subr.bf16.mxu0 0
        %1241 = vmatpush1.bf16.msra.mxu0 0
        %1242 = vmatprep.subr.bf16.mxu0 0
        %1243 = vmatpush1.bf16.msra.mxu0 0
        %1244 = vmatprep.subr.bf16.mxu0 0
        %1245 = vmatpush1.bf16.msra.mxu0 0
        %1246 = vmatprep.subr.bf16.mxu0 0
        %1247 = vmatpush1.bf16.msra.mxu0 0
        %1248 = vmatprep.subr.bf16.mxu0 0
        %1249 = vmatpush1.bf16.msra.mxu0 0
        %1250 = vmatprep.subr.bf16.mxu0 0
        %1251 = vmatpush1.bf16.msra.mxu0 0
        %1252 = vmatprep.subr.bf16.mxu0 0
        %1253 = vmatpush1.bf16.msra.mxu0 0
        %1254 = vmatprep.subr.bf16.mxu0 0
        %1255 = vmatpush1.bf16.msra.mxu0 0
        %1256 = vmatprep.mubr.bf16.mxu0 0
        %1257 = vmatmul.mubr.bf16.gmra.mrb[0].mxu0 %v757
        %v1258 = vpop.f32.mrb[0].mxu0
        %v1259 = vadd.f32 0.0, %v1258
        %v1260 = vpop.f32.mrb[0].mxu0
        %v1261 = vadd.f32 0.0, %v1260
        %v1262 = vpop.f32.mrb[0].mxu0
        %v1263 = vadd.f32 0.0, %v1262
        %v1264 = vpop.f32.mrb[0].mxu0
        %v1265 = vadd.f32 0.0, %v1264
        %1266 = vdwg.mxu0
        %v1267 = vadd.f32 %v1082, %v1216
        %v1268 = vadd.f32 %v1084, %v1218
        %v1269 = vadd.f32 %v1125, %v1259
        %v1270 = vadd.f32 %v1127, %v1261
        %v1271 = vadd.f32 %v1086, %v1220
        %v1272 = vadd.f32 %v1088, %v1222
        %v1273 = vadd.f32 %v1129, %v1263
        %v1274 = vadd.f32 %v1131, %v1265
        %v1275 = vmax.f32 %v857, %v1267
        %v1276 = vmax.f32 %v858, %v1268
        %v1277 = vmax.f32 %v859, %v1269
        %v1278 = vmax.f32 %v860, %v1270
        %v1279 = vmax.f32 %v861, %v1271
        %v1280 = vmax.f32 %v862, %v1272
        %v1281 = vmax.f32 %v863, %v1273
        %v1282 = vmax.f32 %v864, %v1274
        %1283 = vmatprep.subr.bf16.mxu0 %v458
        %1284 = vmatpush1.bf16.msra.mxu0 %v457
        %1285 = vmatprep.subr.bf16.mxu0 %v478
        %1286 = vmatpush1.bf16.msra.mxu0 %v475
        %1287 = vmatprep.subr.bf16.mxu0 0
        %1288 = vmatpush1.bf16.msra.mxu0 0
        %1289 = vmatprep.subr.bf16.mxu0 0
        %1290 = vmatpush1.bf16.msra.mxu0 0
        %1291 = vmatprep.subr.bf16.mxu0 0
        %1292 = vmatpush1.bf16.msra.mxu0 0
        %1293 = vmatprep.subr.bf16.mxu0 0
        %1294 = vmatpush1.bf16.msra.mxu0 0
        %1295 = vmatprep.subr.bf16.mxu0 0
        %1296 = vmatpush1.bf16.msra.mxu0 0
        %1297 = vmatprep.subr.bf16.mxu0 0
        %1298 = vmatpush1.bf16.msra.mxu0 0
        %1299 = vmatprep.subr.bf16.mxu0 0
        %1300 = vmatpush1.bf16.msra.mxu0 0
        %1301 = vmatprep.subr.bf16.mxu0 0
        %1302 = vmatpush1.bf16.msra.mxu0 0
        %1303 = vmatprep.subr.bf16.mxu0 0
        %1304 = vmatpush1.bf16.msra.mxu0 0
        %1305 = vmatprep.subr.bf16.mxu0 0
        %1306 = vmatpush1.bf16.msra.mxu0 0
        %1307 = vmatprep.subr.bf16.mxu0 0
        %1308 = vmatpush1.bf16.msra.mxu0 0
        %1309 = vmatprep.subr.bf16.mxu0 0
        %1310 = vmatpush1.bf16.msra.mxu0 0
        %1311 = vmatprep.subr.bf16.mxu0 0
        %1312 = vmatpush1.bf16.msra.mxu0 0
        %1313 = vmatprep.subr.bf16.mxu0 0
        %1314 = vmatpush1.bf16.msra.mxu0 0
        %1315 = vmatprep.mubr.bf16.mxu0 0
        %1316 = vmatmul.mubr.bf16.gmra.mrb[0].mxu0 %v757
        %v1317 = vpop.f32.mrb[0].mxu0
        %v1318 = vadd.f32 0.0, %v1317
        %v1319 = vpop.f32.mrb[0].mxu0
        %v1320 = vadd.f32 0.0, %v1319
        %v1321 = vpop.f32.mrb[0].mxu0
        %v1322 = vadd.f32 0.0, %v1321
        %v1323 = vpop.f32.mrb[0].mxu0
        %v1324 = vadd.f32 0.0, %v1323
        %1325 = vdwg.mxu0
        %1326 = vmatprep.subr.bf16.mxu0 %v460
        %1327 = vmatpush1.bf16.msra.mxu0 %v459
        %1328 = vmatprep.subr.bf16.mxu0 %v484
        %1329 = vmatpush1.bf16.msra.mxu0 %v481
        %1330 = vmatprep.subr.bf16.mxu0 0
        %1331 = vmatpush1.bf16.msra.mxu0 0
        %1332 = vmatprep.subr.bf16.mxu0 0
        %1333 = vmatpush1.bf16.msra.mxu0 0
        %1334 = vmatprep.subr.bf16.mxu0 0
        %1335 = vmatpush1.bf16.msra.mxu0 0
        %1336 = vmatprep.subr.bf16.mxu0 0
        %1337 = vmatpush1.bf16.msra.mxu0 0
        %1338 = vmatprep.subr.bf16.mxu0 0
        %1339 = vmatpush1.bf16.msra.mxu0 0
        %1340 = vmatprep.subr.bf16.mxu0 0
        %1341 = vmatpush1.bf16.msra.mxu0 0
        %1342 = vmatprep.subr.bf16.mxu0 0
        %1343 = vmatpush1.bf16.msra.mxu0 0
        %1344 = vmatprep.subr.bf16.mxu0 0
        %1345 = vmatpush1.bf16.msra.mxu0 0
        %1346 = vmatprep.subr.bf16.mxu0 0
        %1347 = vmatpush1.bf16.msra.mxu0 0
        %1348 = vmatprep.subr.bf16.mxu0 0
        %1349 = vmatpush1.bf16.msra.mxu0 0
        %1350 = vmatprep.subr.bf16.mxu0 0
        %1351 = vmatpush1.bf16.msra.mxu0 0
        %1352 = vmatprep.subr.bf16.mxu0 0
        %1353 = vmatpush1.bf16.msra.mxu0 0
        %1354 = vmatprep.subr.bf16.mxu0 0
        %1355 = vmatpush1.bf16.msra.mxu0 0
        %1356 = vmatprep.subr.bf16.mxu0 0
        %1357 = vmatpush1.bf16.msra.mxu0 0
        %1358 = vmatprep.mubr.bf16.mxu0 0
        %1359 = vmatmul.mubr.bf16.gmra.mrb[0].mxu0 %v757
        %v1360 = vpop.f32.mrb[0].mxu0
        %v1361 = vadd.f32 0.0, %v1360
        %v1362 = vpop.f32.mrb[0].mxu0
        %v1363 = vadd.f32 0.0, %v1362
        %v1364 = vpop.f32.mrb[0].mxu0
        %v1365 = vadd.f32 0.0, %v1364
        %v1366 = vpop.f32.mrb[0].mxu0
        %v1367 = vadd.f32 0.0, %v1366
        %1368 = vdwg.mxu0
        %1369 = vmatprep.subr.bf16.mxu0 %v602
        %1370 = vmatpush1.bf16.msra.mxu0 %v601
        %1371 = vmatprep.subr.bf16.mxu0 %v620
        %1372 = vmatpush1.bf16.msra.mxu0 %v617
        %1373 = vmatprep.subr.bf16.mxu0 0
        %1374 = vmatpush1.bf16.msra.mxu0 0
        %1375 = vmatprep.subr.bf16.mxu0 0
        %1376 = vmatpush1.bf16.msra.mxu0 0
        %1377 = vmatprep.subr.bf16.mxu0 0
        %1378 = vmatpush1.bf16.msra.mxu0 0
        %1379 = vmatprep.subr.bf16.mxu0 0
        %1380 = vmatpush1.bf16.msra.mxu0 0
        %1381 = vmatprep.subr.bf16.mxu0 0
        %1382 = vmatpush1.bf16.msra.mxu0 0
        %1383 = vmatprep.subr.bf16.mxu0 0
        %1384 = vmatpush1.bf16.msra.mxu0 0
        %1385 = vmatprep.subr.bf16.mxu0 0
        %1386 = vmatpush1.bf16.msra.mxu0 0
        %1387 = vmatprep.subr.bf16.mxu0 0
        %1388 = vmatpush1.bf16.msra.mxu0 0
        %1389 = vmatprep.subr.bf16.mxu0 0
        %1390 = vmatpush1.bf16.msra.mxu0 0
        %1391 = vmatprep.subr.bf16.mxu0 0
        %1392 = vmatpush1.bf16.msra.mxu0 0
        %1393 = vmatprep.subr.bf16.mxu0 0
        %1394 = vmatpush1.bf16.msra.mxu0 0
        %1395 = vmatprep.subr.bf16.mxu0 0
        %1396 = vmatpush1.bf16.msra.mxu0 0
        %1397 = vmatprep.subr.bf16.mxu0 0
        %1398 = vmatpush1.bf16.msra.mxu0 0
        %1399 = vmatprep.subr.bf16.mxu0 0
        %1400 = vmatpush1.bf16.msra.mxu0 0
        %1401 = vmatprep.mubr.bf16.mxu0 0
        %1402 = vmatmul.mubr.bf16.gmra.mrb[0].mxu0 %v471
        %v1403 = vpop.f32.mrb[0].mxu0
        %v1404 = vadd.f32 %v1318, %v1403
        %v1405 = vpop.f32.mrb[0].mxu0
        %v1406 = vadd.f32 %v1320, %v1405
        %v1407 = vpop.f32.mrb[0].mxu0
        %v1408 = vadd.f32 %v1322, %v1407
        %v1409 = vpop.f32.mrb[0].mxu0
        %v1410 = vadd.f32 %v1324, %v1409
        %1411 = vdwg.mxu0
        %1412 = vmatprep.subr.bf16.mxu0 %v604
        %1413 = vmatpush1.bf16.msra.mxu0 %v603
        %1414 = vmatprep.subr.bf16.mxu0 %v626
        %1415 = vmatpush1.bf16.msra.mxu0 %v623
        %1416 = vmatprep.subr.bf16.mxu0 0
        %1417 = vmatpush1.bf16.msra.mxu0 0
        %1418 = vmatprep.subr.bf16.mxu0 0
        %1419 = vmatpush1.bf16.msra.mxu0 0
        %1420 = vmatprep.subr.bf16.mxu0 0
        %1421 = vmatpush1.bf16.msra.mxu0 0
        %1422 = vmatprep.subr.bf16.mxu0 0
        %1423 = vmatpush1.bf16.msra.mxu0 0
        %1424 = vmatprep.subr.bf16.mxu0 0
        %1425 = vmatpush1.bf16.msra.mxu0 0
        %1426 = vmatprep.subr.bf16.mxu0 0
        %1427 = vmatpush1.bf16.msra.mxu0 0
        %1428 = vmatprep.subr.bf16.mxu0 0
        %1429 = vmatpush1.bf16.msra.mxu0 0
        %1430 = vmatprep.subr.bf16.mxu0 0
        %1431 = vmatpush1.bf16.msra.mxu0 0
        %1432 = vmatprep.subr.bf16.mxu0 0
        %1433 = vmatpush1.bf16.msra.mxu0 0
        %1434 = vmatprep.subr.bf16.mxu0 0
        %1435 = vmatpush1.bf16.msra.mxu0 0
        %1436 = vmatprep.subr.bf16.mxu0 0
        %1437 = vmatpush1.bf16.msra.mxu0 0
        %1438 = vmatprep.subr.bf16.mxu0 0
        %1439 = vmatpush1.bf16.msra.mxu0 0
        %1440 = vmatprep.subr.bf16.mxu0 0
        %1441 = vmatpush1.bf16.msra.mxu0 0
        %1442 = vmatprep.subr.bf16.mxu0 0
        %1443 = vmatpush1.bf16.msra.mxu0 0
        %1444 = vmatprep.mubr.bf16.mxu0 0
        %1445 = vmatmul.mubr.bf16.gmra.mrb[0].mxu0 %v471
        %v1446 = vpop.f32.mrb[0].mxu0
        %v1447 = vadd.f32 %v1361, %v1446
        %v1448 = vpop.f32.mrb[0].mxu0
        %v1449 = vadd.f32 %v1363, %v1448
        %v1450 = vpop.f32.mrb[0].mxu0
        %v1451 = vadd.f32 %v1365, %v1450
        %v1452 = vpop.f32.mrb[0].mxu0
        %v1453 = vadd.f32 %v1367, %v1452
        %1454 = vdwg.mxu0
        %v1455 = vshrl.u32 %v432, 16
        %v1457 = vshll.u32 %v432, 16
        %v1459 = vrot.slane %v1457, 1
        %v1460 = vor.u32 %v1455, %v1459
        %v1462 = vsel %vm469, %v1460, 0
        %1464 = vmatprep.subr.bf16.mxu0 %v745
        %1465 = vmatpush1.bf16.msra.mxu0 %v744
        %1466 = vmatprep.subr.bf16.mxu0 %v763
        %1467 = vmatpush1.bf16.msra.mxu0 %v760
        %1468 = vmatprep.subr.bf16.mxu0 0
        %1469 = vmatpush1.bf16.msra.mxu0 0
        %1470 = vmatprep.subr.bf16.mxu0 0
        %1471 = vmatpush1.bf16.msra.mxu0 0
        %1472 = vmatprep.subr.bf16.mxu0 0
        %1473 = vmatpush1.bf16.msra.mxu0 0
        %1474 = vmatprep.subr.bf16.mxu0 0
        %1475 = vmatpush1.bf16.msra.mxu0 0
        %1476 = vmatprep.subr.bf16.mxu0 0
        %1477 = vmatpush1.bf16.msra.mxu0 0
        %1478 = vmatprep.subr.bf16.mxu0 0
        %1479 = vmatpush1.bf16.msra.mxu0 0
        %1480 = vmatprep.subr.bf16.mxu0 0
        %1481 = vmatpush1.bf16.msra.mxu0 0
        %1482 = vmatprep.subr.bf16.mxu0 0
        %1483 = vmatpush1.bf16.msra.mxu0 0
        %1484 = vmatprep.subr.bf16.mxu0 0
        %1485 = vmatpush1.bf16.msra.mxu0 0
        %1486 = vmatprep.subr.bf16.mxu0 0
        %1487 = vmatpush1.bf16.msra.mxu0 0
        %1488 = vmatprep.subr.bf16.mxu0 0
        %1489 = vmatpush1.bf16.msra.mxu0 0
        %1490 = vmatprep.subr.bf16.mxu0 0
        %1491 = vmatpush1.bf16.msra.mxu0 0
        %1492 = vmatprep.subr.bf16.mxu0 0
        %1493 = vmatpush1.bf16.msra.mxu0 0
        %1494 = vmatprep.subr.bf16.mxu0 0
        %1495 = vmatpush1.bf16.msra.mxu0 0
        %1496 = vmatprep.mubr.bf16.mxu0 0
        %1497 = vmatmul.mubr.bf16.gmra.mrb[0].mxu0 %v1462
        %v1498 = vpop.f32.mrb[0].mxu0
        %v1499 = vadd.f32 0.0, %v1498
        %v1500 = vpop.f32.mrb[0].mxu0
        %v1501 = vadd.f32 0.0, %v1500
        %v1502 = vpop.f32.mrb[0].mxu0
        %v1503 = vadd.f32 0.0, %v1502
        %v1504 = vpop.f32.mrb[0].mxu0
        %v1505 = vadd.f32 0.0, %v1504
        %1506 = vdwg.mxu0
        %1507 = vmatprep.subr.bf16.mxu0 %v747
        %1508 = vmatpush1.bf16.msra.mxu0 %v746
        %1509 = vmatprep.subr.bf16.mxu0 %v769
        %1510 = vmatpush1.bf16.msra.mxu0 %v766
        %1511 = vmatprep.subr.bf16.mxu0 0
        %1512 = vmatpush1.bf16.msra.mxu0 0
        %1513 = vmatprep.subr.bf16.mxu0 0
        %1514 = vmatpush1.bf16.msra.mxu0 0
        %1515 = vmatprep.subr.bf16.mxu0 0
        %1516 = vmatpush1.bf16.msra.mxu0 0
        %1517 = vmatprep.subr.bf16.mxu0 0
        %1518 = vmatpush1.bf16.msra.mxu0 0
        %1519 = vmatprep.subr.bf16.mxu0 0
        %1520 = vmatpush1.bf16.msra.mxu0 0
        %1521 = vmatprep.subr.bf16.mxu0 0
        %1522 = vmatpush1.bf16.msra.mxu0 0
        %1523 = vmatprep.subr.bf16.mxu0 0
        %1524 = vmatpush1.bf16.msra.mxu0 0
        %1525 = vmatprep.subr.bf16.mxu0 0
        %1526 = vmatpush1.bf16.msra.mxu0 0
        %1527 = vmatprep.subr.bf16.mxu0 0
        %1528 = vmatpush1.bf16.msra.mxu0 0
        %1529 = vmatprep.subr.bf16.mxu0 0
        %1530 = vmatpush1.bf16.msra.mxu0 0
        %1531 = vmatprep.subr.bf16.mxu0 0
        %1532 = vmatpush1.bf16.msra.mxu0 0
        %1533 = vmatprep.subr.bf16.mxu0 0
        %1534 = vmatpush1.bf16.msra.mxu0 0
        %1535 = vmatprep.subr.bf16.mxu0 0
        %1536 = vmatpush1.bf16.msra.mxu0 0
        %1537 = vmatprep.subr.bf16.mxu0 0
        %1538 = vmatpush1.bf16.msra.mxu0 0
        %1539 = vmatprep.mubr.bf16.mxu0 0
        %1540 = vmatmul.mubr.bf16.gmra.mrb[0].mxu0 %v1462
        %v1541 = vpop.f32.mrb[0].mxu0
        %v1542 = vadd.f32 0.0, %v1541
        %v1543 = vpop.f32.mrb[0].mxu0
        %v1544 = vadd.f32 0.0, %v1543
        %v1545 = vpop.f32.mrb[0].mxu0
        %v1546 = vadd.f32 0.0, %v1545
        %v1547 = vpop.f32.mrb[0].mxu0
        %v1548 = vadd.f32 0.0, %v1547
        %1549 = vdwg.mxu0
        %v1550 = vadd.f32 %v1404, %v1499
        %v1551 = vadd.f32 %v1406, %v1501
        %v1552 = vadd.f32 %v1447, %v1542
        %v1553 = vadd.f32 %v1449, %v1544
        %v1554 = vadd.f32 %v1408, %v1503
        %v1555 = vadd.f32 %v1410, %v1505
        %v1556 = vadd.f32 %v1451, %v1546
        %v1557 = vadd.f32 %v1453, %v1548
        %v1558 = vmax.f32 %v1275, %v1550
        %v1559 = vmax.f32 %v1276, %v1551
        %v1560 = vmax.f32 %v1277, %v1552
        %v1561 = vmax.f32 %v1278, %v1553
        %v1562 = vmax.f32 %v1279, %v1554
        %v1563 = vmax.f32 %v1280, %v1555
        %v1564 = vmax.f32 %v1281, %v1556
        %v1565 = vmax.f32 %v1282, %v1557
        %1566 = vmatprep.subr.bf16.mxu0 %v890
        %1567 = vmatpush1.bf16.msra.mxu0 %v889
        %1568 = vmatprep.subr.bf16.mxu0 %v905
        %1569 = vmatpush1.bf16.msra.mxu0 %v902
        %1570 = vmatprep.subr.bf16.mxu0 0
        %1571 = vmatpush1.bf16.msra.mxu0 0
        %1572 = vmatprep.subr.bf16.mxu0 0
        %1573 = vmatpush1.bf16.msra.mxu0 0
        %1574 = vmatprep.subr.bf16.mxu0 0
        %1575 = vmatpush1.bf16.msra.mxu0 0
        %1576 = vmatprep.subr.bf16.mxu0 0
        %1577 = vmatpush1.bf16.msra.mxu0 0
        %1578 = vmatprep.subr.bf16.mxu0 0
        %1579 = vmatpush1.bf16.msra.mxu0 0
        %1580 = vmatprep.subr.bf16.mxu0 0
        %1581 = vmatpush1.bf16.msra.mxu0 0
        %1582 = vmatprep.subr.bf16.mxu0 0
        %1583 = vmatpush1.bf16.msra.mxu0 0
        %1584 = vmatprep.subr.bf16.mxu0 0
        %1585 = vmatpush1.bf16.msra.mxu0 0
        %1586 = vmatprep.subr.bf16.mxu0 0
        %1587 = vmatpush1.bf16.msra.mxu0 0
        %1588 = vmatprep.subr.bf16.mxu0 0
        %1589 = vmatpush1.bf16.msra.mxu0 0
        %1590 = vmatprep.subr.bf16.mxu0 0
        %1591 = vmatpush1.bf16.msra.mxu0 0
        %1592 = vmatprep.subr.bf16.mxu0 0
        %1593 = vmatpush1.bf16.msra.mxu0 0
        %1594 = vmatprep.subr.bf16.mxu0 0
        %1595 = vmatpush1.bf16.msra.mxu0 0
        %1596 = vmatprep.subr.bf16.mxu0 0
        %1597 = vmatpush1.bf16.msra.mxu0 0
        %1598 = vmatprep.mubr.bf16.mxu0 0
        %1599 = vmatmul.mubr.bf16.gmra.mrb[0].mxu0 %v757
        %v1600 = vpop.f32.mrb[0].mxu0
        %v1601 = vadd.f32 0.0, %v1600
        %v1602 = vpop.f32.mrb[0].mxu0
        %v1603 = vadd.f32 0.0, %v1602
        %v1604 = vpop.f32.mrb[0].mxu0
        %v1605 = vadd.f32 0.0, %v1604
        %v1606 = vpop.f32.mrb[0].mxu0
        %v1607 = vadd.f32 0.0, %v1606
        %1608 = vdwg.mxu0
        %1609 = vmatprep.subr.bf16.mxu0 %v892
        %1610 = vmatpush1.bf16.msra.mxu0 %v891
        %1611 = vmatprep.subr.bf16.mxu0 %v911
        %1612 = vmatpush1.bf16.msra.mxu0 %v908
        %1613 = vmatprep.subr.bf16.mxu0 0
        %1614 = vmatpush1.bf16.msra.mxu0 0
        %1615 = vmatprep.subr.bf16.mxu0 0
        %1616 = vmatpush1.bf16.msra.mxu0 0
        %1617 = vmatprep.subr.bf16.mxu0 0
        %1618 = vmatpush1.bf16.msra.mxu0 0
        %1619 = vmatprep.subr.bf16.mxu0 0
        %1620 = vmatpush1.bf16.msra.mxu0 0
        %1621 = vmatprep.subr.bf16.mxu0 0
        %1622 = vmatpush1.bf16.msra.mxu0 0
        %1623 = vmatprep.subr.bf16.mxu0 0
        %1624 = vmatpush1.bf16.msra.mxu0 0
        %1625 = vmatprep.subr.bf16.mxu0 0
        %1626 = vmatpush1.bf16.msra.mxu0 0
        %1627 = vmatprep.subr.bf16.mxu0 0
        %1628 = vmatpush1.bf16.msra.mxu0 0
        %1629 = vmatprep.subr.bf16.mxu0 0
        %1630 = vmatpush1.bf16.msra.mxu0 0
        %1631 = vmatprep.subr.bf16.mxu0 0
        %1632 = vmatpush1.bf16.msra.mxu0 0
        %1633 = vmatprep.subr.bf16.mxu0 0
        %1634 = vmatpush1.bf16.msra.mxu0 0
        %1635 = vmatprep.subr.bf16.mxu0 0
        %1636 = vmatpush1.bf16.msra.mxu0 0
        %1637 = vmatprep.subr.bf16.mxu0 0
        %1638 = vmatpush1.bf16.msra.mxu0 0
        %1639 = vmatprep.subr.bf16.mxu0 0
        %1640 = vmatpush1.bf16.msra.mxu0 0
        %1641 = vmatprep.mubr.bf16.mxu0 0
        %1642 = vmatmul.mubr.bf16.gmra.mrb[0].mxu0 %v757
        %v1643 = vpop.f32.mrb[0].mxu0
        %v1644 = vadd.f32 0.0, %v1643
        %v1645 = vpop.f32.mrb[0].mxu0
        %v1646 = vadd.f32 0.0, %v1645
        %v1647 = vpop.f32.mrb[0].mxu0
        %v1648 = vadd.f32 0.0, %v1647
        %v1649 = vpop.f32.mrb[0].mxu0
        %v1650 = vadd.f32 0.0, %v1649
        %1651 = vdwg.mxu0
        %1652 = vmatprep.subr.bf16.mxu0 %v1024
        %1653 = vmatpush1.bf16.msra.mxu0 %v1023
        %1654 = vmatprep.subr.bf16.mxu0 %v1039
        %1655 = vmatpush1.bf16.msra.mxu0 %v1036
        %1656 = vmatprep.subr.bf16.mxu0 0
        %1657 = vmatpush1.bf16.msra.mxu0 0
        %1658 = vmatprep.subr.bf16.mxu0 0
        %1659 = vmatpush1.bf16.msra.mxu0 0
        %1660 = vmatprep.subr.bf16.mxu0 0
        %1661 = vmatpush1.bf16.msra.mxu0 0
        %1662 = vmatprep.subr.bf16.mxu0 0
        %1663 = vmatpush1.bf16.msra.mxu0 0
        %1664 = vmatprep.subr.bf16.mxu0 0
        %1665 = vmatpush1.bf16.msra.mxu0 0
        %1666 = vmatprep.subr.bf16.mxu0 0
        %1667 = vmatpush1.bf16.msra.mxu0 0
        %1668 = vmatprep.subr.bf16.mxu0 0
        %1669 = vmatpush1.bf16.msra.mxu0 0
        %1670 = vmatprep.subr.bf16.mxu0 0
        %1671 = vmatpush1.bf16.msra.mxu0 0
        %1672 = vmatprep.subr.bf16.mxu0 0
        %1673 = vmatpush1.bf16.msra.mxu0 0
        %1674 = vmatprep.subr.bf16.mxu0 0
        %1675 = vmatpush1.bf16.msra.mxu0 0
        %1676 = vmatprep.subr.bf16.mxu0 0
        %1677 = vmatpush1.bf16.msra.mxu0 0
        %1678 = vmatprep.subr.bf16.mxu0 0
        %1679 = vmatpush1.bf16.msra.mxu0 0
        %1680 = vmatprep.subr.bf16.mxu0 0
        %1681 = vmatpush1.bf16.msra.mxu0 0
        %1682 = vmatprep.subr.bf16.mxu0 0
        %1683 = vmatpush1.bf16.msra.mxu0 0
        %1684 = vmatprep.mubr.bf16.mxu0 0
        %1685 = vmatmul.mubr.bf16.gmra.mrb[0].mxu0 %v471
        %v1686 = vpop.f32.mrb[0].mxu0
        %v1687 = vadd.f32 %v1601, %v1686
        %v1688 = vpop.f32.mrb[0].mxu0
        %v1689 = vadd.f32 %v1603, %v1688
        %v1690 = vpop.f32.mrb[0].mxu0
        %v1691 = vadd.f32 %v1605, %v1690
        %v1692 = vpop.f32.mrb[0].mxu0
        %v1693 = vadd.f32 %v1607, %v1692
        %1694 = vdwg.mxu0
        %1695 = vmatprep.subr.bf16.mxu0 %v1026
        %1696 = vmatpush1.bf16.msra.mxu0 %v1025
        %1697 = vmatprep.subr.bf16.mxu0 %v1045
        %1698 = vmatpush1.bf16.msra.mxu0 %v1042
        %1699 = vmatprep.subr.bf16.mxu0 0
        %1700 = vmatpush1.bf16.msra.mxu0 0
        %1701 = vmatprep.subr.bf16.mxu0 0
        %1702 = vmatpush1.bf16.msra.mxu0 0
        %1703 = vmatprep.subr.bf16.mxu0 0
        %1704 = vmatpush1.bf16.msra.mxu0 0
        %1705 = vmatprep.subr.bf16.mxu0 0
        %1706 = vmatpush1.bf16.msra.mxu0 0
        %1707 = vmatprep.subr.bf16.mxu0 0
        %1708 = vmatpush1.bf16.msra.mxu0 0
        %1709 = vmatprep.subr.bf16.mxu0 0
        %1710 = vmatpush1.bf16.msra.mxu0 0
        %1711 = vmatprep.subr.bf16.mxu0 0
        %1712 = vmatpush1.bf16.msra.mxu0 0
        %1713 = vmatprep.subr.bf16.mxu0 0
        %1714 = vmatpush1.bf16.msra.mxu0 0
        %1715 = vmatprep.subr.bf16.mxu0 0
        %1716 = vmatpush1.bf16.msra.mxu0 0
        %1717 = vmatprep.subr.bf16.mxu0 0
        %1718 = vmatpush1.bf16.msra.mxu0 0
        %1719 = vmatprep.subr.bf16.mxu0 0
        %1720 = vmatpush1.bf16.msra.mxu0 0
        %1721 = vmatprep.subr.bf16.mxu0 0
        %1722 = vmatpush1.bf16.msra.mxu0 0
        %1723 = vmatprep.subr.bf16.mxu0 0
        %1724 = vmatpush1.bf16.msra.mxu0 0
        %1725 = vmatprep.subr.bf16.mxu0 0
        %1726 = vmatpush1.bf16.msra.mxu0 0
        %1727 = vmatprep.mubr.bf16.mxu0 0
        %1728 = vmatmul.mubr.bf16.gmra.mrb[0].mxu0 %v471
        %v1729 = vpop.f32.mrb[0].mxu0
        %v1730 = vadd.f32 %v1644, %v1729
        %v1731 = vpop.f32.mrb[0].mxu0
        %v1732 = vadd.f32 %v1646, %v1731
        %v1733 = vpop.f32.mrb[0].mxu0
        %v1734 = vadd.f32 %v1648, %v1733
        %v1735 = vpop.f32.mrb[0].mxu0
        %v1736 = vadd.f32 %v1650, %v1735
        %1737 = vdwg.mxu0
        %1738 = vmatprep.subr.bf16.mxu0 %v1158
        %1739 = vmatpush1.bf16.msra.mxu0 %v1157
        %1740 = vmatprep.subr.bf16.mxu0 %v1173
        %1741 = vmatpush1.bf16.msra.mxu0 %v1170
        %1742 = vmatprep.subr.bf16.mxu0 0
        %1743 = vmatpush1.bf16.msra.mxu0 0
        %1744 = vmatprep.subr.bf16.mxu0 0
        %1745 = vmatpush1.bf16.msra.mxu0 0
        %1746 = vmatprep.subr.bf16.mxu0 0
        %1747 = vmatpush1.bf16.msra.mxu0 0
        %1748 = vmatprep.subr.bf16.mxu0 0
        %1749 = vmatpush1.bf16.msra.mxu0 0
        %1750 = vmatprep.subr.bf16.mxu0 0
        %1751 = vmatpush1.bf16.msra.mxu0 0
        %1752 = vmatprep.subr.bf16.mxu0 0
        %1753 = vmatpush1.bf16.msra.mxu0 0
        %1754 = vmatprep.subr.bf16.mxu0 0
        %1755 = vmatpush1.bf16.msra.mxu0 0
        %1756 = vmatprep.subr.bf16.mxu0 0
        %1757 = vmatpush1.bf16.msra.mxu0 0
        %1758 = vmatprep.subr.bf16.mxu0 0
        %1759 = vmatpush1.bf16.msra.mxu0 0
        %1760 = vmatprep.subr.bf16.mxu0 0
        %1761 = vmatpush1.bf16.msra.mxu0 0
        %1762 = vmatprep.subr.bf16.mxu0 0
        %1763 = vmatpush1.bf16.msra.mxu0 0
        %1764 = vmatprep.subr.bf16.mxu0 0
        %1765 = vmatpush1.bf16.msra.mxu0 0
        %1766 = vmatprep.subr.bf16.mxu0 0
        %1767 = vmatpush1.bf16.msra.mxu0 0
        %1768 = vmatprep.subr.bf16.mxu0 0
        %1769 = vmatpush1.bf16.msra.mxu0 0
        %1770 = vmatprep.mubr.bf16.mxu0 0
        %1771 = vmatmul.mubr.bf16.gmra.mrb[0].mxu0 %v1462
        %v1772 = vpop.f32.mrb[0].mxu0
        %v1773 = vadd.f32 0.0, %v1772
        %v1774 = vpop.f32.mrb[0].mxu0
        %v1775 = vadd.f32 0.0, %v1774
        %v1776 = vpop.f32.mrb[0].mxu0
        %v1777 = vadd.f32 0.0, %v1776
        %v1778 = vpop.f32.mrb[0].mxu0
        %v1779 = vadd.f32 0.0, %v1778
        %1780 = vdwg.mxu0
        %1781 = vmatprep.subr.bf16.mxu0 %v1160
        %1782 = vmatpush1.bf16.msra.mxu0 %v1159
        %1783 = vmatprep.subr.bf16.mxu0 %v1179
        %1784 = vmatpush1.bf16.msra.mxu0 %v1176
        %1785 = vmatprep.subr.bf16.mxu0 0
        %1786 = vmatpush1.bf16.msra.mxu0 0
        %1787 = vmatprep.subr.bf16.mxu0 0
        %1788 = vmatpush1.bf16.msra.mxu0 0
        %1789 = vmatprep.subr.bf16.mxu0 0
        %1790 = vmatpush1.bf16.msra.mxu0 0
        %1791 = vmatprep.subr.bf16.mxu0 0
        %1792 = vmatpush1.bf16.msra.mxu0 0
        %1793 = vmatprep.subr.bf16.mxu0 0
        %1794 = vmatpush1.bf16.msra.mxu0 0
        %1795 = vmatprep.subr.bf16.mxu0 0
        %1796 = vmatpush1.bf16.msra.mxu0 0
        %1797 = vmatprep.subr.bf16.mxu0 0
        %1798 = vmatpush1.bf16.msra.mxu0 0
        %1799 = vmatprep.subr.bf16.mxu0 0
        %1800 = vmatpush1.bf16.msra.mxu0 0
        %1801 = vmatprep.subr.bf16.mxu0 0
        %1802 = vmatpush1.bf16.msra.mxu0 0
        %1803 = vmatprep.subr.bf16.mxu0 0
        %1804 = vmatpush1.bf16.msra.mxu0 0
        %1805 = vmatprep.subr.bf16.mxu0 0
        %1806 = vmatpush1.bf16.msra.mxu0 0
        %1807 = vmatprep.subr.bf16.mxu0 0
        %1808 = vmatpush1.bf16.msra.mxu0 0
        %1809 = vmatprep.subr.bf16.mxu0 0
        %1810 = vmatpush1.bf16.msra.mxu0 0
        %1811 = vmatprep.subr.bf16.mxu0 0
        %1812 = vmatpush1.bf16.msra.mxu0 0
        %1813 = vmatprep.mubr.bf16.mxu0 0
        %1814 = vmatmul.mubr.bf16.gmra.mrb[0].mxu0 %v1462
        %v1815 = vpop.f32.mrb[0].mxu0
        %v1816 = vadd.f32 0.0, %v1815
        %v1817 = vpop.f32.mrb[0].mxu0
        %v1818 = vadd.f32 0.0, %v1817
        %v1819 = vpop.f32.mrb[0].mxu0
        %v1820 = vadd.f32 0.0, %v1819
        %v1821 = vpop.f32.mrb[0].mxu0
        %v1822 = vadd.f32 0.0, %v1821
        %1823 = vdwg.mxu0
        %v1824 = vadd.f32 %v1687, %v1773
        %v1825 = vadd.f32 %v1689, %v1775
        %v1826 = vadd.f32 %v1730, %v1816
        %v1827 = vadd.f32 %v1732, %v1818
        %v1828 = vadd.f32 %v1691, %v1777
        %v1829 = vadd.f32 %v1693, %v1779
        %v1830 = vadd.f32 %v1734, %v1820
        %v1831 = vadd.f32 %v1736, %v1822
        %v1832 = vmax.f32 %v1558, %v1824
        %v1833 = vmax.f32 %v1559, %v1825
        %v1834 = vmax.f32 %v1560, %v1826
        %v1835 = vmax.f32 %v1561, %v1827
        %v1836 = vmax.f32 %v1562, %v1828
        %v1837 = vmax.f32 %v1563, %v1829
        %v1838 = vmax.f32 %v1564, %v1830
        %v1839 = vmax.f32 %v1565, %v1831
        %v1840 = vld [vmem:[%s8] sm:$0xf]
        %v1842 = vlaneseq
        %v1843 = vshrl.u32 %v1842, 7
        %v1844 = vsub.s32 0, %v1843
        %v1845 = vrot.slane %v1840, %v1844
        %v1846 = vlaneseq
        %v1847 = vshrl.u32 %v1846, 7
        %v1848 = vsub.s32 1, %v1847
        %v1849 = vrot.slane %v1840, %v1848
        %v1850 = vlaneseq
        %v1851 = vshrl.u32 %v1850, 7
        %v1852 = vsub.s32 2, %v1851
        %v1853 = vrot.slane %v1840, %v1852
        %v1854 = vlaneseq
        %v1855 = vshrl.u32 %v1854, 7
        %v1856 = vsub.s32 3, %v1855
        %v1857 = vrot.slane %v1840, %v1856
        %v1862 = vadd.f32 %v1832, %v1845
        %v1863 = vadd.f32 %v1833, %v1849
        %v1864 = vadd.f32 %v1834, %v1853
        %v1865 = vadd.f32 %v1835, %v1857
        %v1866 = vadd.f32 %v1836, %v1845
        %v1867 = vadd.f32 %v1837, %v1849
        %v1868 = vadd.f32 %v1838, %v1853
        %v1869 = vadd.f32 %v1839, %v1857
        %v1870 = vmax.f32 %v1862, 0.0
        %v1871 = vmax.f32 %v1863, 0.0
        %v1872 = vmax.f32 %v1864, 0.0
        %v1873 = vmax.f32 %v1865, 0.0
        %v1874 = vmax.f32 %v1866, 0.0
        %v1875 = vmax.f32 %v1867, 0.0
        %v1876 = vmax.f32 %v1868, 0.0
        %v1877 = vmax.f32 %v1869, 0.0
        %v1878 = vpack.c.bf16 %v1874, %v1870
        %v1879 = vpack.c.bf16 %v1875, %v1871
        %v1880 = vpack.c.bf16 %v1876, %v1872
        %v1881 = vpack.c.bf16 %v1877, %v1873
        %v1886 = vunpack.c.l.b16 %v1878
        %v1887 = vunpack.c.l.b16 %v1879
        %v1888 = vunpack.c.l.b16 %v1880
        %v1889 = vunpack.c.l.b16 %v1881
        %v1890 = vunpack.c.h.b16 %v1878
        %v1891 = vunpack.c.h.b16 %v1879
        %v1892 = vunpack.c.h.b16 %v1880
        %v1893 = vunpack.c.h.b16 %v1881
        %v1894 = vpack.c.b16 %v1887, %v1886
        %v1895 = vpack.c.b16 %v1889, %v1888
        %v1896 = vpack.c.b16 %v1891, %v1890
        %v1897 = vpack.c.b16 %v1893, %v1892
        %1902 = vst [vmem:[%s373] sm:$0xff] %v1894
        %vm1903 = vcmask 1043456
        %vm1904 = vcmask 261124
        %vm1905 = vmor %vm1904, %vm1903
        %1906 = vst.msk [vmem:[%s373 + $0x8] sm:$0xff] %vm1905, %v1895
        %vm1907 = vcmask 1043456
        %vm1908 = vsmask.f32 3328
        %vm1909 = vmand %vm1907, %vm1908
        %vm1910 = vcmask 1047556
        %vm1911 = vsmask.f32 7424
        %vm1912 = vmand %vm1910, %vm1911
        %vm1913 = vmor %vm1912, %vm1909
        %v1914 = vld [vmem:[%s373 + $0x10] sm:$0xff]
        %v1915 = vsel %vm1913, %v1896, %v1914
        %1916 = vst [vmem:[%s373 + $0x10] sm:$0xff] %v1915
        %vm1917 = vcmask 261124
        %vm1918 = vmand %vm1917, %vm1911
        %vm1919 = vmor %vm1918, %vm1909
        %v1920 = vld [vmem:[%s373 + $0x18] sm:$0xff]
        %v1921 = vsel %vm1919, %v1897, %v1920
        %1922 = vst [vmem:[%s373 + $0x18] sm:$0xff] %v1921
        %s1923 = smul.u32 2, %s21
        %p1924 = scmp.lt.s32.totalorder %s1923, 3
        %s1925 = scalar_select %p1924, %s1923, 3
        %s1926 = smul.addr %s1925, 4
        %s1927 = smul.addr %s1926, 4
        %s1928 = scalar_lea.vmem %s9, %s1927
        // Predicated region
        $region61: #{basic_cnn_forward.3} parent=55 // pred_check
          %p1929 = pneg %p238
        $region62: #{basic_cnn_forward.3} parent=55 // pred_check_branch
          %1931 = sbr.rel (%p1929) target = $region64
        $region63: #{basic_cnn_forward.3} parent=55 // pred_region
          %s1932 = smul.u32 2, %s21
        $region64: #{basic_cnn_forward.3} parent=55 // pred_fallthru
          _
      $region56: #{basic_cnn_forward.3} parent=5 // pred_fallthru
        _
      %p1933 = scmp.le.s32.totalorder 2, %s16
      // Predicated region
      $region65: #{basic_cnn_forward.3} parent=5 // pred_check
        %p1934 = pneg %p1933
      $region66: #{basic_cnn_forward.3} parent=5 // pred_check_branch
        %1936 = sbr.rel (%p1934) target = $region68
      $region67: #{basic_cnn_forward.3} parent=5 // pred_region
        %s1937 = ssub.s32 %s16, 2
        // Predicated region
        $region69: #{basic_cnn_forward.3} parent=67 // pred_check
          %p1938 = pneg %p244
        $region70: #{basic_cnn_forward.3} parent=67 // pred_check_branch
          %1940 = sbr.rel (%p1938) target = $region72
        $region71: #{basic_cnn_forward.3} parent=67 // pred_region
          %s1941 = smul.u32 2, %s22
          %p1942 = scmp.lt.s32.totalorder %s1941, 3
          %s1943 = scalar_select %p1942, %s1941, 3
          %s1944 = smul.addr %s1943, 4
          %s1945 = smul.addr %s1944, 4
          %s1946 = scalar_lea.vmem %s9, %s1945
        $region72: #{basic_cnn_forward.3} parent=67 // pred_fallthru
          _
      $region68: #{basic_cnn_forward.3} parent=5 // pred_fallthru
        _
    $region6: #{basic_cnn_forward.3} parent=1 // loop_footer
      %s20 = sadd.s32 1, %s16
    $region7: #{basic_cnn_forward.3} parent=1 // loop_footer_branch
      %15 = sbr.rel target = $region3
    $region8: #{basic_cnn_forward.3} parent=1 // loop_exit
      _
    %1947 = vsyncpa [#allocation3], 1
    %s1948 = scalar_lea.sflag [#allocation3], 1
    %1949 = vsyncpa %s1948, 1

// kernel: basic_cnn_forward.4
$region0: #{basic_cnn_forward.4}
  #allocation0 [shape = 'u32[]', space=smem, size = 0x4, offset = 0x4, fixed_abs, tag = 'smem constant byte address 0x4 - core index']
  #allocation1 [shape = 'u32[144,128]{1,0:T(1,128)}', space=vmem, size = 0x12000, scoped, tag = 'internal scratch']
  %s0 = inlined_call_operand.vmem [shape: bf16[16,416], index: 0, kind: input, shape index: {}]
  %s1 = inlined_call_operand.vmem [shape: bf16[16,416], index: 1, kind: input, shape index: {}]
  %s2 = inlined_call_operand.vmem [shape: bf16[416,320], index: 2, kind: input, shape index: {}]
  %s3 = inlined_call_operand.vmem [shape: bf16[416,320], index: 3, kind: input, shape index: {}]
  %s4 = inlined_call_operand.vmem [shape: bf16[416,320], index: 4, kind: input, shape index: {}]
  %s5 = inlined_call_operand.hbm [shape: bf16[416,320], index: 5, kind: input, shape index: {}]
  %s6 = inlined_call_operand.hbm [shape: bf16[416,320], index: 6, kind: input, shape index: {}]
  %s7 = inlined_call_operand.hbm [shape: bf16[416,320], index: 7, kind: input, shape index: {}]
  %s8 = inlined_call_operand.vmem [shape: f32[1,320], index: 8, kind: input, shape index: {}]
  %s9 = inlined_call_operand.vmem [shape: bf16[16,320], index: 9, kind: output, shape index: {}]
  %s10 = sld [smem:[#allocation0]]
  $region81: #{basic_cnn_forward.4} parent=0
    _
  %s12 = ssub.s32 1, %s10
  %s13 = scalar_select 0, %s12, %s10
  $region1: #{basic_cnn_forward.4} parent=0
    #allocation2 [shape = 'u8[319488]{0}', space=vmem, size = 0x4e000, scoped, tag = 'input window, operand 5, single buffered']
    #allocation3 [shape = 's32[2]{0}', space=sflag, size = 0x8, scoped, tag = 'scoped memory for basic_cnn_forward.4']
    #allocation4 [shape = 'u8[319488]{0}', space=vmem, size = 0x4e000, scoped, tag = 'input window, operand 6, single buffered']
    #allocation5 [shape = 's32[1]{0}', space=sflag, size = 0x4, scoped, tag = 'scoped memory for basic_cnn_forward.4']
    #allocation6 [shape = 'u8[319488]{0}', space=vmem, size = 0x4e000, scoped, tag = 'input window, operand 7, single buffered']
    %14 = vsyncpa [#allocation3], 0
    %15 = vsyncpa [#allocation5], 0
    loop: start=0, step=1, limit=4
    $region2: #{basic_cnn_forward.4} parent=1 // loop_pre_header
      _
    $region3: #{basic_cnn_forward.4} parent=1 // loop_header
      %s17 = sphi 0, %s21
      %p18 = scmp.ge.s32.totalorder %s17, 4
      %s27 = sphi 0, %s29
      %s30 = sphi 0, %s27
      %s31 = sphi 0, %s30
      %s47 = sphi 0, %s31
      %s53 = sphi 0, %s55
      %s56 = sphi 0, %s53
      %s57 = sphi 0, %s56
      %s73 = sphi 0, %s57
      %s77 = sphi 0, %s77
      %s79 = sphi 0, %s77
      %s80 = sphi 0, %s79
      %s94 = sphi 0, %s80
      %s98 = sphi 0, %s98
      %s100 = sphi 0, %s98
      %s101 = sphi 0, %s100
      %s115 = sphi 0, %s101
      %s119 = sphi 0, %s119
      %s121 = sphi 0, %s119
      %s122 = sphi 0, %s121
      %s136 = sphi 0, %s122
      %s140 = sphi 0, %s140
      %s142 = sphi 0, %s140
      %s143 = sphi 0, %s142
      %s157 = sphi 0, %s143
      %s161 = sphi 0, %s161
      %s163 = sphi 0, %s161
      %s164 = sphi 0, %s163
      %s178 = sphi 0, %s164
      %s182 = sphi 0, %s182
      %s184 = sphi 0, %s182
      %s185 = sphi 0, %s184
      %s199 = sphi 0, %s185
      %s203 = sphi 0, %s203
      %s205 = sphi 0, %s203
      %s206 = sphi 0, %s205
      %s220 = sphi 0, %s206
      %s226 = sphi 0, %s228
      %s229 = sphi 0, %s226
      %s230 = sphi 0, %s229
      %s246 = sphi 0, %s230
    $region4: #{basic_cnn_forward.4} parent=1 // loop_header_branch
      %20 = sbr.rel (%p18) target = $region8
    $region5: #{basic_cnn_forward.4} parent=1 // loop_body
      %s22 = ssub.s32 %s17, 1
      %s23 = ssub.s32 %s17, 2
      %s24 = sadd.s32 %s17, 1
      %s25 = ssub.s32 %s17, %s24
      %p26 = scmp.eq.s32.totalorder %s25, 0
      %s28 = sadd.s32 %s27, 1
      %s29 = scalar_select %p26, %s27, %s28
      %p32 = pneg %p26
      %p33 = scmp.eq.s32.totalorder %s17, 1
      %p34 = por %p32, %p33
      %p35 = scmp.ne.s32.totalorder %s27, %s30
      %p36 = scmp.eq.s32.totalorder %s17, 0
      %p37 = por %p35, %p36
      %p38 = scmp.ne.s32.totalorder %s27, %s30
      %p39 = scmp.eq.s32.totalorder %s22, 1
      %p40 = por %p38, %p39
      %p41 = scmp.ne.s32.totalorder %s30, %s31
      %p42 = scmp.eq.s32.totalorder %s22, 0
      %p43 = por %p41, %p42
      %p44 = scmp.ne.s32.totalorder %s30, %s31
      %p45 = scmp.eq.s32.totalorder %s23, 1
      %p46 = por %p44, %p45
      %p48 = scmp.ne.s32.totalorder %s31, %s47
      %p49 = scmp.eq.s32.totalorder %s23, 0
      %p50 = por %p48, %p49
      %s51 = ssub.s32 %s17, %s24
      %p52 = scmp.eq.s32.totalorder %s51, 0
      %s54 = sadd.s32 %s53, 1
      %s55 = scalar_select %p52, %s53, %s54
      %p58 = pneg %p52
      %p59 = scmp.eq.s32.totalorder %s17, 1
      %p60 = por %p58, %p59
      %p61 = scmp.ne.s32.totalorder %s53, %s56
      %p62 = scmp.eq.s32.totalorder %s17, 0
      %p63 = por %p61, %p62
      %p64 = scmp.ne.s32.totalorder %s53, %s56
      %p65 = scmp.eq.s32.totalorder %s22, 1
      %p66 = por %p64, %p65
      %p67 = scmp.ne.s32.totalorder %s56, %s57
      %p68 = scmp.eq.s32.totalorder %s22, 0
      %p69 = por %p67, %p68
      %p70 = scmp.ne.s32.totalorder %s56, %s57
      %p71 = scmp.eq.s32.totalorder %s23, 1
      %p72 = por %p70, %p71
      %p74 = scmp.ne.s32.totalorder %s57, %s73
      %p75 = scmp.eq.s32.totalorder %s23, 0
      %p76 = por %p74, %p75
      %s78 = sadd.s32 %s77, 1
      %p81 = scmp.eq.s32.totalorder %s17, 1
      %p82 = scmp.ne.s32.totalorder %s77, %s79
      %p83 = scmp.eq.s32.totalorder %s17, 0
      %p84 = por %p82, %p83
      %p85 = scmp.ne.s32.totalorder %s77, %s79
      %p86 = scmp.eq.s32.totalorder %s22, 1
      %p87 = por %p85, %p86
      %p88 = scmp.ne.s32.totalorder %s79, %s80
      %p89 = scmp.eq.s32.totalorder %s22, 0
      %p90 = por %p88, %p89
      %p91 = scmp.ne.s32.totalorder %s79, %s80
      %p92 = scmp.eq.s32.totalorder %s23, 1
      %p93 = por %p91, %p92
      %p95 = scmp.ne.s32.totalorder %s80, %s94
      %p96 = scmp.eq.s32.totalorder %s23, 0
      %p97 = por %p95, %p96
      %s99 = sadd.s32 %s98, 1
      %p102 = scmp.eq.s32.totalorder %s17, 1
      %p103 = scmp.ne.s32.totalorder %s98, %s100
      %p104 = scmp.eq.s32.totalorder %s17, 0
      %p105 = por %p103, %p104
      %p106 = scmp.ne.s32.totalorder %s98, %s100
      %p107 = scmp.eq.s32.totalorder %s22, 1
      %p108 = por %p106, %p107
      %p109 = scmp.ne.s32.totalorder %s100, %s101
      %p110 = scmp.eq.s32.totalorder %s22, 0
      %p111 = por %p109, %p110
      %p112 = scmp.ne.s32.totalorder %s100, %s101
      %p113 = scmp.eq.s32.totalorder %s23, 1
      %p114 = por %p112, %p113
      %p116 = scmp.ne.s32.totalorder %s101, %s115
      %p117 = scmp.eq.s32.totalorder %s23, 0
      %p118 = por %p116, %p117
      %s120 = sadd.s32 %s119, 1
      %p123 = scmp.eq.s32.totalorder %s17, 1
      %p124 = scmp.ne.s32.totalorder %s119, %s121
      %p125 = scmp.eq.s32.totalorder %s17, 0
      %p126 = por %p124, %p125
      %p127 = scmp.ne.s32.totalorder %s119, %s121
      %p128 = scmp.eq.s32.totalorder %s22, 1
      %p129 = por %p127, %p128
      %p130 = scmp.ne.s32.totalorder %s121, %s122
      %p131 = scmp.eq.s32.totalorder %s22, 0
      %p132 = por %p130, %p131
      %p133 = scmp.ne.s32.totalorder %s121, %s122
      %p134 = scmp.eq.s32.totalorder %s23, 1
      %p135 = por %p133, %p134
      %p137 = scmp.ne.s32.totalorder %s122, %s136
      %p138 = scmp.eq.s32.totalorder %s23, 0
      %p139 = por %p137, %p138
      %s141 = sadd.s32 %s140, 1
      %p144 = scmp.eq.s32.totalorder %s17, 1
      %p145 = scmp.ne.s32.totalorder %s140, %s142
      %p146 = scmp.eq.s32.totalorder %s17, 0
      %p147 = por %p145, %p146
      %p148 = scmp.ne.s32.totalorder %s140, %s142
      %p149 = scmp.eq.s32.totalorder %s22, 1
      %p150 = por %p148, %p149
      %p151 = scmp.ne.s32.totalorder %s142, %s143
      %p152 = scmp.eq.s32.totalorder %s22, 0
      %p153 = por %p151, %p152
      %p154 = scmp.ne.s32.totalorder %s142, %s143
      %p155 = scmp.eq.s32.totalorder %s23, 1
      %p156 = por %p154, %p155
      %p158 = scmp.ne.s32.totalorder %s143, %s157
      %p159 = scmp.eq.s32.totalorder %s23, 0
      %p160 = por %p158, %p159
      %s162 = sadd.s32 %s161, 1
      %p165 = scmp.eq.s32.totalorder %s17, 1
      %p166 = scmp.ne.s32.totalorder %s161, %s163
      %p167 = scmp.eq.s32.totalorder %s17, 0
      %p168 = por %p166, %p167
      %p169 = scmp.ne.s32.totalorder %s161, %s163
      %p170 = scmp.eq.s32.totalorder %s22, 1
      %p171 = por %p169, %p170
      %p172 = scmp.ne.s32.totalorder %s163, %s164
      %p173 = scmp.eq.s32.totalorder %s22, 0
      %p174 = por %p172, %p173
      %p175 = scmp.ne.s32.totalorder %s163, %s164
      %p176 = scmp.eq.s32.totalorder %s23, 1
      %p177 = por %p175, %p176
      %p179 = scmp.ne.s32.totalorder %s164, %s178
      %p180 = scmp.eq.s32.totalorder %s23, 0
      %p181 = por %p179, %p180
      %s183 = sadd.s32 %s182, 1
      %p186 = scmp.eq.s32.totalorder %s17, 1
      %p187 = scmp.ne.s32.totalorder %s182, %s184
      %p188 = scmp.eq.s32.totalorder %s17, 0
      %p189 = por %p187, %p188
      %p190 = scmp.ne.s32.totalorder %s182, %s184
      %p191 = scmp.eq.s32.totalorder %s22, 1
      %p192 = por %p190, %p191
      %p193 = scmp.ne.s32.totalorder %s184, %s185
      %p194 = scmp.eq.s32.totalorder %s22, 0
      %p195 = por %p193, %p194
      %p196 = scmp.ne.s32.totalorder %s184, %s185
      %p197 = scmp.eq.s32.totalorder %s23, 1
      %p198 = por %p196, %p197
      %p200 = scmp.ne.s32.totalorder %s185, %s199
      %p201 = scmp.eq.s32.totalorder %s23, 0
      %p202 = por %p200, %p201
      %s204 = sadd.s32 %s203, 1
      %p207 = scmp.eq.s32.totalorder %s17, 1
      %p208 = scmp.ne.s32.totalorder %s203, %s205
      %p209 = scmp.eq.s32.totalorder %s17, 0
      %p210 = por %p208, %p209
      %p211 = scmp.ne.s32.totalorder %s203, %s205
      %p212 = scmp.eq.s32.totalorder %s22, 1
      %p213 = por %p211, %p212
      %p214 = scmp.ne.s32.totalorder %s205, %s206
      %p215 = scmp.eq.s32.totalorder %s22, 0
      %p216 = por %p214, %p215
      %p217 = scmp.ne.s32.totalorder %s205, %s206
      %p218 = scmp.eq.s32.totalorder %s23, 1
      %p219 = por %p217, %p218
      %p221 = scmp.ne.s32.totalorder %s206, %s220
      %p222 = scmp.eq.s32.totalorder %s23, 0
      %p223 = por %p221, %p222
      %s224 = ssub.s32 %s17, %s24
      %p225 = scmp.eq.s32.totalorder %s224, 0
      %s227 = sadd.s32 %s226, 1
      %s228 = scalar_select %p225, %s226, %s227
      %p231 = pneg %p225
      %p232 = scmp.eq.s32.totalorder %s17, 1
      %p233 = por %p231, %p232
      %p234 = scmp.ne.s32.totalorder %s226, %s229
      %p235 = scmp.eq.s32.totalorder %s17, 0
      %p236 = por %p234, %p235
      %p237 = scmp.ne.s32.totalorder %s226, %s229
      %p238 = scmp.eq.s32.totalorder %s22, 1
      %p239 = por %p237, %p238
      %p240 = scmp.ne.s32.totalorder %s229, %s230
      %p241 = scmp.eq.s32.totalorder %s22, 0
      %p242 = por %p240, %p241
      %p243 = scmp.ne.s32.totalorder %s229, %s230
      %p244 = scmp.eq.s32.totalorder %s23, 1
      %p245 = por %p243, %p244
      %p247 = scmp.ne.s32.totalorder %s230, %s246
      %p248 = scmp.eq.s32.totalorder %s23, 0
      %p249 = por %p247, %p248
      %p250 = scmp.le.s32.totalorder 1, %s17
      %p251 = scmp.lt.s32.totalorder %s17, 3
      %p252 = pnand %p250, %p251
      %p253 = pneg %p252
      // Predicated region
      $region9: #{basic_cnn_forward.4} parent=5 // pred_check
        _
      $region10: #{basic_cnn_forward.4} parent=5 // pred_check_branch
        %255 = sbr.rel (%p252) target = $region12
      $region11: #{basic_cnn_forward.4} parent=5 // pred_region
        %s256 = ssub.s32 %s17, 1
        // Predicated region
        $region13: #{basic_cnn_forward.4} parent=11 // pred_check
          %p257 = pneg %p90
        $region14: #{basic_cnn_forward.4} parent=11 // pred_check_branch
          %259 = sbr.rel (%p257) target = $region16
        $region15: #{basic_cnn_forward.4} parent=11 // pred_region
          _
        $region16: #{basic_cnn_forward.4} parent=11 // pred_fallthru
          _
        // Predicated region
        $region17: #{basic_cnn_forward.4} parent=11 // pred_check
          %p260 = pneg %p111
        $region18: #{basic_cnn_forward.4} parent=11 // pred_check_branch
          %262 = sbr.rel (%p260) target = $region20
        $region19: #{basic_cnn_forward.4} parent=11 // pred_region
          _
        $region20: #{basic_cnn_forward.4} parent=11 // pred_fallthru
          _
        // Predicated region
        $region21: #{basic_cnn_forward.4} parent=11 // pred_check
          %p263 = pneg %p132
        $region22: #{basic_cnn_forward.4} parent=11 // pred_check_branch
          %265 = sbr.rel (%p263) target = $region24
        $region23: #{basic_cnn_forward.4} parent=11 // pred_region
          _
        $region24: #{basic_cnn_forward.4} parent=11 // pred_fallthru
          _
        // Predicated region
        $region25: #{basic_cnn_forward.4} parent=11 // pred_check
          %p266 = pneg %p153
        $region26: #{basic_cnn_forward.4} parent=11 // pred_check_branch
          %268 = sbr.rel (%p266) target = $region28
        $region27: #{basic_cnn_forward.4} parent=11 // pred_region
          %s270 = ssub.s32 9984, 9984
          %271 = vsyncadd [#allocation3], %s270
          %s272 = sshll.u32 [#allocation2], 4
          %s273 = int_to_ptr.vmem [resolvable:$true] %s272
          %278 = dma.hbm_to_vmem [thread:$0]  %s5, 9984, %s273, [#allocation3], 192, 192, 12
        $region28: #{basic_cnn_forward.4} parent=11 // pred_fallthru
          _
        // Predicated region
        $region29: #{basic_cnn_forward.4} parent=11 // pred_check
          %p279 = pneg %p174
        $region30: #{basic_cnn_forward.4} parent=11 // pred_check_branch
          %281 = sbr.rel (%p279) target = $region32
        $region31: #{basic_cnn_forward.4} parent=11 // pred_region
          %s283 = ssub.s32 9984, 9984
          %284 = vsyncadd [#allocation5], %s283
          %s285 = sshll.u32 [#allocation4], 4
          %s286 = int_to_ptr.vmem [resolvable:$true] %s285
          %291 = dma.hbm_to_vmem [thread:$0]  %s6, 9984, %s286, [#allocation5], 192, 192, 12
        $region32: #{basic_cnn_forward.4} parent=11 // pred_fallthru
          _
        // Predicated region
        $region33: #{basic_cnn_forward.4} parent=11 // pred_check
          %p292 = pneg %p195
        $region34: #{basic_cnn_forward.4} parent=11 // pred_check_branch
          %294 = sbr.rel (%p292) target = $region36
        $region35: #{basic_cnn_forward.4} parent=11 // pred_region
          %s296 = ssub.s32 9984, 9984
          %297 = vsyncadd [#allocation5], %s296
          %s298 = sshll.u32 [#allocation6], 4
          %s299 = int_to_ptr.vmem [resolvable:$true] %s298
          %304 = dma.hbm_to_vmem [thread:$0]  %s7, 9984, %s299, [#allocation5], 192, 192, 12
        $region36: #{basic_cnn_forward.4} parent=11 // pred_fallthru
          _
        // Predicated region
        $region37: #{basic_cnn_forward.4} parent=11 // pred_check
          %p305 = pneg %p216
        $region38: #{basic_cnn_forward.4} parent=11 // pred_check_branch
          %307 = sbr.rel (%p305) target = $region40
        $region39: #{basic_cnn_forward.4} parent=11 // pred_region
          _
        $region40: #{basic_cnn_forward.4} parent=11 // pred_fallthru
          _
      $region12: #{basic_cnn_forward.4} parent=5 // pred_fallthru
        _
      %p308 = scmp.lt.s32.totalorder %s17, 2
      // Predicated region
      $region41: #{basic_cnn_forward.4} parent=5 // pred_check
        %p309 = pneg %p308
      $region42: #{basic_cnn_forward.4} parent=5 // pred_check_branch
        %311 = sbr.rel (%p309) target = $region44
      $region43: #{basic_cnn_forward.4} parent=5 // pred_region
        // Predicated region
        $region45: #{basic_cnn_forward.4} parent=43 // pred_check
          %p312 = pneg %p37
        $region46: #{basic_cnn_forward.4} parent=43 // pred_check_branch
          %314 = sbr.rel (%p312) target = $region48
        $region47: #{basic_cnn_forward.4} parent=43 // pred_region
          %p315 = scmp.lt.s32.totalorder %s17, 1
          %s316 = scalar_select %p315, %s17, 1
          %s317 = smul.addr %s316, 4
          %s318 = smul.addr %s317, 4
          %s319 = scalar_lea.vmem %s0, %s318
        $region48: #{basic_cnn_forward.4} parent=43 // pred_fallthru
          _
        // Predicated region
        $region49: #{basic_cnn_forward.4} parent=43 // pred_check
          %p320 = pneg %p63
        $region50: #{basic_cnn_forward.4} parent=43 // pred_check_branch
          %322 = sbr.rel (%p320) target = $region52
        $region51: #{basic_cnn_forward.4} parent=43 // pred_region
          %p323 = scmp.lt.s32.totalorder %s17, 1
          %s324 = scalar_select %p323, %s17, 1
          %s325 = smul.addr %s324, 4
          %s326 = smul.addr %s325, 4
          %s327 = scalar_lea.vmem %s1, %s326
        $region52: #{basic_cnn_forward.4} parent=43 // pred_fallthru
          _
      $region44: #{basic_cnn_forward.4} parent=5 // pred_fallthru
        _
      %p328 = scmp.le.s32.totalorder 1, %s17
      %p329 = scmp.lt.s32.totalorder %s17, 3
      %p330 = pnand %p328, %p329
      %p331 = pneg %p330
      // Predicated region
      $region53: #{basic_cnn_forward.4} parent=5 // pred_check
        _
      $region54: #{basic_cnn_forward.4} parent=5 // pred_check_branch
        %333 = sbr.rel (%p330) target = $region56
      $region55: #{basic_cnn_forward.4} parent=5 // pred_region
        %s334 = ssub.s32 %s17, 1
        // Predicated region
        $region57: #{basic_cnn_forward.4} parent=55 // pred_check
          %p335 = pneg %p153
        $region58: #{basic_cnn_forward.4} parent=55 // pred_check_branch
          %337 = sbr.rel (%p335) target = $region60
        $region59: #{basic_cnn_forward.4} parent=55 // pred_region
          %338 = dma.done [#allocation3], 9984
        $region60: #{basic_cnn_forward.4} parent=55 // pred_fallthru
          _
        // Predicated region
        $region61: #{basic_cnn_forward.4} parent=55 // pred_check
          %p339 = pneg %p174
        $region62: #{basic_cnn_forward.4} parent=55 // pred_check_branch
          %341 = sbr.rel (%p339) target = $region64
        $region63: #{basic_cnn_forward.4} parent=55 // pred_region
          %342 = dma.done [#allocation5], 9984
        $region64: #{basic_cnn_forward.4} parent=55 // pred_fallthru
          _
        // Predicated region
        $region65: #{basic_cnn_forward.4} parent=55 // pred_check
          %p343 = pneg %p195
        $region66: #{basic_cnn_forward.4} parent=55 // pred_check_branch
          %345 = sbr.rel (%p343) target = $region68
        $region67: #{basic_cnn_forward.4} parent=55 // pred_region
          %346 = dma.done [#allocation5], 9984
        $region68: #{basic_cnn_forward.4} parent=55 // pred_fallthru
          _
        %p347 = scmp.lt.s32.totalorder %s22, 1
        %s348 = scalar_select %p347, %s22, 1
        %s349 = smul.addr %s348, 4
        %s350 = smul.addr %s349, 4
        %s351 = scalar_lea.vmem %s0, %s350
        %p352 = pneg %p43
        %p353 = pneg %p40
        %p354 = scmp.lt.s32.totalorder %s22, 1
        %s355 = scalar_select %p354, %s22, 1
        %s356 = smul.addr %s355, 4
        %s357 = smul.addr %s356, 4
        %s358 = scalar_lea.vmem %s1, %s357
        %p359 = pneg %p69
        %p360 = pneg %p66
        %p361 = pneg %p90
        %p362 = pneg %p87
        %p363 = pneg %p111
        %p364 = pneg %p108
        %p365 = pneg %p132
        %p366 = pneg %p129
        %p367 = pneg %p153
        %p368 = pneg %p150
        %p369 = pneg %p174
        %p370 = pneg %p171
        %p371 = pneg %p195
        %p372 = pneg %p192
        %p373 = pneg %p216
        %p374 = pneg %p213
        %p375 = pneg %p242
        %p376 = pneg %p239
        %p377 = scmp.lt.s32.totalorder %s22, 1
        %s378 = scalar_select %p377, %s22, 1
        %s379 = smul.addr %s378, 3
        %s380 = smul.addr %s379, 4
        %s381 = scalar_lea.vmem %s9, %s380
        %p382 = scmp.lt.s32.totalorder %s22, 1
        %s383 = scalar_select %p382, %s22, 1
        %s384 = smul.addr %s383, 4
        %s385 = smul.addr %s384, 4
        %s386 = scalar_lea.vmem %s0, %s385
        %p387 = scmp.lt.s32.totalorder %s22, 1
        %s388 = scalar_select %p387, %s22, 1
        %s389 = smul.addr %s388, 4
        %s390 = smul.addr %s389, 4
        %s391 = scalar_lea.vmem %s1, %s390
        %p392 = scmp.lt.s32.totalorder %s22, 1
        %s393 = scalar_select %p392, %s22, 1
        %s394 = smul.addr %s393, 3
        %s395 = smul.addr %s394, 4
        %s396 = scalar_lea.vmem %s9, %s395
        %v398 = vld [vmem:[%s386] sm:$0xff]
        %v399 = vld [vmem:[%s386 + $0x8] sm:$0xff]
        %v400 = vld [vmem:[%s391] sm:$0xff]
        %v401 = vld [vmem:[%s391 + $0x8] sm:$0xff]
        %v402 = vld [vmem:[%s2] sm:$0xff]
        %v403 = vld [vmem:[%s2 + $0x8] sm:$0xf]
        %v404 = vld [vmem:[%s2 + $0xc] sm:$0xff]
        %v405 = vld [vmem:[%s2 + $0x14] sm:$0xf]
        %v406 = vld [vmem:[%s2 + $0x18] sm:$0xff]
        %v407 = vld [vmem:[%s2 + $0x20] sm:$0xf]
        %v408 = vld [vmem:[%s2 + $0x24] sm:$0xff]
        %v409 = vld [vmem:[%s2 + $0x2c] sm:$0xf]
        %v410 = vld [vmem:[%s2 + $0x30] sm:$0xff]
        %v411 = vld [vmem:[%s2 + $0x38] sm:$0xf]
        %v412 = vld [vmem:[%s2 + $0x3c] sm:$0xff]
        %v413 = vld [vmem:[%s2 + $0x44] sm:$0xf]
        %v414 = vld [vmem:[%s2 + $0x48] sm:$0xff]
        %v415 = vld [vmem:[%s2 + $0x50] sm:$0xf]
        %v416 = vld [vmem:[%s2 + $0x54] sm:$0xff]
        %v417 = vld [vmem:[%s2 + $0x5c] sm:$0xf]
        %v418 = vld [vmem:[%s2 + $0x60] sm:$0xff]
        %v419 = vld [vmem:[%s2 + $0x68] sm:$0xf]
        %v420 = vld [vmem:[%s2 + $0x6c] sm:$0xff]
        %v421 = vld [vmem:[%s2 + $0x74] sm:$0xf]
        %v422 = vld [vmem:[%s2 + $0x78] sm:$0xff]
        %v423 = vld [vmem:[%s2 + $0x80] sm:$0xf]
        %v424 = vld [vmem:[%s2 + $0x84] sm:$0xff]
        %v425 = vld [vmem:[%s2 + $0x8c] sm:$0xf]
        %v426 = vld [vmem:[%s2 + $0x90] sm:$0xff]
        %v427 = vld [vmem:[%s2 + $0x98] sm:$0xf]
        %v428 = vld [vmem:[%s2 + $0x9c] sm:$0xff]
        %v429 = vld [vmem:[%s2 + $0xa4] sm:$0xf]
        %v430 = vld [vmem:[%s2 + $0xa8] sm:$0xff]
        %v431 = vld [vmem:[%s2 + $0xb0] sm:$0xf]
        %v432 = vld [vmem:[%s2 + $0xb4] sm:$0xff]
        %v433 = vld [vmem:[%s2 + $0xbc] sm:$0xf]
        %v434 = vld [vmem:[%s2 + $0xc0] sm:$0xff]
        %v435 = vld [vmem:[%s2 + $0xc8] sm:$0xf]
        %v436 = vld [vmem:[%s2 + $0xcc] sm:$0xff]
        %v437 = vld [vmem:[%s2 + $0xd4] sm:$0xf]
        %v438 = vld [vmem:[%s2 + $0xd8] sm:$0xff]
        %v439 = vld [vmem:[%s2 + $0xe0] sm:$0xf]
        %v440 = vld [vmem:[%s2 + $0xe4] sm:$0xff]
        %v441 = vld [vmem:[%s2 + $0xec] sm:$0xf]
        %v442 = vld [vmem:[%s2 + $0xf0] sm:$0xff]
        %v443 = vld [vmem:[%s2 + $0xf8] sm:$0xf]
        %v444 = vld [vmem:[%s2 + $0xfc] sm:$0xff]
        %v445 = vld [vmem:[%s2 + $0x104] sm:$0xf]
        %v446 = vld [vmem:[%s2 + $0x108] sm:$0xff]
        %v447 = vld [vmem:[%s2 + $0x110] sm:$0xf]
        %v448 = vld [vmem:[%s2 + $0x114] sm:$0xff]
        %v449 = vld [vmem:[%s2 + $0x11c] sm:$0xf]
        %v450 = vld [vmem:[%s2 + $0x120] sm:$0xff]
        %v451 = vld [vmem:[%s2 + $0x128] sm:$0xf]
        %v452 = vld [vmem:[%s2 + $0x12c] sm:$0xff]
        %v453 = vld [vmem:[%s2 + $0x134] sm:$0xf]
        %v454 = vld [vmem:[%s2 + $0x138] sm:$0xff]
        %v455 = vld [vmem:[%s2 + $0x140] sm:$0xf]
        %v456 = vld [vmem:[%s2 + $0x144] sm:$0xff]
        %v457 = vld [vmem:[%s2 + $0x14c] sm:$0xf]
        %v458 = vld [vmem:[%s2 + $0x150] sm:$0xff]
        %v459 = vld [vmem:[%s2 + $0x158] sm:$0xf]
        %v460 = vld [vmem:[%s2 + $0x15c] sm:$0xff]
        %v461 = vld [vmem:[%s2 + $0x164] sm:$0xf]
        %v462 = vld [vmem:[%s2 + $0x168] sm:$0xff]
        %v463 = vld [vmem:[%s2 + $0x170] sm:$0xf]
        %v464 = vld [vmem:[%s2 + $0x174] sm:$0xff]
        %v465 = vld [vmem:[%s2 + $0x17c] sm:$0xf]
        %v466 = vld [vmem:[%s2 + $0x180] sm:$0xff]
        %v467 = vld [vmem:[%s2 + $0x188] sm:$0xf]
        %v468 = vld [vmem:[%s2 + $0x18c] sm:$0xff]
        %v469 = vld [vmem:[%s2 + $0x194] sm:$0xf]
        %v470 = vld [vmem:[%s2 + $0x198] sm:$0xff]
        %v471 = vld [vmem:[%s2 + $0x1a0] sm:$0xf]
        %v472 = vld [vmem:[%s2 + $0x1a4] sm:$0xff]
        %v473 = vld [vmem:[%s2 + $0x1ac] sm:$0xf]
        %v474 = vld [vmem:[%s2 + $0x1b0] sm:$0xff]
        %v475 = vld [vmem:[%s2 + $0x1b8] sm:$0xf]
        %v476 = vld [vmem:[%s2 + $0x1bc] sm:$0xff]
        %v477 = vld [vmem:[%s2 + $0x1c4] sm:$0xf]
        %v478 = vld [vmem:[%s2 + $0x1c8] sm:$0xff]
        %v479 = vld [vmem:[%s2 + $0x1d0] sm:$0xf]
        %v480 = vld [vmem:[%s2 + $0x1d4] sm:$0xff]
        %v481 = vld [vmem:[%s2 + $0x1dc] sm:$0xf]
        %v482 = vld [vmem:[%s2 + $0x1e0] sm:$0xff]
        %v483 = vld [vmem:[%s2 + $0x1e8] sm:$0xf]
        %v484 = vld [vmem:[%s2 + $0x1ec] sm:$0xff]
        %v485 = vld [vmem:[%s2 + $0x1f4] sm:$0xf]
        %v486 = vld [vmem:[%s2 + $0x1f8] sm:$0xff]
        %v487 = vld [vmem:[%s2 + $0x200] sm:$0xf]
        %v488 = vld [vmem:[%s2 + $0x204] sm:$0xff]
        %v489 = vld [vmem:[%s2 + $0x20c] sm:$0xf]
        %v490 = vld [vmem:[%s2 + $0x210] sm:$0xff]
        %v491 = vld [vmem:[%s2 + $0x218] sm:$0xf]
        %v492 = vld [vmem:[%s2 + $0x21c] sm:$0xff]
        %v493 = vld [vmem:[%s2 + $0x224] sm:$0xf]
        %v494 = vld [vmem:[%s2 + $0x228] sm:$0xff]
        %v495 = vld [vmem:[%s2 + $0x230] sm:$0xf]
        %v496 = vld [vmem:[%s2 + $0x234] sm:$0xff]
        %v497 = vld [vmem:[%s2 + $0x23c] sm:$0xf]
        %v498 = vld [vmem:[%s2 + $0x240] sm:$0xff]
        %v499 = vld [vmem:[%s2 + $0x248] sm:$0xf]
        %v500 = vld [vmem:[%s2 + $0x24c] sm:$0xff]
        %v501 = vld [vmem:[%s2 + $0x254] sm:$0xf]
        %v502 = vld [vmem:[%s2 + $0x258] sm:$0xff]
        %v503 = vld [vmem:[%s2 + $0x260] sm:$0xf]
        %v504 = vld [vmem:[%s2 + $0x264] sm:$0xff]
        %v505 = vld [vmem:[%s2 + $0x26c] sm:$0xf]
        %v506 = vld [vmem:[%s3] sm:$0xff]
        %v507 = vld [vmem:[%s3 + $0x8] sm:$0xf]
        %v508 = vld [vmem:[%s3 + $0xc] sm:$0xff]
        %v509 = vld [vmem:[%s3 + $0x14] sm:$0xf]
        %v510 = vld [vmem:[%s3 + $0x18] sm:$0xff]
        %v511 = vld [vmem:[%s3 + $0x20] sm:$0xf]
        %v512 = vld [vmem:[%s3 + $0x24] sm:$0xff]
        %v513 = vld [vmem:[%s3 + $0x2c] sm:$0xf]
        %v514 = vld [vmem:[%s3 + $0x30] sm:$0xff]
        %v515 = vld [vmem:[%s3 + $0x38] sm:$0xf]
        %v516 = vld [vmem:[%s3 + $0x3c] sm:$0xff]
        %v517 = vld [vmem:[%s3 + $0x44] sm:$0xf]
        %v518 = vld [vmem:[%s3 + $0x48] sm:$0xff]
        %v519 = vld [vmem:[%s3 + $0x50] sm:$0xf]
        %v520 = vld [vmem:[%s3 + $0x54] sm:$0xff]
        %v521 = vld [vmem:[%s3 + $0x5c] sm:$0xf]
        %v522 = vld [vmem:[%s3 + $0x60] sm:$0xff]
        %v523 = vld [vmem:[%s3 + $0x68] sm:$0xf]
        %v524 = vld [vmem:[%s3 + $0x6c] sm:$0xff]
        %v525 = vld [vmem:[%s3 + $0x74] sm:$0xf]
        %v526 = vld [vmem:[%s3 + $0x78] sm:$0xff]
        %v527 = vld [vmem:[%s3 + $0x80] sm:$0xf]
        %v528 = vld [vmem:[%s3 + $0x84] sm:$0xff]
        %v529 = vld [vmem:[%s3 + $0x8c] sm:$0xf]
        %v530 = vld [vmem:[%s3 + $0x90] sm:$0xff]
        %v531 = vld [vmem:[%s3 + $0x98] sm:$0xf]
        %v532 = vld [vmem:[%s3 + $0x9c] sm:$0xff]
        %v533 = vld [vmem:[%s3 + $0xa4] sm:$0xf]
        %v534 = vld [vmem:[%s3 + $0xa8] sm:$0xff]
        %v535 = vld [vmem:[%s3 + $0xb0] sm:$0xf]
        %v536 = vld [vmem:[%s3 + $0xb4] sm:$0xff]
        %v537 = vld [vmem:[%s3 + $0xbc] sm:$0xf]
        %v538 = vld [vmem:[%s3 + $0xc0] sm:$0xff]
        %v539 = vld [vmem:[%s3 + $0xc8] sm:$0xf]
        %v540 = vld [vmem:[%s3 + $0xcc] sm:$0xff]
        %v541 = vld [vmem:[%s3 + $0xd4] sm:$0xf]
        %v542 = vld [vmem:[%s3 + $0xd8] sm:$0xff]
        %v543 = vld [vmem:[%s3 + $0xe0] sm:$0xf]
        %v544 = vld [vmem:[%s3 + $0xe4] sm:$0xff]
        %v545 = vld [vmem:[%s3 + $0xec] sm:$0xf]
        %v546 = vld [vmem:[%s3 + $0xf0] sm:$0xff]
        %v547 = vld [vmem:[%s3 + $0xf8] sm:$0xf]
        %v548 = vld [vmem:[%s3 + $0xfc] sm:$0xff]
        %v549 = vld [vmem:[%s3 + $0x104] sm:$0xf]
        %v550 = vld [vmem:[%s3 + $0x108] sm:$0xff]
        %v551 = vld [vmem:[%s3 + $0x110] sm:$0xf]
        %v552 = vld [vmem:[%s3 + $0x114] sm:$0xff]
        %v553 = vld [vmem:[%s3 + $0x11c] sm:$0xf]
        %v554 = vld [vmem:[%s3 + $0x120] sm:$0xff]
        %v555 = vld [vmem:[%s3 + $0x128] sm:$0xf]
        %v556 = vld [vmem:[%s3 + $0x12c] sm:$0xff]
        %v557 = vld [vmem:[%s3 + $0x134] sm:$0xf]
        %v558 = vld [vmem:[%s3 + $0x138] sm:$0xff]
        %v559 = vld [vmem:[%s3 + $0x140] sm:$0xf]
        %v560 = vld [vmem:[%s3 + $0x144] sm:$0xff]
        %v561 = vld [vmem:[%s3 + $0x14c] sm:$0xf]
        %v562 = vld [vmem:[%s3 + $0x150] sm:$0xff]
        %v563 = vld [vmem:[%s3 + $0x158] sm:$0xf]
        %v564 = vld [vmem:[%s3 + $0x15c] sm:$0xff]
        %v565 = vld [vmem:[%s3 + $0x164] sm:$0xf]
        %v566 = vld [vmem:[%s3 + $0x168] sm:$0xff]
        %v567 = vld [vmem:[%s3 + $0x170] sm:$0xf]
        %v568 = vld [vmem:[%s3 + $0x174] sm:$0xff]
        %v569 = vld [vmem:[%s3 + $0x17c] sm:$0xf]
        %v570 = vld [vmem:[%s3 + $0x180] sm:$0xff]
        %v571 = vld [vmem:[%s3 + $0x188] sm:$0xf]
        %v572 = vld [vmem:[%s3 + $0x18c] sm:$0xff]
        %v573 = vld [vmem:[%s3 + $0x194] sm:$0xf]
        %v574 = vld [vmem:[%s3 + $0x198] sm:$0xff]
        %v575 = vld [vmem:[%s3 + $0x1a0] sm:$0xf]
        %v576 = vld [vmem:[%s3 + $0x1a4] sm:$0xff]
        %v577 = vld [vmem:[%s3 + $0x1ac] sm:$0xf]
        %v578 = vld [vmem:[%s3 + $0x1b0] sm:$0xff]
        %v579 = vld [vmem:[%s3 + $0x1b8] sm:$0xf]
        %v580 = vld [vmem:[%s3 + $0x1bc] sm:$0xff]
        %v581 = vld [vmem:[%s3 + $0x1c4] sm:$0xf]
        %v582 = vld [vmem:[%s3 + $0x1c8] sm:$0xff]
        %v583 = vld [vmem:[%s3 + $0x1d0] sm:$0xf]
        %v584 = vld [vmem:[%s3 + $0x1d4] sm:$0xff]
        %v585 = vld [vmem:[%s3 + $0x1dc] sm:$0xf]
        %v586 = vld [vmem:[%s3 + $0x1e0] sm:$0xff]
        %v587 = vld [vmem:[%s3 + $0x1e8] sm:$0xf]
        %v588 = vld [vmem:[%s3 + $0x1ec] sm:$0xff]
        %v589 = vld [vmem:[%s3 + $0x1f4] sm:$0xf]
        %v590 = vld [vmem:[%s3 + $0x1f8] sm:$0xff]
        %v591 = vld [vmem:[%s3 + $0x200] sm:$0xf]
        %v592 = vld [vmem:[%s3 + $0x204] sm:$0xff]
        %v593 = vld [vmem:[%s3 + $0x20c] sm:$0xf]
        %v594 = vld [vmem:[%s3 + $0x210] sm:$0xff]
        %v595 = vld [vmem:[%s3 + $0x218] sm:$0xf]
        %v596 = vld [vmem:[%s3 + $0x21c] sm:$0xff]
        %v597 = vld [vmem:[%s3 + $0x224] sm:$0xf]
        %v598 = vld [vmem:[%s3 + $0x228] sm:$0xff]
        %v599 = vld [vmem:[%s3 + $0x230] sm:$0xf]
        %v600 = vld [vmem:[%s3 + $0x234] sm:$0xff]
        %v601 = vld [vmem:[%s3 + $0x23c] sm:$0xf]
        %v602 = vld [vmem:[%s3 + $0x240] sm:$0xff]
        %v603 = vld [vmem:[%s3 + $0x248] sm:$0xf]
        %v604 = vld [vmem:[%s3 + $0x24c] sm:$0xff]
        %v605 = vld [vmem:[%s3 + $0x254] sm:$0xf]
        %v606 = vld [vmem:[%s3 + $0x258] sm:$0xff]
        %v607 = vld [vmem:[%s3 + $0x260] sm:$0xf]
        %v608 = vld [vmem:[%s3 + $0x264] sm:$0xff]
        %v609 = vld [vmem:[%s3 + $0x26c] sm:$0xf]
        %v610 = vld [vmem:[%s4] sm:$0xff]
        %v611 = vld [vmem:[%s4 + $0x8] sm:$0xf]
        %v612 = vld [vmem:[%s4 + $0xc] sm:$0xff]
        %v613 = vld [vmem:[%s4 + $0x14] sm:$0xf]
        %v614 = vld [vmem:[%s4 + $0x18] sm:$0xff]
        %v615 = vld [vmem:[%s4 + $0x20] sm:$0xf]
        %v616 = vld [vmem:[%s4 + $0x24] sm:$0xff]
        %v617 = vld [vmem:[%s4 + $0x2c] sm:$0xf]
        %v618 = vld [vmem:[%s4 + $0x30] sm:$0xff]
        %v619 = vld [vmem:[%s4 + $0x38] sm:$0xf]
        %v620 = vld [vmem:[%s4 + $0x3c] sm:$0xff]
        %v621 = vld [vmem:[%s4 + $0x44] sm:$0xf]
        %v622 = vld [vmem:[%s4 + $0x48] sm:$0xff]
        %v623 = vld [vmem:[%s4 + $0x50] sm:$0xf]
        %v624 = vld [vmem:[%s4 + $0x54] sm:$0xff]
        %v625 = vld [vmem:[%s4 + $0x5c] sm:$0xf]
        %v626 = vld [vmem:[%s4 + $0x60] sm:$0xff]
        %v627 = vld [vmem:[%s4 + $0x68] sm:$0xf]
        %v628 = vld [vmem:[%s4 + $0x6c] sm:$0xff]
        %v629 = vld [vmem:[%s4 + $0x74] sm:$0xf]
        %v630 = vld [vmem:[%s4 + $0x78] sm:$0xff]
        %v631 = vld [vmem:[%s4 + $0x80] sm:$0xf]
        %v632 = vld [vmem:[%s4 + $0x84] sm:$0xff]
        %v633 = vld [vmem:[%s4 + $0x8c] sm:$0xf]
        %v634 = vld [vmem:[%s4 + $0x90] sm:$0xff]
        %v635 = vld [vmem:[%s4 + $0x98] sm:$0xf]
        %v636 = vld [vmem:[%s4 + $0x9c] sm:$0xff]
        %v637 = vld [vmem:[%s4 + $0xa4] sm:$0xf]
        %v638 = vld [vmem:[%s4 + $0xa8] sm:$0xff]
        %v639 = vld [vmem:[%s4 + $0xb0] sm:$0xf]
        %v640 = vld [vmem:[%s4 + $0xb4] sm:$0xff]
        %v641 = vld [vmem:[%s4 + $0xbc] sm:$0xf]
        %v642 = vld [vmem:[%s4 + $0xc0] sm:$0xff]
        %v643 = vld [vmem:[%s4 + $0xc8] sm:$0xf]
        %v644 = vld [vmem:[%s4 + $0xcc] sm:$0xff]
        %v645 = vld [vmem:[%s4 + $0xd4] sm:$0xf]
        %v646 = vld [vmem:[%s4 + $0xd8] sm:$0xff]
        %v647 = vld [vmem:[%s4 + $0xe0] sm:$0xf]
        %v648 = vld [vmem:[%s4 + $0xe4] sm:$0xff]
        %v649 = vld [vmem:[%s4 + $0xec] sm:$0xf]
        %v650 = vld [vmem:[%s4 + $0xf0] sm:$0xff]
        %v651 = vld [vmem:[%s4 + $0xf8] sm:$0xf]
        %v652 = vld [vmem:[%s4 + $0xfc] sm:$0xff]
        %v653 = vld [vmem:[%s4 + $0x104] sm:$0xf]
        %v654 = vld [vmem:[%s4 + $0x108] sm:$0xff]
        %v655 = vld [vmem:[%s4 + $0x110] sm:$0xf]
        %v656 = vld [vmem:[%s4 + $0x114] sm:$0xff]
        %v657 = vld [vmem:[%s4 + $0x11c] sm:$0xf]
        %v658 = vld [vmem:[%s4 + $0x120] sm:$0xff]
        %v659 = vld [vmem:[%s4 + $0x128] sm:$0xf]
        %v660 = vld [vmem:[%s4 + $0x12c] sm:$0xff]
        %v661 = vld [vmem:[%s4 + $0x134] sm:$0xf]
        %v662 = vld [vmem:[%s4 + $0x138] sm:$0xff]
        %v663 = vld [vmem:[%s4 + $0x140] sm:$0xf]
        %v664 = vld [vmem:[%s4 + $0x144] sm:$0xff]
        %v665 = vld [vmem:[%s4 + $0x14c] sm:$0xf]
        %v666 = vld [vmem:[%s4 + $0x150] sm:$0xff]
        %v667 = vld [vmem:[%s4 + $0x158] sm:$0xf]
        %v668 = vld [vmem:[%s4 + $0x15c] sm:$0xff]
        %v669 = vld [vmem:[%s4 + $0x164] sm:$0xf]
        %v670 = vld [vmem:[%s4 + $0x168] sm:$0xff]
        %v671 = vld [vmem:[%s4 + $0x170] sm:$0xf]
        %v672 = vld [vmem:[%s4 + $0x174] sm:$0xff]
        %v673 = vld [vmem:[%s4 + $0x17c] sm:$0xf]
        %v674 = vld [vmem:[%s4 + $0x180] sm:$0xff]
        %v675 = vld [vmem:[%s4 + $0x188] sm:$0xf]
        %v676 = vld [vmem:[%s4 + $0x18c] sm:$0xff]
        %v677 = vld [vmem:[%s4 + $0x194] sm:$0xf]
        %v678 = vld [vmem:[%s4 + $0x198] sm:$0xff]
        %v679 = vld [vmem:[%s4 + $0x1a0] sm:$0xf]
        %v680 = vld [vmem:[%s4 + $0x1a4] sm:$0xff]
        %v681 = vld [vmem:[%s4 + $0x1ac] sm:$0xf]
        %v682 = vld [vmem:[%s4 + $0x1b0] sm:$0xff]
        %v683 = vld [vmem:[%s4 + $0x1b8] sm:$0xf]
        %v684 = vld [vmem:[%s4 + $0x1bc] sm:$0xff]
        %v685 = vld [vmem:[%s4 + $0x1c4] sm:$0xf]
        %v686 = vld [vmem:[%s4 + $0x1c8] sm:$0xff]
        %v687 = vld [vmem:[%s4 + $0x1d0] sm:$0xf]
        %v688 = vld [vmem:[%s4 + $0x1d4] sm:$0xff]
        %v689 = vld [vmem:[%s4 + $0x1dc] sm:$0xf]
        %v690 = vld [vmem:[%s4 + $0x1e0] sm:$0xff]
        %v691 = vld [vmem:[%s4 + $0x1e8] sm:$0xf]
        %v692 = vld [vmem:[%s4 + $0x1ec] sm:$0xff]
        %v693 = vld [vmem:[%s4 + $0x1f4] sm:$0xf]
        %v694 = vld [vmem:[%s4 + $0x1f8] sm:$0xff]
        %v695 = vld [vmem:[%s4 + $0x200] sm:$0xf]
        %v696 = vld [vmem:[%s4 + $0x204] sm:$0xff]
        %v697 = vld [vmem:[%s4 + $0x20c] sm:$0xf]
        %v698 = vld [vmem:[%s4 + $0x210] sm:$0xff]
        %v699 = vld [vmem:[%s4 + $0x218] sm:$0xf]
        %v700 = vld [vmem:[%s4 + $0x21c] sm:$0xff]
        %v701 = vld [vmem:[%s4 + $0x224] sm:$0xf]
        %v702 = vld [vmem:[%s4 + $0x228] sm:$0xff]
        %v703 = vld [vmem:[%s4 + $0x230] sm:$0xf]
        %v704 = vld [vmem:[%s4 + $0x234] sm:$0xff]
        %v705 = vld [vmem:[%s4 + $0x23c] sm:$0xf]
        %v706 = vld [vmem:[%s4 + $0x240] sm:$0xff]
        %v707 = vld [vmem:[%s4 + $0x248] sm:$0xf]
        %v708 = vld [vmem:[%s4 + $0x24c] sm:$0xff]
        %v709 = vld [vmem:[%s4 + $0x254] sm:$0xf]
        %v710 = vld [vmem:[%s4 + $0x258] sm:$0xff]
        %v711 = vld [vmem:[%s4 + $0x260] sm:$0xf]
        %v712 = vld [vmem:[%s4 + $0x264] sm:$0xff]
        %v713 = vld [vmem:[%s4 + $0x26c] sm:$0xf]
        %v714 = vld [vmem:[#allocation2] sm:$0xff]
        %v715 = vld [vmem:[#allocation2 + $0x8] sm:$0xf]
        %v716 = vld [vmem:[#allocation2 + $0xc] sm:$0xff]
        %v717 = vld [vmem:[#allocation2 + $0x14] sm:$0xf]
        %v718 = vld [vmem:[#allocation2 + $0x18] sm:$0xff]
        %v719 = vld [vmem:[#allocation2 + $0x20] sm:$0xf]
        %v720 = vld [vmem:[#allocation2 + $0x24] sm:$0xff]
        %v721 = vld [vmem:[#allocation2 + $0x2c] sm:$0xf]
        %v722 = vld [vmem:[#allocation2 + $0x30] sm:$0xff]
        %v723 = vld [vmem:[#allocation2 + $0x38] sm:$0xf]
        %v724 = vld [vmem:[#allocation2 + $0x3c] sm:$0xff]
        %v725 = vld [vmem:[#allocation2 + $0x44] sm:$0xf]
        %v726 = vld [vmem:[#allocation2 + $0x48] sm:$0xff]
        %v727 = vld [vmem:[#allocation2 + $0x50] sm:$0xf]
        %v728 = vld [vmem:[#allocation2 + $0x54] sm:$0xff]
        %v729 = vld [vmem:[#allocation2 + $0x5c] sm:$0xf]
        %v730 = vld [vmem:[#allocation2 + $0x60] sm:$0xff]
        %v731 = vld [vmem:[#allocation2 + $0x68] sm:$0xf]
        %v732 = vld [vmem:[#allocation2 + $0x6c] sm:$0xff]
        %v733 = vld [vmem:[#allocation2 + $0x74] sm:$0xf]
        %v734 = vld [vmem:[#allocation2 + $0x78] sm:$0xff]
        %v735 = vld [vmem:[#allocation2 + $0x80] sm:$0xf]
        %v736 = vld [vmem:[#allocation2 + $0x84] sm:$0xff]
        %v737 = vld [vmem:[#allocation2 + $0x8c] sm:$0xf]
        %v738 = vld [vmem:[#allocation2 + $0x90] sm:$0xff]
        %v739 = vld [vmem:[#allocation2 + $0x98] sm:$0xf]
        %v740 = vld [vmem:[#allocation2 + $0x9c] sm:$0xff]
        %v741 = vld [vmem:[#allocation2 + $0xa4] sm:$0xf]
        %v742 = vld [vmem:[#allocation2 + $0xa8] sm:$0xff]
        %v743 = vld [vmem:[#allocation2 + $0xb0] sm:$0xf]
        %v744 = vld [vmem:[#allocation2 + $0xb4] sm:$0xff]
        %v745 = vld [vmem:[#allocation2 + $0xbc] sm:$0xf]
        %v746 = vld [vmem:[#allocation2 + $0xc0] sm:$0xff]
        %v747 = vld [vmem:[#allocation2 + $0xc8] sm:$0xf]
        %v748 = vld [vmem:[#allocation2 + $0xcc] sm:$0xff]
        %v749 = vld [vmem:[#allocation2 + $0xd4] sm:$0xf]
        %v750 = vld [vmem:[#allocation2 + $0xd8] sm:$0xff]
        %v751 = vld [vmem:[#allocation2 + $0xe0] sm:$0xf]
        %v752 = vld [vmem:[#allocation2 + $0xe4] sm:$0xff]
        %v753 = vld [vmem:[#allocation2 + $0xec] sm:$0xf]
        %v754 = vld [vmem:[#allocation2 + $0xf0] sm:$0xff]
        %v755 = vld [vmem:[#allocation2 + $0xf8] sm:$0xf]
        %v756 = vld [vmem:[#allocation2 + $0xfc] sm:$0xff]
        %v757 = vld [vmem:[#allocation2 + $0x104] sm:$0xf]
        %v758 = vld [vmem:[#allocation2 + $0x108] sm:$0xff]
        %v759 = vld [vmem:[#allocation2 + $0x110] sm:$0xf]
        %v760 = vld [vmem:[#allocation2 + $0x114] sm:$0xff]
        %v761 = vld [vmem:[#allocation2 + $0x11c] sm:$0xf]
        %v762 = vld [vmem:[#allocation2 + $0x120] sm:$0xff]
        %v763 = vld [vmem:[#allocation2 + $0x128] sm:$0xf]
        %v764 = vld [vmem:[#allocation2 + $0x12c] sm:$0xff]
        %v765 = vld [vmem:[#allocation2 + $0x134] sm:$0xf]
        %v766 = vld [vmem:[#allocation2 + $0x138] sm:$0xff]
        %v767 = vld [vmem:[#allocation2 + $0x140] sm:$0xf]
        %v768 = vld [vmem:[#allocation2 + $0x144] sm:$0xff]
        %v769 = vld [vmem:[#allocation2 + $0x14c] sm:$0xf]
        %v770 = vld [vmem:[#allocation2 + $0x150] sm:$0xff]
        %v771 = vld [vmem:[#allocation2 + $0x158] sm:$0xf]
        %v772 = vld [vmem:[#allocation2 + $0x15c] sm:$0xff]
        %v773 = vld [vmem:[#allocation2 + $0x164] sm:$0xf]
        %v774 = vld [vmem:[#allocation2 + $0x168] sm:$0xff]
        %v775 = vld [vmem:[#allocation2 + $0x170] sm:$0xf]
        %v776 = vld [vmem:[#allocation2 + $0x174] sm:$0xff]
        %v777 = vld [vmem:[#allocation2 + $0x17c] sm:$0xf]
        %v778 = vld [vmem:[#allocation2 + $0x180] sm:$0xff]
        %v779 = vld [vmem:[#allocation2 + $0x188] sm:$0xf]
        %v780 = vld [vmem:[#allocation2 + $0x18c] sm:$0xff]
        %v781 = vld [vmem:[#allocation2 + $0x194] sm:$0xf]
        %v782 = vld [vmem:[#allocation2 + $0x198] sm:$0xff]
        %v783 = vld [vmem:[#allocation2 + $0x1a0] sm:$0xf]
        %v784 = vld [vmem:[#allocation2 + $0x1a4] sm:$0xff]
        %v785 = vld [vmem:[#allocation2 + $0x1ac] sm:$0xf]
        %v786 = vld [vmem:[#allocation2 + $0x1b0] sm:$0xff]
        %v787 = vld [vmem:[#allocation2 + $0x1b8] sm:$0xf]
        %v788 = vld [vmem:[#allocation2 + $0x1bc] sm:$0xff]
        %v789 = vld [vmem:[#allocation2 + $0x1c4] sm:$0xf]
        %v790 = vld [vmem:[#allocation2 + $0x1c8] sm:$0xff]
        %v791 = vld [vmem:[#allocation2 + $0x1d0] sm:$0xf]
        %v792 = vld [vmem:[#allocation2 + $0x1d4] sm:$0xff]
        %v793 = vld [vmem:[#allocation2 + $0x1dc] sm:$0xf]
        %v794 = vld [vmem:[#allocation2 + $0x1e0] sm:$0xff]
        %v795 = vld [vmem:[#allocation2 + $0x1e8] sm:$0xf]
        %v796 = vld [vmem:[#allocation2 + $0x1ec] sm:$0xff]
        %v797 = vld [vmem:[#allocation2 + $0x1f4] sm:$0xf]
        %v798 = vld [vmem:[#allocation2 + $0x1f8] sm:$0xff]
        %v799 = vld [vmem:[#allocation2 + $0x200] sm:$0xf]
        %v800 = vld [vmem:[#allocation2 + $0x204] sm:$0xff]
        %v801 = vld [vmem:[#allocation2 + $0x20c] sm:$0xf]
        %v802 = vld [vmem:[#allocation2 + $0x210] sm:$0xff]
        %v803 = vld [vmem:[#allocation2 + $0x218] sm:$0xf]
        %v804 = vld [vmem:[#allocation2 + $0x21c] sm:$0xff]
        %v805 = vld [vmem:[#allocation2 + $0x224] sm:$0xf]
        %v806 = vld [vmem:[#allocation2 + $0x228] sm:$0xff]
        %v807 = vld [vmem:[#allocation2 + $0x230] sm:$0xf]
        %v808 = vld [vmem:[#allocation2 + $0x234] sm:$0xff]
        %v809 = vld [vmem:[#allocation2 + $0x23c] sm:$0xf]
        %v810 = vld [vmem:[#allocation2 + $0x240] sm:$0xff]
        %v811 = vld [vmem:[#allocation2 + $0x248] sm:$0xf]
        %v812 = vld [vmem:[#allocation2 + $0x24c] sm:$0xff]
        %v813 = vld [vmem:[#allocation2 + $0x254] sm:$0xf]
        %v814 = vld [vmem:[#allocation2 + $0x258] sm:$0xff]
        %v815 = vld [vmem:[#allocation2 + $0x260] sm:$0xf]
        %v816 = vld [vmem:[#allocation2 + $0x264] sm:$0xff]
        %v817 = vld [vmem:[#allocation2 + $0x26c] sm:$0xf]
        %v818 = vld [vmem:[#allocation4] sm:$0xff]
        %v819 = vld [vmem:[#allocation4 + $0x8] sm:$0xf]
        %v820 = vld [vmem:[#allocation4 + $0xc] sm:$0xff]
        %v821 = vld [vmem:[#allocation4 + $0x14] sm:$0xf]
        %v822 = vld [vmem:[#allocation4 + $0x18] sm:$0xff]
        %v823 = vld [vmem:[#allocation4 + $0x20] sm:$0xf]
        %v824 = vld [vmem:[#allocation4 + $0x24] sm:$0xff]
        %v825 = vld [vmem:[#allocation4 + $0x2c] sm:$0xf]
        %v826 = vld [vmem:[#allocation4 + $0x30] sm:$0xff]
        %v827 = vld [vmem:[#allocation4 + $0x38] sm:$0xf]
        %v828 = vld [vmem:[#allocation4 + $0x3c] sm:$0xff]
        %v829 = vld [vmem:[#allocation4 + $0x44] sm:$0xf]
        %v830 = vld [vmem:[#allocation4 + $0x48] sm:$0xff]
        %v831 = vld [vmem:[#allocation4 + $0x50] sm:$0xf]
        %v832 = vld [vmem:[#allocation4 + $0x54] sm:$0xff]
        %v833 = vld [vmem:[#allocation4 + $0x5c] sm:$0xf]
        %v834 = vld [vmem:[#allocation4 + $0x60] sm:$0xff]
        %v835 = vld [vmem:[#allocation4 + $0x68] sm:$0xf]
        %v836 = vld [vmem:[#allocation4 + $0x6c] sm:$0xff]
        %v837 = vld [vmem:[#allocation4 + $0x74] sm:$0xf]
        %v838 = vld [vmem:[#allocation4 + $0x78] sm:$0xff]
        %v839 = vld [vmem:[#allocation4 + $0x80] sm:$0xf]
        %v840 = vld [vmem:[#allocation4 + $0x84] sm:$0xff]
        %v841 = vld [vmem:[#allocation4 + $0x8c] sm:$0xf]
        %v842 = vld [vmem:[#allocation4 + $0x90] sm:$0xff]
        %v843 = vld [vmem:[#allocation4 + $0x98] sm:$0xf]
        %v844 = vld [vmem:[#allocation4 + $0x9c] sm:$0xff]
        %v845 = vld [vmem:[#allocation4 + $0xa4] sm:$0xf]
        %v846 = vld [vmem:[#allocation4 + $0xa8] sm:$0xff]
        %v847 = vld [vmem:[#allocation4 + $0xb0] sm:$0xf]
        %v848 = vld [vmem:[#allocation4 + $0xb4] sm:$0xff]
        %v849 = vld [vmem:[#allocation4 + $0xbc] sm:$0xf]
        %v850 = vld [vmem:[#allocation4 + $0xc0] sm:$0xff]
        %v851 = vld [vmem:[#allocation4 + $0xc8] sm:$0xf]
        %v852 = vld [vmem:[#allocation4 + $0xcc] sm:$0xff]
        %v853 = vld [vmem:[#allocation4 + $0xd4] sm:$0xf]
        %v854 = vld [vmem:[#allocation4 + $0xd8] sm:$0xff]
        %v855 = vld [vmem:[#allocation4 + $0xe0] sm:$0xf]
        %v856 = vld [vmem:[#allocation4 + $0xe4] sm:$0xff]
        %v857 = vld [vmem:[#allocation4 + $0xec] sm:$0xf]
        %v858 = vld [vmem:[#allocation4 + $0xf0] sm:$0xff]
        %v859 = vld [vmem:[#allocation4 + $0xf8] sm:$0xf]
        %v860 = vld [vmem:[#allocation4 + $0xfc] sm:$0xff]
        %v861 = vld [vmem:[#allocation4 + $0x104] sm:$0xf]
        %v862 = vld [vmem:[#allocation4 + $0x108] sm:$0xff]
        %v863 = vld [vmem:[#allocation4 + $0x110] sm:$0xf]
        %v864 = vld [vmem:[#allocation4 + $0x114] sm:$0xff]
        %v865 = vld [vmem:[#allocation4 + $0x11c] sm:$0xf]
        %v866 = vld [vmem:[#allocation4 + $0x120] sm:$0xff]
        %v867 = vld [vmem:[#allocation4 + $0x128] sm:$0xf]
        %v868 = vld [vmem:[#allocation4 + $0x12c] sm:$0xff]
        %v869 = vld [vmem:[#allocation4 + $0x134] sm:$0xf]
        %v870 = vld [vmem:[#allocation4 + $0x138] sm:$0xff]
        %v871 = vld [vmem:[#allocation4 + $0x140] sm:$0xf]
        %v872 = vld [vmem:[#allocation4 + $0x144] sm:$0xff]
        %v873 = vld [vmem:[#allocation4 + $0x14c] sm:$0xf]
        %v874 = vld [vmem:[#allocation4 + $0x150] sm:$0xff]
        %v875 = vld [vmem:[#allocation4 + $0x158] sm:$0xf]
        %v876 = vld [vmem:[#allocation4 + $0x15c] sm:$0xff]
        %v877 = vld [vmem:[#allocation4 + $0x164] sm:$0xf]
        %v878 = vld [vmem:[#allocation4 + $0x168] sm:$0xff]
        %v879 = vld [vmem:[#allocation4 + $0x170] sm:$0xf]
        %v880 = vld [vmem:[#allocation4 + $0x174] sm:$0xff]
        %v881 = vld [vmem:[#allocation4 + $0x17c] sm:$0xf]
        %v882 = vld [vmem:[#allocation4 + $0x180] sm:$0xff]
        %v883 = vld [vmem:[#allocation4 + $0x188] sm:$0xf]
        %v884 = vld [vmem:[#allocation4 + $0x18c] sm:$0xff]
        %v885 = vld [vmem:[#allocation4 + $0x194] sm:$0xf]
        %v886 = vld [vmem:[#allocation4 + $0x198] sm:$0xff]
        %v887 = vld [vmem:[#allocation4 + $0x1a0] sm:$0xf]
        %v888 = vld [vmem:[#allocation4 + $0x1a4] sm:$0xff]
        %v889 = vld [vmem:[#allocation4 + $0x1ac] sm:$0xf]
        %v890 = vld [vmem:[#allocation4 + $0x1b0] sm:$0xff]
        %v891 = vld [vmem:[#allocation4 + $0x1b8] sm:$0xf]
        %v892 = vld [vmem:[#allocation4 + $0x1bc] sm:$0xff]
        %v893 = vld [vmem:[#allocation4 + $0x1c4] sm:$0xf]
        %v894 = vld [vmem:[#allocation4 + $0x1c8] sm:$0xff]
        %v895 = vld [vmem:[#allocation4 + $0x1d0] sm:$0xf]
        %v896 = vld [vmem:[#allocation4 + $0x1d4] sm:$0xff]
        %v897 = vld [vmem:[#allocation4 + $0x1dc] sm:$0xf]
        %v898 = vld [vmem:[#allocation4 + $0x1e0] sm:$0xff]
        %v899 = vld [vmem:[#allocation4 + $0x1e8] sm:$0xf]
        %v900 = vld [vmem:[#allocation4 + $0x1ec] sm:$0xff]
        %v901 = vld [vmem:[#allocation4 + $0x1f4] sm:$0xf]
        %v902 = vld [vmem:[#allocation4 + $0x1f8] sm:$0xff]
        %v903 = vld [vmem:[#allocation4 + $0x200] sm:$0xf]
        %v904 = vld [vmem:[#allocation4 + $0x204] sm:$0xff]
        %v905 = vld [vmem:[#allocation4 + $0x20c] sm:$0xf]
        %v906 = vld [vmem:[#allocation4 + $0x210] sm:$0xff]
        %v907 = vld [vmem:[#allocation4 + $0x218] sm:$0xf]
        %v908 = vld [vmem:[#allocation4 + $0x21c] sm:$0xff]
        %v909 = vld [vmem:[#allocation4 + $0x224] sm:$0xf]
        %v910 = vld [vmem:[#allocation4 + $0x228] sm:$0xff]
        %v911 = vld [vmem:[#allocation4 + $0x230] sm:$0xf]
        %v912 = vld [vmem:[#allocation4 + $0x234] sm:$0xff]
        %v913 = vld [vmem:[#allocation4 + $0x23c] sm:$0xf]
        %v914 = vld [vmem:[#allocation4 + $0x240] sm:$0xff]
        %v915 = vld [vmem:[#allocation4 + $0x248] sm:$0xf]
        %v916 = vld [vmem:[#allocation4 + $0x24c] sm:$0xff]
        %v917 = vld [vmem:[#allocation4 + $0x254] sm:$0xf]
        %v918 = vld [vmem:[#allocation4 + $0x258] sm:$0xff]
        %v919 = vld [vmem:[#allocation4 + $0x260] sm:$0xf]
        %v920 = vld [vmem:[#allocation4 + $0x264] sm:$0xff]
        %v921 = vld [vmem:[#allocation4 + $0x26c] sm:$0xf]
        %v922 = vld [vmem:[#allocation6] sm:$0xff]
        %v923 = vld [vmem:[#allocation6 + $0x8] sm:$0xf]
        %v924 = vld [vmem:[#allocation6 + $0xc] sm:$0xff]
        %v925 = vld [vmem:[#allocation6 + $0x14] sm:$0xf]
        %v926 = vld [vmem:[#allocation6 + $0x18] sm:$0xff]
        %v927 = vld [vmem:[#allocation6 + $0x20] sm:$0xf]
        %v928 = vld [vmem:[#allocation6 + $0x24] sm:$0xff]
        %v929 = vld [vmem:[#allocation6 + $0x2c] sm:$0xf]
        %v930 = vld [vmem:[#allocation6 + $0x30] sm:$0xff]
        %v931 = vld [vmem:[#allocation6 + $0x38] sm:$0xf]
        %v932 = vld [vmem:[#allocation6 + $0x3c] sm:$0xff]
        %v933 = vld [vmem:[#allocation6 + $0x44] sm:$0xf]
        %v934 = vld [vmem:[#allocation6 + $0x48] sm:$0xff]
        %v935 = vld [vmem:[#allocation6 + $0x50] sm:$0xf]
        %v936 = vld [vmem:[#allocation6 + $0x54] sm:$0xff]
        %v937 = vld [vmem:[#allocation6 + $0x5c] sm:$0xf]
        %v938 = vld [vmem:[#allocation6 + $0x60] sm:$0xff]
        %v939 = vld [vmem:[#allocation6 + $0x68] sm:$0xf]
        %v940 = vld [vmem:[#allocation6 + $0x6c] sm:$0xff]
        %v941 = vld [vmem:[#allocation6 + $0x74] sm:$0xf]
        %v942 = vld [vmem:[#allocation6 + $0x78] sm:$0xff]
        %v943 = vld [vmem:[#allocation6 + $0x80] sm:$0xf]
        %v944 = vld [vmem:[#allocation6 + $0x84] sm:$0xff]
        %v945 = vld [vmem:[#allocation6 + $0x8c] sm:$0xf]
        %v946 = vld [vmem:[#allocation6 + $0x90] sm:$0xff]
        %v947 = vld [vmem:[#allocation6 + $0x98] sm:$0xf]
        %v948 = vld [vmem:[#allocation6 + $0x9c] sm:$0xff]
        %v949 = vld [vmem:[#allocation6 + $0xa4] sm:$0xf]
        %v950 = vld [vmem:[#allocation6 + $0xa8] sm:$0xff]
        %v951 = vld [vmem:[#allocation6 + $0xb0] sm:$0xf]
        %v952 = vld [vmem:[#allocation6 + $0xb4] sm:$0xff]
        %v953 = vld [vmem:[#allocation6 + $0xbc] sm:$0xf]
        %v954 = vld [vmem:[#allocation6 + $0xc0] sm:$0xff]
        %v955 = vld [vmem:[#allocation6 + $0xc8] sm:$0xf]
        %v956 = vld [vmem:[#allocation6 + $0xcc] sm:$0xff]
        %v957 = vld [vmem:[#allocation6 + $0xd4] sm:$0xf]
        %v958 = vld [vmem:[#allocation6 + $0xd8] sm:$0xff]
        %v959 = vld [vmem:[#allocation6 + $0xe0] sm:$0xf]
        %v960 = vld [vmem:[#allocation6 + $0xe4] sm:$0xff]
        %v961 = vld [vmem:[#allocation6 + $0xec] sm:$0xf]
        %v962 = vld [vmem:[#allocation6 + $0xf0] sm:$0xff]
        %v963 = vld [vmem:[#allocation6 + $0xf8] sm:$0xf]
        %v964 = vld [vmem:[#allocation6 + $0xfc] sm:$0xff]
        %v965 = vld [vmem:[#allocation6 + $0x104] sm:$0xf]
        %v966 = vld [vmem:[#allocation6 + $0x108] sm:$0xff]
        %v967 = vld [vmem:[#allocation6 + $0x110] sm:$0xf]
        %v968 = vld [vmem:[#allocation6 + $0x114] sm:$0xff]
        %v969 = vld [vmem:[#allocation6 + $0x11c] sm:$0xf]
        %v970 = vld [vmem:[#allocation6 + $0x120] sm:$0xff]
        %v971 = vld [vmem:[#allocation6 + $0x128] sm:$0xf]
        %v972 = vld [vmem:[#allocation6 + $0x12c] sm:$0xff]
        %v973 = vld [vmem:[#allocation6 + $0x134] sm:$0xf]
        %v974 = vld [vmem:[#allocation6 + $0x138] sm:$0xff]
        %v975 = vld [vmem:[#allocation6 + $0x140] sm:$0xf]
        %v976 = vld [vmem:[#allocation6 + $0x144] sm:$0xff]
        %v977 = vld [vmem:[#allocation6 + $0x14c] sm:$0xf]
        %v978 = vld [vmem:[#allocation6 + $0x150] sm:$0xff]
        %v979 = vld [vmem:[#allocation6 + $0x158] sm:$0xf]
        %v980 = vld [vmem:[#allocation6 + $0x15c] sm:$0xff]
        %v981 = vld [vmem:[#allocation6 + $0x164] sm:$0xf]
        %v982 = vld [vmem:[#allocation6 + $0x168] sm:$0xff]
        %v983 = vld [vmem:[#allocation6 + $0x170] sm:$0xf]
        %v984 = vld [vmem:[#allocation6 + $0x174] sm:$0xff]
        %v985 = vld [vmem:[#allocation6 + $0x17c] sm:$0xf]
        %v986 = vld [vmem:[#allocation6 + $0x180] sm:$0xff]
        %v987 = vld [vmem:[#allocation6 + $0x188] sm:$0xf]
        %v988 = vld [vmem:[#allocation6 + $0x18c] sm:$0xff]
        %v989 = vld [vmem:[#allocation6 + $0x194] sm:$0xf]
        %v990 = vld [vmem:[#allocation6 + $0x198] sm:$0xff]
        %v991 = vld [vmem:[#allocation6 + $0x1a0] sm:$0xf]
        %v992 = vld [vmem:[#allocation6 + $0x1a4] sm:$0xff]
        %v993 = vld [vmem:[#allocation6 + $0x1ac] sm:$0xf]
        %v994 = vld [vmem:[#allocation6 + $0x1b0] sm:$0xff]
        %v995 = vld [vmem:[#allocation6 + $0x1b8] sm:$0xf]
        %v996 = vld [vmem:[#allocation6 + $0x1bc] sm:$0xff]
        %v997 = vld [vmem:[#allocation6 + $0x1c4] sm:$0xf]
        %v998 = vld [vmem:[#allocation6 + $0x1c8] sm:$0xff]
        %v999 = vld [vmem:[#allocation6 + $0x1d0] sm:$0xf]
        %v1000 = vld [vmem:[#allocation6 + $0x1d4] sm:$0xff]
        %v1001 = vld [vmem:[#allocation6 + $0x1dc] sm:$0xf]
        %v1002 = vld [vmem:[#allocation6 + $0x1e0] sm:$0xff]
        %v1003 = vld [vmem:[#allocation6 + $0x1e8] sm:$0xf]
        %v1004 = vld [vmem:[#allocation6 + $0x1ec] sm:$0xff]
        %v1005 = vld [vmem:[#allocation6 + $0x1f4] sm:$0xf]
        %v1006 = vld [vmem:[#allocation6 + $0x1f8] sm:$0xff]
        %v1007 = vld [vmem:[#allocation6 + $0x200] sm:$0xf]
        %v1008 = vld [vmem:[#allocation6 + $0x204] sm:$0xff]
        %v1009 = vld [vmem:[#allocation6 + $0x20c] sm:$0xf]
        %v1010 = vld [vmem:[#allocation6 + $0x210] sm:$0xff]
        %v1011 = vld [vmem:[#allocation6 + $0x218] sm:$0xf]
        %v1012 = vld [vmem:[#allocation6 + $0x21c] sm:$0xff]
        %v1013 = vld [vmem:[#allocation6 + $0x224] sm:$0xf]
        %v1014 = vld [vmem:[#allocation6 + $0x228] sm:$0xff]
        %v1015 = vld [vmem:[#allocation6 + $0x230] sm:$0xf]
        %v1016 = vld [vmem:[#allocation6 + $0x234] sm:$0xff]
        %v1017 = vld [vmem:[#allocation6 + $0x23c] sm:$0xf]
        %v1018 = vld [vmem:[#allocation6 + $0x240] sm:$0xff]
        %v1019 = vld [vmem:[#allocation6 + $0x248] sm:$0xf]
        %v1020 = vld [vmem:[#allocation6 + $0x24c] sm:$0xff]
        %v1021 = vld [vmem:[#allocation6 + $0x254] sm:$0xf]
        %v1022 = vld [vmem:[#allocation6 + $0x258] sm:$0xff]
        %v1023 = vld [vmem:[#allocation6 + $0x260] sm:$0xf]
        %v1024 = vld [vmem:[#allocation6 + $0x264] sm:$0xff]
        %v1025 = vld [vmem:[#allocation6 + $0x26c] sm:$0xf]
        %v1028 = vunpack.c.l.b16 %v400
        %v1029 = vunpack.c.h.b16 %v400
        %v1030 = vunpack.c.l.b16 %v401
        %v1031 = vunpack.c.h.b16 %v401
        %v1032 = vpack.c.b16 %v1028, %v1028
        %v1033 = vpack.c.b16 %v1029, %v1029
        %v1034 = vpack.c.b16 %v1030, %v1030
        %v1035 = vpack.c.b16 %v1031, %v1031
        %v1143 = vunpack.c.l.b16 %v506
        %v1144 = vunpack.c.h.b16 %v506
        %v1145 = vunpack.c.l.b16 %v507
        %v1146 = vunpack.c.l.b16 %v508
        %v1147 = vunpack.c.h.b16 %v508
        %v1148 = vunpack.c.l.b16 %v509
        %v1149 = vunpack.c.l.b16 %v510
        %v1150 = vunpack.c.h.b16 %v510
        %v1151 = vunpack.c.l.b16 %v511
        %v1152 = vunpack.c.l.b16 %v512
        %v1153 = vunpack.c.h.b16 %v512
        %v1154 = vunpack.c.l.b16 %v513
        %v1155 = vunpack.c.l.b16 %v514
        %v1156 = vunpack.c.h.b16 %v514
        %v1157 = vunpack.c.l.b16 %v515
        %v1158 = vunpack.c.l.b16 %v516
        %v1159 = vunpack.c.h.b16 %v516
        %v1160 = vunpack.c.l.b16 %v517
        %v1161 = vunpack.c.l.b16 %v518
        %v1162 = vunpack.c.h.b16 %v518
        %v1163 = vunpack.c.l.b16 %v519
        %v1164 = vunpack.c.l.b16 %v520
        %v1165 = vunpack.c.h.b16 %v520
        %v1166 = vunpack.c.l.b16 %v521
        %v1167 = vunpack.c.l.b16 %v522
        %v1168 = vunpack.c.h.b16 %v522
        %v1169 = vunpack.c.l.b16 %v523
        %v1170 = vunpack.c.l.b16 %v524
        %v1171 = vunpack.c.h.b16 %v524
        %v1172 = vunpack.c.l.b16 %v525
        %v1173 = vunpack.c.l.b16 %v526
        %v1174 = vunpack.c.h.b16 %v526
        %v1175 = vunpack.c.l.b16 %v527
        %v1176 = vunpack.c.l.b16 %v528
        %v1177 = vunpack.c.h.b16 %v528
        %v1178 = vunpack.c.l.b16 %v529
        %v1179 = vunpack.c.l.b16 %v530
        %v1180 = vunpack.c.h.b16 %v530
        %v1181 = vunpack.c.l.b16 %v531
        %v1182 = vunpack.c.l.b16 %v532
        %v1183 = vunpack.c.h.b16 %v532
        %v1184 = vunpack.c.l.b16 %v533
        %v1185 = vunpack.c.l.b16 %v534
        %v1186 = vunpack.c.h.b16 %v534
        %v1187 = vunpack.c.l.b16 %v535
        %v1188 = vunpack.c.l.b16 %v536
        %v1189 = vunpack.c.h.b16 %v536
        %v1190 = vunpack.c.l.b16 %v537
        %v1191 = vunpack.c.l.b16 %v538
        %v1192 = vunpack.c.h.b16 %v538
        %v1193 = vunpack.c.l.b16 %v539
        %v1194 = vunpack.c.l.b16 %v540
        %v1195 = vunpack.c.h.b16 %v540
        %v1196 = vunpack.c.l.b16 %v541
        %v1197 = vunpack.c.l.b16 %v542
        %v1198 = vunpack.c.h.b16 %v542
        %v1199 = vunpack.c.l.b16 %v543
        %v1200 = vunpack.c.l.b16 %v544
        %v1201 = vunpack.c.h.b16 %v544
        %v1202 = vunpack.c.l.b16 %v545
        %v1203 = vunpack.c.l.b16 %v546
        %v1204 = vunpack.c.h.b16 %v546
        %v1205 = vunpack.c.l.b16 %v547
        %v1206 = vunpack.c.l.b16 %v548
        %v1207 = vunpack.c.h.b16 %v548
        %v1208 = vunpack.c.l.b16 %v549
        %v1209 = vunpack.c.l.b16 %v550
        %v1210 = vunpack.c.h.b16 %v550
        %v1211 = vunpack.c.l.b16 %v551
        %v1212 = vunpack.c.l.b16 %v552
        %v1213 = vunpack.c.h.b16 %v552
        %v1214 = vunpack.c.l.b16 %v553
        %v1215 = vunpack.c.l.b16 %v554
        %v1216 = vunpack.c.h.b16 %v554
        %v1217 = vunpack.c.l.b16 %v555
        %v1218 = vunpack.c.l.b16 %v556
        %v1219 = vunpack.c.h.b16 %v556
        %v1220 = vunpack.c.l.b16 %v557
        %v1221 = vunpack.c.l.b16 %v558
        %v1222 = vunpack.c.h.b16 %v558
        %v1223 = vunpack.c.l.b16 %v559
        %v1224 = vunpack.c.l.b16 %v560
        %v1225 = vunpack.c.h.b16 %v560
        %v1226 = vunpack.c.l.b16 %v561
        %v1227 = vunpack.c.l.b16 %v562
        %v1228 = vunpack.c.h.b16 %v562
        %v1229 = vunpack.c.l.b16 %v563
        %v1230 = vunpack.c.l.b16 %v564
        %v1231 = vunpack.c.h.b16 %v564
        %v1232 = vunpack.c.l.b16 %v565
        %v1233 = vunpack.c.l.b16 %v566
        %v1234 = vunpack.c.h.b16 %v566
        %v1235 = vunpack.c.l.b16 %v567
        %v1236 = vunpack.c.l.b16 %v568
        %v1237 = vunpack.c.h.b16 %v568
        %v1238 = vunpack.c.l.b16 %v569
        %v1239 = vunpack.c.l.b16 %v570
        %v1240 = vunpack.c.h.b16 %v570
        %v1241 = vunpack.c.l.b16 %v571
        %v1242 = vunpack.c.l.b16 %v572
        %v1243 = vunpack.c.h.b16 %v572
        %v1244 = vunpack.c.l.b16 %v573
        %v1245 = vunpack.c.l.b16 %v574
        %v1246 = vunpack.c.h.b16 %v574
        %v1247 = vunpack.c.l.b16 %v575
        %v1248 = vunpack.c.l.b16 %v576
        %v1249 = vunpack.c.h.b16 %v576
        %v1250 = vunpack.c.l.b16 %v577
        %v1251 = vunpack.c.l.b16 %v578
        %v1252 = vunpack.c.h.b16 %v578
        %v1253 = vunpack.c.l.b16 %v579
        %v1254 = vunpack.c.l.b16 %v580
        %v1255 = vunpack.c.h.b16 %v580
        %v1256 = vunpack.c.l.b16 %v581
        %v1257 = vunpack.c.l.b16 %v582
        %v1258 = vunpack.c.h.b16 %v582
        %v1259 = vunpack.c.l.b16 %v583
        %v1260 = vunpack.c.l.b16 %v584
        %v1261 = vunpack.c.h.b16 %v584
        %v1262 = vunpack.c.l.b16 %v585
        %v1263 = vunpack.c.l.b16 %v586
        %v1264 = vunpack.c.h.b16 %v586
        %v1265 = vunpack.c.l.b16 %v587
        %v1266 = vunpack.c.l.b16 %v588
        %v1267 = vunpack.c.h.b16 %v588
        %v1268 = vunpack.c.l.b16 %v589
        %v1269 = vunpack.c.l.b16 %v590
        %v1270 = vunpack.c.h.b16 %v590
        %v1271 = vunpack.c.l.b16 %v591
        %v1272 = vunpack.c.l.b16 %v592
        %v1273 = vunpack.c.h.b16 %v592
        %v1274 = vunpack.c.l.b16 %v593
        %v1275 = vunpack.c.l.b16 %v594
        %v1276 = vunpack.c.h.b16 %v594
        %v1277 = vunpack.c.l.b16 %v595
        %v1278 = vunpack.c.l.b16 %v596
        %v1279 = vunpack.c.h.b16 %v596
        %v1280 = vunpack.c.l.b16 %v597
        %v1281 = vunpack.c.l.b16 %v598
        %v1282 = vunpack.c.h.b16 %v598
        %v1283 = vunpack.c.l.b16 %v599
        %v1284 = vunpack.c.l.b16 %v600
        %v1285 = vunpack.c.h.b16 %v600
        %v1286 = vunpack.c.l.b16 %v601
        %v1287 = vunpack.c.l.b16 %v602
        %v1288 = vunpack.c.h.b16 %v602
        %v1289 = vunpack.c.l.b16 %v603
        %v1290 = vunpack.c.l.b16 %v604
        %v1291 = vunpack.c.h.b16 %v604
        %v1292 = vunpack.c.l.b16 %v605
        %v1293 = vunpack.c.l.b16 %v606
        %v1294 = vunpack.c.h.b16 %v606
        %v1295 = vunpack.c.l.b16 %v607
        %v1296 = vunpack.c.l.b16 %v608
        %v1297 = vunpack.c.h.b16 %v608
        %v1298 = vunpack.c.l.b16 %v609
        %v1299 = vpack.c.b16 %v1146, %v1143
        %v1300 = vpack.c.b16 %v1147, %v1144
        %v1301 = vpack.c.b16 %v1148, %v1145
        %v1302 = vpack.c.b16 %v1152, %v1149
        %v1303 = vpack.c.b16 %v1153, %v1150
        %v1304 = vpack.c.b16 %v1154, %v1151
        %v1305 = vpack.c.b16 %v1158, %v1155
        %v1306 = vpack.c.b16 %v1159, %v1156
        %v1307 = vpack.c.b16 %v1160, %v1157
        %v1308 = vpack.c.b16 %v1164, %v1161
        %v1309 = vpack.c.b16 %v1165, %v1162
        %v1310 = vpack.c.b16 %v1166, %v1163
        %v1311 = vpack.c.b16 %v1170, %v1167
        %v1312 = vpack.c.b16 %v1171, %v1168
        %v1313 = vpack.c.b16 %v1172, %v1169
        %v1314 = vpack.c.b16 %v1176, %v1173
        %v1315 = vpack.c.b16 %v1177, %v1174
        %v1316 = vpack.c.b16 %v1178, %v1175
        %v1317 = vpack.c.b16 %v1182, %v1179
        %v1318 = vpack.c.b16 %v1183, %v1180
        %v1319 = vpack.c.b16 %v1184, %v1181
        %v1320 = vpack.c.b16 %v1188, %v1185
        %v1321 = vpack.c.b16 %v1189, %v1186
        %v1322 = vpack.c.b16 %v1190, %v1187
        %v1323 = vpack.c.b16 %v1194, %v1191
        %v1324 = vpack.c.b16 %v1195, %v1192
        %v1325 = vpack.c.b16 %v1196, %v1193
        %v1326 = vpack.c.b16 %v1200, %v1197
        %v1327 = vpack.c.b16 %v1201, %v1198
        %v1328 = vpack.c.b16 %v1202, %v1199
        %v1329 = vpack.c.b16 %v1206, %v1203
        %v1330 = vpack.c.b16 %v1207, %v1204
        %v1331 = vpack.c.b16 %v1208, %v1205
        %v1332 = vpack.c.b16 %v1212, %v1209
        %v1333 = vpack.c.b16 %v1213, %v1210
        %v1334 = vpack.c.b16 %v1214, %v1211
        %v1335 = vpack.c.b16 %v1218, %v1215
        %v1336 = vpack.c.b16 %v1219, %v1216
        %v1337 = vpack.c.b16 %v1220, %v1217
        %v1338 = vpack.c.b16 %v1224, %v1221
        %v1339 = vpack.c.b16 %v1225, %v1222
        %v1340 = vpack.c.b16 %v1226, %v1223
        %v1341 = vpack.c.b16 %v1230, %v1227
        %v1342 = vpack.c.b16 %v1231, %v1228
        %v1343 = vpack.c.b16 %v1232, %v1229
        %v1344 = vpack.c.b16 %v1236, %v1233
        %v1345 = vpack.c.b16 %v1237, %v1234
        %v1346 = vpack.c.b16 %v1238, %v1235
        %v1347 = vpack.c.b16 %v1242, %v1239
        %v1348 = vpack.c.b16 %v1243, %v1240
        %v1349 = vpack.c.b16 %v1244, %v1241
        %v1350 = vpack.c.b16 %v1248, %v1245
        %v1351 = vpack.c.b16 %v1249, %v1246
        %v1352 = vpack.c.b16 %v1250, %v1247
        %v1353 = vpack.c.b16 %v1254, %v1251
        %v1354 = vpack.c.b16 %v1255, %v1252
        %v1355 = vpack.c.b16 %v1256, %v1253
        %v1356 = vpack.c.b16 %v1260, %v1257
        %v1357 = vpack.c.b16 %v1261, %v1258
        %v1358 = vpack.c.b16 %v1262, %v1259
        %v1359 = vpack.c.b16 %v1266, %v1263
        %v1360 = vpack.c.b16 %v1267, %v1264
        %v1361 = vpack.c.b16 %v1268, %v1265
        %v1362 = vpack.c.b16 %v1272, %v1269
        %v1363 = vpack.c.b16 %v1273, %v1270
        %v1364 = vpack.c.b16 %v1274, %v1271
        %v1365 = vpack.c.b16 %v1278, %v1275
        %v1366 = vpack.c.b16 %v1279, %v1276
        %v1367 = vpack.c.b16 %v1280, %v1277
        %v1368 = vpack.c.b16 %v1284, %v1281
        %v1369 = vpack.c.b16 %v1285, %v1282
        %v1370 = vpack.c.b16 %v1286, %v1283
        %v1371 = vpack.c.b16 %v1290, %v1287
        %v1372 = vpack.c.b16 %v1291, %v1288
        %v1373 = vpack.c.b16 %v1292, %v1289
        %v1374 = vpack.c.b16 %v1296, %v1293
        %v1375 = vpack.c.b16 %v1297, %v1294
        %v1376 = vpack.c.b16 %v1298, %v1295
        %vm1455 = vcmask 261120
        %v1457 = vsel %vm1455, %v1035, 0
        %1459 = vmatprep.subr.bf16.mxu0 %v1300
        %1460 = vmatpush1.bf16.msra.mxu0 %v1299
        %1461 = vmatprep.subr.bf16.mxu0 %v1303
        %1462 = vmatpush1.bf16.msra.mxu0 %v1302
        %1463 = vmatprep.subr.bf16.mxu0 %v1306
        %1464 = vmatpush1.bf16.msra.mxu0 %v1305
        %1465 = vmatprep.subr.bf16.mxu0 %v1309
        %1466 = vmatpush1.bf16.msra.mxu0 %v1308
        %1467 = vmatprep.subr.bf16.mxu0 %v1312
        %1468 = vmatpush1.bf16.msra.mxu0 %v1311
        %1469 = vmatprep.subr.bf16.mxu0 %v1315
        %1470 = vmatpush1.bf16.msra.mxu0 %v1314
        %1471 = vmatprep.subr.bf16.mxu0 %v1318
        %1472 = vmatpush1.bf16.msra.mxu0 %v1317
        %1473 = vmatprep.subr.bf16.mxu0 %v1321
        %1474 = vmatpush1.bf16.msra.mxu0 %v1320
        %1475 = vmatprep.subr.bf16.mxu0 %v1324
        %1476 = vmatpush1.bf16.msra.mxu0 %v1323
        %1477 = vmatprep.subr.bf16.mxu0 %v1327
        %1478 = vmatpush1.bf16.msra.mxu0 %v1326
        %1479 = vmatprep.subr.bf16.mxu0 %v1330
        %1480 = vmatpush1.bf16.msra.mxu0 %v1329
        %1481 = vmatprep.subr.bf16.mxu0 %v1333
        %1482 = vmatpush1.bf16.msra.mxu0 %v1332
        %1483 = vmatprep.subr.bf16.mxu0 %v1336
        %1484 = vmatpush1.bf16.msra.mxu0 %v1335
        %1485 = vmatprep.subr.bf16.mxu0 %v1339
        %1486 = vmatpush1.bf16.msra.mxu0 %v1338
        %1487 = vmatprep.subr.bf16.mxu0 %v1342
        %1488 = vmatpush1.bf16.msra.mxu0 %v1341
        %1489 = vmatprep.subr.bf16.mxu0 %v1345
        %1490 = vmatpush1.bf16.msra.mxu0 %v1344
        %1491 = vmatprep.mubr.bf16.mxu0 %v1033
        %1492 = vmatmul.mubr.bf16.gmra.mrb[0].mxu0 %v1032
        %v1493 = vpop.f32.mrb[0].mxu0
        %v1494 = vadd.f32 0.0, %v1493
        %v1495 = vpop.f32.mrb[0].mxu0
        %v1496 = vadd.f32 0.0, %v1495
        %v1497 = vpop.f32.mrb[0].mxu0
        %v1498 = vpop.f32.mrb[0].mxu0
        %1499 = vdwg.mxu0
        %1500 = vmatprep.subr.bf16.mxu0 %v1348
        %1501 = vmatpush1.bf16.msra.mxu0 %v1347
        %1502 = vmatprep.subr.bf16.mxu0 %v1351
        %1503 = vmatpush1.bf16.msra.mxu0 %v1350
        %1504 = vmatprep.subr.bf16.mxu0 %v1354
        %1505 = vmatpush1.bf16.msra.mxu0 %v1353
        %1506 = vmatprep.subr.bf16.mxu0 %v1357
        %1507 = vmatpush1.bf16.msra.mxu0 %v1356
        %1508 = vmatprep.subr.bf16.mxu0 %v1360
        %1509 = vmatpush1.bf16.msra.mxu0 %v1359
        %1510 = vmatprep.subr.bf16.mxu0 %v1363
        %1511 = vmatpush1.bf16.msra.mxu0 %v1362
        %1512 = vmatprep.subr.bf16.mxu0 %v1366
        %1513 = vmatpush1.bf16.msra.mxu0 %v1365
        %1514 = vmatprep.subr.bf16.mxu0 %v1369
        %1515 = vmatpush1.bf16.msra.mxu0 %v1368
        %1516 = vmatprep.subr.bf16.mxu0 %v1372
        %1517 = vmatpush1.bf16.msra.mxu0 %v1371
        %1518 = vmatprep.subr.bf16.mxu0 %v1375
        %1519 = vmatpush1.bf16.msra.mxu0 %v1374
        %1520 = vmatprep.subr.bf16.mxu0 0
        %1521 = vmatpush1.bf16.msra.mxu0 0
        %1522 = vmatprep.subr.bf16.mxu0 0
        %1523 = vmatpush1.bf16.msra.mxu0 0
        %1524 = vmatprep.subr.bf16.mxu0 0
        %1525 = vmatpush1.bf16.msra.mxu0 0
        %1526 = vmatprep.subr.bf16.mxu0 0
        %1527 = vmatpush1.bf16.msra.mxu0 0
        %1528 = vmatprep.subr.bf16.mxu0 0
        %1529 = vmatpush1.bf16.msra.mxu0 0
        %1530 = vmatprep.subr.bf16.mxu0 0
        %1531 = vmatpush1.bf16.msra.mxu0 0
        %1532 = vmatprep.mubr.bf16.mxu0 %v1457
        %1533 = vmatmul.mubr.bf16.gmra.mrb[0].mxu0 %v1034
        %v1534 = vpop.f32.mrb[0].mxu0
        %v1535 = vadd.f32 %v1494, %v1534
        %v1536 = vpop.f32.mrb[0].mxu0
        %v1537 = vadd.f32 %v1496, %v1536
        %v1538 = vpop.f32.mrb[0].mxu0
        %v1539 = vpop.f32.mrb[0].mxu0
        %1540 = vdwg.mxu0
        %1541 = vmatprep.subr.bf16.mxu0 0
        %1542 = vmatpush1.bf16.msra.mxu0 %v1301
        %1543 = vmatprep.subr.bf16.mxu0 0
        %1544 = vmatpush1.bf16.msra.mxu0 %v1304
        %1545 = vmatprep.subr.bf16.mxu0 0
        %1546 = vmatpush1.bf16.msra.mxu0 %v1307
        %1547 = vmatprep.subr.bf16.mxu0 0
        %1548 = vmatpush1.bf16.msra.mxu0 %v1310
        %1549 = vmatprep.subr.bf16.mxu0 0
        %1550 = vmatpush1.bf16.msra.mxu0 %v1313
        %1551 = vmatprep.subr.bf16.mxu0 0
        %1552 = vmatpush1.bf16.msra.mxu0 %v1316
        %1553 = vmatprep.subr.bf16.mxu0 0
        %1554 = vmatpush1.bf16.msra.mxu0 %v1319
        %1555 = vmatprep.subr.bf16.mxu0 0
        %1556 = vmatpush1.bf16.msra.mxu0 %v1322
        %1557 = vmatprep.subr.bf16.mxu0 0
        %1558 = vmatpush1.bf16.msra.mxu0 %v1325
        %1559 = vmatprep.subr.bf16.mxu0 0
        %1560 = vmatpush1.bf16.msra.mxu0 %v1328
        %1561 = vmatprep.subr.bf16.mxu0 0
        %1562 = vmatpush1.bf16.msra.mxu0 %v1331
        %1563 = vmatprep.subr.bf16.mxu0 0
        %1564 = vmatpush1.bf16.msra.mxu0 %v1334
        %1565 = vmatprep.subr.bf16.mxu0 0
        %1566 = vmatpush1.bf16.msra.mxu0 %v1337
        %1567 = vmatprep.subr.bf16.mxu0 0
        %1568 = vmatpush1.bf16.msra.mxu0 %v1340
        %1569 = vmatprep.subr.bf16.mxu0 0
        %1570 = vmatpush1.bf16.msra.mxu0 %v1343
        %1571 = vmatprep.subr.bf16.mxu0 0
        %1572 = vmatpush1.bf16.msra.mxu0 %v1346
        %1573 = vmatprep.mubr.bf16.mxu0 %v1033
        %1574 = vmatmul.mubr.bf16.gmra.mrb[0].mxu0 %v1032
        %v1575 = vpop.f32.mrb[0].mxu0
        %v1576 = vadd.f32 0.0, %v1575
        %v1577 = vpop.f32.mrb[0].mxu0
        %v1578 = vpop.f32.mrb[0].mxu0
        %v1579 = vpop.f32.mrb[0].mxu0
        %1580 = vdwg.mxu0
        %1581 = vmatprep.subr.bf16.mxu0 0
        %1582 = vmatpush1.bf16.msra.mxu0 %v1349
        %1583 = vmatprep.subr.bf16.mxu0 0
        %1584 = vmatpush1.bf16.msra.mxu0 %v1352
        %1585 = vmatprep.subr.bf16.mxu0 0
        %1586 = vmatpush1.bf16.msra.mxu0 %v1355
        %1587 = vmatprep.subr.bf16.mxu0 0
        %1588 = vmatpush1.bf16.msra.mxu0 %v1358
        %1589 = vmatprep.subr.bf16.mxu0 0
        %1590 = vmatpush1.bf16.msra.mxu0 %v1361
        %1591 = vmatprep.subr.bf16.mxu0 0
        %1592 = vmatpush1.bf16.msra.mxu0 %v1364
        %1593 = vmatprep.subr.bf16.mxu0 0
        %1594 = vmatpush1.bf16.msra.mxu0 %v1367
        %1595 = vmatprep.subr.bf16.mxu0 0
        %1596 = vmatpush1.bf16.msra.mxu0 %v1370
        %1597 = vmatprep.subr.bf16.mxu0 0
        %1598 = vmatpush1.bf16.msra.mxu0 %v1373
        %1599 = vmatprep.subr.bf16.mxu0 0
        %1600 = vmatpush1.bf16.msra.mxu0 %v1376
        %1601 = vmatprep.subr.bf16.mxu0 0
        %1602 = vmatpush1.bf16.msra.mxu0 0
        %1603 = vmatprep.subr.bf16.mxu0 0
        %1604 = vmatpush1.bf16.msra.mxu0 0
        %1605 = vmatprep.subr.bf16.mxu0 0
        %1606 = vmatpush1.bf16.msra.mxu0 0
        %1607 = vmatprep.subr.bf16.mxu0 0
        %1608 = vmatpush1.bf16.msra.mxu0 0
        %1609 = vmatprep.subr.bf16.mxu0 0
        %1610 = vmatpush1.bf16.msra.mxu0 0
        %1611 = vmatprep.subr.bf16.mxu0 0
        %1612 = vmatpush1.bf16.msra.mxu0 0
        %1613 = vmatprep.mubr.bf16.mxu0 %v1457
        %1614 = vmatmul.mubr.bf16.gmra.mrb[0].mxu0 %v1034
        %v1615 = vpop.f32.mrb[0].mxu0
        %v1616 = vadd.f32 %v1576, %v1615
        %v1617 = vpop.f32.mrb[0].mxu0
        %v1618 = vpop.f32.mrb[0].mxu0
        %v1619 = vpop.f32.mrb[0].mxu0
        %1620 = vdwg.mxu0
        %v1623 = vunpack.c.l.b16 %v398
        %v1624 = vunpack.c.h.b16 %v398
        %v1625 = vunpack.c.l.b16 %v399
        %v1626 = vunpack.c.h.b16 %v399
        %v1627 = vpack.c.b16 %v1623, %v1623
        %v1628 = vpack.c.b16 %v1624, %v1624
        %v1629 = vpack.c.b16 %v1625, %v1625
        %v1630 = vpack.c.b16 %v1626, %v1626
        %v1738 = vunpack.c.l.b16 %v402
        %v1739 = vunpack.c.h.b16 %v402
        %v1740 = vunpack.c.l.b16 %v403
        %v1741 = vunpack.c.l.b16 %v404
        %v1742 = vunpack.c.h.b16 %v404
        %v1743 = vunpack.c.l.b16 %v405
        %v1744 = vunpack.c.l.b16 %v406
        %v1745 = vunpack.c.h.b16 %v406
        %v1746 = vunpack.c.l.b16 %v407
        %v1747 = vunpack.c.l.b16 %v408
        %v1748 = vunpack.c.h.b16 %v408
        %v1749 = vunpack.c.l.b16 %v409
        %v1750 = vunpack.c.l.b16 %v410
        %v1751 = vunpack.c.h.b16 %v410
        %v1752 = vunpack.c.l.b16 %v411
        %v1753 = vunpack.c.l.b16 %v412
        %v1754 = vunpack.c.h.b16 %v412
        %v1755 = vunpack.c.l.b16 %v413
        %v1756 = vunpack.c.l.b16 %v414
        %v1757 = vunpack.c.h.b16 %v414
        %v1758 = vunpack.c.l.b16 %v415
        %v1759 = vunpack.c.l.b16 %v416
        %v1760 = vunpack.c.h.b16 %v416
        %v1761 = vunpack.c.l.b16 %v417
        %v1762 = vunpack.c.l.b16 %v418
        %v1763 = vunpack.c.h.b16 %v418
        %v1764 = vunpack.c.l.b16 %v419
        %v1765 = vunpack.c.l.b16 %v420
        %v1766 = vunpack.c.h.b16 %v420
        %v1767 = vunpack.c.l.b16 %v421
        %v1768 = vunpack.c.l.b16 %v422
        %v1769 = vunpack.c.h.b16 %v422
        %v1770 = vunpack.c.l.b16 %v423
        %v1771 = vunpack.c.l.b16 %v424
        %v1772 = vunpack.c.h.b16 %v424
        %v1773 = vunpack.c.l.b16 %v425
        %v1774 = vunpack.c.l.b16 %v426
        %v1775 = vunpack.c.h.b16 %v426
        %v1776 = vunpack.c.l.b16 %v427
        %v1777 = vunpack.c.l.b16 %v428
        %v1778 = vunpack.c.h.b16 %v428
        %v1779 = vunpack.c.l.b16 %v429
        %v1780 = vunpack.c.l.b16 %v430
        %v1781 = vunpack.c.h.b16 %v430
        %v1782 = vunpack.c.l.b16 %v431
        %v1783 = vunpack.c.l.b16 %v432
        %v1784 = vunpack.c.h.b16 %v432
        %v1785 = vunpack.c.l.b16 %v433
        %v1786 = vunpack.c.l.b16 %v434
        %v1787 = vunpack.c.h.b16 %v434
        %v1788 = vunpack.c.l.b16 %v435
        %v1789 = vunpack.c.l.b16 %v436
        %v1790 = vunpack.c.h.b16 %v436
        %v1791 = vunpack.c.l.b16 %v437
        %v1792 = vunpack.c.l.b16 %v438
        %v1793 = vunpack.c.h.b16 %v438
        %v1794 = vunpack.c.l.b16 %v439
        %v1795 = vunpack.c.l.b16 %v440
        %v1796 = vunpack.c.h.b16 %v440
        %v1797 = vunpack.c.l.b16 %v441
        %v1798 = vunpack.c.l.b16 %v442
        %v1799 = vunpack.c.h.b16 %v442
        %v1800 = vunpack.c.l.b16 %v443
        %v1801 = vunpack.c.l.b16 %v444
        %v1802 = vunpack.c.h.b16 %v444
        %v1803 = vunpack.c.l.b16 %v445
        %v1804 = vunpack.c.l.b16 %v446
        %v1805 = vunpack.c.h.b16 %v446
        %v1806 = vunpack.c.l.b16 %v447
        %v1807 = vunpack.c.l.b16 %v448
        %v1808 = vunpack.c.h.b16 %v448
        %v1809 = vunpack.c.l.b16 %v449
        %v1810 = vunpack.c.l.b16 %v450
        %v1811 = vunpack.c.h.b16 %v450
        %v1812 = vunpack.c.l.b16 %v451
        %v1813 = vunpack.c.l.b16 %v452
        %v1814 = vunpack.c.h.b16 %v452
        %v1815 = vunpack.c.l.b16 %v453
        %v1816 = vunpack.c.l.b16 %v454
        %v1817 = vunpack.c.h.b16 %v454
        %v1818 = vunpack.c.l.b16 %v455
        %v1819 = vunpack.c.l.b16 %v456
        %v1820 = vunpack.c.h.b16 %v456
        %v1821 = vunpack.c.l.b16 %v457
        %v1822 = vunpack.c.l.b16 %v458
        %v1823 = vunpack.c.h.b16 %v458
        %v1824 = vunpack.c.l.b16 %v459
        %v1825 = vunpack.c.l.b16 %v460
        %v1826 = vunpack.c.h.b16 %v460
        %v1827 = vunpack.c.l.b16 %v461
        %v1828 = vunpack.c.l.b16 %v462
        %v1829 = vunpack.c.h.b16 %v462
        %v1830 = vunpack.c.l.b16 %v463
        %v1831 = vunpack.c.l.b16 %v464
        %v1832 = vunpack.c.h.b16 %v464
        %v1833 = vunpack.c.l.b16 %v465
        %v1834 = vunpack.c.l.b16 %v466
        %v1835 = vunpack.c.h.b16 %v466
        %v1836 = vunpack.c.l.b16 %v467
        %v1837 = vunpack.c.l.b16 %v468
        %v1838 = vunpack.c.h.b16 %v468
        %v1839 = vunpack.c.l.b16 %v469
        %v1840 = vunpack.c.l.b16 %v470
        %v1841 = vunpack.c.h.b16 %v470
        %v1842 = vunpack.c.l.b16 %v471
        %v1843 = vunpack.c.l.b16 %v472
        %v1844 = vunpack.c.h.b16 %v472
        %v1845 = vunpack.c.l.b16 %v473
        %v1846 = vunpack.c.l.b16 %v474
        %v1847 = vunpack.c.h.b16 %v474
        %v1848 = vunpack.c.l.b16 %v475
        %v1849 = vunpack.c.l.b16 %v476
        %v1850 = vunpack.c.h.b16 %v476
        %v1851 = vunpack.c.l.b16 %v477
        %v1852 = vunpack.c.l.b16 %v478
        %v1853 = vunpack.c.h.b16 %v478
        %v1854 = vunpack.c.l.b16 %v479
        %v1855 = vunpack.c.l.b16 %v480
        %v1856 = vunpack.c.h.b16 %v480
        %v1857 = vunpack.c.l.b16 %v481
        %v1858 = vunpack.c.l.b16 %v482
        %v1859 = vunpack.c.h.b16 %v482
        %v1860 = vunpack.c.l.b16 %v483
        %v1861 = vunpack.c.l.b16 %v484
        %v1862 = vunpack.c.h.b16 %v484
        %v1863 = vunpack.c.l.b16 %v485
        %v1864 = vunpack.c.l.b16 %v486
        %v1865 = vunpack.c.h.b16 %v486
        %v1866 = vunpack.c.l.b16 %v487
        %v1867 = vunpack.c.l.b16 %v488
        %v1868 = vunpack.c.h.b16 %v488
        %v1869 = vunpack.c.l.b16 %v489
        %v1870 = vunpack.c.l.b16 %v490
        %v1871 = vunpack.c.h.b16 %v490
        %v1872 = vunpack.c.l.b16 %v491
        %v1873 = vunpack.c.l.b16 %v492
        %v1874 = vunpack.c.h.b16 %v492
        %v1875 = vunpack.c.l.b16 %v493
        %v1876 = vunpack.c.l.b16 %v494
        %v1877 = vunpack.c.h.b16 %v494
        %v1878 = vunpack.c.l.b16 %v495
        %v1879 = vunpack.c.l.b16 %v496
        %v1880 = vunpack.c.h.b16 %v496
        %v1881 = vunpack.c.l.b16 %v497
        %v1882 = vunpack.c.l.b16 %v498
        %v1883 = vunpack.c.h.b16 %v498
        %v1884 = vunpack.c.l.b16 %v499
        %v1885 = vunpack.c.l.b16 %v500
        %v1886 = vunpack.c.h.b16 %v500
        %v1887 = vunpack.c.l.b16 %v501
        %v1888 = vunpack.c.l.b16 %v502
        %v1889 = vunpack.c.h.b16 %v502
        %v1890 = vunpack.c.l.b16 %v503
        %v1891 = vunpack.c.l.b16 %v504
        %v1892 = vunpack.c.h.b16 %v504
        %v1893 = vunpack.c.l.b16 %v505
        %v1894 = vpack.c.b16 %v1741, %v1738
        %v1895 = vpack.c.b16 %v1742, %v1739
        %v1896 = vpack.c.b16 %v1743, %v1740
        %v1897 = vpack.c.b16 %v1747, %v1744
        %v1898 = vpack.c.b16 %v1748, %v1745
        %v1899 = vpack.c.b16 %v1749, %v1746
        %v1900 = vpack.c.b16 %v1753, %v1750
        %v1901 = vpack.c.b16 %v1754, %v1751
        %v1902 = vpack.c.b16 %v1755, %v1752
        %v1903 = vpack.c.b16 %v1759, %v1756
        %v1904 = vpack.c.b16 %v1760, %v1757
        %v1905 = vpack.c.b16 %v1761, %v1758
        %v1906 = vpack.c.b16 %v1765, %v1762
        %v1907 = vpack.c.b16 %v1766, %v1763
        %v1908 = vpack.c.b16 %v1767, %v1764
        %v1909 = vpack.c.b16 %v1771, %v1768
        %v1910 = vpack.c.b16 %v1772, %v1769
        %v1911 = vpack.c.b16 %v1773, %v1770
        %v1912 = vpack.c.b16 %v1777, %v1774
        %v1913 = vpack.c.b16 %v1778, %v1775
        %v1914 = vpack.c.b16 %v1779, %v1776
        %v1915 = vpack.c.b16 %v1783, %v1780
        %v1916 = vpack.c.b16 %v1784, %v1781
        %v1917 = vpack.c.b16 %v1785, %v1782
        %v1918 = vpack.c.b16 %v1789, %v1786
        %v1919 = vpack.c.b16 %v1790, %v1787
        %v1920 = vpack.c.b16 %v1791, %v1788
        %v1921 = vpack.c.b16 %v1795, %v1792
        %v1922 = vpack.c.b16 %v1796, %v1793
        %v1923 = vpack.c.b16 %v1797, %v1794
        %v1924 = vpack.c.b16 %v1801, %v1798
        %v1925 = vpack.c.b16 %v1802, %v1799
        %v1926 = vpack.c.b16 %v1803, %v1800
        %v1927 = vpack.c.b16 %v1807, %v1804
        %v1928 = vpack.c.b16 %v1808, %v1805
        %v1929 = vpack.c.b16 %v1809, %v1806
        %v1930 = vpack.c.b16 %v1813, %v1810
        %v1931 = vpack.c.b16 %v1814, %v1811
        %v1932 = vpack.c.b16 %v1815, %v1812
        %v1933 = vpack.c.b16 %v1819, %v1816
        %v1934 = vpack.c.b16 %v1820, %v1817
        %v1935 = vpack.c.b16 %v1821, %v1818
        %v1936 = vpack.c.b16 %v1825, %v1822
        %v1937 = vpack.c.b16 %v1826, %v1823
        %v1938 = vpack.c.b16 %v1827, %v1824
        %v1939 = vpack.c.b16 %v1831, %v1828
        %v1940 = vpack.c.b16 %v1832, %v1829
        %v1941 = vpack.c.b16 %v1833, %v1830
        %v1942 = vpack.c.b16 %v1837, %v1834
        %v1943 = vpack.c.b16 %v1838, %v1835
        %v1944 = vpack.c.b16 %v1839, %v1836
        %v1945 = vpack.c.b16 %v1843, %v1840
        %v1946 = vpack.c.b16 %v1844, %v1841
        %v1947 = vpack.c.b16 %v1845, %v1842
        %v1948 = vpack.c.b16 %v1849, %v1846
        %v1949 = vpack.c.b16 %v1850, %v1847
        %v1950 = vpack.c.b16 %v1851, %v1848
        %v1951 = vpack.c.b16 %v1855, %v1852
        %v1952 = vpack.c.b16 %v1856, %v1853
        %v1953 = vpack.c.b16 %v1857, %v1854
        %v1954 = vpack.c.b16 %v1861, %v1858
        %v1955 = vpack.c.b16 %v1862, %v1859
        %v1956 = vpack.c.b16 %v1863, %v1860
        %v1957 = vpack.c.b16 %v1867, %v1864
        %v1958 = vpack.c.b16 %v1868, %v1865
        %v1959 = vpack.c.b16 %v1869, %v1866
        %v1960 = vpack.c.b16 %v1873, %v1870
        %v1961 = vpack.c.b16 %v1874, %v1871
        %v1962 = vpack.c.b16 %v1875, %v1872
        %v1963 = vpack.c.b16 %v1879, %v1876
        %v1964 = vpack.c.b16 %v1880, %v1877
        %v1965 = vpack.c.b16 %v1881, %v1878
        %v1966 = vpack.c.b16 %v1885, %v1882
        %v1967 = vpack.c.b16 %v1886, %v1883
        %v1968 = vpack.c.b16 %v1887, %v1884
        %v1969 = vpack.c.b16 %v1891, %v1888
        %v1970 = vpack.c.b16 %v1892, %v1889
        %v1971 = vpack.c.b16 %v1893, %v1890
        %v2051 = vsel %vm1455, %v1630, 0
        %2053 = vmatprep.subr.bf16.mxu0 %v1895
        %2054 = vmatpush1.bf16.msra.mxu0 %v1894
        %2055 = vmatprep.subr.bf16.mxu0 %v1898
        %2056 = vmatpush1.bf16.msra.mxu0 %v1897
        %2057 = vmatprep.subr.bf16.mxu0 %v1901
        %2058 = vmatpush1.bf16.msra.mxu0 %v1900
        %2059 = vmatprep.subr.bf16.mxu0 %v1904
        %2060 = vmatpush1.bf16.msra.mxu0 %v1903
        %2061 = vmatprep.subr.bf16.mxu0 %v1907
        %2062 = vmatpush1.bf16.msra.mxu0 %v1906
        %2063 = vmatprep.subr.bf16.mxu0 %v1910
        %2064 = vmatpush1.bf16.msra.mxu0 %v1909
        %2065 = vmatprep.subr.bf16.mxu0 %v1913
        %2066 = vmatpush1.bf16.msra.mxu0 %v1912
        %2067 = vmatprep.subr.bf16.mxu0 %v1916
        %2068 = vmatpush1.bf16.msra.mxu0 %v1915
        %2069 = vmatprep.subr.bf16.mxu0 %v1919
        %2070 = vmatpush1.bf16.msra.mxu0 %v1918
        %2071 = vmatprep.subr.bf16.mxu0 %v1922
        %2072 = vmatpush1.bf16.msra.mxu0 %v1921
        %2073 = vmatprep.subr.bf16.mxu0 %v1925
        %2074 = vmatpush1.bf16.msra.mxu0 %v1924
        %2075 = vmatprep.subr.bf16.mxu0 %v1928
        %2076 = vmatpush1.bf16.msra.mxu0 %v1927
        %2077 = vmatprep.subr.bf16.mxu0 %v1931
        %2078 = vmatpush1.bf16.msra.mxu0 %v1930
        %2079 = vmatprep.subr.bf16.mxu0 %v1934
        %2080 = vmatpush1.bf16.msra.mxu0 %v1933
        %2081 = vmatprep.subr.bf16.mxu0 %v1937
        %2082 = vmatpush1.bf16.msra.mxu0 %v1936
        %2083 = vmatprep.subr.bf16.mxu0 %v1940
        %2084 = vmatpush1.bf16.msra.mxu0 %v1939
        %2085 = vmatprep.mubr.bf16.mxu0 %v1628
        %2086 = vmatmul.mubr.bf16.gmra.mrb[0].mxu0 %v1627
        %v2087 = vpop.f32.mrb[0].mxu0
        %v2088 = vadd.f32 %v1535, %v2087
        %v2089 = vpop.f32.mrb[0].mxu0
        %v2090 = vadd.f32 %v1537, %v2089
        %v2091 = vpop.f32.mrb[0].mxu0
        %v2092 = vpop.f32.mrb[0].mxu0
        %2093 = vdwg.mxu0
        %2094 = vmatprep.subr.bf16.mxu0 %v1943
        %2095 = vmatpush1.bf16.msra.mxu0 %v1942
        %2096 = vmatprep.subr.bf16.mxu0 %v1946
        %2097 = vmatpush1.bf16.msra.mxu0 %v1945
        %2098 = vmatprep.subr.bf16.mxu0 %v1949
        %2099 = vmatpush1.bf16.msra.mxu0 %v1948
        %2100 = vmatprep.subr.bf16.mxu0 %v1952
        %2101 = vmatpush1.bf16.msra.mxu0 %v1951
        %2102 = vmatprep.subr.bf16.mxu0 %v1955
        %2103 = vmatpush1.bf16.msra.mxu0 %v1954
        %2104 = vmatprep.subr.bf16.mxu0 %v1958
        %2105 = vmatpush1.bf16.msra.mxu0 %v1957
        %2106 = vmatprep.subr.bf16.mxu0 %v1961
        %2107 = vmatpush1.bf16.msra.mxu0 %v1960
        %2108 = vmatprep.subr.bf16.mxu0 %v1964
        %2109 = vmatpush1.bf16.msra.mxu0 %v1963
        %2110 = vmatprep.subr.bf16.mxu0 %v1967
        %2111 = vmatpush1.bf16.msra.mxu0 %v1966
        %2112 = vmatprep.subr.bf16.mxu0 %v1970
        %2113 = vmatpush1.bf16.msra.mxu0 %v1969
        %2114 = vmatprep.subr.bf16.mxu0 0
        %2115 = vmatpush1.bf16.msra.mxu0 0
        %2116 = vmatprep.subr.bf16.mxu0 0
        %2117 = vmatpush1.bf16.msra.mxu0 0
        %2118 = vmatprep.subr.bf16.mxu0 0
        %2119 = vmatpush1.bf16.msra.mxu0 0
        %2120 = vmatprep.subr.bf16.mxu0 0
        %2121 = vmatpush1.bf16.msra.mxu0 0
        %2122 = vmatprep.subr.bf16.mxu0 0
        %2123 = vmatpush1.bf16.msra.mxu0 0
        %2124 = vmatprep.subr.bf16.mxu0 0
        %2125 = vmatpush1.bf16.msra.mxu0 0
        %2126 = vmatprep.mubr.bf16.mxu0 %v2051
        %2127 = vmatmul.mubr.bf16.gmra.mrb[0].mxu0 %v1629
        %v2128 = vpop.f32.mrb[0].mxu0
        %v2129 = vadd.f32 %v2088, %v2128
        %v2130 = vpop.f32.mrb[0].mxu0
        %v2131 = vadd.f32 %v2090, %v2130
        %v2132 = vpop.f32.mrb[0].mxu0
        %v2133 = vpop.f32.mrb[0].mxu0
        %2134 = vdwg.mxu0
        %2135 = vmatprep.subr.bf16.mxu0 0
        %2136 = vmatpush1.bf16.msra.mxu0 %v1896
        %2137 = vmatprep.subr.bf16.mxu0 0
        %2138 = vmatpush1.bf16.msra.mxu0 %v1899
        %2139 = vmatprep.subr.bf16.mxu0 0
        %2140 = vmatpush1.bf16.msra.mxu0 %v1902
        %2141 = vmatprep.subr.bf16.mxu0 0
        %2142 = vmatpush1.bf16.msra.mxu0 %v1905
        %2143 = vmatprep.subr.bf16.mxu0 0
        %2144 = vmatpush1.bf16.msra.mxu0 %v1908
        %2145 = vmatprep.subr.bf16.mxu0 0
        %2146 = vmatpush1.bf16.msra.mxu0 %v1911
        %2147 = vmatprep.subr.bf16.mxu0 0
        %2148 = vmatpush1.bf16.msra.mxu0 %v1914
        %2149 = vmatprep.subr.bf16.mxu0 0
        %2150 = vmatpush1.bf16.msra.mxu0 %v1917
        %2151 = vmatprep.subr.bf16.mxu0 0
        %2152 = vmatpush1.bf16.msra.mxu0 %v1920
        %2153 = vmatprep.subr.bf16.mxu0 0
        %2154 = vmatpush1.bf16.msra.mxu0 %v1923
        %2155 = vmatprep.subr.bf16.mxu0 0
        %2156 = vmatpush1.bf16.msra.mxu0 %v1926
        %2157 = vmatprep.subr.bf16.mxu0 0
        %2158 = vmatpush1.bf16.msra.mxu0 %v1929
        %2159 = vmatprep.subr.bf16.mxu0 0
        %2160 = vmatpush1.bf16.msra.mxu0 %v1932
        %2161 = vmatprep.subr.bf16.mxu0 0
        %2162 = vmatpush1.bf16.msra.mxu0 %v1935
        %2163 = vmatprep.subr.bf16.mxu0 0
        %2164 = vmatpush1.bf16.msra.mxu0 %v1938
        %2165 = vmatprep.subr.bf16.mxu0 0
        %2166 = vmatpush1.bf16.msra.mxu0 %v1941
        %2167 = vmatprep.mubr.bf16.mxu0 %v1628
        %2168 = vmatmul.mubr.bf16.gmra.mrb[0].mxu0 %v1627
        %v2169 = vpop.f32.mrb[0].mxu0
        %v2170 = vadd.f32 %v1616, %v2169
        %v2171 = vpop.f32.mrb[0].mxu0
        %v2172 = vpop.f32.mrb[0].mxu0
        %v2173 = vpop.f32.mrb[0].mxu0
        %2174 = vdwg.mxu0
        %2175 = vmatprep.subr.bf16.mxu0 0
        %2176 = vmatpush1.bf16.msra.mxu0 %v1944
        %2177 = vmatprep.subr.bf16.mxu0 0
        %2178 = vmatpush1.bf16.msra.mxu0 %v1947
        %2179 = vmatprep.subr.bf16.mxu0 0
        %2180 = vmatpush1.bf16.msra.mxu0 %v1950
        %2181 = vmatprep.subr.bf16.mxu0 0
        %2182 = vmatpush1.bf16.msra.mxu0 %v1953
        %2183 = vmatprep.subr.bf16.mxu0 0
        %2184 = vmatpush1.bf16.msra.mxu0 %v1956
        %2185 = vmatprep.subr.bf16.mxu0 0
        %2186 = vmatpush1.bf16.msra.mxu0 %v1959
        %2187 = vmatprep.subr.bf16.mxu0 0
        %2188 = vmatpush1.bf16.msra.mxu0 %v1962
        %2189 = vmatprep.subr.bf16.mxu0 0
        %2190 = vmatpush1.bf16.msra.mxu0 %v1965
        %2191 = vmatprep.subr.bf16.mxu0 0
        %2192 = vmatpush1.bf16.msra.mxu0 %v1968
        %2193 = vmatprep.subr.bf16.mxu0 0
        %2194 = vmatpush1.bf16.msra.mxu0 %v1971
        %2195 = vmatprep.subr.bf16.mxu0 0
        %2196 = vmatpush1.bf16.msra.mxu0 0
        %2197 = vmatprep.subr.bf16.mxu0 0
        %2198 = vmatpush1.bf16.msra.mxu0 0
        %2199 = vmatprep.subr.bf16.mxu0 0
        %2200 = vmatpush1.bf16.msra.mxu0 0
        %2201 = vmatprep.subr.bf16.mxu0 0
        %2202 = vmatpush1.bf16.msra.mxu0 0
        %2203 = vmatprep.subr.bf16.mxu0 0
        %2204 = vmatpush1.bf16.msra.mxu0 0
        %2205 = vmatprep.subr.bf16.mxu0 0
        %2206 = vmatpush1.bf16.msra.mxu0 0
        %2207 = vmatprep.mubr.bf16.mxu0 %v2051
        %2208 = vmatmul.mubr.bf16.gmra.mrb[0].mxu0 %v1629
        %v2209 = vpop.f32.mrb[0].mxu0
        %v2210 = vadd.f32 %v2170, %v2209
        %v2211 = vpop.f32.mrb[0].mxu0
        %v2212 = vpop.f32.mrb[0].mxu0
        %v2213 = vpop.f32.mrb[0].mxu0
        %2214 = vdwg.mxu0
        %v2216 = vshrl.u32 %v1627, 16
        %v2218 = vshll.u32 %v1627, 16
        %v2220 = vrot.slane %v2218, 1
        %v2221 = vor.u32 %v2216, %v2220
        %v2223 = vshrl.u32 %v1628, 16
        %v2225 = vshll.u32 %v1628, 16
        %v2227 = vrot.slane %v2225, 1
        %v2228 = vor.u32 %v2223, %v2227
        %v2230 = vshrl.u32 %v1629, 16
        %v2232 = vshll.u32 %v1629, 16
        %v2234 = vrot.slane %v2232, 1
        %v2235 = vor.u32 %v2230, %v2234
        %v2236 = vshrl.u32 %v1630, 16
        %v2238 = vshll.u32 %v1630, 16
        %v2240 = vrot.slane %v2238, 1
        %v2241 = vor.u32 %v2236, %v2240
        %v2349 = vunpack.c.l.b16 %v610
        %v2350 = vunpack.c.h.b16 %v610
        %v2351 = vunpack.c.l.b16 %v611
        %v2352 = vunpack.c.l.b16 %v612
        %v2353 = vunpack.c.h.b16 %v612
        %v2354 = vunpack.c.l.b16 %v613
        %v2355 = vunpack.c.l.b16 %v614
        %v2356 = vunpack.c.h.b16 %v614
        %v2357 = vunpack.c.l.b16 %v615
        %v2358 = vunpack.c.l.b16 %v616
        %v2359 = vunpack.c.h.b16 %v616
        %v2360 = vunpack.c.l.b16 %v617
        %v2361 = vunpack.c.l.b16 %v618
        %v2362 = vunpack.c.h.b16 %v618
        %v2363 = vunpack.c.l.b16 %v619
        %v2364 = vunpack.c.l.b16 %v620
        %v2365 = vunpack.c.h.b16 %v620
        %v2366 = vunpack.c.l.b16 %v621
        %v2367 = vunpack.c.l.b16 %v622
        %v2368 = vunpack.c.h.b16 %v622
        %v2369 = vunpack.c.l.b16 %v623
        %v2370 = vunpack.c.l.b16 %v624
        %v2371 = vunpack.c.h.b16 %v624
        %v2372 = vunpack.c.l.b16 %v625
        %v2373 = vunpack.c.l.b16 %v626
        %v2374 = vunpack.c.h.b16 %v626
        %v2375 = vunpack.c.l.b16 %v627
        %v2376 = vunpack.c.l.b16 %v628
        %v2377 = vunpack.c.h.b16 %v628
        %v2378 = vunpack.c.l.b16 %v629
        %v2379 = vunpack.c.l.b16 %v630
        %v2380 = vunpack.c.h.b16 %v630
        %v2381 = vunpack.c.l.b16 %v631
        %v2382 = vunpack.c.l.b16 %v632
        %v2383 = vunpack.c.h.b16 %v632
        %v2384 = vunpack.c.l.b16 %v633
        %v2385 = vunpack.c.l.b16 %v634
        %v2386 = vunpack.c.h.b16 %v634
        %v2387 = vunpack.c.l.b16 %v635
        %v2388 = vunpack.c.l.b16 %v636
        %v2389 = vunpack.c.h.b16 %v636
        %v2390 = vunpack.c.l.b16 %v637
        %v2391 = vunpack.c.l.b16 %v638
        %v2392 = vunpack.c.h.b16 %v638
        %v2393 = vunpack.c.l.b16 %v639
        %v2394 = vunpack.c.l.b16 %v640
        %v2395 = vunpack.c.h.b16 %v640
        %v2396 = vunpack.c.l.b16 %v641
        %v2397 = vunpack.c.l.b16 %v642
        %v2398 = vunpack.c.h.b16 %v642
        %v2399 = vunpack.c.l.b16 %v643
        %v2400 = vunpack.c.l.b16 %v644
        %v2401 = vunpack.c.h.b16 %v644
        %v2402 = vunpack.c.l.b16 %v645
        %v2403 = vunpack.c.l.b16 %v646
        %v2404 = vunpack.c.h.b16 %v646
        %v2405 = vunpack.c.l.b16 %v647
        %v2406 = vunpack.c.l.b16 %v648
        %v2407 = vunpack.c.h.b16 %v648
        %v2408 = vunpack.c.l.b16 %v649
        %v2409 = vunpack.c.l.b16 %v650
        %v2410 = vunpack.c.h.b16 %v650
        %v2411 = vunpack.c.l.b16 %v651
        %v2412 = vunpack.c.l.b16 %v652
        %v2413 = vunpack.c.h.b16 %v652
        %v2414 = vunpack.c.l.b16 %v653
        %v2415 = vunpack.c.l.b16 %v654
        %v2416 = vunpack.c.h.b16 %v654
        %v2417 = vunpack.c.l.b16 %v655
        %v2418 = vunpack.c.l.b16 %v656
        %v2419 = vunpack.c.h.b16 %v656
        %v2420 = vunpack.c.l.b16 %v657
        %v2421 = vunpack.c.l.b16 %v658
        %v2422 = vunpack.c.h.b16 %v658
        %v2423 = vunpack.c.l.b16 %v659
        %v2424 = vunpack.c.l.b16 %v660
        %v2425 = vunpack.c.h.b16 %v660
        %v2426 = vunpack.c.l.b16 %v661
        %v2427 = vunpack.c.l.b16 %v662
        %v2428 = vunpack.c.h.b16 %v662
        %v2429 = vunpack.c.l.b16 %v663
        %v2430 = vunpack.c.l.b16 %v664
        %v2431 = vunpack.c.h.b16 %v664
        %v2432 = vunpack.c.l.b16 %v665
        %v2433 = vunpack.c.l.b16 %v666
        %v2434 = vunpack.c.h.b16 %v666
        %v2435 = vunpack.c.l.b16 %v667
        %v2436 = vunpack.c.l.b16 %v668
        %v2437 = vunpack.c.h.b16 %v668
        %v2438 = vunpack.c.l.b16 %v669
        %v2439 = vunpack.c.l.b16 %v670
        %v2440 = vunpack.c.h.b16 %v670
        %v2441 = vunpack.c.l.b16 %v671
        %v2442 = vunpack.c.l.b16 %v672
        %v2443 = vunpack.c.h.b16 %v672
        %v2444 = vunpack.c.l.b16 %v673
        %v2445 = vunpack.c.l.b16 %v674
        %v2446 = vunpack.c.h.b16 %v674
        %v2447 = vunpack.c.l.b16 %v675
        %v2448 = vunpack.c.l.b16 %v676
        %v2449 = vunpack.c.h.b16 %v676
        %v2450 = vunpack.c.l.b16 %v677
        %v2451 = vunpack.c.l.b16 %v678
        %v2452 = vunpack.c.h.b16 %v678
        %v2453 = vunpack.c.l.b16 %v679
        %v2454 = vunpack.c.l.b16 %v680
        %v2455 = vunpack.c.h.b16 %v680
        %v2456 = vunpack.c.l.b16 %v681
        %v2457 = vunpack.c.l.b16 %v682
        %v2458 = vunpack.c.h.b16 %v682
        %v2459 = vunpack.c.l.b16 %v683
        %v2460 = vunpack.c.l.b16 %v684
        %v2461 = vunpack.c.h.b16 %v684
        %v2462 = vunpack.c.l.b16 %v685
        %v2463 = vunpack.c.l.b16 %v686
        %v2464 = vunpack.c.h.b16 %v686
        %v2465 = vunpack.c.l.b16 %v687
        %v2466 = vunpack.c.l.b16 %v688
        %v2467 = vunpack.c.h.b16 %v688
        %v2468 = vunpack.c.l.b16 %v689
        %v2469 = vunpack.c.l.b16 %v690
        %v2470 = vunpack.c.h.b16 %v690
        %v2471 = vunpack.c.l.b16 %v691
        %v2472 = vunpack.c.l.b16 %v692
        %v2473 = vunpack.c.h.b16 %v692
        %v2474 = vunpack.c.l.b16 %v693
        %v2475 = vunpack.c.l.b16 %v694
        %v2476 = vunpack.c.h.b16 %v694
        %v2477 = vunpack.c.l.b16 %v695
        %v2478 = vunpack.c.l.b16 %v696
        %v2479 = vunpack.c.h.b16 %v696
        %v2480 = vunpack.c.l.b16 %v697
        %v2481 = vunpack.c.l.b16 %v698
        %v2482 = vunpack.c.h.b16 %v698
        %v2483 = vunpack.c.l.b16 %v699
        %v2484 = vunpack.c.l.b16 %v700
        %v2485 = vunpack.c.h.b16 %v700
        %v2486 = vunpack.c.l.b16 %v701
        %v2487 = vunpack.c.l.b16 %v702
        %v2488 = vunpack.c.h.b16 %v702
        %v2489 = vunpack.c.l.b16 %v703
        %v2490 = vunpack.c.l.b16 %v704
        %v2491 = vunpack.c.h.b16 %v704
        %v2492 = vunpack.c.l.b16 %v705
        %v2493 = vunpack.c.l.b16 %v706
        %v2494 = vunpack.c.h.b16 %v706
        %v2495 = vunpack.c.l.b16 %v707
        %v2496 = vunpack.c.l.b16 %v708
        %v2497 = vunpack.c.h.b16 %v708
        %v2498 = vunpack.c.l.b16 %v709
        %v2499 = vunpack.c.l.b16 %v710
        %v2500 = vunpack.c.h.b16 %v710
        %v2501 = vunpack.c.l.b16 %v711
        %v2502 = vunpack.c.l.b16 %v712
        %v2503 = vunpack.c.h.b16 %v712
        %v2504 = vunpack.c.l.b16 %v713
        %v2505 = vpack.c.b16 %v2352, %v2349
        %v2506 = vpack.c.b16 %v2353, %v2350
        %v2507 = vpack.c.b16 %v2354, %v2351
        %v2508 = vpack.c.b16 %v2358, %v2355
        %v2509 = vpack.c.b16 %v2359, %v2356
        %v2510 = vpack.c.b16 %v2360, %v2357
        %v2511 = vpack.c.b16 %v2364, %v2361
        %v2512 = vpack.c.b16 %v2365, %v2362
        %v2513 = vpack.c.b16 %v2366, %v2363
        %v2514 = vpack.c.b16 %v2370, %v2367
        %v2515 = vpack.c.b16 %v2371, %v2368
        %v2516 = vpack.c.b16 %v2372, %v2369
        %v2517 = vpack.c.b16 %v2376, %v2373
        %v2518 = vpack.c.b16 %v2377, %v2374
        %v2519 = vpack.c.b16 %v2378, %v2375
        %v2520 = vpack.c.b16 %v2382, %v2379
        %v2521 = vpack.c.b16 %v2383, %v2380
        %v2522 = vpack.c.b16 %v2384, %v2381
        %v2523 = vpack.c.b16 %v2388, %v2385
        %v2524 = vpack.c.b16 %v2389, %v2386
        %v2525 = vpack.c.b16 %v2390, %v2387
        %v2526 = vpack.c.b16 %v2394, %v2391
        %v2527 = vpack.c.b16 %v2395, %v2392
        %v2528 = vpack.c.b16 %v2396, %v2393
        %v2529 = vpack.c.b16 %v2400, %v2397
        %v2530 = vpack.c.b16 %v2401, %v2398
        %v2531 = vpack.c.b16 %v2402, %v2399
        %v2532 = vpack.c.b16 %v2406, %v2403
        %v2533 = vpack.c.b16 %v2407, %v2404
        %v2534 = vpack.c.b16 %v2408, %v2405
        %v2535 = vpack.c.b16 %v2412, %v2409
        %v2536 = vpack.c.b16 %v2413, %v2410
        %v2537 = vpack.c.b16 %v2414, %v2411
        %v2538 = vpack.c.b16 %v2418, %v2415
        %v2539 = vpack.c.b16 %v2419, %v2416
        %v2540 = vpack.c.b16 %v2420, %v2417
        %v2541 = vpack.c.b16 %v2424, %v2421
        %v2542 = vpack.c.b16 %v2425, %v2422
        %v2543 = vpack.c.b16 %v2426, %v2423
        %v2544 = vpack.c.b16 %v2430, %v2427
        %v2545 = vpack.c.b16 %v2431, %v2428
        %v2546 = vpack.c.b16 %v2432, %v2429
        %v2547 = vpack.c.b16 %v2436, %v2433
        %v2548 = vpack.c.b16 %v2437, %v2434
        %v2549 = vpack.c.b16 %v2438, %v2435
        %v2550 = vpack.c.b16 %v2442, %v2439
        %v2551 = vpack.c.b16 %v2443, %v2440
        %v2552 = vpack.c.b16 %v2444, %v2441
        %v2553 = vpack.c.b16 %v2448, %v2445
        %v2554 = vpack.c.b16 %v2449, %v2446
        %v2555 = vpack.c.b16 %v2450, %v2447
        %v2556 = vpack.c.b16 %v2454, %v2451
        %v2557 = vpack.c.b16 %v2455, %v2452
        %v2558 = vpack.c.b16 %v2456, %v2453
        %v2559 = vpack.c.b16 %v2460, %v2457
        %v2560 = vpack.c.b16 %v2461, %v2458
        %v2561 = vpack.c.b16 %v2462, %v2459
        %v2562 = vpack.c.b16 %v2466, %v2463
        %v2563 = vpack.c.b16 %v2467, %v2464
        %v2564 = vpack.c.b16 %v2468, %v2465
        %v2565 = vpack.c.b16 %v2472, %v2469
        %v2566 = vpack.c.b16 %v2473, %v2470
        %v2567 = vpack.c.b16 %v2474, %v2471
        %v2568 = vpack.c.b16 %v2478, %v2475
        %v2569 = vpack.c.b16 %v2479, %v2476
        %v2570 = vpack.c.b16 %v2480, %v2477
        %v2571 = vpack.c.b16 %v2484, %v2481
        %v2572 = vpack.c.b16 %v2485, %v2482
        %v2573 = vpack.c.b16 %v2486, %v2483
        %v2574 = vpack.c.b16 %v2490, %v2487
        %v2575 = vpack.c.b16 %v2491, %v2488
        %v2576 = vpack.c.b16 %v2492, %v2489
        %v2577 = vpack.c.b16 %v2496, %v2493
        %v2578 = vpack.c.b16 %v2497, %v2494
        %v2579 = vpack.c.b16 %v2498, %v2495
        %v2580 = vpack.c.b16 %v2502, %v2499
        %v2581 = vpack.c.b16 %v2503, %v2500
        %v2582 = vpack.c.b16 %v2504, %v2501
        %v2662 = vsel %vm1455, %v2241, 0
        %2664 = vmatprep.subr.bf16.mxu0 %v2506
        %2665 = vmatpush1.bf16.msra.mxu0 %v2505
        %2666 = vmatprep.subr.bf16.mxu0 %v2509
        %2667 = vmatpush1.bf16.msra.mxu0 %v2508
        %2668 = vmatprep.subr.bf16.mxu0 %v2512
        %2669 = vmatpush1.bf16.msra.mxu0 %v2511
        %2670 = vmatprep.subr.bf16.mxu0 %v2515
        %2671 = vmatpush1.bf16.msra.mxu0 %v2514
        %2672 = vmatprep.subr.bf16.mxu0 %v2518
        %2673 = vmatpush1.bf16.msra.mxu0 %v2517
        %2674 = vmatprep.subr.bf16.mxu0 %v2521
        %2675 = vmatpush1.bf16.msra.mxu0 %v2520
        %2676 = vmatprep.subr.bf16.mxu0 %v2524
        %2677 = vmatpush1.bf16.msra.mxu0 %v2523
        %2678 = vmatprep.subr.bf16.mxu0 %v2527
        %2679 = vmatpush1.bf16.msra.mxu0 %v2526
        %2680 = vmatprep.subr.bf16.mxu0 %v2530
        %2681 = vmatpush1.bf16.msra.mxu0 %v2529
        %2682 = vmatprep.subr.bf16.mxu0 %v2533
        %2683 = vmatpush1.bf16.msra.mxu0 %v2532
        %2684 = vmatprep.subr.bf16.mxu0 %v2536
        %2685 = vmatpush1.bf16.msra.mxu0 %v2535
        %2686 = vmatprep.subr.bf16.mxu0 %v2539
        %2687 = vmatpush1.bf16.msra.mxu0 %v2538
        %2688 = vmatprep.subr.bf16.mxu0 %v2542
        %2689 = vmatpush1.bf16.msra.mxu0 %v2541
        %2690 = vmatprep.subr.bf16.mxu0 %v2545
        %2691 = vmatpush1.bf16.msra.mxu0 %v2544
        %2692 = vmatprep.subr.bf16.mxu0 %v2548
        %2693 = vmatpush1.bf16.msra.mxu0 %v2547
        %2694 = vmatprep.subr.bf16.mxu0 %v2551
        %2695 = vmatpush1.bf16.msra.mxu0 %v2550
        %2696 = vmatprep.mubr.bf16.mxu0 %v2228
        %2697 = vmatmul.mubr.bf16.gmra.mrb[0].mxu0 %v2221
        %v2698 = vpop.f32.mrb[0].mxu0
        %v2699 = vadd.f32 0.0, %v2698
        %v2700 = vpop.f32.mrb[0].mxu0
        %v2701 = vadd.f32 0.0, %v2700
        %v2702 = vpop.f32.mrb[0].mxu0
        %v2703 = vpop.f32.mrb[0].mxu0
        %2704 = vdwg.mxu0
        %2705 = vmatprep.subr.bf16.mxu0 %v2554
        %2706 = vmatpush1.bf16.msra.mxu0 %v2553
        %2707 = vmatprep.subr.bf16.mxu0 %v2557
        %2708 = vmatpush1.bf16.msra.mxu0 %v2556
        %2709 = vmatprep.subr.bf16.mxu0 %v2560
        %2710 = vmatpush1.bf16.msra.mxu0 %v2559
        %2711 = vmatprep.subr.bf16.mxu0 %v2563
        %2712 = vmatpush1.bf16.msra.mxu0 %v2562
        %2713 = vmatprep.subr.bf16.mxu0 %v2566
        %2714 = vmatpush1.bf16.msra.mxu0 %v2565
        %2715 = vmatprep.subr.bf16.mxu0 %v2569
        %2716 = vmatpush1.bf16.msra.mxu0 %v2568
        %2717 = vmatprep.subr.bf16.mxu0 %v2572
        %2718 = vmatpush1.bf16.msra.mxu0 %v2571
        %2719 = vmatprep.subr.bf16.mxu0 %v2575
        %2720 = vmatpush1.bf16.msra.mxu0 %v2574
        %2721 = vmatprep.subr.bf16.mxu0 %v2578
        %2722 = vmatpush1.bf16.msra.mxu0 %v2577
        %2723 = vmatprep.subr.bf16.mxu0 %v2581
        %2724 = vmatpush1.bf16.msra.mxu0 %v2580
        %2725 = vmatprep.subr.bf16.mxu0 0
        %2726 = vmatpush1.bf16.msra.mxu0 0
        %2727 = vmatprep.subr.bf16.mxu0 0
        %2728 = vmatpush1.bf16.msra.mxu0 0
        %2729 = vmatprep.subr.bf16.mxu0 0
        %2730 = vmatpush1.bf16.msra.mxu0 0
        %2731 = vmatprep.subr.bf16.mxu0 0
        %2732 = vmatpush1.bf16.msra.mxu0 0
        %2733 = vmatprep.subr.bf16.mxu0 0
        %2734 = vmatpush1.bf16.msra.mxu0 0
        %2735 = vmatprep.subr.bf16.mxu0 0
        %2736 = vmatpush1.bf16.msra.mxu0 0
        %2737 = vmatprep.mubr.bf16.mxu0 %v2662
        %2738 = vmatmul.mubr.bf16.gmra.mrb[0].mxu0 %v2235
        %v2739 = vpop.f32.mrb[0].mxu0
        %v2740 = vadd.f32 %v2699, %v2739
        %v2741 = vpop.f32.mrb[0].mxu0
        %v2742 = vadd.f32 %v2701, %v2741
        %v2743 = vpop.f32.mrb[0].mxu0
        %v2744 = vpop.f32.mrb[0].mxu0
        %2745 = vdwg.mxu0
        %2746 = vmatprep.subr.bf16.mxu0 0
        %2747 = vmatpush1.bf16.msra.mxu0 %v2507
        %2748 = vmatprep.subr.bf16.mxu0 0
        %2749 = vmatpush1.bf16.msra.mxu0 %v2510
        %2750 = vmatprep.subr.bf16.mxu0 0
        %2751 = vmatpush1.bf16.msra.mxu0 %v2513
        %2752 = vmatprep.subr.bf16.mxu0 0
        %2753 = vmatpush1.bf16.msra.mxu0 %v2516
        %2754 = vmatprep.subr.bf16.mxu0 0
        %2755 = vmatpush1.bf16.msra.mxu0 %v2519
        %2756 = vmatprep.subr.bf16.mxu0 0
        %2757 = vmatpush1.bf16.msra.mxu0 %v2522
        %2758 = vmatprep.subr.bf16.mxu0 0
        %2759 = vmatpush1.bf16.msra.mxu0 %v2525
        %2760 = vmatprep.subr.bf16.mxu0 0
        %2761 = vmatpush1.bf16.msra.mxu0 %v2528
        %2762 = vmatprep.subr.bf16.mxu0 0
        %2763 = vmatpush1.bf16.msra.mxu0 %v2531
        %2764 = vmatprep.subr.bf16.mxu0 0
        %2765 = vmatpush1.bf16.msra.mxu0 %v2534
        %2766 = vmatprep.subr.bf16.mxu0 0
        %2767 = vmatpush1.bf16.msra.mxu0 %v2537
        %2768 = vmatprep.subr.bf16.mxu0 0
        %2769 = vmatpush1.bf16.msra.mxu0 %v2540
        %2770 = vmatprep.subr.bf16.mxu0 0
        %2771 = vmatpush1.bf16.msra.mxu0 %v2543
        %2772 = vmatprep.subr.bf16.mxu0 0
        %2773 = vmatpush1.bf16.msra.mxu0 %v2546
        %2774 = vmatprep.subr.bf16.mxu0 0
        %2775 = vmatpush1.bf16.msra.mxu0 %v2549
        %2776 = vmatprep.subr.bf16.mxu0 0
        %2777 = vmatpush1.bf16.msra.mxu0 %v2552
        %2778 = vmatprep.mubr.bf16.mxu0 %v2228
        %2779 = vmatmul.mubr.bf16.gmra.mrb[0].mxu0 %v2221
        %v2780 = vpop.f32.mrb[0].mxu0
        %v2781 = vadd.f32 0.0, %v2780
        %v2782 = vpop.f32.mrb[0].mxu0
        %v2783 = vpop.f32.mrb[0].mxu0
        %v2784 = vpop.f32.mrb[0].mxu0
        %2785 = vdwg.mxu0
        %2786 = vmatprep.subr.bf16.mxu0 0
        %2787 = vmatpush1.bf16.msra.mxu0 %v2555
        %2788 = vmatprep.subr.bf16.mxu0 0
        %2789 = vmatpush1.bf16.msra.mxu0 %v2558
        %2790 = vmatprep.subr.bf16.mxu0 0
        %2791 = vmatpush1.bf16.msra.mxu0 %v2561
        %2792 = vmatprep.subr.bf16.mxu0 0
        %2793 = vmatpush1.bf16.msra.mxu0 %v2564
        %2794 = vmatprep.subr.bf16.mxu0 0
        %2795 = vmatpush1.bf16.msra.mxu0 %v2567
        %2796 = vmatprep.subr.bf16.mxu0 0
        %2797 = vmatpush1.bf16.msra.mxu0 %v2570
        %2798 = vmatprep.subr.bf16.mxu0 0
        %2799 = vmatpush1.bf16.msra.mxu0 %v2573
        %2800 = vmatprep.subr.bf16.mxu0 0
        %2801 = vmatpush1.bf16.msra.mxu0 %v2576
        %2802 = vmatprep.subr.bf16.mxu0 0
        %2803 = vmatpush1.bf16.msra.mxu0 %v2579
        %2804 = vmatprep.subr.bf16.mxu0 0
        %2805 = vmatpush1.bf16.msra.mxu0 %v2582
        %2806 = vmatprep.subr.bf16.mxu0 0
        %2807 = vmatpush1.bf16.msra.mxu0 0
        %2808 = vmatprep.subr.bf16.mxu0 0
        %2809 = vmatpush1.bf16.msra.mxu0 0
        %2810 = vmatprep.subr.bf16.mxu0 0
        %2811 = vmatpush1.bf16.msra.mxu0 0
        %2812 = vmatprep.subr.bf16.mxu0 0
        %2813 = vmatpush1.bf16.msra.mxu0 0
        %2814 = vmatprep.subr.bf16.mxu0 0
        %2815 = vmatpush1.bf16.msra.mxu0 0
        %2816 = vmatprep.subr.bf16.mxu0 0
        %2817 = vmatpush1.bf16.msra.mxu0 0
        %2818 = vmatprep.mubr.bf16.mxu0 %v2662
        %2819 = vmatmul.mubr.bf16.gmra.mrb[0].mxu0 %v2235
        %v2820 = vpop.f32.mrb[0].mxu0
        %v2821 = vadd.f32 %v2781, %v2820
        %v2822 = vpop.f32.mrb[0].mxu0
        %v2823 = vpop.f32.mrb[0].mxu0
        %v2824 = vpop.f32.mrb[0].mxu0
        %2825 = vdwg.mxu0
        %v2826 = vadd.f32 %v2129, %v2740
        %v2827 = vadd.f32 %v2131, %v2742
        %v2828 = vadd.f32 %v2210, %v2821
        %v2933 = vunpack.c.l.b16 %v818
        %v2934 = vunpack.c.h.b16 %v818
        %v2935 = vunpack.c.l.b16 %v819
        %v2936 = vunpack.c.l.b16 %v820
        %v2937 = vunpack.c.h.b16 %v820
        %v2938 = vunpack.c.l.b16 %v821
        %v2939 = vunpack.c.l.b16 %v822
        %v2940 = vunpack.c.h.b16 %v822
        %v2941 = vunpack.c.l.b16 %v823
        %v2942 = vunpack.c.l.b16 %v824
        %v2943 = vunpack.c.h.b16 %v824
        %v2944 = vunpack.c.l.b16 %v825
        %v2945 = vunpack.c.l.b16 %v826
        %v2946 = vunpack.c.h.b16 %v826
        %v2947 = vunpack.c.l.b16 %v827
        %v2948 = vunpack.c.l.b16 %v828
        %v2949 = vunpack.c.h.b16 %v828
        %v2950 = vunpack.c.l.b16 %v829
        %v2951 = vunpack.c.l.b16 %v830
        %v2952 = vunpack.c.h.b16 %v830
        %v2953 = vunpack.c.l.b16 %v831
        %v2954 = vunpack.c.l.b16 %v832
        %v2955 = vunpack.c.h.b16 %v832
        %v2956 = vunpack.c.l.b16 %v833
        %v2957 = vunpack.c.l.b16 %v834
        %v2958 = vunpack.c.h.b16 %v834
        %v2959 = vunpack.c.l.b16 %v835
        %v2960 = vunpack.c.l.b16 %v836
        %v2961 = vunpack.c.h.b16 %v836
        %v2962 = vunpack.c.l.b16 %v837
        %v2963 = vunpack.c.l.b16 %v838
        %v2964 = vunpack.c.h.b16 %v838
        %v2965 = vunpack.c.l.b16 %v839
        %v2966 = vunpack.c.l.b16 %v840
        %v2967 = vunpack.c.h.b16 %v840
        %v2968 = vunpack.c.l.b16 %v841
        %v2969 = vunpack.c.l.b16 %v842
        %v2970 = vunpack.c.h.b16 %v842
        %v2971 = vunpack.c.l.b16 %v843
        %v2972 = vunpack.c.l.b16 %v844
        %v2973 = vunpack.c.h.b16 %v844
        %v2974 = vunpack.c.l.b16 %v845
        %v2975 = vunpack.c.l.b16 %v846
        %v2976 = vunpack.c.h.b16 %v846
        %v2977 = vunpack.c.l.b16 %v847
        %v2978 = vunpack.c.l.b16 %v848
        %v2979 = vunpack.c.h.b16 %v848
        %v2980 = vunpack.c.l.b16 %v849
        %v2981 = vunpack.c.l.b16 %v850
        %v2982 = vunpack.c.h.b16 %v850
        %v2983 = vunpack.c.l.b16 %v851
        %v2984 = vunpack.c.l.b16 %v852
        %v2985 = vunpack.c.h.b16 %v852
        %v2986 = vunpack.c.l.b16 %v853
        %v2987 = vunpack.c.l.b16 %v854
        %v2988 = vunpack.c.h.b16 %v854
        %v2989 = vunpack.c.l.b16 %v855
        %v2990 = vunpack.c.l.b16 %v856
        %v2991 = vunpack.c.h.b16 %v856
        %v2992 = vunpack.c.l.b16 %v857
        %v2993 = vunpack.c.l.b16 %v858
        %v2994 = vunpack.c.h.b16 %v858
        %v2995 = vunpack.c.l.b16 %v859
        %v2996 = vunpack.c.l.b16 %v860
        %v2997 = vunpack.c.h.b16 %v860
        %v2998 = vunpack.c.l.b16 %v861
        %v2999 = vunpack.c.l.b16 %v862
        %v3000 = vunpack.c.h.b16 %v862
        %v3001 = vunpack.c.l.b16 %v863
        %v3002 = vunpack.c.l.b16 %v864
        %v3003 = vunpack.c.h.b16 %v864
        %v3004 = vunpack.c.l.b16 %v865
        %v3005 = vunpack.c.l.b16 %v866
        %v3006 = vunpack.c.h.b16 %v866
        %v3007 = vunpack.c.l.b16 %v867
        %v3008 = vunpack.c.l.b16 %v868
        %v3009 = vunpack.c.h.b16 %v868
        %v3010 = vunpack.c.l.b16 %v869
        %v3011 = vunpack.c.l.b16 %v870
        %v3012 = vunpack.c.h.b16 %v870
        %v3013 = vunpack.c.l.b16 %v871
        %v3014 = vunpack.c.l.b16 %v872
        %v3015 = vunpack.c.h.b16 %v872
        %v3016 = vunpack.c.l.b16 %v873
        %v3017 = vunpack.c.l.b16 %v874
        %v3018 = vunpack.c.h.b16 %v874
        %v3019 = vunpack.c.l.b16 %v875
        %v3020 = vunpack.c.l.b16 %v876
        %v3021 = vunpack.c.h.b16 %v876
        %v3022 = vunpack.c.l.b16 %v877
        %v3023 = vunpack.c.l.b16 %v878
        %v3024 = vunpack.c.h.b16 %v878
        %v3025 = vunpack.c.l.b16 %v879
        %v3026 = vunpack.c.l.b16 %v880
        %v3027 = vunpack.c.h.b16 %v880
        %v3028 = vunpack.c.l.b16 %v881
        %v3029 = vunpack.c.l.b16 %v882
        %v3030 = vunpack.c.h.b16 %v882
        %v3031 = vunpack.c.l.b16 %v883
        %v3032 = vunpack.c.l.b16 %v884
        %v3033 = vunpack.c.h.b16 %v884
        %v3034 = vunpack.c.l.b16 %v885
        %v3035 = vunpack.c.l.b16 %v886
        %v3036 = vunpack.c.h.b16 %v886
        %v3037 = vunpack.c.l.b16 %v887
        %v3038 = vunpack.c.l.b16 %v888
        %v3039 = vunpack.c.h.b16 %v888
        %v3040 = vunpack.c.l.b16 %v889
        %v3041 = vunpack.c.l.b16 %v890
        %v3042 = vunpack.c.h.b16 %v890
        %v3043 = vunpack.c.l.b16 %v891
        %v3044 = vunpack.c.l.b16 %v892
        %v3045 = vunpack.c.h.b16 %v892
        %v3046 = vunpack.c.l.b16 %v893
        %v3047 = vunpack.c.l.b16 %v894
        %v3048 = vunpack.c.h.b16 %v894
        %v3049 = vunpack.c.l.b16 %v895
        %v3050 = vunpack.c.l.b16 %v896
        %v3051 = vunpack.c.h.b16 %v896
        %v3052 = vunpack.c.l.b16 %v897
        %v3053 = vunpack.c.l.b16 %v898
        %v3054 = vunpack.c.h.b16 %v898
        %v3055 = vunpack.c.l.b16 %v899
        %v3056 = vunpack.c.l.b16 %v900
        %v3057 = vunpack.c.h.b16 %v900
        %v3058 = vunpack.c.l.b16 %v901
        %v3059 = vunpack.c.l.b16 %v902
        %v3060 = vunpack.c.h.b16 %v902
        %v3061 = vunpack.c.l.b16 %v903
        %v3062 = vunpack.c.l.b16 %v904
        %v3063 = vunpack.c.h.b16 %v904
        %v3064 = vunpack.c.l.b16 %v905
        %v3065 = vunpack.c.l.b16 %v906
        %v3066 = vunpack.c.h.b16 %v906
        %v3067 = vunpack.c.l.b16 %v907
        %v3068 = vunpack.c.l.b16 %v908
        %v3069 = vunpack.c.h.b16 %v908
        %v3070 = vunpack.c.l.b16 %v909
        %v3071 = vunpack.c.l.b16 %v910
        %v3072 = vunpack.c.h.b16 %v910
        %v3073 = vunpack.c.l.b16 %v911
        %v3074 = vunpack.c.l.b16 %v912
        %v3075 = vunpack.c.h.b16 %v912
        %v3076 = vunpack.c.l.b16 %v913
        %v3077 = vunpack.c.l.b16 %v914
        %v3078 = vunpack.c.h.b16 %v914
        %v3079 = vunpack.c.l.b16 %v915
        %v3080 = vunpack.c.l.b16 %v916
        %v3081 = vunpack.c.h.b16 %v916
        %v3082 = vunpack.c.l.b16 %v917
        %v3083 = vunpack.c.l.b16 %v918
        %v3084 = vunpack.c.h.b16 %v918
        %v3085 = vunpack.c.l.b16 %v919
        %v3086 = vunpack.c.l.b16 %v920
        %v3087 = vunpack.c.h.b16 %v920
        %v3088 = vunpack.c.l.b16 %v921
        %v3089 = vpack.c.b16 %v2936, %v2933
        %v3090 = vpack.c.b16 %v2937, %v2934
        %v3091 = vpack.c.b16 %v2938, %v2935
        %v3092 = vpack.c.b16 %v2942, %v2939
        %v3093 = vpack.c.b16 %v2943, %v2940
        %v3094 = vpack.c.b16 %v2944, %v2941
        %v3095 = vpack.c.b16 %v2948, %v2945
        %v3096 = vpack.c.b16 %v2949, %v2946
        %v3097 = vpack.c.b16 %v2950, %v2947
        %v3098 = vpack.c.b16 %v2954, %v2951
        %v3099 = vpack.c.b16 %v2955, %v2952
        %v3100 = vpack.c.b16 %v2956, %v2953
        %v3101 = vpack.c.b16 %v2960, %v2957
        %v3102 = vpack.c.b16 %v2961, %v2958
        %v3103 = vpack.c.b16 %v2962, %v2959
        %v3104 = vpack.c.b16 %v2966, %v2963
        %v3105 = vpack.c.b16 %v2967, %v2964
        %v3106 = vpack.c.b16 %v2968, %v2965
        %v3107 = vpack.c.b16 %v2972, %v2969
        %v3108 = vpack.c.b16 %v2973, %v2970
        %v3109 = vpack.c.b16 %v2974, %v2971
        %v3110 = vpack.c.b16 %v2978, %v2975
        %v3111 = vpack.c.b16 %v2979, %v2976
        %v3112 = vpack.c.b16 %v2980, %v2977
        %v3113 = vpack.c.b16 %v2984, %v2981
        %v3114 = vpack.c.b16 %v2985, %v2982
        %v3115 = vpack.c.b16 %v2986, %v2983
        %v3116 = vpack.c.b16 %v2990, %v2987
        %v3117 = vpack.c.b16 %v2991, %v2988
        %v3118 = vpack.c.b16 %v2992, %v2989
        %v3119 = vpack.c.b16 %v2996, %v2993
        %v3120 = vpack.c.b16 %v2997, %v2994
        %v3121 = vpack.c.b16 %v2998, %v2995
        %v3122 = vpack.c.b16 %v3002, %v2999
        %v3123 = vpack.c.b16 %v3003, %v3000
        %v3124 = vpack.c.b16 %v3004, %v3001
        %v3125 = vpack.c.b16 %v3008, %v3005
        %v3126 = vpack.c.b16 %v3009, %v3006
        %v3127 = vpack.c.b16 %v3010, %v3007
        %v3128 = vpack.c.b16 %v3014, %v3011
        %v3129 = vpack.c.b16 %v3015, %v3012
        %v3130 = vpack.c.b16 %v3016, %v3013
        %v3131 = vpack.c.b16 %v3020, %v3017
        %v3132 = vpack.c.b16 %v3021, %v3018
        %v3133 = vpack.c.b16 %v3022, %v3019
        %v3134 = vpack.c.b16 %v3026, %v3023
        %v3135 = vpack.c.b16 %v3027, %v3024
        %v3136 = vpack.c.b16 %v3028, %v3025
        %v3137 = vpack.c.b16 %v3032, %v3029
        %v3138 = vpack.c.b16 %v3033, %v3030
        %v3139 = vpack.c.b16 %v3034, %v3031
        %v3140 = vpack.c.b16 %v3038, %v3035
        %v3141 = vpack.c.b16 %v3039, %v3036
        %v3142 = vpack.c.b16 %v3040, %v3037
        %v3143 = vpack.c.b16 %v3044, %v3041
        %v3144 = vpack.c.b16 %v3045, %v3042
        %v3145 = vpack.c.b16 %v3046, %v3043
        %v3146 = vpack.c.b16 %v3050, %v3047
        %v3147 = vpack.c.b16 %v3051, %v3048
        %v3148 = vpack.c.b16 %v3052, %v3049
        %v3149 = vpack.c.b16 %v3056, %v3053
        %v3150 = vpack.c.b16 %v3057, %v3054
        %v3151 = vpack.c.b16 %v3058, %v3055
        %v3152 = vpack.c.b16 %v3062, %v3059
        %v3153 = vpack.c.b16 %v3063, %v3060
        %v3154 = vpack.c.b16 %v3064, %v3061
        %v3155 = vpack.c.b16 %v3068, %v3065
        %v3156 = vpack.c.b16 %v3069, %v3066
        %v3157 = vpack.c.b16 %v3070, %v3067
        %v3158 = vpack.c.b16 %v3074, %v3071
        %v3159 = vpack.c.b16 %v3075, %v3072
        %v3160 = vpack.c.b16 %v3076, %v3073
        %v3161 = vpack.c.b16 %v3080, %v3077
        %v3162 = vpack.c.b16 %v3081, %v3078
        %v3163 = vpack.c.b16 %v3082, %v3079
        %v3164 = vpack.c.b16 %v3086, %v3083
        %v3165 = vpack.c.b16 %v3087, %v3084
        %v3166 = vpack.c.b16 %v3088, %v3085
        %3245 = vmatprep.subr.bf16.mxu0 %v3090
        %3246 = vmatpush1.bf16.msra.mxu0 %v3089
        %3247 = vmatprep.subr.bf16.mxu0 %v3093
        %3248 = vmatpush1.bf16.msra.mxu0 %v3092
        %3249 = vmatprep.subr.bf16.mxu0 %v3096
        %3250 = vmatpush1.bf16.msra.mxu0 %v3095
        %3251 = vmatprep.subr.bf16.mxu0 %v3099
        %3252 = vmatpush1.bf16.msra.mxu0 %v3098
        %3253 = vmatprep.subr.bf16.mxu0 %v3102
        %3254 = vmatpush1.bf16.msra.mxu0 %v3101
        %3255 = vmatprep.subr.bf16.mxu0 %v3105
        %3256 = vmatpush1.bf16.msra.mxu0 %v3104
        %3257 = vmatprep.subr.bf16.mxu0 %v3108
        %3258 = vmatpush1.bf16.msra.mxu0 %v3107
        %3259 = vmatprep.subr.bf16.mxu0 %v3111
        %3260 = vmatpush1.bf16.msra.mxu0 %v3110
        %3261 = vmatprep.subr.bf16.mxu0 %v3114
        %3262 = vmatpush1.bf16.msra.mxu0 %v3113
        %3263 = vmatprep.subr.bf16.mxu0 %v3117
        %3264 = vmatpush1.bf16.msra.mxu0 %v3116
        %3265 = vmatprep.subr.bf16.mxu0 %v3120
        %3266 = vmatpush1.bf16.msra.mxu0 %v3119
        %3267 = vmatprep.subr.bf16.mxu0 %v3123
        %3268 = vmatpush1.bf16.msra.mxu0 %v3122
        %3269 = vmatprep.subr.bf16.mxu0 %v3126
        %3270 = vmatpush1.bf16.msra.mxu0 %v3125
        %3271 = vmatprep.subr.bf16.mxu0 %v3129
        %3272 = vmatpush1.bf16.msra.mxu0 %v3128
        %3273 = vmatprep.subr.bf16.mxu0 %v3132
        %3274 = vmatpush1.bf16.msra.mxu0 %v3131
        %3275 = vmatprep.subr.bf16.mxu0 %v3135
        %3276 = vmatpush1.bf16.msra.mxu0 %v3134
        %3277 = vmatprep.mubr.bf16.mxu0 %v1033
        %3278 = vmatmul.mubr.bf16.gmra.mrb[0].mxu0 %v1032
        %v3279 = vpop.f32.mrb[0].mxu0
        %v3280 = vadd.f32 0.0, %v3279
        %v3281 = vpop.f32.mrb[0].mxu0
        %v3282 = vadd.f32 0.0, %v3281
        %v3283 = vpop.f32.mrb[0].mxu0
        %v3284 = vpop.f32.mrb[0].mxu0
        %3285 = vdwg.mxu0
        %3286 = vmatprep.subr.bf16.mxu0 %v3138
        %3287 = vmatpush1.bf16.msra.mxu0 %v3137
        %3288 = vmatprep.subr.bf16.mxu0 %v3141
        %3289 = vmatpush1.bf16.msra.mxu0 %v3140
        %3290 = vmatprep.subr.bf16.mxu0 %v3144
        %3291 = vmatpush1.bf16.msra.mxu0 %v3143
        %3292 = vmatprep.subr.bf16.mxu0 %v3147
        %3293 = vmatpush1.bf16.msra.mxu0 %v3146
        %3294 = vmatprep.subr.bf16.mxu0 %v3150
        %3295 = vmatpush1.bf16.msra.mxu0 %v3149
        %3296 = vmatprep.subr.bf16.mxu0 %v3153
        %3297 = vmatpush1.bf16.msra.mxu0 %v3152
        %3298 = vmatprep.subr.bf16.mxu0 %v3156
        %3299 = vmatpush1.bf16.msra.mxu0 %v3155
        %3300 = vmatprep.subr.bf16.mxu0 %v3159
        %3301 = vmatpush1.bf16.msra.mxu0 %v3158
        %3302 = vmatprep.subr.bf16.mxu0 %v3162
        %3303 = vmatpush1.bf16.msra.mxu0 %v3161
        %3304 = vmatprep.subr.bf16.mxu0 %v3165
        %3305 = vmatpush1.bf16.msra.mxu0 %v3164
        %3306 = vmatprep.subr.bf16.mxu0 0
        %3307 = vmatpush1.bf16.msra.mxu0 0
        %3308 = vmatprep.subr.bf16.mxu0 0
        %3309 = vmatpush1.bf16.msra.mxu0 0
        %3310 = vmatprep.subr.bf16.mxu0 0
        %3311 = vmatpush1.bf16.msra.mxu0 0
        %3312 = vmatprep.subr.bf16.mxu0 0
        %3313 = vmatpush1.bf16.msra.mxu0 0
        %3314 = vmatprep.subr.bf16.mxu0 0
        %3315 = vmatpush1.bf16.msra.mxu0 0
        %3316 = vmatprep.subr.bf16.mxu0 0
        %3317 = vmatpush1.bf16.msra.mxu0 0
        %3318 = vmatprep.mubr.bf16.mxu0 %v1457
        %3319 = vmatmul.mubr.bf16.gmra.mrb[0].mxu0 %v1034
        %v3320 = vpop.f32.mrb[0].mxu0
        %v3321 = vadd.f32 %v3280, %v3320
        %v3322 = vpop.f32.mrb[0].mxu0
        %v3323 = vadd.f32 %v3282, %v3322
        %v3324 = vpop.f32.mrb[0].mxu0
        %v3325 = vpop.f32.mrb[0].mxu0
        %3326 = vdwg.mxu0
        %3327 = vmatprep.subr.bf16.mxu0 0
        %3328 = vmatpush1.bf16.msra.mxu0 %v3091
        %3329 = vmatprep.subr.bf16.mxu0 0
        %3330 = vmatpush1.bf16.msra.mxu0 %v3094
        %3331 = vmatprep.subr.bf16.mxu0 0
        %3332 = vmatpush1.bf16.msra.mxu0 %v3097
        %3333 = vmatprep.subr.bf16.mxu0 0
        %3334 = vmatpush1.bf16.msra.mxu0 %v3100
        %3335 = vmatprep.subr.bf16.mxu0 0
        %3336 = vmatpush1.bf16.msra.mxu0 %v3103
        %3337 = vmatprep.subr.bf16.mxu0 0
        %3338 = vmatpush1.bf16.msra.mxu0 %v3106
        %3339 = vmatprep.subr.bf16.mxu0 0
        %3340 = vmatpush1.bf16.msra.mxu0 %v3109
        %3341 = vmatprep.subr.bf16.mxu0 0
        %3342 = vmatpush1.bf16.msra.mxu0 %v3112
        %3343 = vmatprep.subr.bf16.mxu0 0
        %3344 = vmatpush1.bf16.msra.mxu0 %v3115
        %3345 = vmatprep.subr.bf16.mxu0 0
        %3346 = vmatpush1.bf16.msra.mxu0 %v3118
        %3347 = vmatprep.subr.bf16.mxu0 0
        %3348 = vmatpush1.bf16.msra.mxu0 %v3121
        %3349 = vmatprep.subr.bf16.mxu0 0
        %3350 = vmatpush1.bf16.msra.mxu0 %v3124
        %3351 = vmatprep.subr.bf16.mxu0 0
        %3352 = vmatpush1.bf16.msra.mxu0 %v3127
        %3353 = vmatprep.subr.bf16.mxu0 0
        %3354 = vmatpush1.bf16.msra.mxu0 %v3130
        %3355 = vmatprep.subr.bf16.mxu0 0
        %3356 = vmatpush1.bf16.msra.mxu0 %v3133
        %3357 = vmatprep.subr.bf16.mxu0 0
        %3358 = vmatpush1.bf16.msra.mxu0 %v3136
        %3359 = vmatprep.mubr.bf16.mxu0 %v1033
        %3360 = vmatmul.mubr.bf16.gmra.mrb[0].mxu0 %v1032
        %v3361 = vpop.f32.mrb[0].mxu0
        %v3362 = vadd.f32 0.0, %v3361
        %v3363 = vpop.f32.mrb[0].mxu0
        %v3364 = vpop.f32.mrb[0].mxu0
        %v3365 = vpop.f32.mrb[0].mxu0
        %3366 = vdwg.mxu0
        %3367 = vmatprep.subr.bf16.mxu0 0
        %3368 = vmatpush1.bf16.msra.mxu0 %v3139
        %3369 = vmatprep.subr.bf16.mxu0 0
        %3370 = vmatpush1.bf16.msra.mxu0 %v3142
        %3371 = vmatprep.subr.bf16.mxu0 0
        %3372 = vmatpush1.bf16.msra.mxu0 %v3145
        %3373 = vmatprep.subr.bf16.mxu0 0
        %3374 = vmatpush1.bf16.msra.mxu0 %v3148
        %3375 = vmatprep.subr.bf16.mxu0 0
        %3376 = vmatpush1.bf16.msra.mxu0 %v3151
        %3377 = vmatprep.subr.bf16.mxu0 0
        %3378 = vmatpush1.bf16.msra.mxu0 %v3154
        %3379 = vmatprep.subr.bf16.mxu0 0
        %3380 = vmatpush1.bf16.msra.mxu0 %v3157
        %3381 = vmatprep.subr.bf16.mxu0 0
        %3382 = vmatpush1.bf16.msra.mxu0 %v3160
        %3383 = vmatprep.subr.bf16.mxu0 0
        %3384 = vmatpush1.bf16.msra.mxu0 %v3163
        %3385 = vmatprep.subr.bf16.mxu0 0
        %3386 = vmatpush1.bf16.msra.mxu0 %v3166
        %3387 = vmatprep.subr.bf16.mxu0 0
        %3388 = vmatpush1.bf16.msra.mxu0 0
        %3389 = vmatprep.subr.bf16.mxu0 0
        %3390 = vmatpush1.bf16.msra.mxu0 0
        %3391 = vmatprep.subr.bf16.mxu0 0
        %3392 = vmatpush1.bf16.msra.mxu0 0
        %3393 = vmatprep.subr.bf16.mxu0 0
        %3394 = vmatpush1.bf16.msra.mxu0 0
        %3395 = vmatprep.subr.bf16.mxu0 0
        %3396 = vmatpush1.bf16.msra.mxu0 0
        %3397 = vmatprep.subr.bf16.mxu0 0
        %3398 = vmatpush1.bf16.msra.mxu0 0
        %3399 = vmatprep.mubr.bf16.mxu0 %v1457
        %3400 = vmatmul.mubr.bf16.gmra.mrb[0].mxu0 %v1034
        %v3401 = vpop.f32.mrb[0].mxu0
        %v3402 = vadd.f32 %v3362, %v3401
        %v3403 = vpop.f32.mrb[0].mxu0
        %v3404 = vpop.f32.mrb[0].mxu0
        %v3405 = vpop.f32.mrb[0].mxu0
        %3406 = vdwg.mxu0
        %v3511 = vunpack.c.l.b16 %v714
        %v3512 = vunpack.c.h.b16 %v714
        %v3513 = vunpack.c.l.b16 %v715
        %v3514 = vunpack.c.l.b16 %v716
        %v3515 = vunpack.c.h.b16 %v716
        %v3516 = vunpack.c.l.b16 %v717
        %v3517 = vunpack.c.l.b16 %v718
        %v3518 = vunpack.c.h.b16 %v718
        %v3519 = vunpack.c.l.b16 %v719
        %v3520 = vunpack.c.l.b16 %v720
        %v3521 = vunpack.c.h.b16 %v720
        %v3522 = vunpack.c.l.b16 %v721
        %v3523 = vunpack.c.l.b16 %v722
        %v3524 = vunpack.c.h.b16 %v722
        %v3525 = vunpack.c.l.b16 %v723
        %v3526 = vunpack.c.l.b16 %v724
        %v3527 = vunpack.c.h.b16 %v724
        %v3528 = vunpack.c.l.b16 %v725
        %v3529 = vunpack.c.l.b16 %v726
        %v3530 = vunpack.c.h.b16 %v726
        %v3531 = vunpack.c.l.b16 %v727
        %v3532 = vunpack.c.l.b16 %v728
        %v3533 = vunpack.c.h.b16 %v728
        %v3534 = vunpack.c.l.b16 %v729
        %v3535 = vunpack.c.l.b16 %v730
        %v3536 = vunpack.c.h.b16 %v730
        %v3537 = vunpack.c.l.b16 %v731
        %v3538 = vunpack.c.l.b16 %v732
        %v3539 = vunpack.c.h.b16 %v732
        %v3540 = vunpack.c.l.b16 %v733
        %v3541 = vunpack.c.l.b16 %v734
        %v3542 = vunpack.c.h.b16 %v734
        %v3543 = vunpack.c.l.b16 %v735
        %v3544 = vunpack.c.l.b16 %v736
        %v3545 = vunpack.c.h.b16 %v736
        %v3546 = vunpack.c.l.b16 %v737
        %v3547 = vunpack.c.l.b16 %v738
        %v3548 = vunpack.c.h.b16 %v738
        %v3549 = vunpack.c.l.b16 %v739
        %v3550 = vunpack.c.l.b16 %v740
        %v3551 = vunpack.c.h.b16 %v740
        %v3552 = vunpack.c.l.b16 %v741
        %v3553 = vunpack.c.l.b16 %v742
        %v3554 = vunpack.c.h.b16 %v742
        %v3555 = vunpack.c.l.b16 %v743
        %v3556 = vunpack.c.l.b16 %v744
        %v3557 = vunpack.c.h.b16 %v744
        %v3558 = vunpack.c.l.b16 %v745
        %v3559 = vunpack.c.l.b16 %v746
        %v3560 = vunpack.c.h.b16 %v746
        %v3561 = vunpack.c.l.b16 %v747
        %v3562 = vunpack.c.l.b16 %v748
        %v3563 = vunpack.c.h.b16 %v748
        %v3564 = vunpack.c.l.b16 %v749
        %v3565 = vunpack.c.l.b16 %v750
        %v3566 = vunpack.c.h.b16 %v750
        %v3567 = vunpack.c.l.b16 %v751
        %v3568 = vunpack.c.l.b16 %v752
        %v3569 = vunpack.c.h.b16 %v752
        %v3570 = vunpack.c.l.b16 %v753
        %v3571 = vunpack.c.l.b16 %v754
        %v3572 = vunpack.c.h.b16 %v754
        %v3573 = vunpack.c.l.b16 %v755
        %v3574 = vunpack.c.l.b16 %v756
        %v3575 = vunpack.c.h.b16 %v756
        %v3576 = vunpack.c.l.b16 %v757
        %v3577 = vunpack.c.l.b16 %v758
        %v3578 = vunpack.c.h.b16 %v758
        %v3579 = vunpack.c.l.b16 %v759
        %v3580 = vunpack.c.l.b16 %v760
        %v3581 = vunpack.c.h.b16 %v760
        %v3582 = vunpack.c.l.b16 %v761
        %v3583 = vunpack.c.l.b16 %v762
        %v3584 = vunpack.c.h.b16 %v762
        %v3585 = vunpack.c.l.b16 %v763
        %v3586 = vunpack.c.l.b16 %v764
        %v3587 = vunpack.c.h.b16 %v764
        %v3588 = vunpack.c.l.b16 %v765
        %v3589 = vunpack.c.l.b16 %v766
        %v3590 = vunpack.c.h.b16 %v766
        %v3591 = vunpack.c.l.b16 %v767
        %v3592 = vunpack.c.l.b16 %v768
        %v3593 = vunpack.c.h.b16 %v768
        %v3594 = vunpack.c.l.b16 %v769
        %v3595 = vunpack.c.l.b16 %v770
        %v3596 = vunpack.c.h.b16 %v770
        %v3597 = vunpack.c.l.b16 %v771
        %v3598 = vunpack.c.l.b16 %v772
        %v3599 = vunpack.c.h.b16 %v772
        %v3600 = vunpack.c.l.b16 %v773
        %v3601 = vunpack.c.l.b16 %v774
        %v3602 = vunpack.c.h.b16 %v774
        %v3603 = vunpack.c.l.b16 %v775
        %v3604 = vunpack.c.l.b16 %v776
        %v3605 = vunpack.c.h.b16 %v776
        %v3606 = vunpack.c.l.b16 %v777
        %v3607 = vunpack.c.l.b16 %v778
        %v3608 = vunpack.c.h.b16 %v778
        %v3609 = vunpack.c.l.b16 %v779
        %v3610 = vunpack.c.l.b16 %v780
        %v3611 = vunpack.c.h.b16 %v780
        %v3612 = vunpack.c.l.b16 %v781
        %v3613 = vunpack.c.l.b16 %v782
        %v3614 = vunpack.c.h.b16 %v782
        %v3615 = vunpack.c.l.b16 %v783
        %v3616 = vunpack.c.l.b16 %v784
        %v3617 = vunpack.c.h.b16 %v784
        %v3618 = vunpack.c.l.b16 %v785
        %v3619 = vunpack.c.l.b16 %v786
        %v3620 = vunpack.c.h.b16 %v786
        %v3621 = vunpack.c.l.b16 %v787
        %v3622 = vunpack.c.l.b16 %v788
        %v3623 = vunpack.c.h.b16 %v788
        %v3624 = vunpack.c.l.b16 %v789
        %v3625 = vunpack.c.l.b16 %v790
        %v3626 = vunpack.c.h.b16 %v790
        %v3627 = vunpack.c.l.b16 %v791
        %v3628 = vunpack.c.l.b16 %v792
        %v3629 = vunpack.c.h.b16 %v792
        %v3630 = vunpack.c.l.b16 %v793
        %v3631 = vunpack.c.l.b16 %v794
        %v3632 = vunpack.c.h.b16 %v794
        %v3633 = vunpack.c.l.b16 %v795
        %v3634 = vunpack.c.l.b16 %v796
        %v3635 = vunpack.c.h.b16 %v796
        %v3636 = vunpack.c.l.b16 %v797
        %v3637 = vunpack.c.l.b16 %v798
        %v3638 = vunpack.c.h.b16 %v798
        %v3639 = vunpack.c.l.b16 %v799
        %v3640 = vunpack.c.l.b16 %v800
        %v3641 = vunpack.c.h.b16 %v800
        %v3642 = vunpack.c.l.b16 %v801
        %v3643 = vunpack.c.l.b16 %v802
        %v3644 = vunpack.c.h.b16 %v802
        %v3645 = vunpack.c.l.b16 %v803
        %v3646 = vunpack.c.l.b16 %v804
        %v3647 = vunpack.c.h.b16 %v804
        %v3648 = vunpack.c.l.b16 %v805
        %v3649 = vunpack.c.l.b16 %v806
        %v3650 = vunpack.c.h.b16 %v806
        %v3651 = vunpack.c.l.b16 %v807
        %v3652 = vunpack.c.l.b16 %v808
        %v3653 = vunpack.c.h.b16 %v808
        %v3654 = vunpack.c.l.b16 %v809
        %v3655 = vunpack.c.l.b16 %v810
        %v3656 = vunpack.c.h.b16 %v810
        %v3657 = vunpack.c.l.b16 %v811
        %v3658 = vunpack.c.l.b16 %v812
        %v3659 = vunpack.c.h.b16 %v812
        %v3660 = vunpack.c.l.b16 %v813
        %v3661 = vunpack.c.l.b16 %v814
        %v3662 = vunpack.c.h.b16 %v814
        %v3663 = vunpack.c.l.b16 %v815
        %v3664 = vunpack.c.l.b16 %v816
        %v3665 = vunpack.c.h.b16 %v816
        %v3666 = vunpack.c.l.b16 %v817
        %v3667 = vpack.c.b16 %v3514, %v3511
        %v3668 = vpack.c.b16 %v3515, %v3512
        %v3669 = vpack.c.b16 %v3516, %v3513
        %v3670 = vpack.c.b16 %v3520, %v3517
        %v3671 = vpack.c.b16 %v3521, %v3518
        %v3672 = vpack.c.b16 %v3522, %v3519
        %v3673 = vpack.c.b16 %v3526, %v3523
        %v3674 = vpack.c.b16 %v3527, %v3524
        %v3675 = vpack.c.b16 %v3528, %v3525
        %v3676 = vpack.c.b16 %v3532, %v3529
        %v3677 = vpack.c.b16 %v3533, %v3530
        %v3678 = vpack.c.b16 %v3534, %v3531
        %v3679 = vpack.c.b16 %v3538, %v3535
        %v3680 = vpack.c.b16 %v3539, %v3536
        %v3681 = vpack.c.b16 %v3540, %v3537
        %v3682 = vpack.c.b16 %v3544, %v3541
        %v3683 = vpack.c.b16 %v3545, %v3542
        %v3684 = vpack.c.b16 %v3546, %v3543
        %v3685 = vpack.c.b16 %v3550, %v3547
        %v3686 = vpack.c.b16 %v3551, %v3548
        %v3687 = vpack.c.b16 %v3552, %v3549
        %v3688 = vpack.c.b16 %v3556, %v3553
        %v3689 = vpack.c.b16 %v3557, %v3554
        %v3690 = vpack.c.b16 %v3558, %v3555
        %v3691 = vpack.c.b16 %v3562, %v3559
        %v3692 = vpack.c.b16 %v3563, %v3560
        %v3693 = vpack.c.b16 %v3564, %v3561
        %v3694 = vpack.c.b16 %v3568, %v3565
        %v3695 = vpack.c.b16 %v3569, %v3566
        %v3696 = vpack.c.b16 %v3570, %v3567
        %v3697 = vpack.c.b16 %v3574, %v3571
        %v3698 = vpack.c.b16 %v3575, %v3572
        %v3699 = vpack.c.b16 %v3576, %v3573
        %v3700 = vpack.c.b16 %v3580, %v3577
        %v3701 = vpack.c.b16 %v3581, %v3578
        %v3702 = vpack.c.b16 %v3582, %v3579
        %v3703 = vpack.c.b16 %v3586, %v3583
        %v3704 = vpack.c.b16 %v3587, %v3584
        %v3705 = vpack.c.b16 %v3588, %v3585
        %v3706 = vpack.c.b16 %v3592, %v3589
        %v3707 = vpack.c.b16 %v3593, %v3590
        %v3708 = vpack.c.b16 %v3594, %v3591
        %v3709 = vpack.c.b16 %v3598, %v3595
        %v3710 = vpack.c.b16 %v3599, %v3596
        %v3711 = vpack.c.b16 %v3600, %v3597
        %v3712 = vpack.c.b16 %v3604, %v3601
        %v3713 = vpack.c.b16 %v3605, %v3602
        %v3714 = vpack.c.b16 %v3606, %v3603
        %v3715 = vpack.c.b16 %v3610, %v3607
        %v3716 = vpack.c.b16 %v3611, %v3608
        %v3717 = vpack.c.b16 %v3612, %v3609
        %v3718 = vpack.c.b16 %v3616, %v3613
        %v3719 = vpack.c.b16 %v3617, %v3614
        %v3720 = vpack.c.b16 %v3618, %v3615
        %v3721 = vpack.c.b16 %v3622, %v3619
        %v3722 = vpack.c.b16 %v3623, %v3620
        %v3723 = vpack.c.b16 %v3624, %v3621
        %v3724 = vpack.c.b16 %v3628, %v3625
        %v3725 = vpack.c.b16 %v3629, %v3626
        %v3726 = vpack.c.b16 %v3630, %v3627
        %v3727 = vpack.c.b16 %v3634, %v3631
        %v3728 = vpack.c.b16 %v3635, %v3632
        %v3729 = vpack.c.b16 %v3636, %v3633
        %v3730 = vpack.c.b16 %v3640, %v3637
        %v3731 = vpack.c.b16 %v3641, %v3638
        %v3732 = vpack.c.b16 %v3642, %v3639
        %v3733 = vpack.c.b16 %v3646, %v3643
        %v3734 = vpack.c.b16 %v3647, %v3644
        %v3735 = vpack.c.b16 %v3648, %v3645
        %v3736 = vpack.c.b16 %v3652, %v3649
        %v3737 = vpack.c.b16 %v3653, %v3650
        %v3738 = vpack.c.b16 %v3654, %v3651
        %v3739 = vpack.c.b16 %v3658, %v3655
        %v3740 = vpack.c.b16 %v3659, %v3656
        %v3741 = vpack.c.b16 %v3660, %v3657
        %v3742 = vpack.c.b16 %v3664, %v3661
        %v3743 = vpack.c.b16 %v3665, %v3662
        %v3744 = vpack.c.b16 %v3666, %v3663
        %3823 = vmatprep.subr.bf16.mxu0 %v3668
        %3824 = vmatpush1.bf16.msra.mxu0 %v3667
        %3825 = vmatprep.subr.bf16.mxu0 %v3671
        %3826 = vmatpush1.bf16.msra.mxu0 %v3670
        %3827 = vmatprep.subr.bf16.mxu0 %v3674
        %3828 = vmatpush1.bf16.msra.mxu0 %v3673
        %3829 = vmatprep.subr.bf16.mxu0 %v3677
        %3830 = vmatpush1.bf16.msra.mxu0 %v3676
        %3831 = vmatprep.subr.bf16.mxu0 %v3680
        %3832 = vmatpush1.bf16.msra.mxu0 %v3679
        %3833 = vmatprep.subr.bf16.mxu0 %v3683
        %3834 = vmatpush1.bf16.msra.mxu0 %v3682
        %3835 = vmatprep.subr.bf16.mxu0 %v3686
        %3836 = vmatpush1.bf16.msra.mxu0 %v3685
        %3837 = vmatprep.subr.bf16.mxu0 %v3689
        %3838 = vmatpush1.bf16.msra.mxu0 %v3688
        %3839 = vmatprep.subr.bf16.mxu0 %v3692
        %3840 = vmatpush1.bf16.msra.mxu0 %v3691
        %3841 = vmatprep.subr.bf16.mxu0 %v3695
        %3842 = vmatpush1.bf16.msra.mxu0 %v3694
        %3843 = vmatprep.subr.bf16.mxu0 %v3698
        %3844 = vmatpush1.bf16.msra.mxu0 %v3697
        %3845 = vmatprep.subr.bf16.mxu0 %v3701
        %3846 = vmatpush1.bf16.msra.mxu0 %v3700
        %3847 = vmatprep.subr.bf16.mxu0 %v3704
        %3848 = vmatpush1.bf16.msra.mxu0 %v3703
        %3849 = vmatprep.subr.bf16.mxu0 %v3707
        %3850 = vmatpush1.bf16.msra.mxu0 %v3706
        %3851 = vmatprep.subr.bf16.mxu0 %v3710
        %3852 = vmatpush1.bf16.msra.mxu0 %v3709
        %3853 = vmatprep.subr.bf16.mxu0 %v3713
        %3854 = vmatpush1.bf16.msra.mxu0 %v3712
        %3855 = vmatprep.mubr.bf16.mxu0 %v1628
        %3856 = vmatmul.mubr.bf16.gmra.mrb[0].mxu0 %v1627
        %v3857 = vpop.f32.mrb[0].mxu0
        %v3858 = vadd.f32 %v3321, %v3857
        %v3859 = vpop.f32.mrb[0].mxu0
        %v3860 = vadd.f32 %v3323, %v3859
        %v3861 = vpop.f32.mrb[0].mxu0
        %v3862 = vpop.f32.mrb[0].mxu0
        %3863 = vdwg.mxu0
        %3864 = vmatprep.subr.bf16.mxu0 %v3716
        %3865 = vmatpush1.bf16.msra.mxu0 %v3715
        %3866 = vmatprep.subr.bf16.mxu0 %v3719
        %3867 = vmatpush1.bf16.msra.mxu0 %v3718
        %3868 = vmatprep.subr.bf16.mxu0 %v3722
        %3869 = vmatpush1.bf16.msra.mxu0 %v3721
        %3870 = vmatprep.subr.bf16.mxu0 %v3725
        %3871 = vmatpush1.bf16.msra.mxu0 %v3724
        %3872 = vmatprep.subr.bf16.mxu0 %v3728
        %3873 = vmatpush1.bf16.msra.mxu0 %v3727
        %3874 = vmatprep.subr.bf16.mxu0 %v3731
        %3875 = vmatpush1.bf16.msra.mxu0 %v3730
        %3876 = vmatprep.subr.bf16.mxu0 %v3734
        %3877 = vmatpush1.bf16.msra.mxu0 %v3733
        %3878 = vmatprep.subr.bf16.mxu0 %v3737
        %3879 = vmatpush1.bf16.msra.mxu0 %v3736
        %3880 = vmatprep.subr.bf16.mxu0 %v3740
        %3881 = vmatpush1.bf16.msra.mxu0 %v3739
        %3882 = vmatprep.subr.bf16.mxu0 %v3743
        %3883 = vmatpush1.bf16.msra.mxu0 %v3742
        %3884 = vmatprep.subr.bf16.mxu0 0
        %3885 = vmatpush1.bf16.msra.mxu0 0
        %3886 = vmatprep.subr.bf16.mxu0 0
        %3887 = vmatpush1.bf16.msra.mxu0 0
        %3888 = vmatprep.subr.bf16.mxu0 0
        %3889 = vmatpush1.bf16.msra.mxu0 0
        %3890 = vmatprep.subr.bf16.mxu0 0
        %3891 = vmatpush1.bf16.msra.mxu0 0
        %3892 = vmatprep.subr.bf16.mxu0 0
        %3893 = vmatpush1.bf16.msra.mxu0 0
        %3894 = vmatprep.subr.bf16.mxu0 0
        %3895 = vmatpush1.bf16.msra.mxu0 0
        %3896 = vmatprep.mubr.bf16.mxu0 %v2051
        %3897 = vmatmul.mubr.bf16.gmra.mrb[0].mxu0 %v1629
        %v3898 = vpop.f32.mrb[0].mxu0
        %v3899 = vadd.f32 %v3858, %v3898
        %v3900 = vpop.f32.mrb[0].mxu0
        %v3901 = vadd.f32 %v3860, %v3900
        %v3902 = vpop.f32.mrb[0].mxu0
        %v3903 = vpop.f32.mrb[0].mxu0
        %3904 = vdwg.mxu0
        %3905 = vmatprep.subr.bf16.mxu0 0
        %3906 = vmatpush1.bf16.msra.mxu0 %v3669
        %3907 = vmatprep.subr.bf16.mxu0 0
        %3908 = vmatpush1.bf16.msra.mxu0 %v3672
        %3909 = vmatprep.subr.bf16.mxu0 0
        %3910 = vmatpush1.bf16.msra.mxu0 %v3675
        %3911 = vmatprep.subr.bf16.mxu0 0
        %3912 = vmatpush1.bf16.msra.mxu0 %v3678
        %3913 = vmatprep.subr.bf16.mxu0 0
        %3914 = vmatpush1.bf16.msra.mxu0 %v3681
        %3915 = vmatprep.subr.bf16.mxu0 0
        %3916 = vmatpush1.bf16.msra.mxu0 %v3684
        %3917 = vmatprep.subr.bf16.mxu0 0
        %3918 = vmatpush1.bf16.msra.mxu0 %v3687
        %3919 = vmatprep.subr.bf16.mxu0 0
        %3920 = vmatpush1.bf16.msra.mxu0 %v3690
        %3921 = vmatprep.subr.bf16.mxu0 0
        %3922 = vmatpush1.bf16.msra.mxu0 %v3693
        %3923 = vmatprep.subr.bf16.mxu0 0
        %3924 = vmatpush1.bf16.msra.mxu0 %v3696
        %3925 = vmatprep.subr.bf16.mxu0 0
        %3926 = vmatpush1.bf16.msra.mxu0 %v3699
        %3927 = vmatprep.subr.bf16.mxu0 0
        %3928 = vmatpush1.bf16.msra.mxu0 %v3702
        %3929 = vmatprep.subr.bf16.mxu0 0
        %3930 = vmatpush1.bf16.msra.mxu0 %v3705
        %3931 = vmatprep.subr.bf16.mxu0 0
        %3932 = vmatpush1.bf16.msra.mxu0 %v3708
        %3933 = vmatprep.subr.bf16.mxu0 0
        %3934 = vmatpush1.bf16.msra.mxu0 %v3711
        %3935 = vmatprep.subr.bf16.mxu0 0
        %3936 = vmatpush1.bf16.msra.mxu0 %v3714
        %3937 = vmatprep.mubr.bf16.mxu0 %v1628
        %3938 = vmatmul.mubr.bf16.gmra.mrb[0].mxu0 %v1627
        %v3939 = vpop.f32.mrb[0].mxu0
        %v3940 = vadd.f32 %v3402, %v3939
        %v3941 = vpop.f32.mrb[0].mxu0
        %v3942 = vpop.f32.mrb[0].mxu0
        %v3943 = vpop.f32.mrb[0].mxu0
        %3944 = vdwg.mxu0
        %3945 = vmatprep.subr.bf16.mxu0 0
        %3946 = vmatpush1.bf16.msra.mxu0 %v3717
        %3947 = vmatprep.subr.bf16.mxu0 0
        %3948 = vmatpush1.bf16.msra.mxu0 %v3720
        %3949 = vmatprep.subr.bf16.mxu0 0
        %3950 = vmatpush1.bf16.msra.mxu0 %v3723
        %3951 = vmatprep.subr.bf16.mxu0 0
        %3952 = vmatpush1.bf16.msra.mxu0 %v3726
        %3953 = vmatprep.subr.bf16.mxu0 0
        %3954 = vmatpush1.bf16.msra.mxu0 %v3729
        %3955 = vmatprep.subr.bf16.mxu0 0
        %3956 = vmatpush1.bf16.msra.mxu0 %v3732
        %3957 = vmatprep.subr.bf16.mxu0 0
        %3958 = vmatpush1.bf16.msra.mxu0 %v3735
        %3959 = vmatprep.subr.bf16.mxu0 0
        %3960 = vmatpush1.bf16.msra.mxu0 %v3738
        %3961 = vmatprep.subr.bf16.mxu0 0
        %3962 = vmatpush1.bf16.msra.mxu0 %v3741
        %3963 = vmatprep.subr.bf16.mxu0 0
        %3964 = vmatpush1.bf16.msra.mxu0 %v3744
        %3965 = vmatprep.subr.bf16.mxu0 0
        %3966 = vmatpush1.bf16.msra.mxu0 0
        %3967 = vmatprep.subr.bf16.mxu0 0
        %3968 = vmatpush1.bf16.msra.mxu0 0
        %3969 = vmatprep.subr.bf16.mxu0 0
        %3970 = vmatpush1.bf16.msra.mxu0 0
        %3971 = vmatprep.subr.bf16.mxu0 0
        %3972 = vmatpush1.bf16.msra.mxu0 0
        %3973 = vmatprep.subr.bf16.mxu0 0
        %3974 = vmatpush1.bf16.msra.mxu0 0
        %3975 = vmatprep.subr.bf16.mxu0 0
        %3976 = vmatpush1.bf16.msra.mxu0 0
        %3977 = vmatprep.mubr.bf16.mxu0 %v2051
        %3978 = vmatmul.mubr.bf16.gmra.mrb[0].mxu0 %v1629
        %v3979 = vpop.f32.mrb[0].mxu0
        %v3980 = vadd.f32 %v3940, %v3979
        %v3981 = vpop.f32.mrb[0].mxu0
        %v3982 = vpop.f32.mrb[0].mxu0
        %v3983 = vpop.f32.mrb[0].mxu0
        %3984 = vdwg.mxu0
        %v4089 = vunpack.c.l.b16 %v922
        %v4090 = vunpack.c.h.b16 %v922
        %v4091 = vunpack.c.l.b16 %v923
        %v4092 = vunpack.c.l.b16 %v924
        %v4093 = vunpack.c.h.b16 %v924
        %v4094 = vunpack.c.l.b16 %v925
        %v4095 = vunpack.c.l.b16 %v926
        %v4096 = vunpack.c.h.b16 %v926
        %v4097 = vunpack.c.l.b16 %v927
        %v4098 = vunpack.c.l.b16 %v928
        %v4099 = vunpack.c.h.b16 %v928
        %v4100 = vunpack.c.l.b16 %v929
        %v4101 = vunpack.c.l.b16 %v930
        %v4102 = vunpack.c.h.b16 %v930
        %v4103 = vunpack.c.l.b16 %v931
        %v4104 = vunpack.c.l.b16 %v932
        %v4105 = vunpack.c.h.b16 %v932
        %v4106 = vunpack.c.l.b16 %v933
        %v4107 = vunpack.c.l.b16 %v934
        %v4108 = vunpack.c.h.b16 %v934
        %v4109 = vunpack.c.l.b16 %v935
        %v4110 = vunpack.c.l.b16 %v936
        %v4111 = vunpack.c.h.b16 %v936
        %v4112 = vunpack.c.l.b16 %v937
        %v4113 = vunpack.c.l.b16 %v938
        %v4114 = vunpack.c.h.b16 %v938
        %v4115 = vunpack.c.l.b16 %v939
        %v4116 = vunpack.c.l.b16 %v940
        %v4117 = vunpack.c.h.b16 %v940
        %v4118 = vunpack.c.l.b16 %v941
        %v4119 = vunpack.c.l.b16 %v942
        %v4120 = vunpack.c.h.b16 %v942
        %v4121 = vunpack.c.l.b16 %v943
        %v4122 = vunpack.c.l.b16 %v944
        %v4123 = vunpack.c.h.b16 %v944
        %v4124 = vunpack.c.l.b16 %v945
        %v4125 = vunpack.c.l.b16 %v946
        %v4126 = vunpack.c.h.b16 %v946
        %v4127 = vunpack.c.l.b16 %v947
        %v4128 = vunpack.c.l.b16 %v948
        %v4129 = vunpack.c.h.b16 %v948
        %v4130 = vunpack.c.l.b16 %v949
        %v4131 = vunpack.c.l.b16 %v950
        %v4132 = vunpack.c.h.b16 %v950
        %v4133 = vunpack.c.l.b16 %v951
        %v4134 = vunpack.c.l.b16 %v952
        %v4135 = vunpack.c.h.b16 %v952
        %v4136 = vunpack.c.l.b16 %v953
        %v4137 = vunpack.c.l.b16 %v954
        %v4138 = vunpack.c.h.b16 %v954
        %v4139 = vunpack.c.l.b16 %v955
        %v4140 = vunpack.c.l.b16 %v956
        %v4141 = vunpack.c.h.b16 %v956
        %v4142 = vunpack.c.l.b16 %v957
        %v4143 = vunpack.c.l.b16 %v958
        %v4144 = vunpack.c.h.b16 %v958
        %v4145 = vunpack.c.l.b16 %v959
        %v4146 = vunpack.c.l.b16 %v960
        %v4147 = vunpack.c.h.b16 %v960
        %v4148 = vunpack.c.l.b16 %v961
        %v4149 = vunpack.c.l.b16 %v962
        %v4150 = vunpack.c.h.b16 %v962
        %v4151 = vunpack.c.l.b16 %v963
        %v4152 = vunpack.c.l.b16 %v964
        %v4153 = vunpack.c.h.b16 %v964
        %v4154 = vunpack.c.l.b16 %v965
        %v4155 = vunpack.c.l.b16 %v966
        %v4156 = vunpack.c.h.b16 %v966
        %v4157 = vunpack.c.l.b16 %v967
        %v4158 = vunpack.c.l.b16 %v968
        %v4159 = vunpack.c.h.b16 %v968
        %v4160 = vunpack.c.l.b16 %v969
        %v4161 = vunpack.c.l.b16 %v970
        %v4162 = vunpack.c.h.b16 %v970
        %v4163 = vunpack.c.l.b16 %v971
        %v4164 = vunpack.c.l.b16 %v972
        %v4165 = vunpack.c.h.b16 %v972
        %v4166 = vunpack.c.l.b16 %v973
        %v4167 = vunpack.c.l.b16 %v974
        %v4168 = vunpack.c.h.b16 %v974
        %v4169 = vunpack.c.l.b16 %v975
        %v4170 = vunpack.c.l.b16 %v976
        %v4171 = vunpack.c.h.b16 %v976
        %v4172 = vunpack.c.l.b16 %v977
        %v4173 = vunpack.c.l.b16 %v978
        %v4174 = vunpack.c.h.b16 %v978
        %v4175 = vunpack.c.l.b16 %v979
        %v4176 = vunpack.c.l.b16 %v980
        %v4177 = vunpack.c.h.b16 %v980
        %v4178 = vunpack.c.l.b16 %v981
        %v4179 = vunpack.c.l.b16 %v982
        %v4180 = vunpack.c.h.b16 %v982
        %v4181 = vunpack.c.l.b16 %v983
        %v4182 = vunpack.c.l.b16 %v984
        %v4183 = vunpack.c.h.b16 %v984
        %v4184 = vunpack.c.l.b16 %v985
        %v4185 = vunpack.c.l.b16 %v986
        %v4186 = vunpack.c.h.b16 %v986
        %v4187 = vunpack.c.l.b16 %v987
        %v4188 = vunpack.c.l.b16 %v988
        %v4189 = vunpack.c.h.b16 %v988
        %v4190 = vunpack.c.l.b16 %v989
        %v4191 = vunpack.c.l.b16 %v990
        %v4192 = vunpack.c.h.b16 %v990
        %v4193 = vunpack.c.l.b16 %v991
        %v4194 = vunpack.c.l.b16 %v992
        %v4195 = vunpack.c.h.b16 %v992
        %v4196 = vunpack.c.l.b16 %v993
        %v4197 = vunpack.c.l.b16 %v994
        %v4198 = vunpack.c.h.b16 %v994
        %v4199 = vunpack.c.l.b16 %v995
        %v4200 = vunpack.c.l.b16 %v996
        %v4201 = vunpack.c.h.b16 %v996
        %v4202 = vunpack.c.l.b16 %v997
        %v4203 = vunpack.c.l.b16 %v998
        %v4204 = vunpack.c.h.b16 %v998
        %v4205 = vunpack.c.l.b16 %v999
        %v4206 = vunpack.c.l.b16 %v1000
        %v4207 = vunpack.c.h.b16 %v1000
        %v4208 = vunpack.c.l.b16 %v1001
        %v4209 = vunpack.c.l.b16 %v1002
        %v4210 = vunpack.c.h.b16 %v1002
        %v4211 = vunpack.c.l.b16 %v1003
        %v4212 = vunpack.c.l.b16 %v1004
        %v4213 = vunpack.c.h.b16 %v1004
        %v4214 = vunpack.c.l.b16 %v1005
        %v4215 = vunpack.c.l.b16 %v1006
        %v4216 = vunpack.c.h.b16 %v1006
        %v4217 = vunpack.c.l.b16 %v1007
        %v4218 = vunpack.c.l.b16 %v1008
        %v4219 = vunpack.c.h.b16 %v1008
        %v4220 = vunpack.c.l.b16 %v1009
        %v4221 = vunpack.c.l.b16 %v1010
        %v4222 = vunpack.c.h.b16 %v1010
        %v4223 = vunpack.c.l.b16 %v1011
        %v4224 = vunpack.c.l.b16 %v1012
        %v4225 = vunpack.c.h.b16 %v1012
        %v4226 = vunpack.c.l.b16 %v1013
        %v4227 = vunpack.c.l.b16 %v1014
        %v4228 = vunpack.c.h.b16 %v1014
        %v4229 = vunpack.c.l.b16 %v1015
        %v4230 = vunpack.c.l.b16 %v1016
        %v4231 = vunpack.c.h.b16 %v1016
        %v4232 = vunpack.c.l.b16 %v1017
        %v4233 = vunpack.c.l.b16 %v1018
        %v4234 = vunpack.c.h.b16 %v1018
        %v4235 = vunpack.c.l.b16 %v1019
        %v4236 = vunpack.c.l.b16 %v1020
        %v4237 = vunpack.c.h.b16 %v1020
        %v4238 = vunpack.c.l.b16 %v1021
        %v4239 = vunpack.c.l.b16 %v1022
        %v4240 = vunpack.c.h.b16 %v1022
        %v4241 = vunpack.c.l.b16 %v1023
        %v4242 = vunpack.c.l.b16 %v1024
        %v4243 = vunpack.c.h.b16 %v1024
        %v4244 = vunpack.c.l.b16 %v1025
        %v4245 = vpack.c.b16 %v4092, %v4089
        %v4246 = vpack.c.b16 %v4093, %v4090
        %v4247 = vpack.c.b16 %v4094, %v4091
        %v4248 = vpack.c.b16 %v4098, %v4095
        %v4249 = vpack.c.b16 %v4099, %v4096
        %v4250 = vpack.c.b16 %v4100, %v4097
        %v4251 = vpack.c.b16 %v4104, %v4101
        %v4252 = vpack.c.b16 %v4105, %v4102
        %v4253 = vpack.c.b16 %v4106, %v4103
        %v4254 = vpack.c.b16 %v4110, %v4107
        %v4255 = vpack.c.b16 %v4111, %v4108
        %v4256 = vpack.c.b16 %v4112, %v4109
        %v4257 = vpack.c.b16 %v4116, %v4113
        %v4258 = vpack.c.b16 %v4117, %v4114
        %v4259 = vpack.c.b16 %v4118, %v4115
        %v4260 = vpack.c.b16 %v4122, %v4119
        %v4261 = vpack.c.b16 %v4123, %v4120
        %v4262 = vpack.c.b16 %v4124, %v4121
        %v4263 = vpack.c.b16 %v4128, %v4125
        %v4264 = vpack.c.b16 %v4129, %v4126
        %v4265 = vpack.c.b16 %v4130, %v4127
        %v4266 = vpack.c.b16 %v4134, %v4131
        %v4267 = vpack.c.b16 %v4135, %v4132
        %v4268 = vpack.c.b16 %v4136, %v4133
        %v4269 = vpack.c.b16 %v4140, %v4137
        %v4270 = vpack.c.b16 %v4141, %v4138
        %v4271 = vpack.c.b16 %v4142, %v4139
        %v4272 = vpack.c.b16 %v4146, %v4143
        %v4273 = vpack.c.b16 %v4147, %v4144
        %v4274 = vpack.c.b16 %v4148, %v4145
        %v4275 = vpack.c.b16 %v4152, %v4149
        %v4276 = vpack.c.b16 %v4153, %v4150
        %v4277 = vpack.c.b16 %v4154, %v4151
        %v4278 = vpack.c.b16 %v4158, %v4155
        %v4279 = vpack.c.b16 %v4159, %v4156
        %v4280 = vpack.c.b16 %v4160, %v4157
        %v4281 = vpack.c.b16 %v4164, %v4161
        %v4282 = vpack.c.b16 %v4165, %v4162
        %v4283 = vpack.c.b16 %v4166, %v4163
        %v4284 = vpack.c.b16 %v4170, %v4167
        %v4285 = vpack.c.b16 %v4171, %v4168
        %v4286 = vpack.c.b16 %v4172, %v4169
        %v4287 = vpack.c.b16 %v4176, %v4173
        %v4288 = vpack.c.b16 %v4177, %v4174
        %v4289 = vpack.c.b16 %v4178, %v4175
        %v4290 = vpack.c.b16 %v4182, %v4179
        %v4291 = vpack.c.b16 %v4183, %v4180
        %v4292 = vpack.c.b16 %v4184, %v4181
        %v4293 = vpack.c.b16 %v4188, %v4185
        %v4294 = vpack.c.b16 %v4189, %v4186
        %v4295 = vpack.c.b16 %v4190, %v4187
        %v4296 = vpack.c.b16 %v4194, %v4191
        %v4297 = vpack.c.b16 %v4195, %v4192
        %v4298 = vpack.c.b16 %v4196, %v4193
        %v4299 = vpack.c.b16 %v4200, %v4197
        %v4300 = vpack.c.b16 %v4201, %v4198
        %v4301 = vpack.c.b16 %v4202, %v4199
        %v4302 = vpack.c.b16 %v4206, %v4203
        %v4303 = vpack.c.b16 %v4207, %v4204
        %v4304 = vpack.c.b16 %v4208, %v4205
        %v4305 = vpack.c.b16 %v4212, %v4209
        %v4306 = vpack.c.b16 %v4213, %v4210
        %v4307 = vpack.c.b16 %v4214, %v4211
        %v4308 = vpack.c.b16 %v4218, %v4215
        %v4309 = vpack.c.b16 %v4219, %v4216
        %v4310 = vpack.c.b16 %v4220, %v4217
        %v4311 = vpack.c.b16 %v4224, %v4221
        %v4312 = vpack.c.b16 %v4225, %v4222
        %v4313 = vpack.c.b16 %v4226, %v4223
        %v4314 = vpack.c.b16 %v4230, %v4227
        %v4315 = vpack.c.b16 %v4231, %v4228
        %v4316 = vpack.c.b16 %v4232, %v4229
        %v4317 = vpack.c.b16 %v4236, %v4233
        %v4318 = vpack.c.b16 %v4237, %v4234
        %v4319 = vpack.c.b16 %v4238, %v4235
        %v4320 = vpack.c.b16 %v4242, %v4239
        %v4321 = vpack.c.b16 %v4243, %v4240
        %v4322 = vpack.c.b16 %v4244, %v4241
        %4401 = vmatprep.subr.bf16.mxu0 %v4246
        %4402 = vmatpush1.bf16.msra.mxu0 %v4245
        %4403 = vmatprep.subr.bf16.mxu0 %v4249
        %4404 = vmatpush1.bf16.msra.mxu0 %v4248
        %4405 = vmatprep.subr.bf16.mxu0 %v4252
        %4406 = vmatpush1.bf16.msra.mxu0 %v4251
        %4407 = vmatprep.subr.bf16.mxu0 %v4255
        %4408 = vmatpush1.bf16.msra.mxu0 %v4254
        %4409 = vmatprep.subr.bf16.mxu0 %v4258
        %4410 = vmatpush1.bf16.msra.mxu0 %v4257
        %4411 = vmatprep.subr.bf16.mxu0 %v4261
        %4412 = vmatpush1.bf16.msra.mxu0 %v4260
        %4413 = vmatprep.subr.bf16.mxu0 %v4264
        %4414 = vmatpush1.bf16.msra.mxu0 %v4263
        %4415 = vmatprep.subr.bf16.mxu0 %v4267
        %4416 = vmatpush1.bf16.msra.mxu0 %v4266
        %4417 = vmatprep.subr.bf16.mxu0 %v4270
        %4418 = vmatpush1.bf16.msra.mxu0 %v4269
        %4419 = vmatprep.subr.bf16.mxu0 %v4273
        %4420 = vmatpush1.bf16.msra.mxu0 %v4272
        %4421 = vmatprep.subr.bf16.mxu0 %v4276
        %4422 = vmatpush1.bf16.msra.mxu0 %v4275
        %4423 = vmatprep.subr.bf16.mxu0 %v4279
        %4424 = vmatpush1.bf16.msra.mxu0 %v4278
        %4425 = vmatprep.subr.bf16.mxu0 %v4282
        %4426 = vmatpush1.bf16.msra.mxu0 %v4281
        %4427 = vmatprep.subr.bf16.mxu0 %v4285
        %4428 = vmatpush1.bf16.msra.mxu0 %v4284
        %4429 = vmatprep.subr.bf16.mxu0 %v4288
        %4430 = vmatpush1.bf16.msra.mxu0 %v4287
        %4431 = vmatprep.subr.bf16.mxu0 %v4291
        %4432 = vmatpush1.bf16.msra.mxu0 %v4290
        %4433 = vmatprep.mubr.bf16.mxu0 %v2228
        %4434 = vmatmul.mubr.bf16.gmra.mrb[0].mxu0 %v2221
        %v4435 = vpop.f32.mrb[0].mxu0
        %v4436 = vadd.f32 0.0, %v4435
        %v4437 = vpop.f32.mrb[0].mxu0
        %v4438 = vadd.f32 0.0, %v4437
        %v4439 = vpop.f32.mrb[0].mxu0
        %v4440 = vpop.f32.mrb[0].mxu0
        %4441 = vdwg.mxu0
        %4442 = vmatprep.subr.bf16.mxu0 %v4294
        %4443 = vmatpush1.bf16.msra.mxu0 %v4293
        %4444 = vmatprep.subr.bf16.mxu0 %v4297
        %4445 = vmatpush1.bf16.msra.mxu0 %v4296
        %4446 = vmatprep.subr.bf16.mxu0 %v4300
        %4447 = vmatpush1.bf16.msra.mxu0 %v4299
        %4448 = vmatprep.subr.bf16.mxu0 %v4303
        %4449 = vmatpush1.bf16.msra.mxu0 %v4302
        %4450 = vmatprep.subr.bf16.mxu0 %v4306
        %4451 = vmatpush1.bf16.msra.mxu0 %v4305
        %4452 = vmatprep.subr.bf16.mxu0 %v4309
        %4453 = vmatpush1.bf16.msra.mxu0 %v4308
        %4454 = vmatprep.subr.bf16.mxu0 %v4312
        %4455 = vmatpush1.bf16.msra.mxu0 %v4311
        %4456 = vmatprep.subr.bf16.mxu0 %v4315
        %4457 = vmatpush1.bf16.msra.mxu0 %v4314
        %4458 = vmatprep.subr.bf16.mxu0 %v4318
        %4459 = vmatpush1.bf16.msra.mxu0 %v4317
        %4460 = vmatprep.subr.bf16.mxu0 %v4321
        %4461 = vmatpush1.bf16.msra.mxu0 %v4320
        %4462 = vmatprep.subr.bf16.mxu0 0
        %4463 = vmatpush1.bf16.msra.mxu0 0
        %4464 = vmatprep.subr.bf16.mxu0 0
        %4465 = vmatpush1.bf16.msra.mxu0 0
        %4466 = vmatprep.subr.bf16.mxu0 0
        %4467 = vmatpush1.bf16.msra.mxu0 0
        %4468 = vmatprep.subr.bf16.mxu0 0
        %4469 = vmatpush1.bf16.msra.mxu0 0
        %4470 = vmatprep.subr.bf16.mxu0 0
        %4471 = vmatpush1.bf16.msra.mxu0 0
        %4472 = vmatprep.subr.bf16.mxu0 0
        %4473 = vmatpush1.bf16.msra.mxu0 0
        %4474 = vmatprep.mubr.bf16.mxu0 %v2662
        %4475 = vmatmul.mubr.bf16.gmra.mrb[0].mxu0 %v2235
        %v4476 = vpop.f32.mrb[0].mxu0
        %v4477 = vadd.f32 %v4436, %v4476
        %v4478 = vpop.f32.mrb[0].mxu0
        %v4479 = vadd.f32 %v4438, %v4478
        %v4480 = vpop.f32.mrb[0].mxu0
        %v4481 = vpop.f32.mrb[0].mxu0
        %4482 = vdwg.mxu0
        %4483 = vmatprep.subr.bf16.mxu0 0
        %4484 = vmatpush1.bf16.msra.mxu0 %v4247
        %4485 = vmatprep.subr.bf16.mxu0 0
        %4486 = vmatpush1.bf16.msra.mxu0 %v4250
        %4487 = vmatprep.subr.bf16.mxu0 0
        %4488 = vmatpush1.bf16.msra.mxu0 %v4253
        %4489 = vmatprep.subr.bf16.mxu0 0
        %4490 = vmatpush1.bf16.msra.mxu0 %v4256
        %4491 = vmatprep.subr.bf16.mxu0 0
        %4492 = vmatpush1.bf16.msra.mxu0 %v4259
        %4493 = vmatprep.subr.bf16.mxu0 0
        %4494 = vmatpush1.bf16.msra.mxu0 %v4262
        %4495 = vmatprep.subr.bf16.mxu0 0
        %4496 = vmatpush1.bf16.msra.mxu0 %v4265
        %4497 = vmatprep.subr.bf16.mxu0 0
        %4498 = vmatpush1.bf16.msra.mxu0 %v4268
        %4499 = vmatprep.subr.bf16.mxu0 0
        %4500 = vmatpush1.bf16.msra.mxu0 %v4271
        %4501 = vmatprep.subr.bf16.mxu0 0
        %4502 = vmatpush1.bf16.msra.mxu0 %v4274
        %4503 = vmatprep.subr.bf16.mxu0 0
        %4504 = vmatpush1.bf16.msra.mxu0 %v4277
        %4505 = vmatprep.subr.bf16.mxu0 0
        %4506 = vmatpush1.bf16.msra.mxu0 %v4280
        %4507 = vmatprep.subr.bf16.mxu0 0
        %4508 = vmatpush1.bf16.msra.mxu0 %v4283
        %4509 = vmatprep.subr.bf16.mxu0 0
        %4510 = vmatpush1.bf16.msra.mxu0 %v4286
        %4511 = vmatprep.subr.bf16.mxu0 0
        %4512 = vmatpush1.bf16.msra.mxu0 %v4289
        %4513 = vmatprep.subr.bf16.mxu0 0
        %4514 = vmatpush1.bf16.msra.mxu0 %v4292
        %4515 = vmatprep.mubr.bf16.mxu0 %v2228
        %4516 = vmatmul.mubr.bf16.gmra.mrb[0].mxu0 %v2221
        %v4517 = vpop.f32.mrb[0].mxu0
        %v4518 = vadd.f32 0.0, %v4517
        %v4519 = vpop.f32.mrb[0].mxu0
        %v4520 = vpop.f32.mrb[0].mxu0
        %v4521 = vpop.f32.mrb[0].mxu0
        %4522 = vdwg.mxu0
        %4523 = vmatprep.subr.bf16.mxu0 0
        %4524 = vmatpush1.bf16.msra.mxu0 %v4295
        %4525 = vmatprep.subr.bf16.mxu0 0
        %4526 = vmatpush1.bf16.msra.mxu0 %v4298
        %4527 = vmatprep.subr.bf16.mxu0 0
        %4528 = vmatpush1.bf16.msra.mxu0 %v4301
        %4529 = vmatprep.subr.bf16.mxu0 0
        %4530 = vmatpush1.bf16.msra.mxu0 %v4304
        %4531 = vmatprep.subr.bf16.mxu0 0
        %4532 = vmatpush1.bf16.msra.mxu0 %v4307
        %4533 = vmatprep.subr.bf16.mxu0 0
        %4534 = vmatpush1.bf16.msra.mxu0 %v4310
        %4535 = vmatprep.subr.bf16.mxu0 0
        %4536 = vmatpush1.bf16.msra.mxu0 %v4313
        %4537 = vmatprep.subr.bf16.mxu0 0
        %4538 = vmatpush1.bf16.msra.mxu0 %v4316
        %4539 = vmatprep.subr.bf16.mxu0 0
        %4540 = vmatpush1.bf16.msra.mxu0 %v4319
        %4541 = vmatprep.subr.bf16.mxu0 0
        %4542 = vmatpush1.bf16.msra.mxu0 %v4322
        %4543 = vmatprep.subr.bf16.mxu0 0
        %4544 = vmatpush1.bf16.msra.mxu0 0
        %4545 = vmatprep.subr.bf16.mxu0 0
        %4546 = vmatpush1.bf16.msra.mxu0 0
        %4547 = vmatprep.subr.bf16.mxu0 0
        %4548 = vmatpush1.bf16.msra.mxu0 0
        %4549 = vmatprep.subr.bf16.mxu0 0
        %4550 = vmatpush1.bf16.msra.mxu0 0
        %4551 = vmatprep.subr.bf16.mxu0 0
        %4552 = vmatpush1.bf16.msra.mxu0 0
        %4553 = vmatprep.subr.bf16.mxu0 0
        %4554 = vmatpush1.bf16.msra.mxu0 0
        %4555 = vmatprep.mubr.bf16.mxu0 %v2662
        %4556 = vmatmul.mubr.bf16.gmra.mrb[0].mxu0 %v2235
        %v4557 = vpop.f32.mrb[0].mxu0
        %v4558 = vadd.f32 %v4518, %v4557
        %v4559 = vpop.f32.mrb[0].mxu0
        %v4560 = vpop.f32.mrb[0].mxu0
        %v4561 = vpop.f32.mrb[0].mxu0
        %4562 = vdwg.mxu0
        %v4563 = vadd.f32 %v3899, %v4477
        %v4564 = vadd.f32 %v3901, %v4479
        %v4565 = vadd.f32 %v3980, %v4558
        %v4566 = vmax.f32 %v2826, %v4563
        %v4567 = vmax.f32 %v2827, %v4564
        %v4568 = vmax.f32 %v2828, %v4565
        %4569 = vmatprep.subr.bf16.mxu0 %v1300
        %4570 = vmatpush1.bf16.msra.mxu0 %v1299
        %4571 = vmatprep.subr.bf16.mxu0 %v1303
        %4572 = vmatpush1.bf16.msra.mxu0 %v1302
        %4573 = vmatprep.subr.bf16.mxu0 %v1306
        %4574 = vmatpush1.bf16.msra.mxu0 %v1305
        %4575 = vmatprep.subr.bf16.mxu0 %v1309
        %4576 = vmatpush1.bf16.msra.mxu0 %v1308
        %4577 = vmatprep.subr.bf16.mxu0 %v1312
        %4578 = vmatpush1.bf16.msra.mxu0 %v1311
        %4579 = vmatprep.subr.bf16.mxu0 %v1315
        %4580 = vmatpush1.bf16.msra.mxu0 %v1314
        %4581 = vmatprep.subr.bf16.mxu0 %v1318
        %4582 = vmatpush1.bf16.msra.mxu0 %v1317
        %4583 = vmatprep.subr.bf16.mxu0 %v1321
        %4584 = vmatpush1.bf16.msra.mxu0 %v1320
        %4585 = vmatprep.subr.bf16.mxu0 %v1324
        %4586 = vmatpush1.bf16.msra.mxu0 %v1323
        %4587 = vmatprep.subr.bf16.mxu0 %v1327
        %4588 = vmatpush1.bf16.msra.mxu0 %v1326
        %4589 = vmatprep.subr.bf16.mxu0 %v1330
        %4590 = vmatpush1.bf16.msra.mxu0 %v1329
        %4591 = vmatprep.subr.bf16.mxu0 %v1333
        %4592 = vmatpush1.bf16.msra.mxu0 %v1332
        %4593 = vmatprep.subr.bf16.mxu0 %v1336
        %4594 = vmatpush1.bf16.msra.mxu0 %v1335
        %4595 = vmatprep.subr.bf16.mxu0 %v1339
        %4596 = vmatpush1.bf16.msra.mxu0 %v1338
        %4597 = vmatprep.subr.bf16.mxu0 %v1342
        %4598 = vmatpush1.bf16.msra.mxu0 %v1341
        %4599 = vmatprep.subr.bf16.mxu0 %v1345
        %4600 = vmatpush1.bf16.msra.mxu0 %v1344
        %4601 = vmatprep.mubr.bf16.mxu0 %v2228
        %4602 = vmatmul.mubr.bf16.gmra.mrb[0].mxu0 %v2221
        %v4603 = vpop.f32.mrb[0].mxu0
        %v4604 = vadd.f32 0.0, %v4603
        %v4605 = vpop.f32.mrb[0].mxu0
        %v4606 = vadd.f32 0.0, %v4605
        %v4607 = vpop.f32.mrb[0].mxu0
        %v4608 = vpop.f32.mrb[0].mxu0
        %4609 = vdwg.mxu0
        %4610 = vmatprep.subr.bf16.mxu0 %v1348
        %4611 = vmatpush1.bf16.msra.mxu0 %v1347
        %4612 = vmatprep.subr.bf16.mxu0 %v1351
        %4613 = vmatpush1.bf16.msra.mxu0 %v1350
        %4614 = vmatprep.subr.bf16.mxu0 %v1354
        %4615 = vmatpush1.bf16.msra.mxu0 %v1353
        %4616 = vmatprep.subr.bf16.mxu0 %v1357
        %4617 = vmatpush1.bf16.msra.mxu0 %v1356
        %4618 = vmatprep.subr.bf16.mxu0 %v1360
        %4619 = vmatpush1.bf16.msra.mxu0 %v1359
        %4620 = vmatprep.subr.bf16.mxu0 %v1363
        %4621 = vmatpush1.bf16.msra.mxu0 %v1362
        %4622 = vmatprep.subr.bf16.mxu0 %v1366
        %4623 = vmatpush1.bf16.msra.mxu0 %v1365
        %4624 = vmatprep.subr.bf16.mxu0 %v1369
        %4625 = vmatpush1.bf16.msra.mxu0 %v1368
        %4626 = vmatprep.subr.bf16.mxu0 %v1372
        %4627 = vmatpush1.bf16.msra.mxu0 %v1371
        %4628 = vmatprep.subr.bf16.mxu0 %v1375
        %4629 = vmatpush1.bf16.msra.mxu0 %v1374
        %4630 = vmatprep.subr.bf16.mxu0 0
        %4631 = vmatpush1.bf16.msra.mxu0 0
        %4632 = vmatprep.subr.bf16.mxu0 0
        %4633 = vmatpush1.bf16.msra.mxu0 0
        %4634 = vmatprep.subr.bf16.mxu0 0
        %4635 = vmatpush1.bf16.msra.mxu0 0
        %4636 = vmatprep.subr.bf16.mxu0 0
        %4637 = vmatpush1.bf16.msra.mxu0 0
        %4638 = vmatprep.subr.bf16.mxu0 0
        %4639 = vmatpush1.bf16.msra.mxu0 0
        %4640 = vmatprep.subr.bf16.mxu0 0
        %4641 = vmatpush1.bf16.msra.mxu0 0
        %4642 = vmatprep.mubr.bf16.mxu0 %v2662
        %4643 = vmatmul.mubr.bf16.gmra.mrb[0].mxu0 %v2235
        %v4644 = vpop.f32.mrb[0].mxu0
        %v4645 = vadd.f32 %v4604, %v4644
        %v4646 = vpop.f32.mrb[0].mxu0
        %v4647 = vadd.f32 %v4606, %v4646
        %v4648 = vpop.f32.mrb[0].mxu0
        %v4649 = vpop.f32.mrb[0].mxu0
        %4650 = vdwg.mxu0
        %4651 = vmatprep.subr.bf16.mxu0 0
        %4652 = vmatpush1.bf16.msra.mxu0 %v1301
        %4653 = vmatprep.subr.bf16.mxu0 0
        %4654 = vmatpush1.bf16.msra.mxu0 %v1304
        %4655 = vmatprep.subr.bf16.mxu0 0
        %4656 = vmatpush1.bf16.msra.mxu0 %v1307
        %4657 = vmatprep.subr.bf16.mxu0 0
        %4658 = vmatpush1.bf16.msra.mxu0 %v1310
        %4659 = vmatprep.subr.bf16.mxu0 0
        %4660 = vmatpush1.bf16.msra.mxu0 %v1313
        %4661 = vmatprep.subr.bf16.mxu0 0
        %4662 = vmatpush1.bf16.msra.mxu0 %v1316
        %4663 = vmatprep.subr.bf16.mxu0 0
        %4664 = vmatpush1.bf16.msra.mxu0 %v1319
        %4665 = vmatprep.subr.bf16.mxu0 0
        %4666 = vmatpush1.bf16.msra.mxu0 %v1322
        %4667 = vmatprep.subr.bf16.mxu0 0
        %4668 = vmatpush1.bf16.msra.mxu0 %v1325
        %4669 = vmatprep.subr.bf16.mxu0 0
        %4670 = vmatpush1.bf16.msra.mxu0 %v1328
        %4671 = vmatprep.subr.bf16.mxu0 0
        %4672 = vmatpush1.bf16.msra.mxu0 %v1331
        %4673 = vmatprep.subr.bf16.mxu0 0
        %4674 = vmatpush1.bf16.msra.mxu0 %v1334
        %4675 = vmatprep.subr.bf16.mxu0 0
        %4676 = vmatpush1.bf16.msra.mxu0 %v1337
        %4677 = vmatprep.subr.bf16.mxu0 0
        %4678 = vmatpush1.bf16.msra.mxu0 %v1340
        %4679 = vmatprep.subr.bf16.mxu0 0
        %4680 = vmatpush1.bf16.msra.mxu0 %v1343
        %4681 = vmatprep.subr.bf16.mxu0 0
        %4682 = vmatpush1.bf16.msra.mxu0 %v1346
        %4683 = vmatprep.mubr.bf16.mxu0 %v2228
        %4684 = vmatmul.mubr.bf16.gmra.mrb[0].mxu0 %v2221
        %v4685 = vpop.f32.mrb[0].mxu0
        %v4686 = vadd.f32 0.0, %v4685
        %v4687 = vpop.f32.mrb[0].mxu0
        %v4688 = vpop.f32.mrb[0].mxu0
        %v4689 = vpop.f32.mrb[0].mxu0
        %4690 = vdwg.mxu0
        %4691 = vmatprep.subr.bf16.mxu0 0
        %4692 = vmatpush1.bf16.msra.mxu0 %v1349
        %4693 = vmatprep.subr.bf16.mxu0 0
        %4694 = vmatpush1.bf16.msra.mxu0 %v1352
        %4695 = vmatprep.subr.bf16.mxu0 0
        %4696 = vmatpush1.bf16.msra.mxu0 %v1355
        %4697 = vmatprep.subr.bf16.mxu0 0
        %4698 = vmatpush1.bf16.msra.mxu0 %v1358
        %4699 = vmatprep.subr.bf16.mxu0 0
        %4700 = vmatpush1.bf16.msra.mxu0 %v1361
        %4701 = vmatprep.subr.bf16.mxu0 0
        %4702 = vmatpush1.bf16.msra.mxu0 %v1364
        %4703 = vmatprep.subr.bf16.mxu0 0
        %4704 = vmatpush1.bf16.msra.mxu0 %v1367
        %4705 = vmatprep.subr.bf16.mxu0 0
        %4706 = vmatpush1.bf16.msra.mxu0 %v1370
        %4707 = vmatprep.subr.bf16.mxu0 0
        %4708 = vmatpush1.bf16.msra.mxu0 %v1373
        %4709 = vmatprep.subr.bf16.mxu0 0
        %4710 = vmatpush1.bf16.msra.mxu0 %v1376
        %4711 = vmatprep.subr.bf16.mxu0 0
        %4712 = vmatpush1.bf16.msra.mxu0 0
        %4713 = vmatprep.subr.bf16.mxu0 0
        %4714 = vmatpush1.bf16.msra.mxu0 0
        %4715 = vmatprep.subr.bf16.mxu0 0
        %4716 = vmatpush1.bf16.msra.mxu0 0
        %4717 = vmatprep.subr.bf16.mxu0 0
        %4718 = vmatpush1.bf16.msra.mxu0 0
        %4719 = vmatprep.subr.bf16.mxu0 0
        %4720 = vmatpush1.bf16.msra.mxu0 0
        %4721 = vmatprep.subr.bf16.mxu0 0
        %4722 = vmatpush1.bf16.msra.mxu0 0
        %4723 = vmatprep.mubr.bf16.mxu0 %v2662
        %4724 = vmatmul.mubr.bf16.gmra.mrb[0].mxu0 %v2235
        %v4725 = vpop.f32.mrb[0].mxu0
        %v4726 = vadd.f32 %v4686, %v4725
        %v4727 = vpop.f32.mrb[0].mxu0
        %v4728 = vpop.f32.mrb[0].mxu0
        %v4729 = vpop.f32.mrb[0].mxu0
        %4730 = vdwg.mxu0
        %4731 = vmatprep.subr.bf16.mxu0 %v1895
        %4732 = vmatpush1.bf16.msra.mxu0 %v1894
        %4733 = vmatprep.subr.bf16.mxu0 %v1898
        %4734 = vmatpush1.bf16.msra.mxu0 %v1897
        %4735 = vmatprep.subr.bf16.mxu0 %v1901
        %4736 = vmatpush1.bf16.msra.mxu0 %v1900
        %4737 = vmatprep.subr.bf16.mxu0 %v1904
        %4738 = vmatpush1.bf16.msra.mxu0 %v1903
        %4739 = vmatprep.subr.bf16.mxu0 %v1907
        %4740 = vmatpush1.bf16.msra.mxu0 %v1906
        %4741 = vmatprep.subr.bf16.mxu0 %v1910
        %4742 = vmatpush1.bf16.msra.mxu0 %v1909
        %4743 = vmatprep.subr.bf16.mxu0 %v1913
        %4744 = vmatpush1.bf16.msra.mxu0 %v1912
        %4745 = vmatprep.subr.bf16.mxu0 %v1916
        %4746 = vmatpush1.bf16.msra.mxu0 %v1915
        %4747 = vmatprep.subr.bf16.mxu0 %v1919
        %4748 = vmatpush1.bf16.msra.mxu0 %v1918
        %4749 = vmatprep.subr.bf16.mxu0 %v1922
        %4750 = vmatpush1.bf16.msra.mxu0 %v1921
        %4751 = vmatprep.subr.bf16.mxu0 %v1925
        %4752 = vmatpush1.bf16.msra.mxu0 %v1924
        %4753 = vmatprep.subr.bf16.mxu0 %v1928
        %4754 = vmatpush1.bf16.msra.mxu0 %v1927
        %4755 = vmatprep.subr.bf16.mxu0 %v1931
        %4756 = vmatpush1.bf16.msra.mxu0 %v1930
        %4757 = vmatprep.subr.bf16.mxu0 %v1934
        %4758 = vmatpush1.bf16.msra.mxu0 %v1933
        %4759 = vmatprep.subr.bf16.mxu0 %v1937
        %4760 = vmatpush1.bf16.msra.mxu0 %v1936
        %4761 = vmatprep.subr.bf16.mxu0 %v1940
        %4762 = vmatpush1.bf16.msra.mxu0 %v1939
        %4763 = vmatprep.mubr.bf16.mxu0 %v1033
        %4764 = vmatmul.mubr.bf16.gmra.mrb[0].mxu0 %v1032
        %v4765 = vpop.f32.mrb[0].mxu0
        %v4766 = vadd.f32 %v4645, %v4765
        %v4767 = vpop.f32.mrb[0].mxu0
        %v4768 = vadd.f32 %v4647, %v4767
        %v4769 = vpop.f32.mrb[0].mxu0
        %v4770 = vpop.f32.mrb[0].mxu0
        %4771 = vdwg.mxu0
        %4772 = vmatprep.subr.bf16.mxu0 %v1943
        %4773 = vmatpush1.bf16.msra.mxu0 %v1942
        %4774 = vmatprep.subr.bf16.mxu0 %v1946
        %4775 = vmatpush1.bf16.msra.mxu0 %v1945
        %4776 = vmatprep.subr.bf16.mxu0 %v1949
        %4777 = vmatpush1.bf16.msra.mxu0 %v1948
        %4778 = vmatprep.subr.bf16.mxu0 %v1952
        %4779 = vmatpush1.bf16.msra.mxu0 %v1951
        %4780 = vmatprep.subr.bf16.mxu0 %v1955
        %4781 = vmatpush1.bf16.msra.mxu0 %v1954
        %4782 = vmatprep.subr.bf16.mxu0 %v1958
        %4783 = vmatpush1.bf16.msra.mxu0 %v1957
        %4784 = vmatprep.subr.bf16.mxu0 %v1961
        %4785 = vmatpush1.bf16.msra.mxu0 %v1960
        %4786 = vmatprep.subr.bf16.mxu0 %v1964
        %4787 = vmatpush1.bf16.msra.mxu0 %v1963
        %4788 = vmatprep.subr.bf16.mxu0 %v1967
        %4789 = vmatpush1.bf16.msra.mxu0 %v1966
        %4790 = vmatprep.subr.bf16.mxu0 %v1970
        %4791 = vmatpush1.bf16.msra.mxu0 %v1969
        %4792 = vmatprep.subr.bf16.mxu0 0
        %4793 = vmatpush1.bf16.msra.mxu0 0
        %4794 = vmatprep.subr.bf16.mxu0 0
        %4795 = vmatpush1.bf16.msra.mxu0 0
        %4796 = vmatprep.subr.bf16.mxu0 0
        %4797 = vmatpush1.bf16.msra.mxu0 0
        %4798 = vmatprep.subr.bf16.mxu0 0
        %4799 = vmatpush1.bf16.msra.mxu0 0
        %4800 = vmatprep.subr.bf16.mxu0 0
        %4801 = vmatpush1.bf16.msra.mxu0 0
        %4802 = vmatprep.subr.bf16.mxu0 0
        %4803 = vmatpush1.bf16.msra.mxu0 0
        %4804 = vmatprep.mubr.bf16.mxu0 %v1457
        %4805 = vmatmul.mubr.bf16.gmra.mrb[0].mxu0 %v1034
        %v4806 = vpop.f32.mrb[0].mxu0
        %v4807 = vadd.f32 %v4766, %v4806
        %v4808 = vpop.f32.mrb[0].mxu0
        %v4809 = vadd.f32 %v4768, %v4808
        %v4810 = vpop.f32.mrb[0].mxu0
        %v4811 = vpop.f32.mrb[0].mxu0
        %4812 = vdwg.mxu0
        %4813 = vmatprep.subr.bf16.mxu0 0
        %4814 = vmatpush1.bf16.msra.mxu0 %v1896
        %4815 = vmatprep.subr.bf16.mxu0 0
        %4816 = vmatpush1.bf16.msra.mxu0 %v1899
        %4817 = vmatprep.subr.bf16.mxu0 0
        %4818 = vmatpush1.bf16.msra.mxu0 %v1902
        %4819 = vmatprep.subr.bf16.mxu0 0
        %4820 = vmatpush1.bf16.msra.mxu0 %v1905
        %4821 = vmatprep.subr.bf16.mxu0 0
        %4822 = vmatpush1.bf16.msra.mxu0 %v1908
        %4823 = vmatprep.subr.bf16.mxu0 0
        %4824 = vmatpush1.bf16.msra.mxu0 %v1911
        %4825 = vmatprep.subr.bf16.mxu0 0
        %4826 = vmatpush1.bf16.msra.mxu0 %v1914
        %4827 = vmatprep.subr.bf16.mxu0 0
        %4828 = vmatpush1.bf16.msra.mxu0 %v1917
        %4829 = vmatprep.subr.bf16.mxu0 0
        %4830 = vmatpush1.bf16.msra.mxu0 %v1920
        %4831 = vmatprep.subr.bf16.mxu0 0
        %4832 = vmatpush1.bf16.msra.mxu0 %v1923
        %4833 = vmatprep.subr.bf16.mxu0 0
        %4834 = vmatpush1.bf16.msra.mxu0 %v1926
        %4835 = vmatprep.subr.bf16.mxu0 0
        %4836 = vmatpush1.bf16.msra.mxu0 %v1929
        %4837 = vmatprep.subr.bf16.mxu0 0
        %4838 = vmatpush1.bf16.msra.mxu0 %v1932
        %4839 = vmatprep.subr.bf16.mxu0 0
        %4840 = vmatpush1.bf16.msra.mxu0 %v1935
        %4841 = vmatprep.subr.bf16.mxu0 0
        %4842 = vmatpush1.bf16.msra.mxu0 %v1938
        %4843 = vmatprep.subr.bf16.mxu0 0
        %4844 = vmatpush1.bf16.msra.mxu0 %v1941
        %4845 = vmatprep.mubr.bf16.mxu0 %v1033
        %4846 = vmatmul.mubr.bf16.gmra.mrb[0].mxu0 %v1032
        %v4847 = vpop.f32.mrb[0].mxu0
        %v4848 = vadd.f32 %v4726, %v4847
        %v4849 = vpop.f32.mrb[0].mxu0
        %v4850 = vpop.f32.mrb[0].mxu0
        %v4851 = vpop.f32.mrb[0].mxu0
        %4852 = vdwg.mxu0
        %4853 = vmatprep.subr.bf16.mxu0 0
        %4854 = vmatpush1.bf16.msra.mxu0 %v1944
        %4855 = vmatprep.subr.bf16.mxu0 0
        %4856 = vmatpush1.bf16.msra.mxu0 %v1947
        %4857 = vmatprep.subr.bf16.mxu0 0
        %4858 = vmatpush1.bf16.msra.mxu0 %v1950
        %4859 = vmatprep.subr.bf16.mxu0 0
        %4860 = vmatpush1.bf16.msra.mxu0 %v1953
        %4861 = vmatprep.subr.bf16.mxu0 0
        %4862 = vmatpush1.bf16.msra.mxu0 %v1956
        %4863 = vmatprep.subr.bf16.mxu0 0
        %4864 = vmatpush1.bf16.msra.mxu0 %v1959
        %4865 = vmatprep.subr.bf16.mxu0 0
        %4866 = vmatpush1.bf16.msra.mxu0 %v1962
        %4867 = vmatprep.subr.bf16.mxu0 0
        %4868 = vmatpush1.bf16.msra.mxu0 %v1965
        %4869 = vmatprep.subr.bf16.mxu0 0
        %4870 = vmatpush1.bf16.msra.mxu0 %v1968
        %4871 = vmatprep.subr.bf16.mxu0 0
        %4872 = vmatpush1.bf16.msra.mxu0 %v1971
        %4873 = vmatprep.subr.bf16.mxu0 0
        %4874 = vmatpush1.bf16.msra.mxu0 0
        %4875 = vmatprep.subr.bf16.mxu0 0
        %4876 = vmatpush1.bf16.msra.mxu0 0
        %4877 = vmatprep.subr.bf16.mxu0 0
        %4878 = vmatpush1.bf16.msra.mxu0 0
        %4879 = vmatprep.subr.bf16.mxu0 0
        %4880 = vmatpush1.bf16.msra.mxu0 0
        %4881 = vmatprep.subr.bf16.mxu0 0
        %4882 = vmatpush1.bf16.msra.mxu0 0
        %4883 = vmatprep.subr.bf16.mxu0 0
        %4884 = vmatpush1.bf16.msra.mxu0 0
        %4885 = vmatprep.mubr.bf16.mxu0 %v1457
        %4886 = vmatmul.mubr.bf16.gmra.mrb[0].mxu0 %v1034
        %v4887 = vpop.f32.mrb[0].mxu0
        %v4888 = vadd.f32 %v4848, %v4887
        %v4889 = vpop.f32.mrb[0].mxu0
        %v4890 = vpop.f32.mrb[0].mxu0
        %v4891 = vpop.f32.mrb[0].mxu0
        %4892 = vdwg.mxu0
        %v4894 = vshrl.u32 %v1032, 16
        %v4896 = vshll.u32 %v1032, 16
        %v4898 = vrot.slane %v4896, 1
        %v4899 = vor.u32 %v4894, %v4898
        %v4901 = vshrl.u32 %v1033, 16
        %v4903 = vshll.u32 %v1033, 16
        %v4905 = vrot.slane %v4903, 1
        %v4906 = vor.u32 %v4901, %v4905
        %v4908 = vshrl.u32 %v1034, 16
        %v4910 = vshll.u32 %v1034, 16
        %v4912 = vrot.slane %v4910, 1
        %v4913 = vor.u32 %v4908, %v4912
        %v4914 = vshrl.u32 %v1035, 16
        %v4916 = vshll.u32 %v1035, 16
        %v4918 = vrot.slane %v4916, 1
        %v4919 = vor.u32 %v4914, %v4918
        %v4924 = vsel %vm1455, %v4919, 0
        %4926 = vmatprep.subr.bf16.mxu0 %v2506
        %4927 = vmatpush1.bf16.msra.mxu0 %v2505
        %4928 = vmatprep.subr.bf16.mxu0 %v2509
        %4929 = vmatpush1.bf16.msra.mxu0 %v2508
        %4930 = vmatprep.subr.bf16.mxu0 %v2512
        %4931 = vmatpush1.bf16.msra.mxu0 %v2511
        %4932 = vmatprep.subr.bf16.mxu0 %v2515
        %4933 = vmatpush1.bf16.msra.mxu0 %v2514
        %4934 = vmatprep.subr.bf16.mxu0 %v2518
        %4935 = vmatpush1.bf16.msra.mxu0 %v2517
        %4936 = vmatprep.subr.bf16.mxu0 %v2521
        %4937 = vmatpush1.bf16.msra.mxu0 %v2520
        %4938 = vmatprep.subr.bf16.mxu0 %v2524
        %4939 = vmatpush1.bf16.msra.mxu0 %v2523
        %4940 = vmatprep.subr.bf16.mxu0 %v2527
        %4941 = vmatpush1.bf16.msra.mxu0 %v2526
        %4942 = vmatprep.subr.bf16.mxu0 %v2530
        %4943 = vmatpush1.bf16.msra.mxu0 %v2529
        %4944 = vmatprep.subr.bf16.mxu0 %v2533
        %4945 = vmatpush1.bf16.msra.mxu0 %v2532
        %4946 = vmatprep.subr.bf16.mxu0 %v2536
        %4947 = vmatpush1.bf16.msra.mxu0 %v2535
        %4948 = vmatprep.subr.bf16.mxu0 %v2539
        %4949 = vmatpush1.bf16.msra.mxu0 %v2538
        %4950 = vmatprep.subr.bf16.mxu0 %v2542
        %4951 = vmatpush1.bf16.msra.mxu0 %v2541
        %4952 = vmatprep.subr.bf16.mxu0 %v2545
        %4953 = vmatpush1.bf16.msra.mxu0 %v2544
        %4954 = vmatprep.subr.bf16.mxu0 %v2548
        %4955 = vmatpush1.bf16.msra.mxu0 %v2547
        %4956 = vmatprep.subr.bf16.mxu0 %v2551
        %4957 = vmatpush1.bf16.msra.mxu0 %v2550
        %4958 = vmatprep.mubr.bf16.mxu0 %v4906
        %4959 = vmatmul.mubr.bf16.gmra.mrb[0].mxu0 %v4899
        %v4960 = vpop.f32.mrb[0].mxu0
        %v4961 = vadd.f32 0.0, %v4960
        %v4962 = vpop.f32.mrb[0].mxu0
        %v4963 = vadd.f32 0.0, %v4962
        %v4964 = vpop.f32.mrb[0].mxu0
        %v4965 = vpop.f32.mrb[0].mxu0
        %4966 = vdwg.mxu0
        %4967 = vmatprep.subr.bf16.mxu0 %v2554
        %4968 = vmatpush1.bf16.msra.mxu0 %v2553
        %4969 = vmatprep.subr.bf16.mxu0 %v2557
        %4970 = vmatpush1.bf16.msra.mxu0 %v2556
        %4971 = vmatprep.subr.bf16.mxu0 %v2560
        %4972 = vmatpush1.bf16.msra.mxu0 %v2559
        %4973 = vmatprep.subr.bf16.mxu0 %v2563
        %4974 = vmatpush1.bf16.msra.mxu0 %v2562
        %4975 = vmatprep.subr.bf16.mxu0 %v2566
        %4976 = vmatpush1.bf16.msra.mxu0 %v2565
        %4977 = vmatprep.subr.bf16.mxu0 %v2569
        %4978 = vmatpush1.bf16.msra.mxu0 %v2568
        %4979 = vmatprep.subr.bf16.mxu0 %v2572
        %4980 = vmatpush1.bf16.msra.mxu0 %v2571
        %4981 = vmatprep.subr.bf16.mxu0 %v2575
        %4982 = vmatpush1.bf16.msra.mxu0 %v2574
        %4983 = vmatprep.subr.bf16.mxu0 %v2578
        %4984 = vmatpush1.bf16.msra.mxu0 %v2577
        %4985 = vmatprep.subr.bf16.mxu0 %v2581
        %4986 = vmatpush1.bf16.msra.mxu0 %v2580
        %4987 = vmatprep.subr.bf16.mxu0 0
        %4988 = vmatpush1.bf16.msra.mxu0 0
        %4989 = vmatprep.subr.bf16.mxu0 0
        %4990 = vmatpush1.bf16.msra.mxu0 0
        %4991 = vmatprep.subr.bf16.mxu0 0
        %4992 = vmatpush1.bf16.msra.mxu0 0
        %4993 = vmatprep.subr.bf16.mxu0 0
        %4994 = vmatpush1.bf16.msra.mxu0 0
        %4995 = vmatprep.subr.bf16.mxu0 0
        %4996 = vmatpush1.bf16.msra.mxu0 0
        %4997 = vmatprep.subr.bf16.mxu0 0
        %4998 = vmatpush1.bf16.msra.mxu0 0
        %4999 = vmatprep.mubr.bf16.mxu0 %v4924
        %5000 = vmatmul.mubr.bf16.gmra.mrb[0].mxu0 %v4913
        %v5001 = vpop.f32.mrb[0].mxu0
        %v5002 = vadd.f32 %v4961, %v5001
        %v5003 = vpop.f32.mrb[0].mxu0
        %v5004 = vadd.f32 %v4963, %v5003
        %v5005 = vpop.f32.mrb[0].mxu0
        %v5006 = vpop.f32.mrb[0].mxu0
        %5007 = vdwg.mxu0
        %5008 = vmatprep.subr.bf16.mxu0 0
        %5009 = vmatpush1.bf16.msra.mxu0 %v2507
        %5010 = vmatprep.subr.bf16.mxu0 0
        %5011 = vmatpush1.bf16.msra.mxu0 %v2510
        %5012 = vmatprep.subr.bf16.mxu0 0
        %5013 = vmatpush1.bf16.msra.mxu0 %v2513
        %5014 = vmatprep.subr.bf16.mxu0 0
        %5015 = vmatpush1.bf16.msra.mxu0 %v2516
        %5016 = vmatprep.subr.bf16.mxu0 0
        %5017 = vmatpush1.bf16.msra.mxu0 %v2519
        %5018 = vmatprep.subr.bf16.mxu0 0
        %5019 = vmatpush1.bf16.msra.mxu0 %v2522
        %5020 = vmatprep.subr.bf16.mxu0 0
        %5021 = vmatpush1.bf16.msra.mxu0 %v2525
        %5022 = vmatprep.subr.bf16.mxu0 0
        %5023 = vmatpush1.bf16.msra.mxu0 %v2528
        %5024 = vmatprep.subr.bf16.mxu0 0
        %5025 = vmatpush1.bf16.msra.mxu0 %v2531
        %5026 = vmatprep.subr.bf16.mxu0 0
        %5027 = vmatpush1.bf16.msra.mxu0 %v2534
        %5028 = vmatprep.subr.bf16.mxu0 0
        %5029 = vmatpush1.bf16.msra.mxu0 %v2537
        %5030 = vmatprep.subr.bf16.mxu0 0
        %5031 = vmatpush1.bf16.msra.mxu0 %v2540
        %5032 = vmatprep.subr.bf16.mxu0 0
        %5033 = vmatpush1.bf16.msra.mxu0 %v2543
        %5034 = vmatprep.subr.bf16.mxu0 0
        %5035 = vmatpush1.bf16.msra.mxu0 %v2546
        %5036 = vmatprep.subr.bf16.mxu0 0
        %5037 = vmatpush1.bf16.msra.mxu0 %v2549
        %5038 = vmatprep.subr.bf16.mxu0 0
        %5039 = vmatpush1.bf16.msra.mxu0 %v2552
        %5040 = vmatprep.mubr.bf16.mxu0 %v4906
        %5041 = vmatmul.mubr.bf16.gmra.mrb[0].mxu0 %v4899
        %v5042 = vpop.f32.mrb[0].mxu0
        %v5043 = vadd.f32 0.0, %v5042
        %v5044 = vpop.f32.mrb[0].mxu0
        %v5045 = vpop.f32.mrb[0].mxu0
        %v5046 = vpop.f32.mrb[0].mxu0
        %5047 = vdwg.mxu0
        %5048 = vmatprep.subr.bf16.mxu0 0
        %5049 = vmatpush1.bf16.msra.mxu0 %v2555
        %5050 = vmatprep.subr.bf16.mxu0 0
        %5051 = vmatpush1.bf16.msra.mxu0 %v2558
        %5052 = vmatprep.subr.bf16.mxu0 0
        %5053 = vmatpush1.bf16.msra.mxu0 %v2561
        %5054 = vmatprep.subr.bf16.mxu0 0
        %5055 = vmatpush1.bf16.msra.mxu0 %v2564
        %5056 = vmatprep.subr.bf16.mxu0 0
        %5057 = vmatpush1.bf16.msra.mxu0 %v2567
        %5058 = vmatprep.subr.bf16.mxu0 0
        %5059 = vmatpush1.bf16.msra.mxu0 %v2570
        %5060 = vmatprep.subr.bf16.mxu0 0
        %5061 = vmatpush1.bf16.msra.mxu0 %v2573
        %5062 = vmatprep.subr.bf16.mxu0 0
        %5063 = vmatpush1.bf16.msra.mxu0 %v2576
        %5064 = vmatprep.subr.bf16.mxu0 0
        %5065 = vmatpush1.bf16.msra.mxu0 %v2579
        %5066 = vmatprep.subr.bf16.mxu0 0
        %5067 = vmatpush1.bf16.msra.mxu0 %v2582
        %5068 = vmatprep.subr.bf16.mxu0 0
        %5069 = vmatpush1.bf16.msra.mxu0 0
        %5070 = vmatprep.subr.bf16.mxu0 0
        %5071 = vmatpush1.bf16.msra.mxu0 0
        %5072 = vmatprep.subr.bf16.mxu0 0
        %5073 = vmatpush1.bf16.msra.mxu0 0
        %5074 = vmatprep.subr.bf16.mxu0 0
        %5075 = vmatpush1.bf16.msra.mxu0 0
        %5076 = vmatprep.subr.bf16.mxu0 0
        %5077 = vmatpush1.bf16.msra.mxu0 0
        %5078 = vmatprep.subr.bf16.mxu0 0
        %5079 = vmatpush1.bf16.msra.mxu0 0
        %5080 = vmatprep.mubr.bf16.mxu0 %v4924
        %5081 = vmatmul.mubr.bf16.gmra.mrb[0].mxu0 %v4913
        %v5082 = vpop.f32.mrb[0].mxu0
        %v5083 = vadd.f32 %v5043, %v5082
        %v5084 = vpop.f32.mrb[0].mxu0
        %v5085 = vpop.f32.mrb[0].mxu0
        %v5086 = vpop.f32.mrb[0].mxu0
        %5087 = vdwg.mxu0
        %v5088 = vadd.f32 %v4807, %v5002
        %v5089 = vadd.f32 %v4809, %v5004
        %v5090 = vadd.f32 %v4888, %v5083
        %v5091 = vmax.f32 %v4566, %v5088
        %v5092 = vmax.f32 %v4567, %v5089
        %v5093 = vmax.f32 %v4568, %v5090
        %5094 = vmatprep.subr.bf16.mxu0 %v3090
        %5095 = vmatpush1.bf16.msra.mxu0 %v3089
        %5096 = vmatprep.subr.bf16.mxu0 %v3093
        %5097 = vmatpush1.bf16.msra.mxu0 %v3092
        %5098 = vmatprep.subr.bf16.mxu0 %v3096
        %5099 = vmatpush1.bf16.msra.mxu0 %v3095
        %5100 = vmatprep.subr.bf16.mxu0 %v3099
        %5101 = vmatpush1.bf16.msra.mxu0 %v3098
        %5102 = vmatprep.subr.bf16.mxu0 %v3102
        %5103 = vmatpush1.bf16.msra.mxu0 %v3101
        %5104 = vmatprep.subr.bf16.mxu0 %v3105
        %5105 = vmatpush1.bf16.msra.mxu0 %v3104
        %5106 = vmatprep.subr.bf16.mxu0 %v3108
        %5107 = vmatpush1.bf16.msra.mxu0 %v3107
        %5108 = vmatprep.subr.bf16.mxu0 %v3111
        %5109 = vmatpush1.bf16.msra.mxu0 %v3110
        %5110 = vmatprep.subr.bf16.mxu0 %v3114
        %5111 = vmatpush1.bf16.msra.mxu0 %v3113
        %5112 = vmatprep.subr.bf16.mxu0 %v3117
        %5113 = vmatpush1.bf16.msra.mxu0 %v3116
        %5114 = vmatprep.subr.bf16.mxu0 %v3120
        %5115 = vmatpush1.bf16.msra.mxu0 %v3119
        %5116 = vmatprep.subr.bf16.mxu0 %v3123
        %5117 = vmatpush1.bf16.msra.mxu0 %v3122
        %5118 = vmatprep.subr.bf16.mxu0 %v3126
        %5119 = vmatpush1.bf16.msra.mxu0 %v3125
        %5120 = vmatprep.subr.bf16.mxu0 %v3129
        %5121 = vmatpush1.bf16.msra.mxu0 %v3128
        %5122 = vmatprep.subr.bf16.mxu0 %v3132
        %5123 = vmatpush1.bf16.msra.mxu0 %v3131
        %5124 = vmatprep.subr.bf16.mxu0 %v3135
        %5125 = vmatpush1.bf16.msra.mxu0 %v3134
        %5126 = vmatprep.mubr.bf16.mxu0 %v2228
        %5127 = vmatmul.mubr.bf16.gmra.mrb[0].mxu0 %v2221
        %v5128 = vpop.f32.mrb[0].mxu0
        %v5129 = vadd.f32 0.0, %v5128
        %v5130 = vpop.f32.mrb[0].mxu0
        %v5131 = vadd.f32 0.0, %v5130
        %v5132 = vpop.f32.mrb[0].mxu0
        %v5133 = vpop.f32.mrb[0].mxu0
        %5134 = vdwg.mxu0
        %5135 = vmatprep.subr.bf16.mxu0 %v3138
        %5136 = vmatpush1.bf16.msra.mxu0 %v3137
        %5137 = vmatprep.subr.bf16.mxu0 %v3141
        %5138 = vmatpush1.bf16.msra.mxu0 %v3140
        %5139 = vmatprep.subr.bf16.mxu0 %v3144
        %5140 = vmatpush1.bf16.msra.mxu0 %v3143
        %5141 = vmatprep.subr.bf16.mxu0 %v3147
        %5142 = vmatpush1.bf16.msra.mxu0 %v3146
        %5143 = vmatprep.subr.bf16.mxu0 %v3150
        %5144 = vmatpush1.bf16.msra.mxu0 %v3149
        %5145 = vmatprep.subr.bf16.mxu0 %v3153
        %5146 = vmatpush1.bf16.msra.mxu0 %v3152
        %5147 = vmatprep.subr.bf16.mxu0 %v3156
        %5148 = vmatpush1.bf16.msra.mxu0 %v3155
        %5149 = vmatprep.subr.bf16.mxu0 %v3159
        %5150 = vmatpush1.bf16.msra.mxu0 %v3158
        %5151 = vmatprep.subr.bf16.mxu0 %v3162
        %5152 = vmatpush1.bf16.msra.mxu0 %v3161
        %5153 = vmatprep.subr.bf16.mxu0 %v3165
        %5154 = vmatpush1.bf16.msra.mxu0 %v3164
        %5155 = vmatprep.subr.bf16.mxu0 0
        %5156 = vmatpush1.bf16.msra.mxu0 0
        %5157 = vmatprep.subr.bf16.mxu0 0
        %5158 = vmatpush1.bf16.msra.mxu0 0
        %5159 = vmatprep.subr.bf16.mxu0 0
        %5160 = vmatpush1.bf16.msra.mxu0 0
        %5161 = vmatprep.subr.bf16.mxu0 0
        %5162 = vmatpush1.bf16.msra.mxu0 0
        %5163 = vmatprep.subr.bf16.mxu0 0
        %5164 = vmatpush1.bf16.msra.mxu0 0
        %5165 = vmatprep.subr.bf16.mxu0 0
        %5166 = vmatpush1.bf16.msra.mxu0 0
        %5167 = vmatprep.mubr.bf16.mxu0 %v2662
        %5168 = vmatmul.mubr.bf16.gmra.mrb[0].mxu0 %v2235
        %v5169 = vpop.f32.mrb[0].mxu0
        %v5170 = vadd.f32 %v5129, %v5169
        %v5171 = vpop.f32.mrb[0].mxu0
        %v5172 = vadd.f32 %v5131, %v5171
        %v5173 = vpop.f32.mrb[0].mxu0
        %v5174 = vpop.f32.mrb[0].mxu0
        %5175 = vdwg.mxu0
        %5176 = vmatprep.subr.bf16.mxu0 0
        %5177 = vmatpush1.bf16.msra.mxu0 %v3091
        %5178 = vmatprep.subr.bf16.mxu0 0
        %5179 = vmatpush1.bf16.msra.mxu0 %v3094
        %5180 = vmatprep.subr.bf16.mxu0 0
        %5181 = vmatpush1.bf16.msra.mxu0 %v3097
        %5182 = vmatprep.subr.bf16.mxu0 0
        %5183 = vmatpush1.bf16.msra.mxu0 %v3100
        %5184 = vmatprep.subr.bf16.mxu0 0
        %5185 = vmatpush1.bf16.msra.mxu0 %v3103
        %5186 = vmatprep.subr.bf16.mxu0 0
        %5187 = vmatpush1.bf16.msra.mxu0 %v3106
        %5188 = vmatprep.subr.bf16.mxu0 0
        %5189 = vmatpush1.bf16.msra.mxu0 %v3109
        %5190 = vmatprep.subr.bf16.mxu0 0
        %5191 = vmatpush1.bf16.msra.mxu0 %v3112
        %5192 = vmatprep.subr.bf16.mxu0 0
        %5193 = vmatpush1.bf16.msra.mxu0 %v3115
        %5194 = vmatprep.subr.bf16.mxu0 0
        %5195 = vmatpush1.bf16.msra.mxu0 %v3118
        %5196 = vmatprep.subr.bf16.mxu0 0
        %5197 = vmatpush1.bf16.msra.mxu0 %v3121
        %5198 = vmatprep.subr.bf16.mxu0 0
        %5199 = vmatpush1.bf16.msra.mxu0 %v3124
        %5200 = vmatprep.subr.bf16.mxu0 0
        %5201 = vmatpush1.bf16.msra.mxu0 %v3127
        %5202 = vmatprep.subr.bf16.mxu0 0
        %5203 = vmatpush1.bf16.msra.mxu0 %v3130
        %5204 = vmatprep.subr.bf16.mxu0 0
        %5205 = vmatpush1.bf16.msra.mxu0 %v3133
        %5206 = vmatprep.subr.bf16.mxu0 0
        %5207 = vmatpush1.bf16.msra.mxu0 %v3136
        %5208 = vmatprep.mubr.bf16.mxu0 %v2228
        %5209 = vmatmul.mubr.bf16.gmra.mrb[0].mxu0 %v2221
        %v5210 = vpop.f32.mrb[0].mxu0
        %v5211 = vadd.f32 0.0, %v5210
        %v5212 = vpop.f32.mrb[0].mxu0
        %v5213 = vpop.f32.mrb[0].mxu0
        %v5214 = vpop.f32.mrb[0].mxu0
        %5215 = vdwg.mxu0
        %5216 = vmatprep.subr.bf16.mxu0 0
        %5217 = vmatpush1.bf16.msra.mxu0 %v3139
        %5218 = vmatprep.subr.bf16.mxu0 0
        %5219 = vmatpush1.bf16.msra.mxu0 %v3142
        %5220 = vmatprep.subr.bf16.mxu0 0
        %5221 = vmatpush1.bf16.msra.mxu0 %v3145
        %5222 = vmatprep.subr.bf16.mxu0 0
        %5223 = vmatpush1.bf16.msra.mxu0 %v3148
        %5224 = vmatprep.subr.bf16.mxu0 0
        %5225 = vmatpush1.bf16.msra.mxu0 %v3151
        %5226 = vmatprep.subr.bf16.mxu0 0
        %5227 = vmatpush1.bf16.msra.mxu0 %v3154
        %5228 = vmatprep.subr.bf16.mxu0 0
        %5229 = vmatpush1.bf16.msra.mxu0 %v3157
        %5230 = vmatprep.subr.bf16.mxu0 0
        %5231 = vmatpush1.bf16.msra.mxu0 %v3160
        %5232 = vmatprep.subr.bf16.mxu0 0
        %5233 = vmatpush1.bf16.msra.mxu0 %v3163
        %5234 = vmatprep.subr.bf16.mxu0 0
        %5235 = vmatpush1.bf16.msra.mxu0 %v3166
        %5236 = vmatprep.subr.bf16.mxu0 0
        %5237 = vmatpush1.bf16.msra.mxu0 0
        %5238 = vmatprep.subr.bf16.mxu0 0
        %5239 = vmatpush1.bf16.msra.mxu0 0
        %5240 = vmatprep.subr.bf16.mxu0 0
        %5241 = vmatpush1.bf16.msra.mxu0 0
        %5242 = vmatprep.subr.bf16.mxu0 0
        %5243 = vmatpush1.bf16.msra.mxu0 0
        %5244 = vmatprep.subr.bf16.mxu0 0
        %5245 = vmatpush1.bf16.msra.mxu0 0
        %5246 = vmatprep.subr.bf16.mxu0 0
        %5247 = vmatpush1.bf16.msra.mxu0 0
        %5248 = vmatprep.mubr.bf16.mxu0 %v2662
        %5249 = vmatmul.mubr.bf16.gmra.mrb[0].mxu0 %v2235
        %v5250 = vpop.f32.mrb[0].mxu0
        %v5251 = vadd.f32 %v5211, %v5250
        %v5252 = vpop.f32.mrb[0].mxu0
        %v5253 = vpop.f32.mrb[0].mxu0
        %v5254 = vpop.f32.mrb[0].mxu0
        %5255 = vdwg.mxu0
        %5256 = vmatprep.subr.bf16.mxu0 %v3668
        %5257 = vmatpush1.bf16.msra.mxu0 %v3667
        %5258 = vmatprep.subr.bf16.mxu0 %v3671
        %5259 = vmatpush1.bf16.msra.mxu0 %v3670
        %5260 = vmatprep.subr.bf16.mxu0 %v3674
        %5261 = vmatpush1.bf16.msra.mxu0 %v3673
        %5262 = vmatprep.subr.bf16.mxu0 %v3677
        %5263 = vmatpush1.bf16.msra.mxu0 %v3676
        %5264 = vmatprep.subr.bf16.mxu0 %v3680
        %5265 = vmatpush1.bf16.msra.mxu0 %v3679
        %5266 = vmatprep.subr.bf16.mxu0 %v3683
        %5267 = vmatpush1.bf16.msra.mxu0 %v3682
        %5268 = vmatprep.subr.bf16.mxu0 %v3686
        %5269 = vmatpush1.bf16.msra.mxu0 %v3685
        %5270 = vmatprep.subr.bf16.mxu0 %v3689
        %5271 = vmatpush1.bf16.msra.mxu0 %v3688
        %5272 = vmatprep.subr.bf16.mxu0 %v3692
        %5273 = vmatpush1.bf16.msra.mxu0 %v3691
        %5274 = vmatprep.subr.bf16.mxu0 %v3695
        %5275 = vmatpush1.bf16.msra.mxu0 %v3694
        %5276 = vmatprep.subr.bf16.mxu0 %v3698
        %5277 = vmatpush1.bf16.msra.mxu0 %v3697
        %5278 = vmatprep.subr.bf16.mxu0 %v3701
        %5279 = vmatpush1.bf16.msra.mxu0 %v3700
        %5280 = vmatprep.subr.bf16.mxu0 %v3704
        %5281 = vmatpush1.bf16.msra.mxu0 %v3703
        %5282 = vmatprep.subr.bf16.mxu0 %v3707
        %5283 = vmatpush1.bf16.msra.mxu0 %v3706
        %5284 = vmatprep.subr.bf16.mxu0 %v3710
        %5285 = vmatpush1.bf16.msra.mxu0 %v3709
        %5286 = vmatprep.subr.bf16.mxu0 %v3713
        %5287 = vmatpush1.bf16.msra.mxu0 %v3712
        %5288 = vmatprep.mubr.bf16.mxu0 %v1033
        %5289 = vmatmul.mubr.bf16.gmra.mrb[0].mxu0 %v1032
        %v5290 = vpop.f32.mrb[0].mxu0
        %v5291 = vadd.f32 %v5170, %v5290
        %v5292 = vpop.f32.mrb[0].mxu0
        %v5293 = vadd.f32 %v5172, %v5292
        %v5294 = vpop.f32.mrb[0].mxu0
        %v5295 = vpop.f32.mrb[0].mxu0
        %5296 = vdwg.mxu0
        %5297 = vmatprep.subr.bf16.mxu0 %v3716
        %5298 = vmatpush1.bf16.msra.mxu0 %v3715
        %5299 = vmatprep.subr.bf16.mxu0 %v3719
        %5300 = vmatpush1.bf16.msra.mxu0 %v3718
        %5301 = vmatprep.subr.bf16.mxu0 %v3722
        %5302 = vmatpush1.bf16.msra.mxu0 %v3721
        %5303 = vmatprep.subr.bf16.mxu0 %v3725
        %5304 = vmatpush1.bf16.msra.mxu0 %v3724
        %5305 = vmatprep.subr.bf16.mxu0 %v3728
        %5306 = vmatpush1.bf16.msra.mxu0 %v3727
        %5307 = vmatprep.subr.bf16.mxu0 %v3731
        %5308 = vmatpush1.bf16.msra.mxu0 %v3730
        %5309 = vmatprep.subr.bf16.mxu0 %v3734
        %5310 = vmatpush1.bf16.msra.mxu0 %v3733
        %5311 = vmatprep.subr.bf16.mxu0 %v3737
        %5312 = vmatpush1.bf16.msra.mxu0 %v3736
        %5313 = vmatprep.subr.bf16.mxu0 %v3740
        %5314 = vmatpush1.bf16.msra.mxu0 %v3739
        %5315 = vmatprep.subr.bf16.mxu0 %v3743
        %5316 = vmatpush1.bf16.msra.mxu0 %v3742
        %5317 = vmatprep.subr.bf16.mxu0 0
        %5318 = vmatpush1.bf16.msra.mxu0 0
        %5319 = vmatprep.subr.bf16.mxu0 0
        %5320 = vmatpush1.bf16.msra.mxu0 0
        %5321 = vmatprep.subr.bf16.mxu0 0
        %5322 = vmatpush1.bf16.msra.mxu0 0
        %5323 = vmatprep.subr.bf16.mxu0 0
        %5324 = vmatpush1.bf16.msra.mxu0 0
        %5325 = vmatprep.subr.bf16.mxu0 0
        %5326 = vmatpush1.bf16.msra.mxu0 0
        %5327 = vmatprep.subr.bf16.mxu0 0
        %5328 = vmatpush1.bf16.msra.mxu0 0
        %5329 = vmatprep.mubr.bf16.mxu0 %v1457
        %5330 = vmatmul.mubr.bf16.gmra.mrb[0].mxu0 %v1034
        %v5331 = vpop.f32.mrb[0].mxu0
        %v5332 = vadd.f32 %v5291, %v5331
        %v5333 = vpop.f32.mrb[0].mxu0
        %v5334 = vadd.f32 %v5293, %v5333
        %v5335 = vpop.f32.mrb[0].mxu0
        %v5336 = vpop.f32.mrb[0].mxu0
        %5337 = vdwg.mxu0
        %5338 = vmatprep.subr.bf16.mxu0 0
        %5339 = vmatpush1.bf16.msra.mxu0 %v3669
        %5340 = vmatprep.subr.bf16.mxu0 0
        %5341 = vmatpush1.bf16.msra.mxu0 %v3672
        %5342 = vmatprep.subr.bf16.mxu0 0
        %5343 = vmatpush1.bf16.msra.mxu0 %v3675
        %5344 = vmatprep.subr.bf16.mxu0 0
        %5345 = vmatpush1.bf16.msra.mxu0 %v3678
        %5346 = vmatprep.subr.bf16.mxu0 0
        %5347 = vmatpush1.bf16.msra.mxu0 %v3681
        %5348 = vmatprep.subr.bf16.mxu0 0
        %5349 = vmatpush1.bf16.msra.mxu0 %v3684
        %5350 = vmatprep.subr.bf16.mxu0 0
        %5351 = vmatpush1.bf16.msra.mxu0 %v3687
        %5352 = vmatprep.subr.bf16.mxu0 0
        %5353 = vmatpush1.bf16.msra.mxu0 %v3690
        %5354 = vmatprep.subr.bf16.mxu0 0
        %5355 = vmatpush1.bf16.msra.mxu0 %v3693
        %5356 = vmatprep.subr.bf16.mxu0 0
        %5357 = vmatpush1.bf16.msra.mxu0 %v3696
        %5358 = vmatprep.subr.bf16.mxu0 0
        %5359 = vmatpush1.bf16.msra.mxu0 %v3699
        %5360 = vmatprep.subr.bf16.mxu0 0
        %5361 = vmatpush1.bf16.msra.mxu0 %v3702
        %5362 = vmatprep.subr.bf16.mxu0 0
        %5363 = vmatpush1.bf16.msra.mxu0 %v3705
        %5364 = vmatprep.subr.bf16.mxu0 0
        %5365 = vmatpush1.bf16.msra.mxu0 %v3708
        %5366 = vmatprep.subr.bf16.mxu0 0
        %5367 = vmatpush1.bf16.msra.mxu0 %v3711
        %5368 = vmatprep.subr.bf16.mxu0 0
        %5369 = vmatpush1.bf16.msra.mxu0 %v3714
        %5370 = vmatprep.mubr.bf16.mxu0 %v1033
        %5371 = vmatmul.mubr.bf16.gmra.mrb[0].mxu0 %v1032
        %v5372 = vpop.f32.mrb[0].mxu0
        %v5373 = vadd.f32 %v5251, %v5372
        %v5374 = vpop.f32.mrb[0].mxu0
        %v5375 = vpop.f32.mrb[0].mxu0
        %v5376 = vpop.f32.mrb[0].mxu0
        %5377 = vdwg.mxu0
        %5378 = vmatprep.subr.bf16.mxu0 0
        %5379 = vmatpush1.bf16.msra.mxu0 %v3717
        %5380 = vmatprep.subr.bf16.mxu0 0
        %5381 = vmatpush1.bf16.msra.mxu0 %v3720
        %5382 = vmatprep.subr.bf16.mxu0 0
        %5383 = vmatpush1.bf16.msra.mxu0 %v3723
        %5384 = vmatprep.subr.bf16.mxu0 0
        %5385 = vmatpush1.bf16.msra.mxu0 %v3726
        %5386 = vmatprep.subr.bf16.mxu0 0
        %5387 = vmatpush1.bf16.msra.mxu0 %v3729
        %5388 = vmatprep.subr.bf16.mxu0 0
        %5389 = vmatpush1.bf16.msra.mxu0 %v3732
        %5390 = vmatprep.subr.bf16.mxu0 0
        %5391 = vmatpush1.bf16.msra.mxu0 %v3735
        %5392 = vmatprep.subr.bf16.mxu0 0
        %5393 = vmatpush1.bf16.msra.mxu0 %v3738
        %5394 = vmatprep.subr.bf16.mxu0 0
        %5395 = vmatpush1.bf16.msra.mxu0 %v3741
        %5396 = vmatprep.subr.bf16.mxu0 0
        %5397 = vmatpush1.bf16.msra.mxu0 %v3744
        %5398 = vmatprep.subr.bf16.mxu0 0
        %5399 = vmatpush1.bf16.msra.mxu0 0
        %5400 = vmatprep.subr.bf16.mxu0 0
        %5401 = vmatpush1.bf16.msra.mxu0 0
        %5402 = vmatprep.subr.bf16.mxu0 0
        %5403 = vmatpush1.bf16.msra.mxu0 0
        %5404 = vmatprep.subr.bf16.mxu0 0
        %5405 = vmatpush1.bf16.msra.mxu0 0
        %5406 = vmatprep.subr.bf16.mxu0 0
        %5407 = vmatpush1.bf16.msra.mxu0 0
        %5408 = vmatprep.subr.bf16.mxu0 0
        %5409 = vmatpush1.bf16.msra.mxu0 0
        %5410 = vmatprep.mubr.bf16.mxu0 %v1457
        %5411 = vmatmul.mubr.bf16.gmra.mrb[0].mxu0 %v1034
        %v5412 = vpop.f32.mrb[0].mxu0
        %v5413 = vadd.f32 %v5373, %v5412
        %v5414 = vpop.f32.mrb[0].mxu0
        %v5415 = vpop.f32.mrb[0].mxu0
        %v5416 = vpop.f32.mrb[0].mxu0
        %5417 = vdwg.mxu0
        %5418 = vmatprep.subr.bf16.mxu0 %v4246
        %5419 = vmatpush1.bf16.msra.mxu0 %v4245
        %5420 = vmatprep.subr.bf16.mxu0 %v4249
        %5421 = vmatpush1.bf16.msra.mxu0 %v4248
        %5422 = vmatprep.subr.bf16.mxu0 %v4252
        %5423 = vmatpush1.bf16.msra.mxu0 %v4251
        %5424 = vmatprep.subr.bf16.mxu0 %v4255
        %5425 = vmatpush1.bf16.msra.mxu0 %v4254
        %5426 = vmatprep.subr.bf16.mxu0 %v4258
        %5427 = vmatpush1.bf16.msra.mxu0 %v4257
        %5428 = vmatprep.subr.bf16.mxu0 %v4261
        %5429 = vmatpush1.bf16.msra.mxu0 %v4260
        %5430 = vmatprep.subr.bf16.mxu0 %v4264
        %5431 = vmatpush1.bf16.msra.mxu0 %v4263
        %5432 = vmatprep.subr.bf16.mxu0 %v4267
        %5433 = vmatpush1.bf16.msra.mxu0 %v4266
        %5434 = vmatprep.subr.bf16.mxu0 %v4270
        %5435 = vmatpush1.bf16.msra.mxu0 %v4269
        %5436 = vmatprep.subr.bf16.mxu0 %v4273
        %5437 = vmatpush1.bf16.msra.mxu0 %v4272
        %5438 = vmatprep.subr.bf16.mxu0 %v4276
        %5439 = vmatpush1.bf16.msra.mxu0 %v4275
        %5440 = vmatprep.subr.bf16.mxu0 %v4279
        %5441 = vmatpush1.bf16.msra.mxu0 %v4278
        %5442 = vmatprep.subr.bf16.mxu0 %v4282
        %5443 = vmatpush1.bf16.msra.mxu0 %v4281
        %5444 = vmatprep.subr.bf16.mxu0 %v4285
        %5445 = vmatpush1.bf16.msra.mxu0 %v4284
        %5446 = vmatprep.subr.bf16.mxu0 %v4288
        %5447 = vmatpush1.bf16.msra.mxu0 %v4287
        %5448 = vmatprep.subr.bf16.mxu0 %v4291
        %5449 = vmatpush1.bf16.msra.mxu0 %v4290
        %5450 = vmatprep.mubr.bf16.mxu0 %v4906
        %5451 = vmatmul.mubr.bf16.gmra.mrb[0].mxu0 %v4899
        %v5452 = vpop.f32.mrb[0].mxu0
        %v5453 = vadd.f32 0.0, %v5452
        %v5454 = vpop.f32.mrb[0].mxu0
        %v5455 = vadd.f32 0.0, %v5454
        %v5456 = vpop.f32.mrb[0].mxu0
        %v5457 = vpop.f32.mrb[0].mxu0
        %5458 = vdwg.mxu0
        %5459 = vmatprep.subr.bf16.mxu0 %v4294
        %5460 = vmatpush1.bf16.msra.mxu0 %v4293
        %5461 = vmatprep.subr.bf16.mxu0 %v4297
        %5462 = vmatpush1.bf16.msra.mxu0 %v4296
        %5463 = vmatprep.subr.bf16.mxu0 %v4300
        %5464 = vmatpush1.bf16.msra.mxu0 %v4299
        %5465 = vmatprep.subr.bf16.mxu0 %v4303
        %5466 = vmatpush1.bf16.msra.mxu0 %v4302
        %5467 = vmatprep.subr.bf16.mxu0 %v4306
        %5468 = vmatpush1.bf16.msra.mxu0 %v4305
        %5469 = vmatprep.subr.bf16.mxu0 %v4309
        %5470 = vmatpush1.bf16.msra.mxu0 %v4308
        %5471 = vmatprep.subr.bf16.mxu0 %v4312
        %5472 = vmatpush1.bf16.msra.mxu0 %v4311
        %5473 = vmatprep.subr.bf16.mxu0 %v4315
        %5474 = vmatpush1.bf16.msra.mxu0 %v4314
        %5475 = vmatprep.subr.bf16.mxu0 %v4318
        %5476 = vmatpush1.bf16.msra.mxu0 %v4317
        %5477 = vmatprep.subr.bf16.mxu0 %v4321
        %5478 = vmatpush1.bf16.msra.mxu0 %v4320
        %5479 = vmatprep.subr.bf16.mxu0 0
        %5480 = vmatpush1.bf16.msra.mxu0 0
        %5481 = vmatprep.subr.bf16.mxu0 0
        %5482 = vmatpush1.bf16.msra.mxu0 0
        %5483 = vmatprep.subr.bf16.mxu0 0
        %5484 = vmatpush1.bf16.msra.mxu0 0
        %5485 = vmatprep.subr.bf16.mxu0 0
        %5486 = vmatpush1.bf16.msra.mxu0 0
        %5487 = vmatprep.subr.bf16.mxu0 0
        %5488 = vmatpush1.bf16.msra.mxu0 0
        %5489 = vmatprep.subr.bf16.mxu0 0
        %5490 = vmatpush1.bf16.msra.mxu0 0
        %5491 = vmatprep.mubr.bf16.mxu0 %v4924
        %5492 = vmatmul.mubr.bf16.gmra.mrb[0].mxu0 %v4913
        %v5493 = vpop.f32.mrb[0].mxu0
        %v5494 = vadd.f32 %v5453, %v5493
        %v5495 = vpop.f32.mrb[0].mxu0
        %v5496 = vadd.f32 %v5455, %v5495
        %v5497 = vpop.f32.mrb[0].mxu0
        %v5498 = vpop.f32.mrb[0].mxu0
        %5499 = vdwg.mxu0
        %5500 = vmatprep.subr.bf16.mxu0 0
        %5501 = vmatpush1.bf16.msra.mxu0 %v4247
        %5502 = vmatprep.subr.bf16.mxu0 0
        %5503 = vmatpush1.bf16.msra.mxu0 %v4250
        %5504 = vmatprep.subr.bf16.mxu0 0
        %5505 = vmatpush1.bf16.msra.mxu0 %v4253
        %5506 = vmatprep.subr.bf16.mxu0 0
        %5507 = vmatpush1.bf16.msra.mxu0 %v4256
        %5508 = vmatprep.subr.bf16.mxu0 0
        %5509 = vmatpush1.bf16.msra.mxu0 %v4259
        %5510 = vmatprep.subr.bf16.mxu0 0
        %5511 = vmatpush1.bf16.msra.mxu0 %v4262
        %5512 = vmatprep.subr.bf16.mxu0 0
        %5513 = vmatpush1.bf16.msra.mxu0 %v4265
        %5514 = vmatprep.subr.bf16.mxu0 0
        %5515 = vmatpush1.bf16.msra.mxu0 %v4268
        %5516 = vmatprep.subr.bf16.mxu0 0
        %5517 = vmatpush1.bf16.msra.mxu0 %v4271
        %5518 = vmatprep.subr.bf16.mxu0 0
        %5519 = vmatpush1.bf16.msra.mxu0 %v4274
        %5520 = vmatprep.subr.bf16.mxu0 0
        %5521 = vmatpush1.bf16.msra.mxu0 %v4277
        %5522 = vmatprep.subr.bf16.mxu0 0
        %5523 = vmatpush1.bf16.msra.mxu0 %v4280
        %5524 = vmatprep.subr.bf16.mxu0 0
        %5525 = vmatpush1.bf16.msra.mxu0 %v4283
        %5526 = vmatprep.subr.bf16.mxu0 0
        %5527 = vmatpush1.bf16.msra.mxu0 %v4286
        %5528 = vmatprep.subr.bf16.mxu0 0
        %5529 = vmatpush1.bf16.msra.mxu0 %v4289
        %5530 = vmatprep.subr.bf16.mxu0 0
        %5531 = vmatpush1.bf16.msra.mxu0 %v4292
        %5532 = vmatprep.mubr.bf16.mxu0 %v4906
        %5533 = vmatmul.mubr.bf16.gmra.mrb[0].mxu0 %v4899
        %v5534 = vpop.f32.mrb[0].mxu0
        %v5535 = vadd.f32 0.0, %v5534
        %v5536 = vpop.f32.mrb[0].mxu0
        %v5537 = vpop.f32.mrb[0].mxu0
        %v5538 = vpop.f32.mrb[0].mxu0
        %5539 = vdwg.mxu0
        %5540 = vmatprep.subr.bf16.mxu0 0
        %5541 = vmatpush1.bf16.msra.mxu0 %v4295
        %5542 = vmatprep.subr.bf16.mxu0 0
        %5543 = vmatpush1.bf16.msra.mxu0 %v4298
        %5544 = vmatprep.subr.bf16.mxu0 0
        %5545 = vmatpush1.bf16.msra.mxu0 %v4301
        %5546 = vmatprep.subr.bf16.mxu0 0
        %5547 = vmatpush1.bf16.msra.mxu0 %v4304
        %5548 = vmatprep.subr.bf16.mxu0 0
        %5549 = vmatpush1.bf16.msra.mxu0 %v4307
        %5550 = vmatprep.subr.bf16.mxu0 0
        %5551 = vmatpush1.bf16.msra.mxu0 %v4310
        %5552 = vmatprep.subr.bf16.mxu0 0
        %5553 = vmatpush1.bf16.msra.mxu0 %v4313
        %5554 = vmatprep.subr.bf16.mxu0 0
        %5555 = vmatpush1.bf16.msra.mxu0 %v4316
        %5556 = vmatprep.subr.bf16.mxu0 0
        %5557 = vmatpush1.bf16.msra.mxu0 %v4319
        %5558 = vmatprep.subr.bf16.mxu0 0
        %5559 = vmatpush1.bf16.msra.mxu0 %v4322
        %5560 = vmatprep.subr.bf16.mxu0 0
        %5561 = vmatpush1.bf16.msra.mxu0 0
        %5562 = vmatprep.subr.bf16.mxu0 0
        %5563 = vmatpush1.bf16.msra.mxu0 0
        %5564 = vmatprep.subr.bf16.mxu0 0
        %5565 = vmatpush1.bf16.msra.mxu0 0
        %5566 = vmatprep.subr.bf16.mxu0 0
        %5567 = vmatpush1.bf16.msra.mxu0 0
        %5568 = vmatprep.subr.bf16.mxu0 0
        %5569 = vmatpush1.bf16.msra.mxu0 0
        %5570 = vmatprep.subr.bf16.mxu0 0
        %5571 = vmatpush1.bf16.msra.mxu0 0
        %5572 = vmatprep.mubr.bf16.mxu0 %v4924
        %5573 = vmatmul.mubr.bf16.gmra.mrb[0].mxu0 %v4913
        %v5574 = vpop.f32.mrb[0].mxu0
        %v5575 = vadd.f32 %v5535, %v5574
        %v5576 = vpop.f32.mrb[0].mxu0
        %v5577 = vpop.f32.mrb[0].mxu0
        %v5578 = vpop.f32.mrb[0].mxu0
        %5579 = vdwg.mxu0
        %v5580 = vadd.f32 %v5332, %v5494
        %v5581 = vadd.f32 %v5334, %v5496
        %v5582 = vadd.f32 %v5413, %v5575
        %v5583 = vmax.f32 %v5091, %v5580
        %v5584 = vmax.f32 %v5092, %v5581
        %v5585 = vmax.f32 %v5093, %v5582
        %v5586 = vld [vmem:[%s8] sm:$0x7]
        %v5588 = vlaneseq
        %v5589 = vshrl.u32 %v5588, 7
        %v5590 = vsub.s32 0, %v5589
        %v5591 = vrot.slane %v5586, %v5590
        %v5592 = vlaneseq
        %v5593 = vshrl.u32 %v5592, 7
        %v5594 = vsub.s32 1, %v5593
        %v5595 = vrot.slane %v5586, %v5594
        %v5596 = vlaneseq
        %v5597 = vshrl.u32 %v5596, 7
        %v5598 = vsub.s32 2, %v5597
        %v5599 = vrot.slane %v5586, %v5598
        %v5603 = vadd.f32 %v5583, %v5591
        %v5604 = vadd.f32 %v5584, %v5595
        %v5605 = vadd.f32 %v5585, %v5599
        %v5606 = vmax.f32 %v5603, 0.0
        %v5607 = vmax.f32 %v5604, 0.0
        %v5608 = vmax.f32 %v5605, 0.0
        %v5609 = vpack.c.bf16 %v5606, %v5606
        %v5610 = vpack.c.bf16 %v5607, %v5607
        %v5611 = vpack.c.bf16 %v5608, %v5608
        %v5615 = vunpack.c.l.b16 %v5609
        %v5616 = vunpack.c.l.b16 %v5610
        %v5617 = vunpack.c.l.b16 %v5611
        %v5618 = vpack.c.b16 %v5616, %v5615
        %v5619 = vpack.c.b16 %v5617, %v5617
        %vm5622 = vcmask 1043456
        %vm5623 = vsmask.f32 3328
        %vm5624 = vmand %vm5622, %vm5623
        %vm5625 = vcmask 1047556
        %vm5626 = vsmask.f32 7424
        %vm5627 = vmand %vm5625, %vm5626
        %vm5628 = vmor %vm5627, %vm5624
        %v5629 = vld [vmem:[%s396] sm:$0xff]
        %v5630 = vsel %vm5628, %v5618, %v5629
        %5631 = vst [vmem:[%s396] sm:$0xff] %v5630
        %vm5632 = vcmask 519168
        %vm5633 = vmand %vm5632, %vm5623
        %v5634 = vld [vmem:[%s396 + $0x8] sm:$0xf]
        %v5635 = vsel %vm5633, %v5619, %v5634
        %5636 = vst [vmem:[%s396 + $0x8] sm:$0xf] %v5635
        %p5637 = scmp.lt.s32.totalorder %s22, 1
        %s5638 = scalar_select %p5637, %s22, 1
        %s5639 = smul.addr %s5638, 3
        %s5640 = smul.addr %s5639, 4
        %s5641 = scalar_lea.vmem %s9, %s5640
        // Predicated region
        $region69: #{basic_cnn_forward.4} parent=55 // pred_check
          %p5642 = pneg %p239
        $region70: #{basic_cnn_forward.4} parent=55 // pred_check_branch
          %5644 = sbr.rel (%p5642) target = $region72
        $region71: #{basic_cnn_forward.4} parent=55 // pred_region
          _
        $region72: #{basic_cnn_forward.4} parent=55 // pred_fallthru
          _
      $region56: #{basic_cnn_forward.4} parent=5 // pred_fallthru
        _
      %p5645 = scmp.le.s32.totalorder 2, %s17
      // Predicated region
      $region73: #{basic_cnn_forward.4} parent=5 // pred_check
        %p5646 = pneg %p5645
      $region74: #{basic_cnn_forward.4} parent=5 // pred_check_branch
        %5648 = sbr.rel (%p5646) target = $region76
      $region75: #{basic_cnn_forward.4} parent=5 // pred_region
        %s5649 = ssub.s32 %s17, 2
        // Predicated region
        $region77: #{basic_cnn_forward.4} parent=75 // pred_check
          %p5650 = pneg %p245
        $region78: #{basic_cnn_forward.4} parent=75 // pred_check_branch
          %5652 = sbr.rel (%p5650) target = $region80
        $region79: #{basic_cnn_forward.4} parent=75 // pred_region
          %p5653 = scmp.lt.s32.totalorder %s23, 1
          %s5654 = scalar_select %p5653, %s23, 1
          %s5655 = smul.addr %s5654, 3
          %s5656 = smul.addr %s5655, 4
          %s5657 = scalar_lea.vmem %s9, %s5656
        $region80: #{basic_cnn_forward.4} parent=75 // pred_fallthru
          _
      $region76: #{basic_cnn_forward.4} parent=5 // pred_fallthru
        _
    $region6: #{basic_cnn_forward.4} parent=1 // loop_footer
      %s21 = sadd.s32 1, %s17
    $region7: #{basic_cnn_forward.4} parent=1 // loop_footer_branch
      %16 = sbr.rel target = $region3
    $region8: #{basic_cnn_forward.4} parent=1 // loop_exit
      _
    %5658 = vsyncpa [#allocation3], 1
    %s5659 = scalar_lea.sflag [#allocation3], 1
    %5660 = vsyncpa %s5659, 1
    %5661 = vsyncpa [#allocation5], 1

</llo_original>
